<compile_context>
chip_gen: v7x
topology: tpu7x:2x2x1
jax: 0.10.0
libtpu: 0.0.40
codegen_flags: <defaults>
</compile_context>

<pallas_src>
import functools

import jax
import jax.numpy as jnp
from jax import lax
from jax.experimental import pallas as pl
from jax.experimental.pallas import tpu as pltpu


# ----------------------------------------------------------------------------
# small helpers
# ----------------------------------------------------------------------------

def _round_up(x, m):
    return ((x + m - 1) // m) * m


def _pad_to(a, shape):
    """Zero-pad 2-D array `a` up to `shape`."""
    out = jnp.zeros(shape, a.dtype)
    return out.at[tuple(slice(0, s) for s in a.shape)].set(a)


# ----------------------------------------------------------------------------
# Encoder kernels: conv-matmul + ReLU + global-avg-pool   (per image, grid=(N,))
#                  batched fc + ReLU                       (one matmul)
# ----------------------------------------------------------------------------

def _encoder_conv_kernel(p_ref, cw_ref, cb_ref, pooled_ref, *, s_count):
    # p_ref     : (1, S, Kp) bf16 im2col patches for one image
    # cw_ref    : (Kp, Cp)   bf16 flattened conv weight
    # cb_ref    : (1, Cp)    f32  conv bias
    # pooled_ref: (1, 1, Cp) f32  global-average-pooled activations
    conv = jnp.dot(p_ref[0], cw_ref[...],
                   preferred_element_type=jnp.float32)            # (S, Cp) on MXU
    conv = jnp.maximum(conv + cb_ref[...], 0.0)                   # bias + ReLU
    pooled_ref[0] = (jnp.sum(conv, axis=0, keepdims=True)
                     * (1.0 / s_count)).astype(pooled_ref.dtype)  # (1, Cp) GAP


def _encoder_fc_kernel(pooled_ref, fw_ref, fb_ref, o_ref):
    # pooled_ref: (Np, Cp) bf16 pooled features (whole batch, sublane-padded)
    # fw_ref    : (Cp, Ep) bf16 fc weight (the replaced inception.fc)
    # fb_ref    : (1, Ep)  f32  fc bias
    # o_ref     : (Np, Ep) f32  embedded features
    feat = jnp.dot(pooled_ref[...], fw_ref[...],
                   preferred_element_type=jnp.float32)            # batched M=Np matmul
    o_ref[...] = jnp.maximum(feat + fb_ref[...], 0.0).astype(o_ref.dtype)


def _im2col_valid(x_nchw, kh, kw):
    """x: (N, C, H, W) -> (N, OH*OW, C*kh*kw) with (C, kh, kw) row-major flattening."""
    N, C, H, W = x_nchw.shape
    oh, ow = H - kh + 1, W - kw + 1
    cols = []
    for i in range(kh):
        for j in range(kw):
            cols.append(x_nchw[:, :, i:i + oh, j:j + ow])         # (N, C, oh, ow)
    p = jnp.stack(cols, axis=2)                                   # (N, C, kh*kw, oh, ow)
    p = p.reshape(N, C * kh * kw, oh * ow)
    p = jnp.transpose(p, (0, 2, 1))                               # (N, S, C*kh*kw)
    return p, oh, ow


def encoder_forward(params, images):
    """EncoderCNN.forward: backbone stand-in -> fc -> ReLU -> dropout(identity)."""
    N = images.shape[0]
    cw = params["conv_w"]                                         # (Cout, Cin, kh, kw)
    cout, cin, kh, kw = cw.shape
    embed = params["fc_w"].shape[0]

    # TODO(synk): at real image sizes the patch extraction should be an
    # in-kernel gather from a (C,H,W) VMEM tile instead of wrapper-side im2col;
    # the 27->128 lane padding is accepted here because real Inception K >= 128.
    patches, oh, ow_ = _im2col_valid(images, kh, kw)              # (N, S, K)
    S = oh * ow_
    K = cin * kh * kw
    kp = _round_up(K, 128)
    cp = _round_up(cout, 128)
    ep = _round_up(embed, 128)
    np_ = _round_up(N, 8)

    p_pad = jnp.zeros((N, S, kp), jnp.float32)
    p_pad = p_pad.at[:, :, :K].set(patches).astype(jnp.bfloat16)
    cw_pad = _pad_to(jnp.transpose(cw.reshape(cout, K)), (kp, cp)).astype(jnp.bfloat16)
    cb_pad = _pad_to(params["conv_b"].reshape(1, cout), (1, cp))

    # Stage 1: per-image conv + ReLU + GAP.  grid=(N,) is "parallel" so on v7x
    # it shards across both TensorCores (>= 2 grid steps at this batch size).
    pooled = pl.pallas_call(
        functools.partial(_encoder_conv_kernel, s_count=S),
        out_shape=jax.ShapeDtypeStruct((N, 1, cp), jnp.float32),
        grid=(N,),
        in_specs=[
            pl.BlockSpec((1, S, kp), lambda n: (n, 0, 0)),
            pl.BlockSpec((kp, cp), lambda n: (0, 0)),
            pl.BlockSpec((1, cp), lambda n: (0, 0)),
        ],
        out_specs=pl.BlockSpec((1, 1, cp), lambda n: (n, 0, 0)),
        compiler_params=pltpu.CompilerParams(
            dimension_semantics=("parallel",),
            vmem_limit_bytes=32 * 1024 * 1024,
        ),
    )(p_pad, cw_pad, cb_pad)

    # Stage 2: one batched fc matmul for all images (no M=1 MXU drains).
    pooled_pad = jnp.zeros((np_, cp), jnp.float32)
    pooled_pad = pooled_pad.at[:N].set(pooled.reshape(N, cp)).astype(jnp.bfloat16)
    fw_pad = _pad_to(jnp.transpose(params["fc_w"]), (cp, ep)).astype(jnp.bfloat16)
    fb_pad = _pad_to(params["fc_b"].reshape(1, embed), (1, ep))

    vmem = pl.BlockSpec(memory_space=pltpu.MemorySpace.VMEM)
    feat = pl.pallas_call(
        _encoder_fc_kernel,
        out_shape=jax.ShapeDtypeStruct((np_, ep), jnp.float32),
        in_specs=[vmem] * 3,
        out_specs=vmem,
    )(pooled_pad, fw_pad, fb_pad)

    # dropout(p=0.5): identity in inference mode
    return feat[:N, :embed]                                       # (N, embed)


# ----------------------------------------------------------------------------
# Decoder kernel 1: fused multi-layer LSTM recurrence (single pallas_call)
# ----------------------------------------------------------------------------

def _lstm_kernel(x_ref, wih_ref, whh_ref, b_ref, hseq_ref, gates_sc,
                 *, num_layers, hp, t_len, bp):
    # x_ref   : (T*Bp, Hp)     bf16 input sequence (features @ t=0 + embeddings)
    # wih_ref : (L, Hp, 4*Hp)  bf16 stacked input-to-hidden weights ([i,f,o,g] layout)
    # whh_ref : (L, Hp, 4*Hp)  bf16 stacked hidden-to-hidden weights
    # b_ref   : (L, 1, 4*Hp)   f32  stacked fused biases (b_ih + b_hh)
    # hseq_ref: (T*Bp, Hp)     bf16 output: last layer's hidden sequence
    # gates_sc: (T*Bp, 4*Hp)   f32  scratch: hoisted input projection + bias
    #
    # Padded-lane invariant: weights/biases are 0 in all padded lanes and h/c
    # start at 0, so tanh(0)=0 keeps the padded lanes of h and c exactly 0
    # through the recurrence (sigmoid(0)=0.5 in padded i/f/o lanes is
    # neutralized by g=0 / c=0).  Do NOT introduce nonzero initial state or
    # bias in padded lanes without revisiting this.
    for layer in range(num_layers):
        # Hoisted input projection with the bias folded in: one big MXU matmul
        # + ONE (1,4Hp)->(T*Bp,4Hp) broadcast per layer (none inside the loop).
        x2d = x_ref[...] if layer == 0 else hseq_ref[...]          # bf16 (T*Bp, Hp)
        gates_sc[...] = (jnp.dot(x2d, wih_ref[layer],
                                 preferred_element_type=jnp.float32)
                         + b_ref[layer])                           # (T*Bp, 4Hp) f32

        # TODO(synk): per review, W_hh could be pinned in the MXU across the
        # time loop via pltpu.matmul_push_rhs / matmul_acc_lhs / matmul_pop;
        # skipped here because (Hp, 4Hp) spans multiple MXU tiles and the
        # explicit-MXU path is not portably shaped across v5e/v6e/v7x.
        def step(t, carry):
            h_bf, c = carry                                        # h bf16, c f32 (vregs)
            base = t * bp                                          # 8-aligned row offset
            g = (gates_sc[pl.ds(base, bp), :]
                 + jnp.dot(h_bf, whh_ref[layer],
                           preferred_element_type=jnp.float32))    # (Bp, 4Hp) f32
            # Packed gate order [i, f, o, g]: one contiguous sigmoid slice,
            # one tanh slice (2 EUP activations per step instead of 4).
            sig = jax.nn.sigmoid(g[:, :3 * hp])                    # (Bp, 3Hp)
            g_gate = jnp.tanh(g[:, 3 * hp:])                       # (Bp, Hp)
            c_new = sig[:, hp:2 * hp] * c + sig[:, :hp] * g_gate   # f32 cell state
            h_new = sig[:, 2 * hp:3 * hp] * jnp.tanh(c_new)
            h_bf_new = h_new.astype(jnp.bfloat16)                  # single cast; reused
            hseq_ref[pl.ds(base, bp), :] = h_bf_new                # lane-dense bf16 store
            return h_bf_new, c_new

        # T*L = 18 unrolled steps at these shapes -- small enough for full
        # unroll.  Switch to unroll=2..4 (or a grid axis) once T or Hp grows,
        # to keep live ranges bounded and avoid vreg spills.
        lax.fori_loop(0, t_len, step,
                      (jnp.zeros((bp, hp), jnp.bfloat16),
                       jnp.zeros((bp, hp), jnp.float32)),
                      unroll=True)


# ----------------------------------------------------------------------------
# Decoder kernel 2: vocab projection, gridded over vocab tiles
# ----------------------------------------------------------------------------

def _vocab_proj_kernel(h_ref, ow_ref, ob_ref, o_ref):
    # h_ref : (T*Bp, Hp) bf16  last-layer hidden sequence (resident across grid)
    # ow_ref: (Hp, Vn)   bf16  vocab-projection weight tile
    # ob_ref: (1, Vn)    f32   vocab-projection bias tile
    # o_ref : (T*Bp, Vn) f32   logits tile (lane-dense multiple-of-128 stores)
    o_ref[...] = (jnp.dot(h_ref[...], ow_ref[...],
                          preferred_element_type=jnp.float32)
                  + ob_ref[...]).astype(o_ref.dtype)


# ----------------------------------------------------------------------------
# Decoder packing + wrapper
# ----------------------------------------------------------------------------

# PyTorch LSTM gate chunks are ordered (i, f, g, o); we repack columns so the
# three sigmoid gates are contiguous: packed slot order is (i, f, o, g).
_GATE_SLOT = (0, 1, 3, 2)


def _pack_lstm_weights(lstm_params, hidden, hp):
    """Stack per-layer LSTM weights into lane-aligned, zero-padded slabs.

    Returns wih (L, Hp, 4Hp) bf16, whh (L, Hp, 4Hp) bf16, bias (L, 1, 4Hp) f32,
    with columns laid out as [i | f | o | g], each gate in its own 128-lane
    aligned Hp-wide chunk.  Padded lanes are exactly 0 (see kernel invariant).
    """
    L = len(lstm_params)
    G = 4 * hp
    wih = jnp.zeros((L, hp, G), jnp.float32)
    whh = jnp.zeros((L, hp, G), jnp.float32)
    bias = jnp.zeros((L, 1, G), jnp.float32)
    for l, (w_ih, w_hh, b_ih, b_hh) in enumerate(lstm_params):
        din = w_ih.shape[1]
        b = b_ih + b_hh
        for g in range(4):
            s = _GATE_SLOT[g]
            wih = wih.at[l, :din, s * hp:s * hp + hidden].set(
                jnp.transpose(w_ih[g * hidden:(g + 1) * hidden, :]))
            whh = whh.at[l, :hidden, s * hp:s * hp + hidden].set(
                jnp.transpose(w_hh[g * hidden:(g + 1) * hidden, :]))
            bias = bias.at[l, 0, s * hp:s * hp + hidden].set(
                b[g * hidden:(g + 1) * hidden])
    return wih.astype(jnp.bfloat16), whh.astype(jnp.bfloat16), bias


def decoder_forward(params, features, captions, *, hidden_size):
    """DecoderRNN.forward = fused LSTM recurrence kernel + gridded vocab projection."""
    vocab_size, embed_size = params["embed"].shape
    t_cap, B = captions.shape
    T = t_cap + 1
    num_layers = len(params["lstm"])

    # Unified padded feature/hidden width (lane-aligned), padded batch (sublanes).
    hp = max(_round_up(embed_size, 128), _round_up(hidden_size, 128))
    vp = _round_up(vocab_size, 128)
    bp = _round_up(B, 8)
    G = 4 * hp

    # Embedding gather + dropout(identity) + features as timestep 0 (wrapper glue).
    emb = params["embed"][captions]                               # (T_cap, B, E)
    x = jnp.concatenate([features[None, :, :], emb], axis=0)      # (T, B, E)
    x_pad = jnp.zeros((T, bp, hp), jnp.float32)
    x_pad = x_pad.at[:, :B, :embed_size].set(x)
    x2d = x_pad.reshape(T * bp, hp).astype(jnp.bfloat16)

    wih, whh, bias = _pack_lstm_weights(params["lstm"], hidden_size, hp)
    ow = _pad_to(jnp.transpose(params["out_w"]), (hp, vp)).astype(jnp.bfloat16)
    ob = _pad_to(params["out_b"].reshape(1, vocab_size), (1, vp))

    # Kernel 1: multi-layer LSTM recurrence, everything VMEM-resident.
    vmem = pl.BlockSpec(memory_space=pltpu.MemorySpace.VMEM)
    hseq = pl.pallas_call(
        functools.partial(_lstm_kernel, num_layers=num_layers, hp=hp,
                          t_len=T, bp=bp),
        out_shape=jax.ShapeDtypeStruct((T * bp, hp), jnp.bfloat16),
        in_specs=[vmem] * 4,
        out_specs=vmem,
        scratch_shapes=[pltpu.VMEM((T * bp, G), jnp.float32)],    # hoisted gates
        compiler_params=pltpu.CompilerParams(vmem_limit_bytes=32 * 1024 * 1024),
    )(x2d, wih, whh, bias)

    # Kernel 2: vocab projection, gridded over vocab tiles so it (a) never
    # holds the whole (Hp,Vp)/(T*Bp,Vp) slabs resident at real vocab scale,
    # (b) shards across both v7x TensorCores, (c) auto-pipelines the weight
    # fetch via BlockSpec.  hseq round trip is only T*Bp*Hp bf16.
    vn = next(c for c in (512, 256, 128) if vp % c == 0)
    logits = pl.pallas_call(
        _vocab_proj_kernel,
        out_shape=jax.ShapeDtypeStruct((T * bp, vp), jnp.float32),
        grid=(vp // vn,),
        in_specs=[
            pl.BlockSpec((T * bp, hp), lambda j: (0, 0)),
            pl.BlockSpec((hp, vn), lambda j: (0, j)),
            pl.BlockSpec((1, vn), lambda j: (0, j)),
        ],
        out_specs=pl.BlockSpec((T * bp, vn), lambda j: (0, j)),
        compiler_params=pltpu.CompilerParams(
            dimension_semantics=("parallel",)),
    )(hseq, ow, ob)

    return logits.reshape(T, bp, vp)[:, :B, :vocab_size]          # (T, B, vocab)


# ----------------------------------------------------------------------------
# CNNtoRNN forward + parameter init + pure-JAX reference
# ----------------------------------------------------------------------------

def cnn_to_rnn_forward(params, images, captions, *, hidden_size):
    features = encoder_forward(params, images)
    return decoder_forward(params, features, captions, hidden_size=hidden_size)


def reference_forward(params, images, captions, *, hidden_size):
    """Pure-JAX f32 reference mirroring the PyTorch module (eval mode)."""
    cw = params["conv_w"]
    cout, cin, kh, kw = cw.shape
    patches, _, _ = _im2col_valid(images, kh, kw)                 # (N, S, K)
    conv = jnp.einsum("nsk,ck->nsc", patches, cw.reshape(cout, -1)) + params["conv_b"]
    conv = jnp.maximum(conv, 0.0)
    pooled = conv.mean(axis=1)                                    # (N, Cout)
    feat = jnp.maximum(pooled @ params["fc_w"].T + params["fc_b"], 0.0)

    emb = params["embed"][captions]                               # (T-1, B, E)
    x = jnp.concatenate([feat[None], emb], axis=0)                # (T, B, E)
    T, B, _ = x.shape
    H = hidden_size
    seq = x
    for (w_ih, w_hh, b_ih, b_hh) in params["lstm"]:
        h = jnp.zeros((B, H), jnp.float32)
        c = jnp.zeros((B, H), jnp.float32)
        outs = []
        for t in range(T):
            g = seq[t] @ w_ih.T + h @ w_hh.T + b_ih + b_hh
            i = jax.nn.sigmoid(g[:, :H])
            f = jax.nn.sigmoid(g[:, H:2 * H])
            gg = jnp.tanh(g[:, 2 * H:3 * H])
            o = jax.nn.sigmoid(g[:, 3 * H:])
            c = f * c + i * gg
            h = o * jnp.tanh(c)
            outs.append(h)
        seq = jnp.stack(outs, axis=0)
    return jnp.einsum("tbh,vh->tbv", seq, params["out_w"]) + params["out_b"]


def init_params(key, *, embed_size, hidden_size, vocab_size, num_layers,
                in_channels, conv_channels, ksize):
    keys = jax.random.split(key, 8 + 4 * num_layers)
    ki = iter(range(len(keys)))
    scale = 0.1
    p = {}
    # Encoder (Inception stand-in): conv + fc (the replaced inception.fc)
    p["conv_w"] = scale * jax.random.normal(
        keys[next(ki)], (conv_channels, in_channels, ksize, ksize), jnp.float32)
    p["conv_b"] = scale * jax.random.normal(keys[next(ki)], (conv_channels,), jnp.float32)
    p["fc_w"] = scale * jax.random.normal(
        keys[next(ki)], (embed_size, conv_channels), jnp.float32)   # (out, in) like nn.Linear
    p["fc_b"] = scale * jax.random.normal(keys[next(ki)], (embed_size,), jnp.float32)
    # Decoder
    p["embed"] = scale * jax.random.normal(
        keys[next(ki)], (vocab_size, embed_size), jnp.float32)
    p["lstm"] = []
    for layer in range(num_layers):
        in_dim = embed_size if layer == 0 else hidden_size
        w_ih = scale * jax.random.normal(keys[next(ki)], (4 * hidden_size, in_dim), jnp.float32)
        w_hh = scale * jax.random.normal(keys[next(ki)], (4 * hidden_size, hidden_size), jnp.float32)
        b_ih = scale * jax.random.normal(keys[next(ki)], (4 * hidden_size,), jnp.float32)
        b_hh = scale * jax.random.normal(keys[next(ki)], (4 * hidden_size,), jnp.float32)
        p["lstm"].append((w_ih, w_hh, b_ih, b_hh))
    p["out_w"] = scale * jax.random.normal(
        keys[next(ki)], (vocab_size, hidden_size), jnp.float32)     # (out, in)
    p["out_b"] = scale * jax.random.normal(keys[next(ki)], (vocab_size,), jnp.float32)
    return p


# ----------------------------------------------------------------------------
# main
# ----------------------------------------------------------------------------

if __name__ == "__main__":
    embed_size = 32
    hidden_size = 32
    vocab_size = 64
    num_layers = 2
    batch = 2
    in_channels = 3
    img_hw = 16
    seq_len = 8
    conv_channels = 8
    ksize = 3

    key = jax.random.PRNGKey(0)
    k_img, k_cap, k_par = jax.random.split(key, 3)

    images = jax.random.normal(k_img, (batch, in_channels, img_hw, img_hw), jnp.float32)
    captions = jax.random.randint(k_cap, (seq_len, batch), 0, vocab_size, jnp.int32)

    params = init_params(
        k_par,
        embed_size=embed_size, hidden_size=hidden_size, vocab_size=vocab_size,
        num_layers=num_layers, in_channels=in_channels,
        conv_channels=conv_channels, ksize=ksize,
    )

    forward = jax.jit(functools.partial(cnn_to_rnn_forward, hidden_size=hidden_size))
    outputs = forward(params, images, captions)
    outputs = jax.block_until_ready(outputs)

    assert outputs.shape == (seq_len + 1, batch, vocab_size), outputs.shape
    assert bool(jnp.all(jnp.isfinite(outputs)))

    # Tolerance check against an f32 pure-JAX reference (bf16 MXU operands +
    # f32 accumulation => small, bounded divergence from exact f32).
    ref = reference_forward(params, images, captions, hidden_size=hidden_size)
    max_err = float(jnp.max(jnp.abs(outputs - ref)))
    assert max_err < 5e-2, f"max abs error vs f32 reference: {max_err}"

    print("KERNEL_OK")
</pallas_src>

<mosaic_0001>
module attributes {stable_mosaic.version = 11 : i64} {
  func.func @_encoder_conv_kernel(%arg0: i32, %arg1: memref<1x196x128xbf16, #tpu.memory_space<vmem>>, %arg2: memref<128x128xbf16, #tpu.memory_space<vmem>>, %arg3: memref<1x128xf32, #tpu.memory_space<vmem>>, %arg4: memref<1x1x128xf32, #tpu.memory_space<vmem>>) attributes {dimension_semantics = [#tpu.dimension_semantics<parallel>], iteration_bounds = array<i64: 2>, scalar_prefetch = 0 : i64, scratch_operands = 0 : i64, tpu.core_type = #tpu.core_type<tc>, window_params = [{transform_indices = @transform_0, window_bounds = array<i64: 1, 196, 128>}, {pipeline_mode = #tpu.pipeline_mode<synchronous>, transform_indices = @transform_1, window_bounds = array<i64: 128, 128>}, {pipeline_mode = #tpu.pipeline_mode<synchronous>, transform_indices = @transform_2, window_bounds = array<i64: 1, 128>}, {transform_indices = @transform_3, window_bounds = array<i64: 1, 1, 128>}]} {
    %c0 = arith.constant 0 : index
    %c0_0 = arith.constant 0 : index
    %c0_1 = arith.constant 0 : index
    %0 = vector.load %arg1[%c0, %c0_0, %c0_1] : memref<1x196x128xbf16, #tpu.memory_space<vmem>>, vector<1x196x128xbf16>
    %1 = vector.shape_cast %0 : vector<1x196x128xbf16> to vector<196x128xbf16>
    %c0_2 = arith.constant 0 : index
    %c0_3 = arith.constant 0 : index
    %2 = vector.load %arg2[%c0_2, %c0_3] : memref<128x128xbf16, #tpu.memory_space<vmem>>, vector<128x128xbf16>
    %cst = arith.constant dense<0.000000e+00> : vector<196x128xf32>
    %3 = tpu.matmul %1, %2, %cst {dimension_numbers = #tpu.dot_dimension_numbers<[1], [0], [0], [1], [0, 0, 1, 1], [], []>} : vector<196x128xbf16>, vector<128x128xbf16>, vector<196x128xf32> -> vector<196x128xf32>
    %c0_4 = arith.constant 0 : index
    %c0_5 = arith.constant 0 : index
    %4 = vector.load %arg3[%c0_4, %c0_5] : memref<1x128xf32, #tpu.memory_space<vmem>>, vector<1x128xf32>
    %5 = vector.broadcast %4 : vector<1x128xf32> to vector<196x128xf32>
    %6 = arith.addf %3, %5 : vector<196x128xf32>
    %cst_6 = arith.constant 0.000000e+00 : f32
    %7 = vector.broadcast %cst_6 : f32 to vector<196x128xf32>
    %8 = arith.maximumf %6, %7 : vector<196x128xf32>
    %cst_7 = arith.constant dense<0.000000e+00> : vector<128xf32>
    %9 = vector.multi_reduction <add>, %8, %cst_7 [0] : vector<196x128xf32> to vector<128xf32>
    %10 = vector.shape_cast %9 : vector<128xf32> to vector<1x128xf32>
    %cst_8 = arith.constant 0.00510204071 : f32
    %11 = vector.broadcast %cst_8 : f32 to vector<1x128xf32>
    %12 = arith.mulf %10, %11 : vector<1x128xf32>
    %c0_9 = arith.constant 0 : index
    %c0_10 = arith.constant 0 : index
    %c0_11 = arith.constant 0 : index
    %13 = vector.load %arg4[%c0_9, %c0_10, %c0_11] : memref<1x1x128xf32, #tpu.memory_space<vmem>>, vector<1x1x128xf32>
    %14 = vector.shape_cast %13 : vector<1x1x128xf32> to vector<1x128xf32>
    %15 = vector.shape_cast %12 : vector<1x128xf32> to vector<1x1x128xf32>
    tpu.vector_store %arg4[%c0_9, %c0_10, %c0_11], %15 {strides = array<i32>} : memref<1x1x128xf32, #tpu.memory_space<vmem>>, vector<1x1x128xf32>,
    return
  }
  func.func @transform_0(%arg0: i32) -> (i32, i32, i32) {
    %c0_i32 = arith.constant 0 : i32
    %c0_i32_0 = arith.constant 0 : i32
    %c0_i32_1 = arith.constant 0 : i32
    return %arg0, %c0_i32, %c0_i32_0 : i32, i32, i32
  }
  func.func @transform_1(%arg0: i32) -> (i32, i32) {
    %c0_i32 = arith.constant 0 : i32
    %c0_i32_0 = arith.constant 0 : i32
    %c0_i32_1 = arith.constant 0 : i32
    return %c0_i32, %c0_i32_0 : i32, i32
  }
  func.func @transform_2(%arg0: i32) -> (i32, i32) {
    %c0_i32 = arith.constant 0 : i32
    %c0_i32_0 = arith.constant 0 : i32
    %c0_i32_1 = arith.constant 0 : i32
    return %c0_i32, %c0_i32_0 : i32, i32
  }
  func.func @transform_3(%arg0: i32) -> (i32, i32, i32) {
    %c0_i32 = arith.constant 0 : i32
    %c0_i32_0 = arith.constant 0 : i32
    %c0_i32_1 = arith.constant 0 : i32
    return %arg0, %c0_i32, %c0_i32_0 : i32, i32, i32
  }
}

module attributes {stable_mosaic.version = 11 : i64} {
  func.func @_encoder_fc_kernel(%arg0: memref<8x128xbf16, #tpu.memory_space<vmem>>, %arg1: memref<128x128xbf16, #tpu.memory_space<vmem>>, %arg2: memref<1x128xf32, #tpu.memory_space<vmem>>, %arg3: memref<8x128xf32, #tpu.memory_space<vmem>>) attributes {dimension_semantics = [], scalar_prefetch = 0 : i64, scratch_operands = 0 : i64, tpu.core_type = #tpu.core_type<tc>} {
    %c0 = arith.constant 0 : index
    %c0_0 = arith.constant 0 : index
    %0 = vector.load %arg0[%c0, %c0_0] : memref<8x128xbf16, #tpu.memory_space<vmem>>, vector<8x128xbf16>
    %c0_1 = arith.constant 0 : index
    %c0_2 = arith.constant 0 : index
    %1 = vector.load %arg1[%c0_1, %c0_2] : memref<128x128xbf16, #tpu.memory_space<vmem>>, vector<128x128xbf16>
    %cst = arith.constant dense<0.000000e+00> : vector<8x128xf32>
    %2 = tpu.matmul %0, %1, %cst {dimension_numbers = #tpu.dot_dimension_numbers<[1], [0], [0], [1], [0, 0, 1, 1], [], []>} : vector<8x128xbf16>, vector<128x128xbf16>, vector<8x128xf32> -> vector<8x128xf32>
    %c0_3 = arith.constant 0 : index
    %c0_4 = arith.constant 0 : index
    %3 = vector.load %arg2[%c0_3, %c0_4] : memref<1x128xf32, #tpu.memory_space<vmem>>, vector<1x128xf32>
    %4 = vector.broadcast %3 : vector<1x128xf32> to vector<8x128xf32>
    %5 = arith.addf %2, %4 : vector<8x128xf32>
    %cst_5 = arith.constant 0.000000e+00 : f32
    %6 = vector.broadcast %cst_5 : f32 to vector<8x128xf32>
    %7 = arith.maximumf %5, %6 : vector<8x128xf32>
    %c0_6 = arith.constant 0 : index
    %c0_7 = arith.constant 0 : index
    %8 = vector.load %arg3[%c0_6, %c0_7] : memref<8x128xf32, #tpu.memory_space<vmem>>, vector<8x128xf32>
    tpu.vector_store %arg3[%c0_6, %c0_7], %7 {strides = array<i32>} : memref<8x128xf32, #tpu.memory_space<vmem>>, vector<8x128xf32>,
    return
  }
}

module attributes {stable_mosaic.version = 11 : i64} {
  func.func @_lstm_kernel(%arg0: memref<72x128xbf16, #tpu.memory_space<vmem>>, %arg1: memref<2x128x512xbf16, #tpu.memory_space<vmem>>, %arg2: memref<2x128x512xbf16, #tpu.memory_space<vmem>>, %arg3: memref<2x1x512xf32, #tpu.memory_space<vmem>>, %arg4: memref<72x128xbf16, #tpu.memory_space<vmem>>, %arg5: memref<72x512xf32, #tpu.memory_space<vmem>>) attributes {dimension_semantics = [], scalar_prefetch = 0 : i64, scratch_operands = 1 : i64, tpu.core_type = #tpu.core_type<tc>} {
    %c0 = arith.constant 0 : index
    %c0_0 = arith.constant 0 : index
    %0 = vector.load %arg0[%c0, %c0_0] : memref<72x128xbf16, #tpu.memory_space<vmem>>, vector<72x128xbf16>
    %c0_1 = arith.constant 0 : index
    %c0_2 = arith.constant 0 : index
    %c0_3 = arith.constant 0 : index
    %1 = vector.load %arg1[%c0_1, %c0_2, %c0_3] : memref<2x128x512xbf16, #tpu.memory_space<vmem>>, vector<1x128x512xbf16>
    %2 = vector.shape_cast %1 : vector<1x128x512xbf16> to vector<128x512xbf16>
    %cst = arith.constant dense<0.000000e+00> : vector<72x512xf32>
    %3 = tpu.matmul %0, %2, %cst {dimension_numbers = #tpu.dot_dimension_numbers<[1], [0], [0], [1], [0, 0, 1, 1], [], []>} : vector<72x128xbf16>, vector<128x512xbf16>, vector<72x512xf32> -> vector<72x512xf32>
    %c0_4 = arith.constant 0 : index
    %c0_5 = arith.constant 0 : index
    %c0_6 = arith.constant 0 : index
    %4 = vector.load %arg3[%c0_4, %c0_5, %c0_6] : memref<2x1x512xf32, #tpu.memory_space<vmem>>, vector<1x1x512xf32>
    %5 = vector.shape_cast %4 : vector<1x1x512xf32> to vector<1x512xf32>
    %6 = vector.broadcast %5 : vector<1x512xf32> to vector<72x512xf32>
    %7 = arith.addf %3, %6 : vector<72x512xf32>
    %c0_7 = arith.constant 0 : index
    %c0_8 = arith.constant 0 : index
    %8 = vector.load %arg5[%c0_7, %c0_8] : memref<72x512xf32, #tpu.memory_space<vmem>>, vector<72x512xf32>
    tpu.vector_store %arg5[%c0_7, %c0_8], %7 {strides = array<i32>} : memref<72x512xf32, #tpu.memory_space<vmem>>, vector<72x512xf32>,
    %cst_9 = arith.constant 0.000000e+00 : bf16
    %9 = vector.broadcast %cst_9 : bf16 to vector<8x128xbf16>
    %cst_10 = arith.constant 0.000000e+00 : f32
    %10 = vector.broadcast %cst_10 : f32 to vector<8x128xf32>
    %c0_i32 = arith.constant 0 : i32
    %c8_i32 = arith.constant 8 : i32
    %11 = arith.muli %c0_i32, %c8_i32 : i32
    %12 = arith.index_cast %11 : i32 to index
    %c0_11 = arith.constant 0 : index
    %13 = vector.load %arg5[%12, %c0_11] : memref<72x512xf32, #tpu.memory_space<vmem>>, vector<8x512xf32>
    %c0_12 = arith.constant 0 : index
    %c0_13 = arith.constant 0 : index
    %c0_14 = arith.constant 0 : index
    %14 = vector.load %arg2[%c0_12, %c0_13, %c0_14] : memref<2x128x512xbf16, #tpu.memory_space<vmem>>, vector<1x128x512xbf16>
    %15 = vector.shape_cast %14 : vector<1x128x512xbf16> to vector<128x512xbf16>
    %cst_15 = arith.constant dense<0.000000e+00> : vector<8x512xf32>
    %16 = tpu.matmul %9, %15, %cst_15 {dimension_numbers = #tpu.dot_dimension_numbers<[1], [0], [0], [1], [0, 0, 1, 1], [], []>} : vector<8x128xbf16>, vector<128x512xbf16>, vector<8x512xf32> -> vector<8x512xf32>
    %17 = arith.addf %13, %16 : vector<8x512xf32>
    %18 = vector.extract_strided_slice %17 {offsets = [0, 0], sizes = [8, 384], strides = [1, 1]} : vector<8x512xf32> to vector<8x384xf32>
    %19 = arith.negf %18 : vector<8x384xf32>
    %20 = math.exp %19 : vector<8x384xf32>
    %cst_16 = arith.constant 1.000000e+00 : f32
    %21 = vector.broadcast %cst_16 : f32 to vector<8x384xf32>
    %22 = arith.addf %21, %20 : vector<8x384xf32>
    %23 = arith.divf %21, %22 : vector<8x384xf32>
    %24 = vector.extract_strided_slice %17 {offsets = [0, 384], sizes = [8, 128], strides = [1, 1]} : vector<8x512xf32> to vector<8x128xf32>
    %25 = math.tanh %24 : vector<8x128xf32>
    %26 = vector.extract_strided_slice %23 {offsets = [0, 128], sizes = [8, 128], strides = [1, 1]} : vector<8x384xf32> to vector<8x128xf32>
    %27 = arith.mulf %26, %10 : vector<8x128xf32>
    %28 = vector.extract_strided_slice %23 {offsets = [0, 0], sizes = [8, 128], strides = [1, 1]} : vector<8x384xf32> to vector<8x128xf32>
    %29 = arith.mulf %28, %25 : vector<8x128xf32>
    %30 = arith.addf %27, %29 : vector<8x128xf32>
    %31 = vector.extract_strided_slice %23 {offsets = [0, 256], sizes = [8, 128], strides = [1, 1]} : vector<8x384xf32> to vector<8x128xf32>
    %32 = math.tanh %30 : vector<8x128xf32>
    %33 = arith.mulf %31, %32 : vector<8x128xf32>
    %34 = arith.truncf %33 : vector<8x128xf32> to vector<8x128xbf16>
    %35 = arith.index_cast %11 : i32 to index
    %c0_17 = arith.constant 0 : index
    %36 = vector.load %arg4[%35, %c0_17] : memref<72x128xbf16, #tpu.memory_space<vmem>>, vector<8x128xbf16>
    tpu.vector_store %arg4[%35, %c0_17], %34 {strides = array<i32>} : memref<72x128xbf16, #tpu.memory_space<vmem>>, vector<8x128xbf16>,
    %c1_i32 = arith.constant 1 : i32
    %c8_i32_18 = arith.constant 8 : i32
    %37 = arith.muli %c1_i32, %c8_i32_18 : i32
    %38 = arith.index_cast %37 : i32 to index
    %c0_19 = arith.constant 0 : index
    %39 = vector.load %arg5[%38, %c0_19] : memref<72x512xf32, #tpu.memory_space<vmem>>, vector<8x512xf32>
    %c0_20 = arith.constant 0 : index
    %c0_21 = arith.constant 0 : index
    %c0_22 = arith.constant 0 : index
    %40 = vector.load %arg2[%c0_20, %c0_21, %c0_22] : memref<2x128x512xbf16, #tpu.memory_space<vmem>>, vector<1x128x512xbf16>
    %41 = vector.shape_cast %40 : vector<1x128x512xbf16> to vector<128x512xbf16>
    %cst_23 = arith.constant dense<0.000000e+00> : vector<8x512xf32>
    %42 = tpu.matmul %34, %41, %cst_23 {dimension_numbers = #tpu.dot_dimension_numbers<[1], [0], [0], [1], [0, 0, 1, 1], [], []>} : vector<8x128xbf16>, vector<128x512xbf16>, vector<8x512xf32> -> vector<8x512xf32>
    %43 = arith.addf %39, %42 : vector<8x512xf32>
    %44 = vector.extract_strided_slice %43 {offsets = [0, 0], sizes = [8, 384], strides = [1, 1]} : vector<8x512xf32> to vector<8x384xf32>
    %45 = arith.negf %44 : vector<8x384xf32>
    %46 = math.exp %45 : vector<8x384xf32>
    %cst_24 = arith.constant 1.000000e+00 : f32
    %47 = vector.broadcast %cst_24 : f32 to vector<8x384xf32>
    %48 = arith.addf %47, %46 : vector<8x384xf32>
    %49 = arith.divf %47, %48 : vector<8x384xf32>
    %50 = vector.extract_strided_slice %43 {offsets = [0, 384], sizes = [8, 128], strides = [1, 1]} : vector<8x512xf32> to vector<8x128xf32>
    %51 = math.tanh %50 : vector<8x128xf32>
    %52 = vector.extract_strided_slice %49 {offsets = [0, 128], sizes = [8, 128], strides = [1, 1]} : vector<8x384xf32> to vector<8x128xf32>
    %53 = arith.mulf %52, %30 : vector<8x128xf32>
    %54 = vector.extract_strided_slice %49 {offsets = [0, 0], sizes = [8, 128], strides = [1, 1]} : vector<8x384xf32> to vector<8x128xf32>
    %55 = arith.mulf %54, %51 : vector<8x128xf32>
    %56 = arith.addf %53, %55 : vector<8x128xf32>
    %57 = vector.extract_strided_slice %49 {offsets = [0, 256], sizes = [8, 128], strides = [1, 1]} : vector<8x384xf32> to vector<8x128xf32>
    %58 = math.tanh %56 : vector<8x128xf32>
    %59 = arith.mulf %57, %58 : vector<8x128xf32>
    %60 = arith.truncf %59 : vector<8x128xf32> to vector<8x128xbf16>
    %61 = arith.index_cast %37 : i32 to index
    %c0_25 = arith.constant 0 : index
    %62 = vector.load %arg4[%61, %c0_25] : memref<72x128xbf16, #tpu.memory_space<vmem>>, vector<8x128xbf16>
    tpu.vector_store %arg4[%61, %c0_25], %60 {strides = array<i32>} : memref<72x128xbf16, #tpu.memory_space<vmem>>, vector<8x128xbf16>,
    %c2_i32 = arith.constant 2 : i32
    %c8_i32_26 = arith.constant 8 : i32
    %63 = arith.muli %c2_i32, %c8_i32_26 : i32
    %64 = arith.index_cast %63 : i32 to index
    %c0_27 = arith.constant 0 : index
    %65 = vector.load %arg5[%64, %c0_27] : memref<72x512xf32, #tpu.memory_space<vmem>>, vector<8x512xf32>
    %c0_28 = arith.constant 0 : index
    %c0_29 = arith.constant 0 : index
    %c0_30 = arith.constant 0 : index
    %66 = vector.load %arg2[%c0_28, %c0_29, %c0_30] : memref<2x128x512xbf16, #tpu.memory_space<vmem>>, vector<1x128x512xbf16>
    %67 = vector.shape_cast %66 : vector<1x128x512xbf16> to vector<128x512xbf16>
    %cst_31 = arith.constant dense<0.000000e+00> : vector<8x512xf32>
    %68 = tpu.matmul %60, %67, %cst_31 {dimension_numbers = #tpu.dot_dimension_numbers<[1], [0], [0], [1], [0, 0, 1, 1], [], []>} : vector<8x128xbf16>, vector<128x512xbf16>, vector<8x512xf32> -> vector<8x512xf32>
    %69 = arith.addf %65, %68 : vector<8x512xf32>
    %70 = vector.extract_strided_slice %69 {offsets = [0, 0], sizes = [8, 384], strides = [1, 1]} : vector<8x512xf32> to vector<8x384xf32>
    %71 = arith.negf %70 : vector<8x384xf32>
    %72 = math.exp %71 : vector<8x384xf32>
    %cst_32 = arith.constant 1.000000e+00 : f32
    %73 = vector.broadcast %cst_32 : f32 to vector<8x384xf32>
    %74 = arith.addf %73, %72 : vector<8x384xf32>
    %75 = arith.divf %73, %74 : vector<8x384xf32>
    %76 = vector.extract_strided_slice %69 {offsets = [0, 384], sizes = [8, 128], strides = [1, 1]} : vector<8x512xf32> to vector<8x128xf32>
    %77 = math.tanh %76 : vector<8x128xf32>
    %78 = vector.extract_strided_slice %75 {offsets = [0, 128], sizes = [8, 128], strides = [1, 1]} : vector<8x384xf32> to vector<8x128xf32>
    %79 = arith.mulf %78, %56 : vector<8x128xf32>
    %80 = vector.extract_strided_slice %75 {offsets = [0, 0], sizes = [8, 128], strides = [1, 1]} : vector<8x384xf32> to vector<8x128xf32>
    %81 = arith.mulf %80, %77 : vector<8x128xf32>
    %82 = arith.addf %79, %81 : vector<8x128xf32>
    %83 = vector.extract_strided_slice %75 {offsets = [0, 256], sizes = [8, 128], strides = [1, 1]} : vector<8x384xf32> to vector<8x128xf32>
    %84 = math.tanh %82 : vector<8x128xf32>
    %85 = arith.mulf %83, %84 : vector<8x128xf32>
    %86 = arith.truncf %85 : vector<8x128xf32> to vector<8x128xbf16>
    %87 = arith.index_cast %63 : i32 to index
    %c0_33 = arith.constant 0 : index
    %88 = vector.load %arg4[%87, %c0_33] : memref<72x128xbf16, #tpu.memory_space<vmem>>, vector<8x128xbf16>
    tpu.vector_store %arg4[%87, %c0_33], %86 {strides = array<i32>} : memref<72x128xbf16, #tpu.memory_space<vmem>>, vector<8x128xbf16>,
    %c3_i32 = arith.constant 3 : i32
    %c8_i32_34 = arith.constant 8 : i32
    %89 = arith.muli %c3_i32, %c8_i32_34 : i32
    %90 = arith.index_cast %89 : i32 to index
    %c0_35 = arith.constant 0 : index
    %91 = vector.load %arg5[%90, %c0_35] : memref<72x512xf32, #tpu.memory_space<vmem>>, vector<8x512xf32>
    %c0_36 = arith.constant 0 : index
    %c0_37 = arith.constant 0 : index
    %c0_38 = arith.constant 0 : index
    %92 = vector.load %arg2[%c0_36, %c0_37, %c0_38] : memref<2x128x512xbf16, #tpu.memory_space<vmem>>, vector<1x128x512xbf16>
    %93 = vector.shape_cast %92 : vector<1x128x512xbf16> to vector<128x512xbf16>
    %cst_39 = arith.constant dense<0.000000e+00> : vector<8x512xf32>
    %94 = tpu.matmul %86, %93, %cst_39 {dimension_numbers = #tpu.dot_dimension_numbers<[1], [0], [0], [1], [0, 0, 1, 1], [], []>} : vector<8x128xbf16>, vector<128x512xbf16>, vector<8x512xf32> -> vector<8x512xf32>
    %95 = arith.addf %91, %94 : vector<8x512xf32>
    %96 = vector.extract_strided_slice %95 {offsets = [0, 0], sizes = [8, 384], strides = [1, 1]} : vector<8x512xf32> to vector<8x384xf32>
    %97 = arith.negf %96 : vector<8x384xf32>
    %98 = math.exp %97 : vector<8x384xf32>
    %cst_40 = arith.constant 1.000000e+00 : f32
    %99 = vector.broadcast %cst_40 : f32 to vector<8x384xf32>
    %100 = arith.addf %99, %98 : vector<8x384xf32>
    %101 = arith.divf %99, %100 : vector<8x384xf32>
    %102 = vector.extract_strided_slice %95 {offsets = [0, 384], sizes = [8, 128], strides = [1, 1]} : vector<8x512xf32> to vector<8x128xf32>
    %103 = math.tanh %102 : vector<8x128xf32>
    %104 = vector.extract_strided_slice %101 {offsets = [0, 128], sizes = [8, 128], strides = [1, 1]} : vector<8x384xf32> to vector<8x128xf32>
    %105 = arith.mulf %104, %82 : vector<8x128xf32>
    %106 = vector.extract_strided_slice %101 {offsets = [0, 0], sizes = [8, 128], strides = [1, 1]} : vector<8x384xf32> to vector<8x128xf32>
    %107 = arith.mulf %106, %103 : vector<8x128xf32>
    %108 = arith.addf %105, %107 : vector<8x128xf32>
    %109 = vector.extract_strided_slice %101 {offsets = [0, 256], sizes = [8, 128], strides = [1, 1]} : vector<8x384xf32> to vector<8x128xf32>
    %110 = math.tanh %108 : vector<8x128xf32>
    %111 = arith.mulf %109, %110 : vector<8x128xf32>
    %112 = arith.truncf %111 : vector<8x128xf32> to vector<8x128xbf16>
    %113 = arith.index_cast %89 : i32 to index
    %c0_41 = arith.constant 0 : index
    %114 = vector.load %arg4[%113, %c0_41] : memref<72x128xbf16, #tpu.memory_space<vmem>>, vector<8x128xbf16>
    tpu.vector_store %arg4[%113, %c0_41], %112 {strides = array<i32>} : memref<72x128xbf16, #tpu.memory_space<vmem>>, vector<8x128xbf16>,
    %c4_i32 = arith.constant 4 : i32
    %c8_i32_42 = arith.constant 8 : i32
    %115 = arith.muli %c4_i32, %c8_i32_42 : i32
    %116 = arith.index_cast %115 : i32 to index
    %c0_43 = arith.constant 0 : index
    %117 = vector.load %arg5[%116, %c0_43] : memref<72x512xf32, #tpu.memory_space<vmem>>, vector<8x512xf32>
    %c0_44 = arith.constant 0 : index
    %c0_45 = arith.constant 0 : index
    %c0_46 = arith.constant 0 : index
    %118 = vector.load %arg2[%c0_44, %c0_45, %c0_46] : memref<2x128x512xbf16, #tpu.memory_space<vmem>>, vector<1x128x512xbf16>
    %119 = vector.shape_cast %118 : vector<1x128x512xbf16> to vector<128x512xbf16>
    %cst_47 = arith.constant dense<0.000000e+00> : vector<8x512xf32>
    %120 = tpu.matmul %112, %119, %cst_47 {dimension_numbers = #tpu.dot_dimension_numbers<[1], [0], [0], [1], [0, 0, 1, 1], [], []>} : vector<8x128xbf16>, vector<128x512xbf16>, vector<8x512xf32> -> vector<8x512xf32>
    %121 = arith.addf %117, %120 : vector<8x512xf32>
    %122 = vector.extract_strided_slice %121 {offsets = [0, 0], sizes = [8, 384], strides = [1, 1]} : vector<8x512xf32> to vector<8x384xf32>
    %123 = arith.negf %122 : vector<8x384xf32>
    %124 = math.exp %123 : vector<8x384xf32>
    %cst_48 = arith.constant 1.000000e+00 : f32
    %125 = vector.broadcast %cst_48 : f32 to vector<8x384xf32>
    %126 = arith.addf %125, %124 : vector<8x384xf32>
    %127 = arith.divf %125, %126 : vector<8x384xf32>
    %128 = vector.extract_strided_slice %121 {offsets = [0, 384], sizes = [8, 128], strides = [1, 1]} : vector<8x512xf32> to vector<8x128xf32>
    %129 = math.tanh %128 : vector<8x128xf32>
    %130 = vector.extract_strided_slice %127 {offsets = [0, 128], sizes = [8, 128], strides = [1, 1]} : vector<8x384xf32> to vector<8x128xf32>
    %131 = arith.mulf %130, %108 : vector<8x128xf32>
    %132 = vector.extract_strided_slice %127 {offsets = [0, 0], sizes = [8, 128], strides = [1, 1]} : vector<8x384xf32> to vector<8x128xf32>
    %133 = arith.mulf %132, %129 : vector<8x128xf32>
    %134 = arith.addf %131, %133 : vector<8x128xf32>
    %135 = vector.extract_strided_slice %127 {offsets = [0, 256], sizes = [8, 128], strides = [1, 1]} : vector<8x384xf32> to vector<8x128xf32>
    %136 = math.tanh %134 : vector<8x128xf32>
    %137 = arith.mulf %135, %136 : vector<8x128xf32>
    %138 = arith.truncf %137 : vector<8x128xf32> to vector<8x128xbf16>
    %139 = arith.index_cast %115 : i32 to index
    %c0_49 = arith.constant 0 : index
    %140 = vector.load %arg4[%139, %c0_49] : memref<72x128xbf16, #tpu.memory_space<vmem>>, vector<8x128xbf16>
    tpu.vector_store %arg4[%139, %c0_49], %138 {strides = array<i32>} : memref<72x128xbf16, #tpu.memory_space<vmem>>, vector<8x128xbf16>,
    %c5_i32 = arith.constant 5 : i32
    %c8_i32_50 = arith.constant 8 : i32
    %141 = arith.muli %c5_i32, %c8_i32_50 : i32
    %142 = arith.index_cast %141 : i32 to index
    %c0_51 = arith.constant 0 : index
    %143 = vector.load %arg5[%142, %c0_51] : memref<72x512xf32, #tpu.memory_space<vmem>>, vector<8x512xf32>
    %c0_52 = arith.constant 0 : index
    %c0_53 = arith.constant 0 : index
    %c0_54 = arith.constant 0 : index
    %144 = vector.load %arg2[%c0_52, %c0_53, %c0_54] : memref<2x128x512xbf16, #tpu.memory_space<vmem>>, vector<1x128x512xbf16>
    %145 = vector.shape_cast %144 : vector<1x128x512xbf16> to vector<128x512xbf16>
    %cst_55 = arith.constant dense<0.000000e+00> : vector<8x512xf32>
    %146 = tpu.matmul %138, %145, %cst_55 {dimension_numbers = #tpu.dot_dimension_numbers<[1], [0], [0], [1], [0, 0, 1, 1], [], []>} : vector<8x128xbf16>, vector<128x512xbf16>, vector<8x512xf32> -> vector<8x512xf32>
    %147 = arith.addf %143, %146 : vector<8x512xf32>
    %148 = vector.extract_strided_slice %147 {offsets = [0, 0], sizes = [8, 384], strides = [1, 1]} : vector<8x512xf32> to vector<8x384xf32>
    %149 = arith.negf %148 : vector<8x384xf32>
    %150 = math.exp %149 : vector<8x384xf32>
    %cst_56 = arith.constant 1.000000e+00 : f32
    %151 = vector.broadcast %cst_56 : f32 to vector<8x384xf32>
    %152 = arith.addf %151, %150 : vector<8x384xf32>
    %153 = arith.divf %151, %152 : vector<8x384xf32>
    %154 = vector.extract_strided_slice %147 {offsets = [0, 384], sizes = [8, 128], strides = [1, 1]} : vector<8x512xf32> to vector<8x128xf32>
    %155 = math.tanh %154 : vector<8x128xf32>
    %156 = vector.extract_strided_slice %153 {offsets = [0, 128], sizes = [8, 128], strides = [1, 1]} : vector<8x384xf32> to vector<8x128xf32>
    %157 = arith.mulf %156, %134 : vector<8x128xf32>
    %158 = vector.extract_strided_slice %153 {offsets = [0, 0], sizes = [8, 128], strides = [1, 1]} : vector<8x384xf32> to vector<8x128xf32>
    %159 = arith.mulf %158, %155 : vector<8x128xf32>
    %160 = arith.addf %157, %159 : vector<8x128xf32>
    %161 = vector.extract_strided_slice %153 {offsets = [0, 256], sizes = [8, 128], strides = [1, 1]} : vector<8x384xf32> to vector<8x128xf32>
    %162 = math.tanh %160 : vector<8x128xf32>
    %163 = arith.mulf %161, %162 : vector<8x128xf32>
    %164 = arith.truncf %163 : vector<8x128xf32> to vector<8x128xbf16>
    %165 = arith.index_cast %141 : i32 to index
    %c0_57 = arith.constant 0 : index
    %166 = vector.load %arg4[%165, %c0_57] : memref<72x128xbf16, #tpu.memory_space<vmem>>, vector<8x128xbf16>
    tpu.vector_store %arg4[%165, %c0_57], %164 {strides = array<i32>} : memref<72x128xbf16, #tpu.memory_space<vmem>>, vector<8x128xbf16>,
    %c6_i32 = arith.constant 6 : i32
    %c8_i32_58 = arith.constant 8 : i32
    %167 = arith.muli %c6_i32, %c8_i32_58 : i32
    %168 = arith.index_cast %167 : i32 to index
    %c0_59 = arith.constant 0 : index
    %169 = vector.load %arg5[%168, %c0_59] : memref<72x512xf32, #tpu.memory_space<vmem>>, vector<8x512xf32>
    %c0_60 = arith.constant 0 : index
    %c0_61 = arith.constant 0 : index
    %c0_62 = arith.constant 0 : index
    %170 = vector.load %arg2[%c0_60, %c0_61, %c0_62] : memref<2x128x512xbf16, #tpu.memory_space<vmem>>, vector<1x128x512xbf16>
    %171 = vector.shape_cast %170 : vector<1x128x512xbf16> to vector<128x512xbf16>
    %cst_63 = arith.constant dense<0.000000e+00> : vector<8x512xf32>
    %172 = tpu.matmul %164, %171, %cst_63 {dimension_numbers = #tpu.dot_dimension_numbers<[1], [0], [0], [1], [0, 0, 1, 1], [], []>} : vector<8x128xbf16>, vector<128x512xbf16>, vector<8x512xf32> -> vector<8x512xf32>
    %173 = arith.addf %169, %172 : vector<8x512xf32>
    %174 = vector.extract_strided_slice %173 {offsets = [0, 0], sizes = [8, 384], strides = [1, 1]} : vector<8x512xf32> to vector<8x384xf32>
    %175 = arith.negf %174 : vector<8x384xf32>
    %176 = math.exp %175 : vector<8x384xf32>
    %cst_64 = arith.constant 1.000000e+00 : f32
    %177 = vector.broadcast %cst_64 : f32 to vector<8x384xf32>
    %178 = arith.addf %177, %176 : vector<8x384xf32>
    %179 = arith.divf %177, %178 : vector<8x384xf32>
    %180 = vector.extract_strided_slice %173 {offsets = [0, 384], sizes = [8, 128], strides = [1, 1]} : vector<8x512xf32> to vector<8x128xf32>
    %181 = math.tanh %180 : vector<8x128xf32>
    %182 = vector.extract_strided_slice %179 {offsets = [0, 128], sizes = [8, 128], strides = [1, 1]} : vector<8x384xf32> to vector<8x128xf32>
    %183 = arith.mulf %182, %160 : vector<8x128xf32>
    %184 = vector.extract_strided_slice %179 {offsets = [0, 0], sizes = [8, 128], strides = [1, 1]} : vector<8x384xf32> to vector<8x128xf32>
    %185 = arith.mulf %184, %181 : vector<8x128xf32>
    %186 = arith.addf %183, %185 : vector<8x128xf32>
    %187 = vector.extract_strided_slice %179 {offsets = [0, 256], sizes = [8, 128], strides = [1, 1]} : vector<8x384xf32> to vector<8x128xf32>
    %188 = math.tanh %186 : vector<8x128xf32>
    %189 = arith.mulf %187, %188 : vector<8x128xf32>
    %190 = arith.truncf %189 : vector<8x128xf32> to vector<8x128xbf16>
    %191 = arith.index_cast %167 : i32 to index
    %c0_65 = arith.constant 0 : index
    %192 = vector.load %arg4[%191, %c0_65] : memref<72x128xbf16, #tpu.memory_space<vmem>>, vector<8x128xbf16>
    tpu.vector_store %arg4[%191, %c0_65], %190 {strides = array<i32>} : memref<72x128xbf16, #tpu.memory_space<vmem>>, vector<8x128xbf16>,
    %c7_i32 = arith.constant 7 : i32
    %c8_i32_66 = arith.constant 8 : i32
    %193 = arith.muli %c7_i32, %c8_i32_66 : i32
    %194 = arith.index_cast %193 : i32 to index
    %c0_67 = arith.constant 0 : index
    %195 = vector.load %arg5[%194, %c0_67] : memref<72x512xf32, #tpu.memory_space<vmem>>, vector<8x512xf32>
    %c0_68 = arith.constant 0 : index
    %c0_69 = arith.constant 0 : index
    %c0_70 = arith.constant 0 : index
    %196 = vector.load %arg2[%c0_68, %c0_69, %c0_70] : memref<2x128x512xbf16, #tpu.memory_space<vmem>>, vector<1x128x512xbf16>
    %197 = vector.shape_cast %196 : vector<1x128x512xbf16> to vector<128x512xbf16>
    %cst_71 = arith.constant dense<0.000000e+00> : vector<8x512xf32>
    %198 = tpu.matmul %190, %197, %cst_71 {dimension_numbers = #tpu.dot_dimension_numbers<[1], [0], [0], [1], [0, 0, 1, 1], [], []>} : vector<8x128xbf16>, vector<128x512xbf16>, vector<8x512xf32> -> vector<8x512xf32>
    %199 = arith.addf %195, %198 : vector<8x512xf32>
    %200 = vector.extract_strided_slice %199 {offsets = [0, 0], sizes = [8, 384], strides = [1, 1]} : vector<8x512xf32> to vector<8x384xf32>
    %201 = arith.negf %200 : vector<8x384xf32>
    %202 = math.exp %201 : vector<8x384xf32>
    %cst_72 = arith.constant 1.000000e+00 : f32
    %203 = vector.broadcast %cst_72 : f32 to vector<8x384xf32>
    %204 = arith.addf %203, %202 : vector<8x384xf32>
    %205 = arith.divf %203, %204 : vector<8x384xf32>
    %206 = vector.extract_strided_slice %199 {offsets = [0, 384], sizes = [8, 128], strides = [1, 1]} : vector<8x512xf32> to vector<8x128xf32>
    %207 = math.tanh %206 : vector<8x128xf32>
    %208 = vector.extract_strided_slice %205 {offsets = [0, 128], sizes = [8, 128], strides = [1, 1]} : vector<8x384xf32> to vector<8x128xf32>
    %209 = arith.mulf %208, %186 : vector<8x128xf32>
    %210 = vector.extract_strided_slice %205 {offsets = [0, 0], sizes = [8, 128], strides = [1, 1]} : vector<8x384xf32> to vector<8x128xf32>
    %211 = arith.mulf %210, %207 : vector<8x128xf32>
    %212 = arith.addf %209, %211 : vector<8x128xf32>
    %213 = vector.extract_strided_slice %205 {offsets = [0, 256], sizes = [8, 128], strides = [1, 1]} : vector<8x384xf32> to vector<8x128xf32>
    %214 = math.tanh %212 : vector<8x128xf32>
    %215 = arith.mulf %213, %214 : vector<8x128xf32>
    %216 = arith.truncf %215 : vector<8x128xf32> to vector<8x128xbf16>
    %217 = arith.index_cast %193 : i32 to index
    %c0_73 = arith.constant 0 : index
    %218 = vector.load %arg4[%217, %c0_73] : memref<72x128xbf16, #tpu.memory_space<vmem>>, vector<8x128xbf16>
    tpu.vector_store %arg4[%217, %c0_73], %216 {strides = array<i32>} : memref<72x128xbf16, #tpu.memory_space<vmem>>, vector<8x128xbf16>,
    %c8_i32_74 = arith.constant 8 : i32
    %c8_i32_75 = arith.constant 8 : i32
    %219 = arith.muli %c8_i32_74, %c8_i32_75 : i32
    %220 = arith.index_cast %219 : i32 to index
    %c0_76 = arith.constant 0 : index
    %221 = vector.load %arg5[%220, %c0_76] : memref<72x512xf32, #tpu.memory_space<vmem>>, vector<8x512xf32>
    %c0_77 = arith.constant 0 : index
    %c0_78 = arith.constant 0 : index
    %c0_79 = arith.constant 0 : index
    %222 = vector.load %arg2[%c0_77, %c0_78, %c0_79] : memref<2x128x512xbf16, #tpu.memory_space<vmem>>, vector<1x128x512xbf16>
    %223 = vector.shape_cast %222 : vector<1x128x512xbf16> to vector<128x512xbf16>
    %cst_80 = arith.constant dense<0.000000e+00> : vector<8x512xf32>
    %224 = tpu.matmul %216, %223, %cst_80 {dimension_numbers = #tpu.dot_dimension_numbers<[1], [0], [0], [1], [0, 0, 1, 1], [], []>} : vector<8x128xbf16>, vector<128x512xbf16>, vector<8x512xf32> -> vector<8x512xf32>
    %225 = arith.addf %221, %224 : vector<8x512xf32>
    %226 = vector.extract_strided_slice %225 {offsets = [0, 0], sizes = [8, 384], strides = [1, 1]} : vector<8x512xf32> to vector<8x384xf32>
    %227 = arith.negf %226 : vector<8x384xf32>
    %228 = math.exp %227 : vector<8x384xf32>
    %cst_81 = arith.constant 1.000000e+00 : f32
    %229 = vector.broadcast %cst_81 : f32 to vector<8x384xf32>
    %230 = arith.addf %229, %228 : vector<8x384xf32>
    %231 = arith.divf %229, %230 : vector<8x384xf32>
    %232 = vector.extract_strided_slice %225 {offsets = [0, 384], sizes = [8, 128], strides = [1, 1]} : vector<8x512xf32> to vector<8x128xf32>
    %233 = math.tanh %232 : vector<8x128xf32>
    %234 = vector.extract_strided_slice %231 {offsets = [0, 128], sizes = [8, 128], strides = [1, 1]} : vector<8x384xf32> to vector<8x128xf32>
    %235 = arith.mulf %234, %212 : vector<8x128xf32>
    %236 = vector.extract_strided_slice %231 {offsets = [0, 0], sizes = [8, 128], strides = [1, 1]} : vector<8x384xf32> to vector<8x128xf32>
    %237 = arith.mulf %236, %233 : vector<8x128xf32>
    %238 = arith.addf %235, %237 : vector<8x128xf32>
    %239 = vector.extract_strided_slice %231 {offsets = [0, 256], sizes = [8, 128], strides = [1, 1]} : vector<8x384xf32> to vector<8x128xf32>
    %240 = math.tanh %238 : vector<8x128xf32>
    %241 = arith.mulf %239, %240 : vector<8x128xf32>
    %242 = arith.truncf %241 : vector<8x128xf32> to vector<8x128xbf16>
    %243 = arith.index_cast %219 : i32 to index
    %c0_82 = arith.constant 0 : index
    %244 = vector.load %arg4[%243, %c0_82] : memref<72x128xbf16, #tpu.memory_space<vmem>>, vector<8x128xbf16>
    tpu.vector_store %arg4[%243, %c0_82], %242 {strides = array<i32>} : memref<72x128xbf16, #tpu.memory_space<vmem>>, vector<8x128xbf16>,
    %c9_i32 = arith.constant 9 : i32
    %c0_83 = arith.constant 0 : index
    %c0_84 = arith.constant 0 : index
    %245 = vector.load %arg4[%c0_83, %c0_84] : memref<72x128xbf16, #tpu.memory_space<vmem>>, vector<72x128xbf16>
    %c1 = arith.constant 1 : index
    %c0_85 = arith.constant 0 : index
    %c0_86 = arith.constant 0 : index
    %246 = vector.load %arg1[%c1, %c0_85, %c0_86] : memref<2x128x512xbf16, #tpu.memory_space<vmem>>, vector<1x128x512xbf16>
    %247 = vector.shape_cast %246 : vector<1x128x512xbf16> to vector<128x512xbf16>
    %cst_87 = arith.constant dense<0.000000e+00> : vector<72x512xf32>
    %248 = tpu.matmul %245, %247, %cst_87 {dimension_numbers = #tpu.dot_dimension_numbers<[1], [0], [0], [1], [0, 0, 1, 1], [], []>} : vector<72x128xbf16>, vector<128x512xbf16>, vector<72x512xf32> -> vector<72x512xf32>
    %c1_88 = arith.constant 1 : index
    %c0_89 = arith.constant 0 : index
    %c0_90 = arith.constant 0 : index
    %249 = vector.load %arg3[%c1_88, %c0_89, %c0_90] : memref<2x1x512xf32, #tpu.memory_space<vmem>>, vector<1x1x512xf32>
    %250 = vector.shape_cast %249 : vector<1x1x512xf32> to vector<1x512xf32>
    %251 = vector.broadcast %250 : vector<1x512xf32> to vector<72x512xf32>
    %252 = arith.addf %248, %251 : vector<72x512xf32>
    %c0_91 = arith.constant 0 : index
    %c0_92 = arith.constant 0 : index
    %253 = vector.load %arg5[%c0_91, %c0_92] : memref<72x512xf32, #tpu.memory_space<vmem>>, vector<72x512xf32>
    tpu.vector_store %arg5[%c0_91, %c0_92], %252 {strides = array<i32>} : memref<72x512xf32, #tpu.memory_space<vmem>>, vector<72x512xf32>,
    %cst_93 = arith.constant 0.000000e+00 : bf16
    %254 = vector.broadcast %cst_93 : bf16 to vector<8x128xbf16>
    %cst_94 = arith.constant 0.000000e+00 : f32
    %255 = vector.broadcast %cst_94 : f32 to vector<8x128xf32>
    %c0_i32_95 = arith.constant 0 : i32
    %c8_i32_96 = arith.constant 8 : i32
    %256 = arith.muli %c0_i32_95, %c8_i32_96 : i32
    %257 = arith.index_cast %256 : i32 to index
    %c0_97 = arith.constant 0 : index
    %258 = vector.load %arg5[%257, %c0_97] : memref<72x512xf32, #tpu.memory_space<vmem>>, vector<8x512xf32>
    %c1_98 = arith.constant 1 : index
    %c0_99 = arith.constant 0 : index
    %c0_100 = arith.constant 0 : index
    %259 = vector.load %arg2[%c1_98, %c0_99, %c0_100] : memref<2x128x512xbf16, #tpu.memory_space<vmem>>, vector<1x128x512xbf16>
    %260 = vector.shape_cast %259 : vector<1x128x512xbf16> to vector<128x512xbf16>
    %cst_101 = arith.constant dense<0.000000e+00> : vector<8x512xf32>
    %261 = tpu.matmul %254, %260, %cst_101 {dimension_numbers = #tpu.dot_dimension_numbers<[1], [0], [0], [1], [0, 0, 1, 1], [], []>} : vector<8x128xbf16>, vector<128x512xbf16>, vector<8x512xf32> -> vector<8x512xf32>
    %262 = arith.addf %258, %261 : vector<8x512xf32>
    %263 = vector.extract_strided_slice %262 {offsets = [0, 0], sizes = [8, 384], strides = [1, 1]} : vector<8x512xf32> to vector<8x384xf32>
    %264 = arith.negf %263 : vector<8x384xf32>
    %265 = math.exp %264 : vector<8x384xf32>
    %cst_102 = arith.constant 1.000000e+00 : f32
    %266 = vector.broadcast %cst_102 : f32 to vector<8x384xf32>
    %267 = arith.addf %266, %265 : vector<8x384xf32>
    %268 = arith.divf %266, %267 : vector<8x384xf32>
    %269 = vector.extract_strided_slice %262 {offsets = [0, 384], sizes = [8, 128], strides = [1, 1]} : vector<8x512xf32> to vector<8x128xf32>
    %270 = math.tanh %269 : vector<8x128xf32>
    %271 = vector.extract_strided_slice %268 {offsets = [0, 128], sizes = [8, 128], strides = [1, 1]} : vector<8x384xf32> to vector<8x128xf32>
    %272 = arith.mulf %271, %255 : vector<8x128xf32>
    %273 = vector.extract_strided_slice %268 {offsets = [0, 0], sizes = [8, 128], strides = [1, 1]} : vector<8x384xf32> to vector<8x128xf32>
    %274 = arith.mulf %273, %270 : vector<8x128xf32>
    %275 = arith.addf %272, %274 : vector<8x128xf32>
    %276 = vector.extract_strided_slice %268 {offsets = [0, 256], sizes = [8, 128], strides = [1, 1]} : vector<8x384xf32> to vector<8x128xf32>
    %277 = math.tanh %275 : vector<8x128xf32>
    %278 = arith.mulf %276, %277 : vector<8x128xf32>
    %279 = arith.truncf %278 : vector<8x128xf32> to vector<8x128xbf16>
    %280 = arith.index_cast %256 : i32 to index
    %c0_103 = arith.constant 0 : index
    %281 = vector.load %arg4[%280, %c0_103] : memref<72x128xbf16, #tpu.memory_space<vmem>>, vector<8x128xbf16>
    tpu.vector_store %arg4[%280, %c0_103], %279 {strides = array<i32>} : memref<72x128xbf16, #tpu.memory_space<vmem>>, vector<8x128xbf16>,
    %c1_i32_104 = arith.constant 1 : i32
    %c8_i32_105 = arith.constant 8 : i32
    %282 = arith.muli %c1_i32_104, %c8_i32_105 : i32
    %283 = arith.index_cast %282 : i32 to index
    %c0_106 = arith.constant 0 : index
    %284 = vector.load %arg5[%283, %c0_106] : memref<72x512xf32, #tpu.memory_space<vmem>>, vector<8x512xf32>
    %c1_107 = arith.constant 1 : index
    %c0_108 = arith.constant 0 : index
    %c0_109 = arith.constant 0 : index
    %285 = vector.load %arg2[%c1_107, %c0_108, %c0_109] : memref<2x128x512xbf16, #tpu.memory_space<vmem>>, vector<1x128x512xbf16>
    %286 = vector.shape_cast %285 : vector<1x128x512xbf16> to vector<128x512xbf16>
    %cst_110 = arith.constant dense<0.000000e+00> : vector<8x512xf32>
    %287 = tpu.matmul %279, %286, %cst_110 {dimension_numbers = #tpu.dot_dimension_numbers<[1], [0], [0], [1], [0, 0, 1, 1], [], []>} : vector<8x128xbf16>, vector<128x512xbf16>, vector<8x512xf32> -> vector<8x512xf32>
    %288 = arith.addf %284, %287 : vector<8x512xf32>
    %289 = vector.extract_strided_slice %288 {offsets = [0, 0], sizes = [8, 384], strides = [1, 1]} : vector<8x512xf32> to vector<8x384xf32>
    %290 = arith.negf %289 : vector<8x384xf32>
    %291 = math.exp %290 : vector<8x384xf32>
    %cst_111 = arith.constant 1.000000e+00 : f32
    %292 = vector.broadcast %cst_111 : f32 to vector<8x384xf32>
    %293 = arith.addf %292, %291 : vector<8x384xf32>
    %294 = arith.divf %292, %293 : vector<8x384xf32>
    %295 = vector.extract_strided_slice %288 {offsets = [0, 384], sizes = [8, 128], strides = [1, 1]} : vector<8x512xf32> to vector<8x128xf32>
    %296 = math.tanh %295 : vector<8x128xf32>
    %297 = vector.extract_strided_slice %294 {offsets = [0, 128], sizes = [8, 128], strides = [1, 1]} : vector<8x384xf32> to vector<8x128xf32>
    %298 = arith.mulf %297, %275 : vector<8x128xf32>
    %299 = vector.extract_strided_slice %294 {offsets = [0, 0], sizes = [8, 128], strides = [1, 1]} : vector<8x384xf32> to vector<8x128xf32>
    %300 = arith.mulf %299, %296 : vector<8x128xf32>
    %301 = arith.addf %298, %300 : vector<8x128xf32>
    %302 = vector.extract_strided_slice %294 {offsets = [0, 256], sizes = [8, 128], strides = [1, 1]} : vector<8x384xf32> to vector<8x128xf32>
    %303 = math.tanh %301 : vector<8x128xf32>
    %304 = arith.mulf %302, %303 : vector<8x128xf32>
    %305 = arith.truncf %304 : vector<8x128xf32> to vector<8x128xbf16>
    %306 = arith.index_cast %282 : i32 to index
    %c0_112 = arith.constant 0 : index
    %307 = vector.load %arg4[%306, %c0_112] : memref<72x128xbf16, #tpu.memory_space<vmem>>, vector<8x128xbf16>
    tpu.vector_store %arg4[%306, %c0_112], %305 {strides = array<i32>} : memref<72x128xbf16, #tpu.memory_space<vmem>>, vector<8x128xbf16>,
    %c2_i32_113 = arith.constant 2 : i32
    %c8_i32_114 = arith.constant 8 : i32
    %308 = arith.muli %c2_i32_113, %c8_i32_114 : i32
    %309 = arith.index_cast %308 : i32 to index
    %c0_115 = arith.constant 0 : index
    %310 = vector.load %arg5[%309, %c0_115] : memref<72x512xf32, #tpu.memory_space<vmem>>, vector<8x512xf32>
    %c1_116 = arith.constant 1 : index
    %c0_117 = arith.constant 0 : index
    %c0_118 = arith.constant 0 : index
    %311 = vector.load %arg2[%c1_116, %c0_117, %c0_118] : memref<2x128x512xbf16, #tpu.memory_space<vmem>>, vector<1x128x512xbf16>
    %312 = vector.shape_cast %311 : vector<1x128x512xbf16> to vector<128x512xbf16>
    %cst_119 = arith.constant dense<0.000000e+00> : vector<8x512xf32>
    %313 = tpu.matmul %305, %312, %cst_119 {dimension_numbers = #tpu.dot_dimension_numbers<[1], [0], [0], [1], [0, 0, 1, 1], [], []>} : vector<8x128xbf16>, vector<128x512xbf16>, vector<8x512xf32> -> vector<8x512xf32>
    %314 = arith.addf %310, %313 : vector<8x512xf32>
    %315 = vector.extract_strided_slice %314 {offsets = [0, 0], sizes = [8, 384], strides = [1, 1]} : vector<8x512xf32> to vector<8x384xf32>
    %316 = arith.negf %315 : vector<8x384xf32>
    %317 = math.exp %316 : vector<8x384xf32>
    %cst_120 = arith.constant 1.000000e+00 : f32
    %318 = vector.broadcast %cst_120 : f32 to vector<8x384xf32>
    %319 = arith.addf %318, %317 : vector<8x384xf32>
    %320 = arith.divf %318, %319 : vector<8x384xf32>
    %321 = vector.extract_strided_slice %314 {offsets = [0, 384], sizes = [8, 128], strides = [1, 1]} : vector<8x512xf32> to vector<8x128xf32>
    %322 = math.tanh %321 : vector<8x128xf32>
    %323 = vector.extract_strided_slice %320 {offsets = [0, 128], sizes = [8, 128], strides = [1, 1]} : vector<8x384xf32> to vector<8x128xf32>
    %324 = arith.mulf %323, %301 : vector<8x128xf32>
    %325 = vector.extract_strided_slice %320 {offsets = [0, 0], sizes = [8, 128], strides = [1, 1]} : vector<8x384xf32> to vector<8x128xf32>
    %326 = arith.mulf %325, %322 : vector<8x128xf32>
    %327 = arith.addf %324, %326 : vector<8x128xf32>
    %328 = vector.extract_strided_slice %320 {offsets = [0, 256], sizes = [8, 128], strides = [1, 1]} : vector<8x384xf32> to vector<8x128xf32>
    %329 = math.tanh %327 : vector<8x128xf32>
    %330 = arith.mulf %328, %329 : vector<8x128xf32>
    %331 = arith.truncf %330 : vector<8x128xf32> to vector<8x128xbf16>
    %332 = arith.index_cast %308 : i32 to index
    %c0_121 = arith.constant 0 : index
    %333 = vector.load %arg4[%332, %c0_121] : memref<72x128xbf16, #tpu.memory_space<vmem>>, vector<8x128xbf16>
    tpu.vector_store %arg4[%332, %c0_121], %331 {strides = array<i32>} : memref<72x128xbf16, #tpu.memory_space<vmem>>, vector<8x128xbf16>,
    %c3_i32_122 = arith.constant 3 : i32
    %c8_i32_123 = arith.constant 8 : i32
    %334 = arith.muli %c3_i32_122, %c8_i32_123 : i32
    %335 = arith.index_cast %334 : i32 to index
    %c0_124 = arith.constant 0 : index
    %336 = vector.load %arg5[%335, %c0_124] : memref<72x512xf32, #tpu.memory_space<vmem>>, vector<8x512xf32>
    %c1_125 = arith.constant 1 : index
    %c0_126 = arith.constant 0 : index
    %c0_127 = arith.constant 0 : index
    %337 = vector.load %arg2[%c1_125, %c0_126, %c0_127] : memref<2x128x512xbf16, #tpu.memory_space<vmem>>, vector<1x128x512xbf16>
    %338 = vector.shape_cast %337 : vector<1x128x512xbf16> to vector<128x512xbf16>
    %cst_128 = arith.constant dense<0.000000e+00> : vector<8x512xf32>
    %339 = tpu.matmul %331, %338, %cst_128 {dimension_numbers = #tpu.dot_dimension_numbers<[1], [0], [0], [1], [0, 0, 1, 1], [], []>} : vector<8x128xbf16>, vector<128x512xbf16>, vector<8x512xf32> -> vector<8x512xf32>
    %340 = arith.addf %336, %339 : vector<8x512xf32>
    %341 = vector.extract_strided_slice %340 {offsets = [0, 0], sizes = [8, 384], strides = [1, 1]} : vector<8x512xf32> to vector<8x384xf32>
    %342 = arith.negf %341 : vector<8x384xf32>
    %343 = math.exp %342 : vector<8x384xf32>
    %cst_129 = arith.constant 1.000000e+00 : f32
    %344 = vector.broadcast %cst_129 : f32 to vector<8x384xf32>
    %345 = arith.addf %344, %343 : vector<8x384xf32>
    %346 = arith.divf %344, %345 : vector<8x384xf32>
    %347 = vector.extract_strided_slice %340 {offsets = [0, 384], sizes = [8, 128], strides = [1, 1]} : vector<8x512xf32> to vector<8x128xf32>
    %348 = math.tanh %347 : vector<8x128xf32>
    %349 = vector.extract_strided_slice %346 {offsets = [0, 128], sizes = [8, 128], strides = [1, 1]} : vector<8x384xf32> to vector<8x128xf32>
    %350 = arith.mulf %349, %327 : vector<8x128xf32>
    %351 = vector.extract_strided_slice %346 {offsets = [0, 0], sizes = [8, 128], strides = [1, 1]} : vector<8x384xf32> to vector<8x128xf32>
    %352 = arith.mulf %351, %348 : vector<8x128xf32>
    %353 = arith.addf %350, %352 : vector<8x128xf32>
    %354 = vector.extract_strided_slice %346 {offsets = [0, 256], sizes = [8, 128], strides = [1, 1]} : vector<8x384xf32> to vector<8x128xf32>
    %355 = math.tanh %353 : vector<8x128xf32>
    %356 = arith.mulf %354, %355 : vector<8x128xf32>
    %357 = arith.truncf %356 : vector<8x128xf32> to vector<8x128xbf16>
    %358 = arith.index_cast %334 : i32 to index
    %c0_130 = arith.constant 0 : index
    %359 = vector.load %arg4[%358, %c0_130] : memref<72x128xbf16, #tpu.memory_space<vmem>>, vector<8x128xbf16>
    tpu.vector_store %arg4[%358, %c0_130], %357 {strides = array<i32>} : memref<72x128xbf16, #tpu.memory_space<vmem>>, vector<8x128xbf16>,
    %c4_i32_131 = arith.constant 4 : i32
    %c8_i32_132 = arith.constant 8 : i32
    %360 = arith.muli %c4_i32_131, %c8_i32_132 : i32
    %361 = arith.index_cast %360 : i32 to index
    %c0_133 = arith.constant 0 : index
    %362 = vector.load %arg5[%361, %c0_133] : memref<72x512xf32, #tpu.memory_space<vmem>>, vector<8x512xf32>
    %c1_134 = arith.constant 1 : index
    %c0_135 = arith.constant 0 : index
    %c0_136 = arith.constant 0 : index
    %363 = vector.load %arg2[%c1_134, %c0_135, %c0_136] : memref<2x128x512xbf16, #tpu.memory_space<vmem>>, vector<1x128x512xbf16>
    %364 = vector.shape_cast %363 : vector<1x128x512xbf16> to vector<128x512xbf16>
    %cst_137 = arith.constant dense<0.000000e+00> : vector<8x512xf32>
    %365 = tpu.matmul %357, %364, %cst_137 {dimension_numbers = #tpu.dot_dimension_numbers<[1], [0], [0], [1], [0, 0, 1, 1], [], []>} : vector<8x128xbf16>, vector<128x512xbf16>, vector<8x512xf32> -> vector<8x512xf32>
    %366 = arith.addf %362, %365 : vector<8x512xf32>
    %367 = vector.extract_strided_slice %366 {offsets = [0, 0], sizes = [8, 384], strides = [1, 1]} : vector<8x512xf32> to vector<8x384xf32>
    %368 = arith.negf %367 : vector<8x384xf32>
    %369 = math.exp %368 : vector<8x384xf32>
    %cst_138 = arith.constant 1.000000e+00 : f32
    %370 = vector.broadcast %cst_138 : f32 to vector<8x384xf32>
    %371 = arith.addf %370, %369 : vector<8x384xf32>
    %372 = arith.divf %370, %371 : vector<8x384xf32>
    %373 = vector.extract_strided_slice %366 {offsets = [0, 384], sizes = [8, 128], strides = [1, 1]} : vector<8x512xf32> to vector<8x128xf32>
    %374 = math.tanh %373 : vector<8x128xf32>
    %375 = vector.extract_strided_slice %372 {offsets = [0, 128], sizes = [8, 128], strides = [1, 1]} : vector<8x384xf32> to vector<8x128xf32>
    %376 = arith.mulf %375, %353 : vector<8x128xf32>
    %377 = vector.extract_strided_slice %372 {offsets = [0, 0], sizes = [8, 128], strides = [1, 1]} : vector<8x384xf32> to vector<8x128xf32>
    %378 = arith.mulf %377, %374 : vector<8x128xf32>
    %379 = arith.addf %376, %378 : vector<8x128xf32>
    %380 = vector.extract_strided_slice %372 {offsets = [0, 256], sizes = [8, 128], strides = [1, 1]} : vector<8x384xf32> to vector<8x128xf32>
    %381 = math.tanh %379 : vector<8x128xf32>
    %382 = arith.mulf %380, %381 : vector<8x128xf32>
    %383 = arith.truncf %382 : vector<8x128xf32> to vector<8x128xbf16>
    %384 = arith.index_cast %360 : i32 to index
    %c0_139 = arith.constant 0 : index
    %385 = vector.load %arg4[%384, %c0_139] : memref<72x128xbf16, #tpu.memory_space<vmem>>, vector<8x128xbf16>
    tpu.vector_store %arg4[%384, %c0_139], %383 {strides = array<i32>} : memref<72x128xbf16, #tpu.memory_space<vmem>>, vector<8x128xbf16>,
    %c5_i32_140 = arith.constant 5 : i32
    %c8_i32_141 = arith.constant 8 : i32
    %386 = arith.muli %c5_i32_140, %c8_i32_141 : i32
    %387 = arith.index_cast %386 : i32 to index
    %c0_142 = arith.constant 0 : index
    %388 = vector.load %arg5[%387, %c0_142] : memref<72x512xf32, #tpu.memory_space<vmem>>, vector<8x512xf32>
    %c1_143 = arith.constant 1 : index
    %c0_144 = arith.constant 0 : index
    %c0_145 = arith.constant 0 : index
    %389 = vector.load %arg2[%c1_143, %c0_144, %c0_145] : memref<2x128x512xbf16, #tpu.memory_space<vmem>>, vector<1x128x512xbf16>
    %390 = vector.shape_cast %389 : vector<1x128x512xbf16> to vector<128x512xbf16>
    %cst_146 = arith.constant dense<0.000000e+00> : vector<8x512xf32>
    %391 = tpu.matmul %383, %390, %cst_146 {dimension_numbers = #tpu.dot_dimension_numbers<[1], [0], [0], [1], [0, 0, 1, 1], [], []>} : vector<8x128xbf16>, vector<128x512xbf16>, vector<8x512xf32> -> vector<8x512xf32>
    %392 = arith.addf %388, %391 : vector<8x512xf32>
    %393 = vector.extract_strided_slice %392 {offsets = [0, 0], sizes = [8, 384], strides = [1, 1]} : vector<8x512xf32> to vector<8x384xf32>
    %394 = arith.negf %393 : vector<8x384xf32>
    %395 = math.exp %394 : vector<8x384xf32>
    %cst_147 = arith.constant 1.000000e+00 : f32
    %396 = vector.broadcast %cst_147 : f32 to vector<8x384xf32>
    %397 = arith.addf %396, %395 : vector<8x384xf32>
    %398 = arith.divf %396, %397 : vector<8x384xf32>
    %399 = vector.extract_strided_slice %392 {offsets = [0, 384], sizes = [8, 128], strides = [1, 1]} : vector<8x512xf32> to vector<8x128xf32>
    %400 = math.tanh %399 : vector<8x128xf32>
    %401 = vector.extract_strided_slice %398 {offsets = [0, 128], sizes = [8, 128], strides = [1, 1]} : vector<8x384xf32> to vector<8x128xf32>
    %402 = arith.mulf %401, %379 : vector<8x128xf32>
    %403 = vector.extract_strided_slice %398 {offsets = [0, 0], sizes = [8, 128], strides = [1, 1]} : vector<8x384xf32> to vector<8x128xf32>
    %404 = arith.mulf %403, %400 : vector<8x128xf32>
    %405 = arith.addf %402, %404 : vector<8x128xf32>
    %406 = vector.extract_strided_slice %398 {offsets = [0, 256], sizes = [8, 128], strides = [1, 1]} : vector<8x384xf32> to vector<8x128xf32>
    %407 = math.tanh %405 : vector<8x128xf32>
    %408 = arith.mulf %406, %407 : vector<8x128xf32>
    %409 = arith.truncf %408 : vector<8x128xf32> to vector<8x128xbf16>
    %410 = arith.index_cast %386 : i32 to index
    %c0_148 = arith.constant 0 : index
    %411 = vector.load %arg4[%410, %c0_148] : memref<72x128xbf16, #tpu.memory_space<vmem>>, vector<8x128xbf16>
    tpu.vector_store %arg4[%410, %c0_148], %409 {strides = array<i32>} : memref<72x128xbf16, #tpu.memory_space<vmem>>, vector<8x128xbf16>,
    %c6_i32_149 = arith.constant 6 : i32
    %c8_i32_150 = arith.constant 8 : i32
    %412 = arith.muli %c6_i32_149, %c8_i32_150 : i32
    %413 = arith.index_cast %412 : i32 to index
    %c0_151 = arith.constant 0 : index
    %414 = vector.load %arg5[%413, %c0_151] : memref<72x512xf32, #tpu.memory_space<vmem>>, vector<8x512xf32>
    %c1_152 = arith.constant 1 : index
    %c0_153 = arith.constant 0 : index
    %c0_154 = arith.constant 0 : index
    %415 = vector.load %arg2[%c1_152, %c0_153, %c0_154] : memref<2x128x512xbf16, #tpu.memory_space<vmem>>, vector<1x128x512xbf16>
    %416 = vector.shape_cast %415 : vector<1x128x512xbf16> to vector<128x512xbf16>
    %cst_155 = arith.constant dense<0.000000e+00> : vector<8x512xf32>
    %417 = tpu.matmul %409, %416, %cst_155 {dimension_numbers = #tpu.dot_dimension_numbers<[1], [0], [0], [1], [0, 0, 1, 1], [], []>} : vector<8x128xbf16>, vector<128x512xbf16>, vector<8x512xf32> -> vector<8x512xf32>
    %418 = arith.addf %414, %417 : vector<8x512xf32>
    %419 = vector.extract_strided_slice %418 {offsets = [0, 0], sizes = [8, 384], strides = [1, 1]} : vector<8x512xf32> to vector<8x384xf32>
    %420 = arith.negf %419 : vector<8x384xf32>
    %421 = math.exp %420 : vector<8x384xf32>
    %cst_156 = arith.constant 1.000000e+00 : f32
    %422 = vector.broadcast %cst_156 : f32 to vector<8x384xf32>
    %423 = arith.addf %422, %421 : vector<8x384xf32>
    %424 = arith.divf %422, %423 : vector<8x384xf32>
    %425 = vector.extract_strided_slice %418 {offsets = [0, 384], sizes = [8, 128], strides = [1, 1]} : vector<8x512xf32> to vector<8x128xf32>
    %426 = math.tanh %425 : vector<8x128xf32>
    %427 = vector.extract_strided_slice %424 {offsets = [0, 128], sizes = [8, 128], strides = [1, 1]} : vector<8x384xf32> to vector<8x128xf32>
    %428 = arith.mulf %427, %405 : vector<8x128xf32>
    %429 = vector.extract_strided_slice %424 {offsets = [0, 0], sizes = [8, 128], strides = [1, 1]} : vector<8x384xf32> to vector<8x128xf32>
    %430 = arith.mulf %429, %426 : vector<8x128xf32>
    %431 = arith.addf %428, %430 : vector<8x128xf32>
    %432 = vector.extract_strided_slice %424 {offsets = [0, 256], sizes = [8, 128], strides = [1, 1]} : vector<8x384xf32> to vector<8x128xf32>
    %433 = math.tanh %431 : vector<8x128xf32>
    %434 = arith.mulf %432, %433 : vector<8x128xf32>
    %435 = arith.truncf %434 : vector<8x128xf32> to vector<8x128xbf16>
    %436 = arith.index_cast %412 : i32 to index
    %c0_157 = arith.constant 0 : index
    %437 = vector.load %arg4[%436, %c0_157] : memref<72x128xbf16, #tpu.memory_space<vmem>>, vector<8x128xbf16>
    tpu.vector_store %arg4[%436, %c0_157], %435 {strides = array<i32>} : memref<72x128xbf16, #tpu.memory_space<vmem>>, vector<8x128xbf16>,
    %c7_i32_158 = arith.constant 7 : i32
    %c8_i32_159 = arith.constant 8 : i32
    %438 = arith.muli %c7_i32_158, %c8_i32_159 : i32
    %439 = arith.index_cast %438 : i32 to index
    %c0_160 = arith.constant 0 : index
    %440 = vector.load %arg5[%439, %c0_160] : memref<72x512xf32, #tpu.memory_space<vmem>>, vector<8x512xf32>
    %c1_161 = arith.constant 1 : index
    %c0_162 = arith.constant 0 : index
    %c0_163 = arith.constant 0 : index
    %441 = vector.load %arg2[%c1_161, %c0_162, %c0_163] : memref<2x128x512xbf16, #tpu.memory_space<vmem>>, vector<1x128x512xbf16>
    %442 = vector.shape_cast %441 : vector<1x128x512xbf16> to vector<128x512xbf16>
    %cst_164 = arith.constant dense<0.000000e+00> : vector<8x512xf32>
    %443 = tpu.matmul %435, %442, %cst_164 {dimension_numbers = #tpu.dot_dimension_numbers<[1], [0], [0], [1], [0, 0, 1, 1], [], []>} : vector<8x128xbf16>, vector<128x512xbf16>, vector<8x512xf32> -> vector<8x512xf32>
    %444 = arith.addf %440, %443 : vector<8x512xf32>
    %445 = vector.extract_strided_slice %444 {offsets = [0, 0], sizes = [8, 384], strides = [1, 1]} : vector<8x512xf32> to vector<8x384xf32>
    %446 = arith.negf %445 : vector<8x384xf32>
    %447 = math.exp %446 : vector<8x384xf32>
    %cst_165 = arith.constant 1.000000e+00 : f32
    %448 = vector.broadcast %cst_165 : f32 to vector<8x384xf32>
    %449 = arith.addf %448, %447 : vector<8x384xf32>
    %450 = arith.divf %448, %449 : vector<8x384xf32>
    %451 = vector.extract_strided_slice %444 {offsets = [0, 384], sizes = [8, 128], strides = [1, 1]} : vector<8x512xf32> to vector<8x128xf32>
    %452 = math.tanh %451 : vector<8x128xf32>
    %453 = vector.extract_strided_slice %450 {offsets = [0, 128], sizes = [8, 128], strides = [1, 1]} : vector<8x384xf32> to vector<8x128xf32>
    %454 = arith.mulf %453, %431 : vector<8x128xf32>
    %455 = vector.extract_strided_slice %450 {offsets = [0, 0], sizes = [8, 128], strides = [1, 1]} : vector<8x384xf32> to vector<8x128xf32>
    %456 = arith.mulf %455, %452 : vector<8x128xf32>
    %457 = arith.addf %454, %456 : vector<8x128xf32>
    %458 = vector.extract_strided_slice %450 {offsets = [0, 256], sizes = [8, 128], strides = [1, 1]} : vector<8x384xf32> to vector<8x128xf32>
    %459 = math.tanh %457 : vector<8x128xf32>
    %460 = arith.mulf %458, %459 : vector<8x128xf32>
    %461 = arith.truncf %460 : vector<8x128xf32> to vector<8x128xbf16>
    %462 = arith.index_cast %438 : i32 to index
    %c0_166 = arith.constant 0 : index
    %463 = vector.load %arg4[%462, %c0_166] : memref<72x128xbf16, #tpu.memory_space<vmem>>, vector<8x128xbf16>
    tpu.vector_store %arg4[%462, %c0_166], %461 {strides = array<i32>} : memref<72x128xbf16, #tpu.memory_space<vmem>>, vector<8x128xbf16>,
    %c8_i32_167 = arith.constant 8 : i32
    %c8_i32_168 = arith.constant 8 : i32
    %464 = arith.muli %c8_i32_167, %c8_i32_168 : i32
    %465 = arith.index_cast %464 : i32 to index
    %c0_169 = arith.constant 0 : index
    %466 = vector.load %arg5[%465, %c0_169] : memref<72x512xf32, #tpu.memory_space<vmem>>, vector<8x512xf32>
    %c1_170 = arith.constant 1 : index
    %c0_171 = arith.constant 0 : index
    %c0_172 = arith.constant 0 : index
    %467 = vector.load %arg2[%c1_170, %c0_171, %c0_172] : memref<2x128x512xbf16, #tpu.memory_space<vmem>>, vector<1x128x512xbf16>
    %468 = vector.shape_cast %467 : vector<1x128x512xbf16> to vector<128x512xbf16>
    %cst_173 = arith.constant dense<0.000000e+00> : vector<8x512xf32>
    %469 = tpu.matmul %461, %468, %cst_173 {dimension_numbers = #tpu.dot_dimension_numbers<[1], [0], [0], [1], [0, 0, 1, 1], [], []>} : vector<8x128xbf16>, vector<128x512xbf16>, vector<8x512xf32> -> vector<8x512xf32>
    %470 = arith.addf %466, %469 : vector<8x512xf32>
    %471 = vector.extract_strided_slice %470 {offsets = [0, 0], sizes = [8, 384], strides = [1, 1]} : vector<8x512xf32> to vector<8x384xf32>
    %472 = arith.negf %471 : vector<8x384xf32>
    %473 = math.exp %472 : vector<8x384xf32>
    %cst_174 = arith.constant 1.000000e+00 : f32
    %474 = vector.broadcast %cst_174 : f32 to vector<8x384xf32>
    %475 = arith.addf %474, %473 : vector<8x384xf32>
    %476 = arith.divf %474, %475 : vector<8x384xf32>
    %477 = vector.extract_strided_slice %470 {offsets = [0, 384], sizes = [8, 128], strides = [1, 1]} : vector<8x512xf32> to vector<8x128xf32>
    %478 = math.tanh %477 : vector<8x128xf32>
    %479 = vector.extract_strided_slice %476 {offsets = [0, 128], sizes = [8, 128], strides = [1, 1]} : vector<8x384xf32> to vector<8x128xf32>
    %480 = arith.mulf %479, %457 : vector<8x128xf32>
    %481 = vector.extract_strided_slice %476 {offsets = [0, 0], sizes = [8, 128], strides = [1, 1]} : vector<8x384xf32> to vector<8x128xf32>
    %482 = arith.mulf %481, %478 : vector<8x128xf32>
    %483 = arith.addf %480, %482 : vector<8x128xf32>
    %484 = vector.extract_strided_slice %476 {offsets = [0, 256], sizes = [8, 128], strides = [1, 1]} : vector<8x384xf32> to vector<8x128xf32>
    %485 = math.tanh %483 : vector<8x128xf32>
    %486 = arith.mulf %484, %485 : vector<8x128xf32>
    %487 = arith.truncf %486 : vector<8x128xf32> to vector<8x128xbf16>
    %488 = arith.index_cast %464 : i32 to index
    %c0_175 = arith.constant 0 : index
    %489 = vector.load %arg4[%488, %c0_175] : memref<72x128xbf16, #tpu.memory_space<vmem>>, vector<8x128xbf16>
    tpu.vector_store %arg4[%488, %c0_175], %487 {strides = array<i32>} : memref<72x128xbf16, #tpu.memory_space<vmem>>, vector<8x128xbf16>,
    %c9_i32_176 = arith.constant 9 : i32
    return
  }
}

module attributes {stable_mosaic.version = 11 : i64} {
  func.func @_vocab_proj_kernel(%arg0: i32, %arg1: memref<72x128xbf16, #tpu.memory_space<vmem>>, %arg2: memref<128x128xbf16, #tpu.memory_space<vmem>>, %arg3: memref<1x128xf32, #tpu.memory_space<vmem>>, %arg4: memref<72x128xf32, #tpu.memory_space<vmem>>) attributes {dimension_semantics = [#tpu.dimension_semantics<parallel>], iteration_bounds = array<i64: 1>, scalar_prefetch = 0 : i64, scratch_operands = 0 : i64, tpu.core_type = #tpu.core_type<tc>, window_params = [{pipeline_mode = #tpu.pipeline_mode<synchronous>, transform_indices = @transform_0, window_bounds = array<i64: 72, 128>}, {transform_indices = @transform_1, window_bounds = array<i64: 128, 128>}, {transform_indices = @transform_2, window_bounds = array<i64: 1, 128>}, {transform_indices = @transform_3, window_bounds = array<i64: 72, 128>}]} {
    %c0 = arith.constant 0 : index
    %c0_0 = arith.constant 0 : index
    %0 = vector.load %arg1[%c0, %c0_0] : memref<72x128xbf16, #tpu.memory_space<vmem>>, vector<72x128xbf16>
    %c0_1 = arith.constant 0 : index
    %c0_2 = arith.constant 0 : index
    %1 = vector.load %arg2[%c0_1, %c0_2] : memref<128x128xbf16, #tpu.memory_space<vmem>>, vector<128x128xbf16>
    %cst = arith.constant dense<0.000000e+00> : vector<72x128xf32>
    %2 = tpu.matmul %0, %1, %cst {dimension_numbers = #tpu.dot_dimension_numbers<[1], [0], [0], [1], [0, 0, 1, 1], [], []>} : vector<72x128xbf16>, vector<128x128xbf16>, vector<72x128xf32> -> vector<72x128xf32>
    %c0_3 = arith.constant 0 : index
    %c0_4 = arith.constant 0 : index
    %3 = vector.load %arg3[%c0_3, %c0_4] : memref<1x128xf32, #tpu.memory_space<vmem>>, vector<1x128xf32>
    %4 = vector.broadcast %3 : vector<1x128xf32> to vector<72x128xf32>
    %5 = arith.addf %2, %4 : vector<72x128xf32>
    %c0_5 = arith.constant 0 : index
    %c0_6 = arith.constant 0 : index
    %6 = vector.load %arg4[%c0_5, %c0_6] : memref<72x128xf32, #tpu.memory_space<vmem>>, vector<72x128xf32>
    tpu.vector_store %arg4[%c0_5, %c0_6], %5 {strides = array<i32>} : memref<72x128xf32, #tpu.memory_space<vmem>>, vector<72x128xf32>,
    return
  }
  func.func @transform_0(%arg0: i32) -> (i32, i32) {
    %c0_i32 = arith.constant 0 : i32
    %c0_i32_0 = arith.constant 0 : i32
    %c0_i32_1 = arith.constant 0 : i32
    return %c0_i32, %c0_i32_0 : i32, i32
  }
  func.func @transform_1(%arg0: i32) -> (i32, i32) {
    %c0_i32 = arith.constant 0 : i32
    %c0_i32_0 = arith.constant 0 : i32
    return %c0_i32, %arg0 : i32, i32
  }
  func.func @transform_2(%arg0: i32) -> (i32, i32) {
    %c0_i32 = arith.constant 0 : i32
    %c0_i32_0 = arith.constant 0 : i32
    return %c0_i32, %arg0 : i32, i32
  }
  func.func @transform_3(%arg0: i32) -> (i32, i32) {
    %c0_i32 = arith.constant 0 : i32
    %c0_i32_0 = arith.constant 0 : i32
    return %c0_i32, %arg0 : i32, i32
  }
}

</mosaic_0001>

<llo_original>
// kernel: cnn_to_rnn_forward.5
$region0: #{cnn_to_rnn_forward.5}
  #allocation0 [shape = 'u32[]', space=smem, size = 0x4, offset = 0x4, fixed_abs, tag = 'smem constant byte address 0x4 - core index']
  #allocation1 [shape = 'u32[144,128]{1,0:T(1,128)}', space=vmem, size = 0x12000, scoped, tag = 'internal scratch']
  %s0 = inlined_call_operand.vmem [shape: bf16[8,128], index: 0, kind: input, shape index: {}]
  %s1 = inlined_call_operand.vmem [shape: bf16[128,128], index: 1, kind: input, shape index: {}]
  %s2 = inlined_call_operand.vmem [shape: f32[1,128], index: 2, kind: input, shape index: {}]
  %s3 = inlined_call_operand.vmem [shape: f32[8,128], index: 3, kind: output, shape index: {}]
  %s4 = sld [smem:[#allocation0]]
  $region22: #{cnn_to_rnn_forward.5} parent=0
    _
  %s6 = ssub.s32 1, %s4
  %s7 = scalar_select 0, %s6, %s4
  // Predicated region
  $region2: #{cnn_to_rnn_forward.5} parent=0 // pred_check
    _
  $region3: #{cnn_to_rnn_forward.5} parent=0 // pred_check_branch
    %9 = sbr.rel (0) target = $region5
  $region4: #{cnn_to_rnn_forward.5} parent=0 // pred_region
    _
  $region5: #{cnn_to_rnn_forward.5} parent=0 // pred_fallthru
    _
  // Predicated region
  $region6: #{cnn_to_rnn_forward.5} parent=0 // pred_check
    _
  $region7: #{cnn_to_rnn_forward.5} parent=0 // pred_check_branch
    %11 = sbr.rel (0) target = $region9
  $region8: #{cnn_to_rnn_forward.5} parent=0 // pred_region
    _
  $region9: #{cnn_to_rnn_forward.5} parent=0 // pred_fallthru
    _
  // Predicated region
  $region10: #{cnn_to_rnn_forward.5} parent=0 // pred_check
    _
  $region11: #{cnn_to_rnn_forward.5} parent=0 // pred_check_branch
    %13 = sbr.rel (0) target = $region13
  $region12: #{cnn_to_rnn_forward.5} parent=0 // pred_region
    _
  $region13: #{cnn_to_rnn_forward.5} parent=0 // pred_fallthru
    _
  %v15 = vld [vmem:[%s0] sm:$0xf]
  %v16 = vld [vmem:[%s1] sm:$0xf]
  %v17 = vld [vmem:[%s1 + $0x4] sm:$0xf]
  %v18 = vld [vmem:[%s1 + $0x8] sm:$0xf]
  %v19 = vld [vmem:[%s1 + $0xc] sm:$0xf]
  %v20 = vld [vmem:[%s1 + $0x10] sm:$0xf]
  %v21 = vld [vmem:[%s1 + $0x14] sm:$0xf]
  %v22 = vld [vmem:[%s1 + $0x18] sm:$0xf]
  %v23 = vld [vmem:[%s1 + $0x1c] sm:$0xf]
  %v24 = vld [vmem:[%s1 + $0x20] sm:$0xf]
  %v25 = vld [vmem:[%s1 + $0x24] sm:$0xf]
  %v26 = vld [vmem:[%s1 + $0x28] sm:$0xf]
  %v27 = vld [vmem:[%s1 + $0x2c] sm:$0xf]
  %v28 = vld [vmem:[%s1 + $0x30] sm:$0xf]
  %v29 = vld [vmem:[%s1 + $0x34] sm:$0xf]
  %v30 = vld [vmem:[%s1 + $0x38] sm:$0xf]
  %v31 = vld [vmem:[%s1 + $0x3c] sm:$0xf]
  %v32 = vld [vmem:[%s2] sm:$0x1]
  %v34 = vlaneseq
  %v35 = vshrl.u32 %v34, 7
  %v36 = vsub.s32 0, %v35
  %v37 = vrot.slane %v32, %v36
  %v55 = vunpack.c.l.b16 %v16
  %v56 = vunpack.c.l.b16 %v17
  %v57 = vunpack.c.l.b16 %v18
  %v58 = vunpack.c.l.b16 %v19
  %v59 = vunpack.c.l.b16 %v20
  %v60 = vunpack.c.l.b16 %v21
  %v61 = vunpack.c.l.b16 %v22
  %v62 = vunpack.c.l.b16 %v23
  %v63 = vunpack.c.l.b16 %v24
  %v64 = vunpack.c.l.b16 %v25
  %v65 = vunpack.c.l.b16 %v26
  %v66 = vunpack.c.l.b16 %v27
  %v67 = vunpack.c.l.b16 %v28
  %v68 = vunpack.c.l.b16 %v29
  %v69 = vunpack.c.l.b16 %v30
  %v70 = vunpack.c.l.b16 %v31
  %v71 = vpack.c.b16 %v56, %v55
  %v72 = vpack.c.b16 %v58, %v57
  %v73 = vpack.c.b16 %v60, %v59
  %v74 = vpack.c.b16 %v62, %v61
  %v75 = vpack.c.b16 %v64, %v63
  %v76 = vpack.c.b16 %v66, %v65
  %v77 = vpack.c.b16 %v68, %v67
  %v78 = vpack.c.b16 %v70, %v69
  %87 = vmatprep.subr.bf16.mxu0 0
  %88 = vmatpush1.bf16.msra.mxu0 %v71
  %89 = vmatprep.subr.bf16.mxu0 0
  %90 = vmatpush1.bf16.msra.mxu0 %v72
  %91 = vmatprep.subr.bf16.mxu0 0
  %92 = vmatpush1.bf16.msra.mxu0 %v73
  %93 = vmatprep.subr.bf16.mxu0 0
  %94 = vmatpush1.bf16.msra.mxu0 %v74
  %95 = vmatprep.subr.bf16.mxu0 0
  %96 = vmatpush1.bf16.msra.mxu0 %v75
  %97 = vmatprep.subr.bf16.mxu0 0
  %98 = vmatpush1.bf16.msra.mxu0 %v76
  %99 = vmatprep.subr.bf16.mxu0 0
  %100 = vmatpush1.bf16.msra.mxu0 %v77
  %101 = vmatprep.subr.bf16.mxu0 0
  %102 = vmatpush1.bf16.msra.mxu0 %v78
  %103 = vmatprep.subr.bf16.mxu0 0
  %104 = vmatpush1.bf16.msra.mxu0 0
  %105 = vmatprep.subr.bf16.mxu0 0
  %106 = vmatpush1.bf16.msra.mxu0 0
  %107 = vmatprep.subr.bf16.mxu0 0
  %108 = vmatpush1.bf16.msra.mxu0 0
  %109 = vmatprep.subr.bf16.mxu0 0
  %110 = vmatpush1.bf16.msra.mxu0 0
  %111 = vmatprep.subr.bf16.mxu0 0
  %112 = vmatpush1.bf16.msra.mxu0 0
  %113 = vmatprep.subr.bf16.mxu0 0
  %114 = vmatpush1.bf16.msra.mxu0 0
  %115 = vmatprep.subr.bf16.mxu0 0
  %116 = vmatpush1.bf16.msra.mxu0 0
  %117 = vmatprep.subr.bf16.mxu0 0
  %118 = vmatpush1.bf16.msra.mxu0 0
  %119 = vmatprep.mubr.bf16.mxu0 0
  %120 = vmatmul.mubr.bf16.gmra.mrb[0].mxu0 %v15
  %v121 = vpop.f32.mrb[0].mxu0
  %v122 = vadd.f32 %v37, %v121
  %v123 = vpop.f32.mrb[0].mxu0
  %v124 = vpop.f32.mrb[0].mxu0
  %v125 = vpop.f32.mrb[0].mxu0
  %126 = vdwg.mxu0
  %v127 = vmax.f32 %v122, 0.0
  %128 = vst [vmem:[%s3] sm:$0xff] %v127
  // Predicated region
  $region14: #{cnn_to_rnn_forward.5} parent=0 // pred_check
    _
  $region15: #{cnn_to_rnn_forward.5} parent=0 // pred_check_branch
    %130 = sbr.rel (0) target = $region17
  $region16: #{cnn_to_rnn_forward.5} parent=0 // pred_region
    _
  $region17: #{cnn_to_rnn_forward.5} parent=0 // pred_fallthru
    _
  // Predicated region
  $region18: #{cnn_to_rnn_forward.5} parent=0 // pred_check
    _
  $region19: #{cnn_to_rnn_forward.5} parent=0 // pred_check_branch
    %132 = sbr.rel (0) target = $region21
  $region20: #{cnn_to_rnn_forward.5} parent=0 // pred_region
    _
  $region21: #{cnn_to_rnn_forward.5} parent=0 // pred_fallthru
    _

// kernel: cnn_to_rnn_forward.4
$region0: #{cnn_to_rnn_forward.4}
  #allocation0 [shape = 'u32[]', space=smem, size = 0x4, offset = 0x4, fixed_abs, tag = 'smem constant byte address 0x4 - core index']
  #allocation1 [shape = 'u32[144,128]{1,0:T(1,128)}', space=vmem, size = 0x12000, scoped, tag = 'internal scratch']
  %s0 = inlined_call_operand.vmem [shape: bf16[2,196,128], index: 0, kind: input, shape index: {}]
  %s1 = inlined_call_operand.vmem [shape: bf16[128,128], index: 1, kind: input, shape index: {}]
  %s2 = inlined_call_operand.vmem [shape: f32[1,128], index: 2, kind: input, shape index: {}]
  %s3 = inlined_call_operand.vmem [shape: f32[2,1,128], index: 3, kind: output, shape index: {}]
  %s4 = sld [smem:[#allocation0]]
  $region45: #{cnn_to_rnn_forward.4} parent=0
    _
  %s6 = ssub.s32 1, %s4
  %s7 = scalar_select 0, %s6, %s4
  loop: start=0, step=1, limit=4
  $region2: #{cnn_to_rnn_forward.4} parent=0 // loop_pre_header
    _
  $region3: #{cnn_to_rnn_forward.4} parent=0 // loop_header
    %s9 = sphi 0, %s13
    %p10 = scmp.ge.s32.totalorder %s9, 4
    %s19 = sphi 0, %s21
    %s22 = sphi 0, %s19
    %s23 = sphi 0, %s22
    %s39 = sphi 0, %s23
    %s43 = sphi 0, %s43
    %s45 = sphi 0, %s43
    %s46 = sphi 0, %s45
    %s60 = sphi 0, %s46
    %s64 = sphi 0, %s64
    %s66 = sphi 0, %s64
    %s67 = sphi 0, %s66
    %s81 = sphi 0, %s67
    %s87 = sphi 0, %s89
    %s90 = sphi 0, %s87
    %s91 = sphi 0, %s90
    %s107 = sphi 0, %s91
  $region4: #{cnn_to_rnn_forward.4} parent=0 // loop_header_branch
    %12 = sbr.rel (%p10) target = $region8
  $region5: #{cnn_to_rnn_forward.4} parent=0 // loop_body
    %s14 = ssub.s32 %s9, 1
    %s15 = ssub.s32 %s9, 2
    %s16 = sadd.s32 %s9, 1
    %s17 = ssub.s32 %s9, %s16
    %p18 = scmp.eq.s32.totalorder %s17, 0
    %s20 = sadd.s32 %s19, 1
    %s21 = scalar_select %p18, %s19, %s20
    %p24 = pneg %p18
    %p25 = scmp.eq.s32.totalorder %s9, 1
    %p26 = por %p24, %p25
    %p27 = scmp.ne.s32.totalorder %s19, %s22
    %p28 = scmp.eq.s32.totalorder %s9, 0
    %p29 = por %p27, %p28
    %p30 = scmp.ne.s32.totalorder %s19, %s22
    %p31 = scmp.eq.s32.totalorder %s14, 1
    %p32 = por %p30, %p31
    %p33 = scmp.ne.s32.totalorder %s22, %s23
    %p34 = scmp.eq.s32.totalorder %s14, 0
    %p35 = por %p33, %p34
    %p36 = scmp.ne.s32.totalorder %s22, %s23
    %p37 = scmp.eq.s32.totalorder %s15, 1
    %p38 = por %p36, %p37
    %p40 = scmp.ne.s32.totalorder %s23, %s39
    %p41 = scmp.eq.s32.totalorder %s15, 0
    %p42 = por %p40, %p41
    %s44 = sadd.s32 %s43, 1
    %p47 = scmp.eq.s32.totalorder %s9, 1
    %p48 = scmp.ne.s32.totalorder %s43, %s45
    %p49 = scmp.eq.s32.totalorder %s9, 0
    %p50 = por %p48, %p49
    %p51 = scmp.ne.s32.totalorder %s43, %s45
    %p52 = scmp.eq.s32.totalorder %s14, 1
    %p53 = por %p51, %p52
    %p54 = scmp.ne.s32.totalorder %s45, %s46
    %p55 = scmp.eq.s32.totalorder %s14, 0
    %p56 = por %p54, %p55
    %p57 = scmp.ne.s32.totalorder %s45, %s46
    %p58 = scmp.eq.s32.totalorder %s15, 1
    %p59 = por %p57, %p58
    %p61 = scmp.ne.s32.totalorder %s46, %s60
    %p62 = scmp.eq.s32.totalorder %s15, 0
    %p63 = por %p61, %p62
    %s65 = sadd.s32 %s64, 1
    %p68 = scmp.eq.s32.totalorder %s9, 1
    %p69 = scmp.ne.s32.totalorder %s64, %s66
    %p70 = scmp.eq.s32.totalorder %s9, 0
    %p71 = por %p69, %p70
    %p72 = scmp.ne.s32.totalorder %s64, %s66
    %p73 = scmp.eq.s32.totalorder %s14, 1
    %p74 = por %p72, %p73
    %p75 = scmp.ne.s32.totalorder %s66, %s67
    %p76 = scmp.eq.s32.totalorder %s14, 0
    %p77 = por %p75, %p76
    %p78 = scmp.ne.s32.totalorder %s66, %s67
    %p79 = scmp.eq.s32.totalorder %s15, 1
    %p80 = por %p78, %p79
    %p82 = scmp.ne.s32.totalorder %s67, %s81
    %p83 = scmp.eq.s32.totalorder %s15, 0
    %p84 = por %p82, %p83
    %s85 = ssub.s32 %s9, %s16
    %p86 = scmp.eq.s32.totalorder %s85, 0
    %s88 = sadd.s32 %s87, 1
    %s89 = scalar_select %p86, %s87, %s88
    %p92 = pneg %p86
    %p93 = scmp.eq.s32.totalorder %s9, 1
    %p94 = por %p92, %p93
    %p95 = scmp.ne.s32.totalorder %s87, %s90
    %p96 = scmp.eq.s32.totalorder %s9, 0
    %p97 = por %p95, %p96
    %p98 = scmp.ne.s32.totalorder %s87, %s90
    %p99 = scmp.eq.s32.totalorder %s14, 1
    %p100 = por %p98, %p99
    %p101 = scmp.ne.s32.totalorder %s90, %s91
    %p102 = scmp.eq.s32.totalorder %s14, 0
    %p103 = por %p101, %p102
    %p104 = scmp.ne.s32.totalorder %s90, %s91
    %p105 = scmp.eq.s32.totalorder %s15, 1
    %p106 = por %p104, %p105
    %p108 = scmp.ne.s32.totalorder %s91, %s107
    %p109 = scmp.eq.s32.totalorder %s15, 0
    %p110 = por %p108, %p109
    %p111 = scmp.le.s32.totalorder 1, %s9
    %p112 = scmp.lt.s32.totalorder %s9, 3
    %p113 = pnand %p111, %p112
    %p114 = pneg %p113
    // Predicated region
    $region9: #{cnn_to_rnn_forward.4} parent=5 // pred_check
      _
    $region10: #{cnn_to_rnn_forward.4} parent=5 // pred_check_branch
      %116 = sbr.rel (%p113) target = $region12
    $region11: #{cnn_to_rnn_forward.4} parent=5 // pred_region
      %s117 = ssub.s32 %s9, 1
      // Predicated region
      $region13: #{cnn_to_rnn_forward.4} parent=11 // pred_check
        %p118 = pneg %p56
      $region14: #{cnn_to_rnn_forward.4} parent=11 // pred_check_branch
        %120 = sbr.rel (%p118) target = $region16
      $region15: #{cnn_to_rnn_forward.4} parent=11 // pred_region
        _
      $region16: #{cnn_to_rnn_forward.4} parent=11 // pred_fallthru
        _
      // Predicated region
      $region17: #{cnn_to_rnn_forward.4} parent=11 // pred_check
        %p121 = pneg %p77
      $region18: #{cnn_to_rnn_forward.4} parent=11 // pred_check_branch
        %123 = sbr.rel (%p121) target = $region20
      $region19: #{cnn_to_rnn_forward.4} parent=11 // pred_region
        _
      $region20: #{cnn_to_rnn_forward.4} parent=11 // pred_fallthru
        _
    $region12: #{cnn_to_rnn_forward.4} parent=5 // pred_fallthru
      _
    %p124 = scmp.lt.s32.totalorder %s9, 2
    // Predicated region
    $region21: #{cnn_to_rnn_forward.4} parent=5 // pred_check
      %p125 = pneg %p124
    $region22: #{cnn_to_rnn_forward.4} parent=5 // pred_check_branch
      %127 = sbr.rel (%p125) target = $region24
    $region23: #{cnn_to_rnn_forward.4} parent=5 // pred_region
      // Predicated region
      $region25: #{cnn_to_rnn_forward.4} parent=23 // pred_check
        %p128 = pneg %p29
      $region26: #{cnn_to_rnn_forward.4} parent=23 // pred_check_branch
        %130 = sbr.rel (%p128) target = $region28
      $region27: #{cnn_to_rnn_forward.4} parent=23 // pred_region
        %p131 = scmp.lt.s32.totalorder %s9, 1
        %s132 = scalar_select %p131, %s9, 1
        %s133 = smul.addr %s132, 25
        %s134 = smul.addr %s133, 4
        %s135 = scalar_lea.vmem %s0, %s134
      $region28: #{cnn_to_rnn_forward.4} parent=23 // pred_fallthru
        _
    $region24: #{cnn_to_rnn_forward.4} parent=5 // pred_fallthru
      _
    %p136 = scmp.le.s32.totalorder 1, %s9
    %p137 = scmp.lt.s32.totalorder %s9, 3
    %p138 = pnand %p136, %p137
    %p139 = pneg %p138
    // Predicated region
    $region29: #{cnn_to_rnn_forward.4} parent=5 // pred_check
      _
    $region30: #{cnn_to_rnn_forward.4} parent=5 // pred_check_branch
      %141 = sbr.rel (%p138) target = $region32
    $region31: #{cnn_to_rnn_forward.4} parent=5 // pred_region
      %s142 = ssub.s32 %s9, 1
      %p143 = scmp.lt.s32.totalorder %s14, 1
      %s144 = scalar_select %p143, %s14, 1
      %s145 = smul.addr %s144, 25
      %s146 = smul.addr %s145, 4
      %s147 = scalar_lea.vmem %s0, %s146
      %p148 = pneg %p35
      %p149 = pneg %p32
      %p150 = pneg %p56
      %p151 = pneg %p53
      %p152 = pneg %p77
      %p153 = pneg %p74
      %p154 = pneg %p103
      %p155 = pneg %p100
      %p156 = scmp.lt.s32.totalorder %s14, 1
      %s157 = scalar_select %p156, %s14, 1
      %s158 = scalar_lea.vmem %s3, %s157
      %p159 = scmp.lt.s32.totalorder %s14, 1
      %s160 = scalar_select %p159, %s14, 1
      %s161 = smul.addr %s160, 25
      %s162 = smul.addr %s161, 4
      %s163 = scalar_lea.vmem %s0, %s162
      %p164 = scmp.lt.s32.totalorder %s14, 1
      %s165 = scalar_select %p164, %s14, 1
      %s166 = scalar_lea.vmem %s3, %s165
      %v168 = vld [vmem:[%s163] sm:$0xf]
      %v169 = vld [vmem:[%s163 + $0x4] sm:$0xf]
      %v170 = vld [vmem:[%s163 + $0x8] sm:$0xf]
      %v171 = vld [vmem:[%s163 + $0xc] sm:$0xf]
      %v172 = vld [vmem:[%s163 + $0x10] sm:$0xf]
      %v173 = vld [vmem:[%s163 + $0x14] sm:$0xf]
      %v174 = vld [vmem:[%s163 + $0x18] sm:$0xf]
      %v175 = vld [vmem:[%s163 + $0x1c] sm:$0xf]
      %v176 = vld [vmem:[%s163 + $0x20] sm:$0xf]
      %v177 = vld [vmem:[%s163 + $0x24] sm:$0xf]
      %v178 = vld [vmem:[%s163 + $0x28] sm:$0xf]
      %v179 = vld [vmem:[%s163 + $0x2c] sm:$0xf]
      %v180 = vld [vmem:[%s163 + $0x30] sm:$0xf]
      %v181 = vld [vmem:[%s163 + $0x34] sm:$0xf]
      %v182 = vld [vmem:[%s163 + $0x38] sm:$0xf]
      %v183 = vld [vmem:[%s163 + $0x3c] sm:$0xf]
      %v184 = vld [vmem:[%s163 + $0x40] sm:$0xf]
      %v185 = vld [vmem:[%s163 + $0x44] sm:$0xf]
      %v186 = vld [vmem:[%s163 + $0x48] sm:$0xf]
      %v187 = vld [vmem:[%s163 + $0x4c] sm:$0xf]
      %v188 = vld [vmem:[%s163 + $0x50] sm:$0xf]
      %v189 = vld [vmem:[%s163 + $0x54] sm:$0xf]
      %v190 = vld [vmem:[%s163 + $0x58] sm:$0xf]
      %v191 = vld [vmem:[%s163 + $0x5c] sm:$0xf]
      %v192 = vld [vmem:[%s163 + $0x60] sm:$0x3]
      %v193 = vld [vmem:[%s1] sm:$0xf]
      %v194 = vld [vmem:[%s1 + $0x4] sm:$0xf]
      %v195 = vld [vmem:[%s1 + $0x8] sm:$0xf]
      %v196 = vld [vmem:[%s1 + $0xc] sm:$0xf]
      %v197 = vld [vmem:[%s1 + $0x10] sm:$0xf]
      %v198 = vld [vmem:[%s1 + $0x14] sm:$0xf]
      %v199 = vld [vmem:[%s1 + $0x18] sm:$0xf]
      %v200 = vld [vmem:[%s1 + $0x1c] sm:$0xf]
      %v201 = vld [vmem:[%s1 + $0x20] sm:$0xf]
      %v202 = vld [vmem:[%s1 + $0x24] sm:$0xf]
      %v203 = vld [vmem:[%s1 + $0x28] sm:$0xf]
      %v204 = vld [vmem:[%s1 + $0x2c] sm:$0xf]
      %v205 = vld [vmem:[%s1 + $0x30] sm:$0xf]
      %v206 = vld [vmem:[%s1 + $0x34] sm:$0xf]
      %v207 = vld [vmem:[%s1 + $0x38] sm:$0xf]
      %v208 = vld [vmem:[%s1 + $0x3c] sm:$0xf]
      %v209 = vld [vmem:[%s2] sm:$0x1]
      %v211 = vlaneseq
      %v212 = vshrl.u32 %v211, 7
      %v213 = vsub.s32 0, %v212
      %v214 = vrot.slane %v209, %v213
      %v241 = vunpack.c.l.b16 %v168
      %v242 = vunpack.c.l.b16 %v169
      %v243 = vunpack.c.l.b16 %v170
      %v244 = vunpack.c.l.b16 %v171
      %v245 = vunpack.c.l.b16 %v172
      %v246 = vunpack.c.l.b16 %v173
      %v247 = vunpack.c.l.b16 %v174
      %v248 = vunpack.c.l.b16 %v175
      %v249 = vunpack.c.l.b16 %v176
      %v250 = vunpack.c.l.b16 %v177
      %v251 = vunpack.c.l.b16 %v178
      %v252 = vunpack.c.l.b16 %v179
      %v253 = vunpack.c.l.b16 %v180
      %v254 = vunpack.c.l.b16 %v181
      %v255 = vunpack.c.l.b16 %v182
      %v256 = vunpack.c.l.b16 %v183
      %v257 = vunpack.c.l.b16 %v184
      %v258 = vunpack.c.l.b16 %v185
      %v259 = vunpack.c.l.b16 %v186
      %v260 = vunpack.c.l.b16 %v187
      %v261 = vunpack.c.l.b16 %v188
      %v262 = vunpack.c.l.b16 %v189
      %v263 = vunpack.c.l.b16 %v190
      %v264 = vunpack.c.l.b16 %v191
      %v265 = vunpack.c.l.b16 %v192
      %v266 = vpack.c.b16 %v242, %v241
      %v267 = vpack.c.b16 %v244, %v243
      %v268 = vpack.c.b16 %v246, %v245
      %v269 = vpack.c.b16 %v248, %v247
      %v270 = vpack.c.b16 %v250, %v249
      %v271 = vpack.c.b16 %v252, %v251
      %v272 = vpack.c.b16 %v254, %v253
      %v273 = vpack.c.b16 %v256, %v255
      %v274 = vpack.c.b16 %v258, %v257
      %v275 = vpack.c.b16 %v260, %v259
      %v276 = vpack.c.b16 %v262, %v261
      %v277 = vpack.c.b16 %v264, %v263
      %v278 = vpack.c.b16 %v265, %v265
      %v308 = vunpack.c.l.b16 %v193
      %v309 = vunpack.c.l.b16 %v194
      %v310 = vunpack.c.l.b16 %v195
      %v311 = vunpack.c.l.b16 %v196
      %v312 = vunpack.c.l.b16 %v197
      %v313 = vunpack.c.l.b16 %v198
      %v314 = vunpack.c.l.b16 %v199
      %v315 = vunpack.c.l.b16 %v200
      %v316 = vunpack.c.l.b16 %v201
      %v317 = vunpack.c.l.b16 %v202
      %v318 = vunpack.c.l.b16 %v203
      %v319 = vunpack.c.l.b16 %v204
      %v320 = vunpack.c.l.b16 %v205
      %v321 = vunpack.c.l.b16 %v206
      %v322 = vunpack.c.l.b16 %v207
      %v323 = vunpack.c.l.b16 %v208
      %v324 = vpack.c.b16 %v309, %v308
      %v325 = vpack.c.b16 %v311, %v310
      %v326 = vpack.c.b16 %v313, %v312
      %v327 = vpack.c.b16 %v315, %v314
      %v328 = vpack.c.b16 %v317, %v316
      %v329 = vpack.c.b16 %v319, %v318
      %v330 = vpack.c.b16 %v321, %v320
      %v331 = vpack.c.b16 %v323, %v322
      %340 = vmatprep.subr.bf16.mxu0 0
      %341 = vmatpush1.bf16.msra.mxu0 %v324
      %342 = vmatprep.subr.bf16.mxu0 0
      %343 = vmatpush1.bf16.msra.mxu0 %v325
      %344 = vmatprep.subr.bf16.mxu0 0
      %345 = vmatpush1.bf16.msra.mxu0 %v326
      %346 = vmatprep.subr.bf16.mxu0 0
      %347 = vmatpush1.bf16.msra.mxu0 %v327
      %348 = vmatprep.subr.bf16.mxu0 0
      %349 = vmatpush1.bf16.msra.mxu0 %v328
      %350 = vmatprep.subr.bf16.mxu0 0
      %351 = vmatpush1.bf16.msra.mxu0 %v329
      %352 = vmatprep.subr.bf16.mxu0 0
      %353 = vmatpush1.bf16.msra.mxu0 %v330
      %354 = vmatprep.subr.bf16.mxu0 0
      %355 = vmatpush1.bf16.msra.mxu0 %v331
      %356 = vmatprep.subr.bf16.mxu0 0
      %357 = vmatpush1.bf16.msra.mxu0 0
      %358 = vmatprep.subr.bf16.mxu0 0
      %359 = vmatpush1.bf16.msra.mxu0 0
      %360 = vmatprep.subr.bf16.mxu0 0
      %361 = vmatpush1.bf16.msra.mxu0 0
      %362 = vmatprep.subr.bf16.mxu0 0
      %363 = vmatpush1.bf16.msra.mxu0 0
      %364 = vmatprep.subr.bf16.mxu0 0
      %365 = vmatpush1.bf16.msra.mxu0 0
      %366 = vmatprep.subr.bf16.mxu0 0
      %367 = vmatpush1.bf16.msra.mxu0 0
      %368 = vmatprep.subr.bf16.mxu0 0
      %369 = vmatpush1.bf16.msra.mxu0 0
      %370 = vmatprep.subr.bf16.mxu0 0
      %371 = vmatpush1.bf16.msra.mxu0 0
      %372 = vmatprep.mubr.bf16.mxu0 0
      %373 = vmatmul.mubr.bf16.gmra.mrb[0].mxu0 %v266
      %v374 = vpop.f32.mrb[0].mxu0
      %v375 = vadd.f32 %v214, %v374
      %v376 = vpop.f32.mrb[0].mxu0
      %v377 = vpop.f32.mrb[0].mxu0
      %v378 = vadd.f32 %v214, %v377
      %v379 = vpop.f32.mrb[0].mxu0
      %380 = vmatprep.mubr.bf16.mxu0 0
      %381 = vmatmul.mubr.bf16.gmra.mrb[0].mxu0 %v267
      %v382 = vpop.f32.mrb[0].mxu0
      %v383 = vadd.f32 %v214, %v382
      %v384 = vpop.f32.mrb[0].mxu0
      %v385 = vpop.f32.mrb[0].mxu0
      %v386 = vadd.f32 %v214, %v385
      %v387 = vpop.f32.mrb[0].mxu0
      %388 = vmatprep.mubr.bf16.mxu0 0
      %389 = vmatmul.mubr.bf16.gmra.mrb[0].mxu0 %v268
      %v390 = vpop.f32.mrb[0].mxu0
      %v391 = vadd.f32 %v214, %v390
      %v392 = vpop.f32.mrb[0].mxu0
      %v393 = vpop.f32.mrb[0].mxu0
      %v394 = vadd.f32 %v214, %v393
      %v395 = vpop.f32.mrb[0].mxu0
      %396 = vmatprep.mubr.bf16.mxu0 0
      %397 = vmatmul.mubr.bf16.gmra.mrb[0].mxu0 %v269
      %v398 = vpop.f32.mrb[0].mxu0
      %v399 = vadd.f32 %v214, %v398
      %v400 = vpop.f32.mrb[0].mxu0
      %v401 = vpop.f32.mrb[0].mxu0
      %v402 = vadd.f32 %v214, %v401
      %v403 = vpop.f32.mrb[0].mxu0
      %404 = vmatprep.mubr.bf16.mxu0 0
      %405 = vmatmul.mubr.bf16.gmra.mrb[0].mxu0 %v270
      %v406 = vpop.f32.mrb[0].mxu0
      %v407 = vadd.f32 %v214, %v406
      %v408 = vpop.f32.mrb[0].mxu0
      %v409 = vpop.f32.mrb[0].mxu0
      %v410 = vadd.f32 %v214, %v409
      %v411 = vpop.f32.mrb[0].mxu0
      %412 = vmatprep.mubr.bf16.mxu0 0
      %413 = vmatmul.mubr.bf16.gmra.mrb[0].mxu0 %v271
      %v414 = vpop.f32.mrb[0].mxu0
      %v415 = vadd.f32 %v214, %v414
      %v416 = vpop.f32.mrb[0].mxu0
      %v417 = vpop.f32.mrb[0].mxu0
      %v418 = vadd.f32 %v214, %v417
      %v419 = vpop.f32.mrb[0].mxu0
      %420 = vmatprep.mubr.bf16.mxu0 0
      %421 = vmatmul.mubr.bf16.gmra.mrb[0].mxu0 %v272
      %v422 = vpop.f32.mrb[0].mxu0
      %v423 = vadd.f32 %v214, %v422
      %v424 = vpop.f32.mrb[0].mxu0
      %v425 = vpop.f32.mrb[0].mxu0
      %v426 = vadd.f32 %v214, %v425
      %v427 = vpop.f32.mrb[0].mxu0
      %428 = vmatprep.mubr.bf16.mxu0 0
      %429 = vmatmul.mubr.bf16.gmra.mrb[0].mxu0 %v273
      %v430 = vpop.f32.mrb[0].mxu0
      %v431 = vadd.f32 %v214, %v430
      %v432 = vpop.f32.mrb[0].mxu0
      %v433 = vpop.f32.mrb[0].mxu0
      %v434 = vadd.f32 %v214, %v433
      %v435 = vpop.f32.mrb[0].mxu0
      %436 = vmatprep.mubr.bf16.mxu0 0
      %437 = vmatmul.mubr.bf16.gmra.mrb[0].mxu0 %v274
      %v438 = vpop.f32.mrb[0].mxu0
      %v439 = vadd.f32 %v214, %v438
      %v440 = vpop.f32.mrb[0].mxu0
      %v441 = vpop.f32.mrb[0].mxu0
      %v442 = vadd.f32 %v214, %v441
      %v443 = vpop.f32.mrb[0].mxu0
      %444 = vmatprep.mubr.bf16.mxu0 0
      %445 = vmatmul.mubr.bf16.gmra.mrb[0].mxu0 %v275
      %v446 = vpop.f32.mrb[0].mxu0
      %v447 = vadd.f32 %v214, %v446
      %v448 = vpop.f32.mrb[0].mxu0
      %v449 = vpop.f32.mrb[0].mxu0
      %v450 = vadd.f32 %v214, %v449
      %v451 = vpop.f32.mrb[0].mxu0
      %452 = vmatprep.mubr.bf16.mxu0 0
      %453 = vmatmul.mubr.bf16.gmra.mrb[0].mxu0 %v276
      %v454 = vpop.f32.mrb[0].mxu0
      %v455 = vadd.f32 %v214, %v454
      %v456 = vpop.f32.mrb[0].mxu0
      %v457 = vpop.f32.mrb[0].mxu0
      %v458 = vadd.f32 %v214, %v457
      %v459 = vpop.f32.mrb[0].mxu0
      %460 = vmatprep.mubr.bf16.mxu0 0
      %461 = vmatmul.mubr.bf16.gmra.mrb[0].mxu0 %v277
      %v462 = vpop.f32.mrb[0].mxu0
      %v463 = vadd.f32 %v214, %v462
      %v464 = vpop.f32.mrb[0].mxu0
      %v465 = vpop.f32.mrb[0].mxu0
      %v466 = vadd.f32 %v214, %v465
      %v467 = vpop.f32.mrb[0].mxu0
      %468 = vmatprep.mubr.bf16.mxu0 0
      %469 = vmatmul.mubr.bf16.gmra.mrb[0].mxu0 %v278
      %v470 = vpop.f32.mrb[0].mxu0
      %v471 = vadd.f32 %v214, %v470
      %v472 = vpop.f32.mrb[0].mxu0
      %v473 = vpop.f32.mrb[0].mxu0
      %v474 = vpop.f32.mrb[0].mxu0
      %475 = vdwg.mxu0
      %v476 = vmax.f32 %v375, 0.0
      %v477 = vmax.f32 %v378, 0.0
      %v478 = vmax.f32 %v383, 0.0
      %v479 = vmax.f32 %v386, 0.0
      %v480 = vmax.f32 %v391, 0.0
      %v481 = vmax.f32 %v394, 0.0
      %v482 = vmax.f32 %v399, 0.0
      %v483 = vmax.f32 %v402, 0.0
      %v484 = vmax.f32 %v407, 0.0
      %v485 = vmax.f32 %v410, 0.0
      %v486 = vmax.f32 %v415, 0.0
      %v487 = vmax.f32 %v418, 0.0
      %v488 = vmax.f32 %v423, 0.0
      %v489 = vmax.f32 %v426, 0.0
      %v490 = vmax.f32 %v431, 0.0
      %v491 = vmax.f32 %v434, 0.0
      %v492 = vmax.f32 %v439, 0.0
      %v493 = vmax.f32 %v442, 0.0
      %v494 = vmax.f32 %v447, 0.0
      %v495 = vmax.f32 %v450, 0.0
      %v496 = vmax.f32 %v455, 0.0
      %v497 = vmax.f32 %v458, 0.0
      %v498 = vmax.f32 %v463, 0.0
      %v499 = vmax.f32 %v466, 0.0
      %v500 = vmax.f32 %v471, 0.0
      %v501 = vadd.f32 %v476, %v477
      %v502 = vadd.f32 %v501, %v478
      %v503 = vadd.f32 %v502, %v479
      %v504 = vadd.f32 %v503, %v480
      %v505 = vadd.f32 %v504, %v481
      %v506 = vadd.f32 %v505, %v482
      %v507 = vadd.f32 %v506, %v483
      %v508 = vadd.f32 %v507, %v484
      %v509 = vadd.f32 %v508, %v485
      %v510 = vadd.f32 %v509, %v486
      %v511 = vadd.f32 %v510, %v487
      %v512 = vadd.f32 %v511, %v488
      %v513 = vadd.f32 %v512, %v489
      %v514 = vadd.f32 %v513, %v490
      %v515 = vadd.f32 %v514, %v491
      %v516 = vadd.f32 %v515, %v492
      %v517 = vadd.f32 %v516, %v493
      %v518 = vadd.f32 %v517, %v494
      %v519 = vadd.f32 %v518, %v495
      %v520 = vadd.f32 %v519, %v496
      %v521 = vadd.f32 %v520, %v497
      %v522 = vadd.f32 %v521, %v498
      %v523 = vadd.f32 %v522, %v499
      %vm524 = vcmask 1043456
      %v525 = vsel %vm524, %v500, 0.0
      %v526 = vadd.f32 %v523, %v525
      %v527 = vrot.slane %v526, 4
      %v528 = vadd.f32 %v526, %v527
      %v529 = vrot.slane %v528, 2
      %v530 = vadd.f32 %v528, %v529
      %v531 = vrot.slane %v530, 1
      %v532 = vadd.f32 %v530, %v531
      %v533 = vmul.f32 %v532, 0.0051020407
      %534 = vst [vmem:[%s166] sm:$0x1] %v533
      %p535 = scmp.lt.s32.totalorder %s14, 1
      %s536 = scalar_select %p535, %s14, 1
      %s537 = scalar_lea.vmem %s3, %s536
      // Predicated region
      $region33: #{cnn_to_rnn_forward.4} parent=31 // pred_check
        %p538 = pneg %p100
      $region34: #{cnn_to_rnn_forward.4} parent=31 // pred_check_branch
        %540 = sbr.rel (%p538) target = $region36
      $region35: #{cnn_to_rnn_forward.4} parent=31 // pred_region
        _
      $region36: #{cnn_to_rnn_forward.4} parent=31 // pred_fallthru
        _
    $region32: #{cnn_to_rnn_forward.4} parent=5 // pred_fallthru
      _
    %p541 = scmp.le.s32.totalorder 2, %s9
    // Predicated region
    $region37: #{cnn_to_rnn_forward.4} parent=5 // pred_check
      %p542 = pneg %p541
    $region38: #{cnn_to_rnn_forward.4} parent=5 // pred_check_branch
      %544 = sbr.rel (%p542) target = $region40
    $region39: #{cnn_to_rnn_forward.4} parent=5 // pred_region
      %s545 = ssub.s32 %s9, 2
      // Predicated region
      $region41: #{cnn_to_rnn_forward.4} parent=39 // pred_check
        %p546 = pneg %p106
      $region42: #{cnn_to_rnn_forward.4} parent=39 // pred_check_branch
        %548 = sbr.rel (%p546) target = $region44
      $region43: #{cnn_to_rnn_forward.4} parent=39 // pred_region
        %p549 = scmp.lt.s32.totalorder %s15, 1
        %s550 = scalar_select %p549, %s15, 1
        %s551 = scalar_lea.vmem %s3, %s550
      $region44: #{cnn_to_rnn_forward.4} parent=39 // pred_fallthru
        _
    $region40: #{cnn_to_rnn_forward.4} parent=5 // pred_fallthru
      _
  $region6: #{cnn_to_rnn_forward.4} parent=0 // loop_footer
    %s13 = sadd.s32 1, %s9
  $region7: #{cnn_to_rnn_forward.4} parent=0 // loop_footer_branch
    %8 = sbr.rel target = $region3
  $region8: #{cnn_to_rnn_forward.4} parent=0 // loop_exit
    _

// kernel: cnn_to_rnn_forward.7
$region0: #{cnn_to_rnn_forward.7}
  #allocation0 [shape = 'u32[]', space=smem, size = 0x4, offset = 0x4, fixed_abs, tag = 'smem constant byte address 0x4 - core index']
  #allocation1 [shape = 'u32[144,128]{1,0:T(1,128)}', space=vmem, size = 0x12000, scoped, tag = 'internal scratch']
  %s0 = inlined_call_operand.vmem [shape: bf16[72,128], index: 0, kind: input, shape index: {}]
  %s1 = inlined_call_operand.vmem [shape: bf16[128,128], index: 1, kind: input, shape index: {}]
  %s2 = inlined_call_operand.vmem [shape: f32[1,128], index: 2, kind: input, shape index: {}]
  %s3 = inlined_call_operand.vmem [shape: f32[72,128], index: 3, kind: output, shape index: {}]
  %s4 = sld [smem:[#allocation0]]
  $region22: #{cnn_to_rnn_forward.7} parent=0
    _
  %s6 = ssub.s32 1, %s4
  %s7 = scalar_select 0, %s6, %s4
  // Predicated region
  $region2: #{cnn_to_rnn_forward.7} parent=0 // pred_check
    _
  $region3: #{cnn_to_rnn_forward.7} parent=0 // pred_check_branch
    %9 = sbr.rel (0) target = $region5
  $region4: #{cnn_to_rnn_forward.7} parent=0 // pred_region
    _
  $region5: #{cnn_to_rnn_forward.7} parent=0 // pred_fallthru
    _
  // Predicated region
  $region6: #{cnn_to_rnn_forward.7} parent=0 // pred_check
    _
  $region7: #{cnn_to_rnn_forward.7} parent=0 // pred_check_branch
    %11 = sbr.rel (0) target = $region9
  $region8: #{cnn_to_rnn_forward.7} parent=0 // pred_region
    _
  $region9: #{cnn_to_rnn_forward.7} parent=0 // pred_fallthru
    _
  // Predicated region
  $region10: #{cnn_to_rnn_forward.7} parent=0 // pred_check
    _
  $region11: #{cnn_to_rnn_forward.7} parent=0 // pred_check_branch
    %13 = sbr.rel (0) target = $region13
  $region12: #{cnn_to_rnn_forward.7} parent=0 // pred_region
    _
  $region13: #{cnn_to_rnn_forward.7} parent=0 // pred_fallthru
    _
  %v15 = vld [vmem:[%s0] sm:$0xf]
  %v16 = vld [vmem:[%s0 + $0x4] sm:$0xf]
  %v17 = vld [vmem:[%s0 + $0x8] sm:$0xf]
  %v18 = vld [vmem:[%s0 + $0xc] sm:$0xf]
  %v19 = vld [vmem:[%s0 + $0x10] sm:$0xf]
  %v20 = vld [vmem:[%s0 + $0x14] sm:$0xf]
  %v21 = vld [vmem:[%s0 + $0x18] sm:$0xf]
  %v22 = vld [vmem:[%s0 + $0x1c] sm:$0xf]
  %v23 = vld [vmem:[%s0 + $0x20] sm:$0xf]
  %v24 = vld [vmem:[%s1] sm:$0xf]
  %v25 = vld [vmem:[%s1 + $0x4] sm:$0xf]
  %v26 = vld [vmem:[%s1 + $0x8] sm:$0xf]
  %v27 = vld [vmem:[%s1 + $0xc] sm:$0xf]
  %v28 = vld [vmem:[%s1 + $0x10] sm:$0xf]
  %v29 = vld [vmem:[%s1 + $0x14] sm:$0xf]
  %v30 = vld [vmem:[%s1 + $0x18] sm:$0xf]
  %v31 = vld [vmem:[%s1 + $0x1c] sm:$0xf]
  %v32 = vld [vmem:[%s1 + $0x20] sm:$0xf]
  %v33 = vld [vmem:[%s1 + $0x24] sm:$0xf]
  %v34 = vld [vmem:[%s1 + $0x28] sm:$0xf]
  %v35 = vld [vmem:[%s1 + $0x2c] sm:$0xf]
  %v36 = vld [vmem:[%s1 + $0x30] sm:$0xf]
  %v37 = vld [vmem:[%s1 + $0x34] sm:$0xf]
  %v38 = vld [vmem:[%s1 + $0x38] sm:$0xf]
  %v39 = vld [vmem:[%s1 + $0x3c] sm:$0xf]
  %v40 = vld [vmem:[%s2] sm:$0x1]
  %v42 = vlaneseq
  %v43 = vshrl.u32 %v42, 7
  %v44 = vsub.s32 0, %v43
  %v45 = vrot.slane %v40, %v44
  %v56 = vunpack.c.l.b16 %v15
  %v57 = vunpack.c.l.b16 %v16
  %v58 = vunpack.c.l.b16 %v17
  %v59 = vunpack.c.l.b16 %v18
  %v60 = vunpack.c.l.b16 %v19
  %v61 = vunpack.c.l.b16 %v20
  %v62 = vunpack.c.l.b16 %v21
  %v63 = vunpack.c.l.b16 %v22
  %v64 = vunpack.c.l.b16 %v23
  %v65 = vpack.c.b16 %v57, %v56
  %v66 = vpack.c.b16 %v59, %v58
  %v67 = vpack.c.b16 %v61, %v60
  %v68 = vpack.c.b16 %v63, %v62
  %v69 = vpack.c.b16 %v64, %v64
  %v91 = vunpack.c.l.b16 %v24
  %v92 = vunpack.c.l.b16 %v25
  %v93 = vunpack.c.l.b16 %v26
  %v94 = vunpack.c.l.b16 %v27
  %v95 = vunpack.c.l.b16 %v28
  %v96 = vunpack.c.l.b16 %v29
  %v97 = vunpack.c.l.b16 %v30
  %v98 = vunpack.c.l.b16 %v31
  %v99 = vunpack.c.l.b16 %v32
  %v100 = vunpack.c.l.b16 %v33
  %v101 = vunpack.c.l.b16 %v34
  %v102 = vunpack.c.l.b16 %v35
  %v103 = vunpack.c.l.b16 %v36
  %v104 = vunpack.c.l.b16 %v37
  %v105 = vunpack.c.l.b16 %v38
  %v106 = vunpack.c.l.b16 %v39
  %v107 = vpack.c.b16 %v92, %v91
  %v108 = vpack.c.b16 %v94, %v93
  %v109 = vpack.c.b16 %v96, %v95
  %v110 = vpack.c.b16 %v98, %v97
  %v111 = vpack.c.b16 %v100, %v99
  %v112 = vpack.c.b16 %v102, %v101
  %v113 = vpack.c.b16 %v104, %v103
  %v114 = vpack.c.b16 %v106, %v105
  %123 = vmatprep.subr.bf16.mxu0 0
  %124 = vmatpush1.bf16.msra.mxu0 %v107
  %125 = vmatprep.subr.bf16.mxu0 0
  %126 = vmatpush1.bf16.msra.mxu0 %v108
  %127 = vmatprep.subr.bf16.mxu0 0
  %128 = vmatpush1.bf16.msra.mxu0 %v109
  %129 = vmatprep.subr.bf16.mxu0 0
  %130 = vmatpush1.bf16.msra.mxu0 %v110
  %131 = vmatprep.subr.bf16.mxu0 0
  %132 = vmatpush1.bf16.msra.mxu0 %v111
  %133 = vmatprep.subr.bf16.mxu0 0
  %134 = vmatpush1.bf16.msra.mxu0 %v112
  %135 = vmatprep.subr.bf16.mxu0 0
  %136 = vmatpush1.bf16.msra.mxu0 %v113
  %137 = vmatprep.subr.bf16.mxu0 0
  %138 = vmatpush1.bf16.msra.mxu0 %v114
  %139 = vmatprep.subr.bf16.mxu0 0
  %140 = vmatpush1.bf16.msra.mxu0 0
  %141 = vmatprep.subr.bf16.mxu0 0
  %142 = vmatpush1.bf16.msra.mxu0 0
  %143 = vmatprep.subr.bf16.mxu0 0
  %144 = vmatpush1.bf16.msra.mxu0 0
  %145 = vmatprep.subr.bf16.mxu0 0
  %146 = vmatpush1.bf16.msra.mxu0 0
  %147 = vmatprep.subr.bf16.mxu0 0
  %148 = vmatpush1.bf16.msra.mxu0 0
  %149 = vmatprep.subr.bf16.mxu0 0
  %150 = vmatpush1.bf16.msra.mxu0 0
  %151 = vmatprep.subr.bf16.mxu0 0
  %152 = vmatpush1.bf16.msra.mxu0 0
  %153 = vmatprep.subr.bf16.mxu0 0
  %154 = vmatpush1.bf16.msra.mxu0 0
  %155 = vmatprep.mubr.bf16.mxu0 0
  %156 = vmatmul.mubr.bf16.gmra.mrb[0].mxu0 %v65
  %v157 = vpop.f32.mrb[0].mxu0
  %v158 = vadd.f32 %v45, %v157
  %v159 = vpop.f32.mrb[0].mxu0
  %v160 = vpop.f32.mrb[0].mxu0
  %v161 = vadd.f32 %v45, %v160
  %v162 = vpop.f32.mrb[0].mxu0
  %163 = vmatprep.mubr.bf16.mxu0 0
  %164 = vmatmul.mubr.bf16.gmra.mrb[0].mxu0 %v66
  %v165 = vpop.f32.mrb[0].mxu0
  %v166 = vadd.f32 %v45, %v165
  %v167 = vpop.f32.mrb[0].mxu0
  %v168 = vpop.f32.mrb[0].mxu0
  %v169 = vadd.f32 %v45, %v168
  %v170 = vpop.f32.mrb[0].mxu0
  %171 = vmatprep.mubr.bf16.mxu0 0
  %172 = vmatmul.mubr.bf16.gmra.mrb[0].mxu0 %v67
  %v173 = vpop.f32.mrb[0].mxu0
  %v174 = vadd.f32 %v45, %v173
  %v175 = vpop.f32.mrb[0].mxu0
  %v176 = vpop.f32.mrb[0].mxu0
  %v177 = vadd.f32 %v45, %v176
  %v178 = vpop.f32.mrb[0].mxu0
  %179 = vmatprep.mubr.bf16.mxu0 0
  %180 = vmatmul.mubr.bf16.gmra.mrb[0].mxu0 %v68
  %v181 = vpop.f32.mrb[0].mxu0
  %v182 = vadd.f32 %v45, %v181
  %v183 = vpop.f32.mrb[0].mxu0
  %v184 = vpop.f32.mrb[0].mxu0
  %v185 = vadd.f32 %v45, %v184
  %v186 = vpop.f32.mrb[0].mxu0
  %187 = vmatprep.mubr.bf16.mxu0 0
  %188 = vmatmul.mubr.bf16.gmra.mrb[0].mxu0 %v69
  %v189 = vpop.f32.mrb[0].mxu0
  %v190 = vadd.f32 %v45, %v189
  %v191 = vpop.f32.mrb[0].mxu0
  %v192 = vpop.f32.mrb[0].mxu0
  %v193 = vpop.f32.mrb[0].mxu0
  %194 = vdwg.mxu0
  %195 = vst [vmem:[%s3] sm:$0xff] %v158
  %196 = vst [vmem:[%s3 + $0x8] sm:$0xff] %v161
  %197 = vst [vmem:[%s3 + $0x10] sm:$0xff] %v166
  %198 = vst [vmem:[%s3 + $0x18] sm:$0xff] %v169
  %199 = vst [vmem:[%s3 + $0x20] sm:$0xff] %v174
  %200 = vst [vmem:[%s3 + $0x28] sm:$0xff] %v177
  %201 = vst [vmem:[%s3 + $0x30] sm:$0xff] %v182
  %202 = vst [vmem:[%s3 + $0x38] sm:$0xff] %v185
  %203 = vst [vmem:[%s3 + $0x40] sm:$0xff] %v190
  // Predicated region
  $region14: #{cnn_to_rnn_forward.7} parent=0 // pred_check
    _
  $region15: #{cnn_to_rnn_forward.7} parent=0 // pred_check_branch
    %205 = sbr.rel (0) target = $region17
  $region16: #{cnn_to_rnn_forward.7} parent=0 // pred_region
    _
  $region17: #{cnn_to_rnn_forward.7} parent=0 // pred_fallthru
    _
  // Predicated region
  $region18: #{cnn_to_rnn_forward.7} parent=0 // pred_check
    _
  $region19: #{cnn_to_rnn_forward.7} parent=0 // pred_check_branch
    %207 = sbr.rel (0) target = $region21
  $region20: #{cnn_to_rnn_forward.7} parent=0 // pred_region
    _
  $region21: #{cnn_to_rnn_forward.7} parent=0 // pred_fallthru
    _

// kernel: cnn_to_rnn_forward.6
$region0: #{cnn_to_rnn_forward.6}
  #allocation0 [shape = 'u32[]', space=smem, size = 0x4, offset = 0x4, fixed_abs, tag = 'smem constant byte address 0x4 - core index']
  #allocation1 [shape = 'u32[144,128]{1,0:T(1,128)}', space=vmem, size = 0x12000, scoped, tag = 'internal scratch']
  #allocation2 [shape = 'f32[72,512]{1,0:T(8,128)}', space=vmem, size = 0x24000, scoped, tag = 'scratch operand']
  %s0 = inlined_call_operand.vmem [shape: bf16[72,128], index: 0, kind: input, shape index: {}]
  %s1 = inlined_call_operand.vmem [shape: bf16[2,128,512], index: 1, kind: input, shape index: {}]
  %s2 = inlined_call_operand.vmem [shape: bf16[2,128,512], index: 2, kind: input, shape index: {}]
  %s3 = inlined_call_operand.vmem [shape: f32[2,1,512], index: 3, kind: input, shape index: {}]
  %s4 = inlined_call_operand.vmem [shape: bf16[72,128], index: 4, kind: output, shape index: {}]
  %s5 = sld [smem:[#allocation0]]
  $region26: #{cnn_to_rnn_forward.6} parent=0
    _
  %s7 = ssub.s32 1, %s5
  %s8 = scalar_select 0, %s7, %s5
  // Predicated region
  $region2: #{cnn_to_rnn_forward.6} parent=0 // pred_check
    _
  $region3: #{cnn_to_rnn_forward.6} parent=0 // pred_check_branch
    %10 = sbr.rel (0) target = $region5
  $region4: #{cnn_to_rnn_forward.6} parent=0 // pred_region
    _
  $region5: #{cnn_to_rnn_forward.6} parent=0 // pred_fallthru
    _
  // Predicated region
  $region6: #{cnn_to_rnn_forward.6} parent=0 // pred_check
    _
  $region7: #{cnn_to_rnn_forward.6} parent=0 // pred_check_branch
    %12 = sbr.rel (0) target = $region9
  $region8: #{cnn_to_rnn_forward.6} parent=0 // pred_region
    _
  $region9: #{cnn_to_rnn_forward.6} parent=0 // pred_fallthru
    _
  // Predicated region
  $region10: #{cnn_to_rnn_forward.6} parent=0 // pred_check
    _
  $region11: #{cnn_to_rnn_forward.6} parent=0 // pred_check_branch
    %14 = sbr.rel (0) target = $region13
  $region12: #{cnn_to_rnn_forward.6} parent=0 // pred_region
    _
  $region13: #{cnn_to_rnn_forward.6} parent=0 // pred_fallthru
    _
  // Predicated region
  $region14: #{cnn_to_rnn_forward.6} parent=0 // pred_check
    _
  $region15: #{cnn_to_rnn_forward.6} parent=0 // pred_check_branch
    %16 = sbr.rel (0) target = $region17
  $region16: #{cnn_to_rnn_forward.6} parent=0 // pred_region
    _
  $region17: #{cnn_to_rnn_forward.6} parent=0 // pred_fallthru
    _
  %v18 = vld [vmem:[%s0] sm:$0xf]
  %v19 = vld [vmem:[%s0 + $0x4] sm:$0xf]
  %v20 = vld [vmem:[%s0 + $0x8] sm:$0xf]
  %v21 = vld [vmem:[%s0 + $0xc] sm:$0xf]
  %v22 = vld [vmem:[%s0 + $0x10] sm:$0xf]
  %v23 = vld [vmem:[%s0 + $0x14] sm:$0xf]
  %v24 = vld [vmem:[%s0 + $0x18] sm:$0xf]
  %v25 = vld [vmem:[%s0 + $0x1c] sm:$0xf]
  %v26 = vld [vmem:[%s0 + $0x20] sm:$0xf]
  %v27 = vld [vmem:[%s1] sm:$0xff]
  %v28 = vld [vmem:[%s1 + $0x8] sm:$0xff]
  %v29 = vld [vmem:[%s1 + $0x10] sm:$0xff]
  %v30 = vld [vmem:[%s1 + $0x18] sm:$0xff]
  %v31 = vld [vmem:[%s1 + $0x20] sm:$0xff]
  %v32 = vld [vmem:[%s1 + $0x28] sm:$0xff]
  %v33 = vld [vmem:[%s1 + $0x30] sm:$0xff]
  %v34 = vld [vmem:[%s1 + $0x38] sm:$0xff]
  %v35 = vld [vmem:[%s1 + $0x40] sm:$0xff]
  %v36 = vld [vmem:[%s1 + $0x48] sm:$0xff]
  %v37 = vld [vmem:[%s1 + $0x50] sm:$0xff]
  %v38 = vld [vmem:[%s1 + $0x58] sm:$0xff]
  %v39 = vld [vmem:[%s1 + $0x60] sm:$0xff]
  %v40 = vld [vmem:[%s1 + $0x68] sm:$0xff]
  %v41 = vld [vmem:[%s1 + $0x70] sm:$0xff]
  %v42 = vld [vmem:[%s1 + $0x78] sm:$0xff]
  %v43 = vld [vmem:[%s1 + $0x80] sm:$0xff]
  %v44 = vld [vmem:[%s1 + $0x88] sm:$0xff]
  %v45 = vld [vmem:[%s1 + $0x90] sm:$0xff]
  %v46 = vld [vmem:[%s1 + $0x98] sm:$0xff]
  %v47 = vld [vmem:[%s1 + $0xa0] sm:$0xff]
  %v48 = vld [vmem:[%s1 + $0xa8] sm:$0xff]
  %v49 = vld [vmem:[%s1 + $0xb0] sm:$0xff]
  %v50 = vld [vmem:[%s1 + $0xb8] sm:$0xff]
  %v51 = vld [vmem:[%s1 + $0xc0] sm:$0xff]
  %v52 = vld [vmem:[%s1 + $0xc8] sm:$0xff]
  %v53 = vld [vmem:[%s1 + $0xd0] sm:$0xff]
  %v54 = vld [vmem:[%s1 + $0xd8] sm:$0xff]
  %v55 = vld [vmem:[%s1 + $0xe0] sm:$0xff]
  %v56 = vld [vmem:[%s1 + $0xe8] sm:$0xff]
  %v57 = vld [vmem:[%s1 + $0xf0] sm:$0xff]
  %v58 = vld [vmem:[%s1 + $0xf8] sm:$0xff]
  %v59 = vld [vmem:[%s3] sm:$0xf]
  %v61 = vlaneseq
  %v62 = vshrl.u32 %v61, 7
  %v63 = vsub.s32 0, %v62
  %v64 = vrot.slane %v59, %v63
  %v65 = vlaneseq
  %v66 = vshrl.u32 %v65, 7
  %v67 = vsub.s32 1, %v66
  %v68 = vrot.slane %v59, %v67
  %v69 = vlaneseq
  %v70 = vshrl.u32 %v69, 7
  %v71 = vsub.s32 2, %v70
  %v72 = vrot.slane %v59, %v71
  %v73 = vlaneseq
  %v74 = vshrl.u32 %v73, 7
  %v75 = vsub.s32 3, %v74
  %v76 = vrot.slane %v59, %v75
  %v90 = vunpack.c.l.b16 %v18
  %v91 = vunpack.c.l.b16 %v19
  %v92 = vunpack.c.l.b16 %v20
  %v93 = vunpack.c.l.b16 %v21
  %v94 = vunpack.c.l.b16 %v22
  %v95 = vunpack.c.l.b16 %v23
  %v96 = vunpack.c.l.b16 %v24
  %v97 = vunpack.c.l.b16 %v25
  %v98 = vunpack.c.l.b16 %v26
  %v99 = vpack.c.b16 %v91, %v90
  %v100 = vpack.c.b16 %v93, %v92
  %v101 = vpack.c.b16 %v95, %v94
  %v102 = vpack.c.b16 %v97, %v96
  %v103 = vpack.c.b16 %v98, %v98
  %v141 = vunpack.c.l.b16 %v27
  %v142 = vunpack.c.h.b16 %v27
  %v143 = vunpack.c.l.b16 %v28
  %v144 = vunpack.c.h.b16 %v28
  %v145 = vunpack.c.l.b16 %v29
  %v146 = vunpack.c.h.b16 %v29
  %v147 = vunpack.c.l.b16 %v30
  %v148 = vunpack.c.h.b16 %v30
  %v149 = vunpack.c.l.b16 %v31
  %v150 = vunpack.c.h.b16 %v31
  %v151 = vunpack.c.l.b16 %v32
  %v152 = vunpack.c.h.b16 %v32
  %v153 = vunpack.c.l.b16 %v33
  %v154 = vunpack.c.h.b16 %v33
  %v155 = vunpack.c.l.b16 %v34
  %v156 = vunpack.c.h.b16 %v34
  %v157 = vunpack.c.l.b16 %v35
  %v158 = vunpack.c.h.b16 %v35
  %v159 = vunpack.c.l.b16 %v36
  %v160 = vunpack.c.h.b16 %v36
  %v161 = vunpack.c.l.b16 %v37
  %v162 = vunpack.c.h.b16 %v37
  %v163 = vunpack.c.l.b16 %v38
  %v164 = vunpack.c.h.b16 %v38
  %v165 = vunpack.c.l.b16 %v39
  %v166 = vunpack.c.h.b16 %v39
  %v167 = vunpack.c.l.b16 %v40
  %v168 = vunpack.c.h.b16 %v40
  %v169 = vunpack.c.l.b16 %v41
  %v170 = vunpack.c.h.b16 %v41
  %v171 = vunpack.c.l.b16 %v42
  %v172 = vunpack.c.h.b16 %v42
  %v173 = vunpack.c.l.b16 %v43
  %v174 = vunpack.c.h.b16 %v43
  %v175 = vunpack.c.l.b16 %v44
  %v176 = vunpack.c.h.b16 %v44
  %v177 = vunpack.c.l.b16 %v45
  %v178 = vunpack.c.h.b16 %v45
  %v179 = vunpack.c.l.b16 %v46
  %v180 = vunpack.c.h.b16 %v46
  %v181 = vunpack.c.l.b16 %v47
  %v182 = vunpack.c.h.b16 %v47
  %v183 = vunpack.c.l.b16 %v48
  %v184 = vunpack.c.h.b16 %v48
  %v185 = vunpack.c.l.b16 %v49
  %v186 = vunpack.c.h.b16 %v49
  %v187 = vunpack.c.l.b16 %v50
  %v188 = vunpack.c.h.b16 %v50
  %v189 = vunpack.c.l.b16 %v51
  %v190 = vunpack.c.h.b16 %v51
  %v191 = vunpack.c.l.b16 %v52
  %v192 = vunpack.c.h.b16 %v52
  %v193 = vunpack.c.l.b16 %v53
  %v194 = vunpack.c.h.b16 %v53
  %v195 = vunpack.c.l.b16 %v54
  %v196 = vunpack.c.h.b16 %v54
  %v197 = vunpack.c.l.b16 %v55
  %v198 = vunpack.c.h.b16 %v55
  %v199 = vunpack.c.l.b16 %v56
  %v200 = vunpack.c.h.b16 %v56
  %v201 = vunpack.c.l.b16 %v57
  %v202 = vunpack.c.h.b16 %v57
  %v203 = vunpack.c.l.b16 %v58
  %v204 = vunpack.c.h.b16 %v58
  %v205 = vpack.c.b16 %v145, %v141
  %v206 = vpack.c.b16 %v146, %v142
  %v207 = vpack.c.b16 %v147, %v143
  %v208 = vpack.c.b16 %v148, %v144
  %v209 = vpack.c.b16 %v153, %v149
  %v210 = vpack.c.b16 %v154, %v150
  %v211 = vpack.c.b16 %v155, %v151
  %v212 = vpack.c.b16 %v156, %v152
  %v213 = vpack.c.b16 %v161, %v157
  %v214 = vpack.c.b16 %v162, %v158
  %v215 = vpack.c.b16 %v163, %v159
  %v216 = vpack.c.b16 %v164, %v160
  %v217 = vpack.c.b16 %v169, %v165
  %v218 = vpack.c.b16 %v170, %v166
  %v219 = vpack.c.b16 %v171, %v167
  %v220 = vpack.c.b16 %v172, %v168
  %v221 = vpack.c.b16 %v177, %v173
  %v222 = vpack.c.b16 %v178, %v174
  %v223 = vpack.c.b16 %v179, %v175
  %v224 = vpack.c.b16 %v180, %v176
  %v225 = vpack.c.b16 %v185, %v181
  %v226 = vpack.c.b16 %v186, %v182
  %v227 = vpack.c.b16 %v187, %v183
  %v228 = vpack.c.b16 %v188, %v184
  %v229 = vpack.c.b16 %v193, %v189
  %v230 = vpack.c.b16 %v194, %v190
  %v231 = vpack.c.b16 %v195, %v191
  %v232 = vpack.c.b16 %v196, %v192
  %v233 = vpack.c.b16 %v201, %v197
  %v234 = vpack.c.b16 %v202, %v198
  %v235 = vpack.c.b16 %v203, %v199
  %v236 = vpack.c.b16 %v204, %v200
  %269 = vmatprep.subr.bf16.mxu0 %v206
  %270 = vmatpush1.bf16.msra.mxu0 %v205
  %271 = vmatprep.subr.bf16.mxu0 %v210
  %272 = vmatpush1.bf16.msra.mxu0 %v209
  %273 = vmatprep.subr.bf16.mxu0 %v214
  %274 = vmatpush1.bf16.msra.mxu0 %v213
  %275 = vmatprep.subr.bf16.mxu0 %v218
  %276 = vmatpush1.bf16.msra.mxu0 %v217
  %277 = vmatprep.subr.bf16.mxu0 %v222
  %278 = vmatpush1.bf16.msra.mxu0 %v221
  %279 = vmatprep.subr.bf16.mxu0 %v226
  %280 = vmatpush1.bf16.msra.mxu0 %v225
  %281 = vmatprep.subr.bf16.mxu0 %v230
  %282 = vmatpush1.bf16.msra.mxu0 %v229
  %283 = vmatprep.subr.bf16.mxu0 %v234
  %284 = vmatpush1.bf16.msra.mxu0 %v233
  %285 = vmatprep.subr.bf16.mxu0 0
  %286 = vmatpush1.bf16.msra.mxu0 0
  %287 = vmatprep.subr.bf16.mxu0 0
  %288 = vmatpush1.bf16.msra.mxu0 0
  %289 = vmatprep.subr.bf16.mxu0 0
  %290 = vmatpush1.bf16.msra.mxu0 0
  %291 = vmatprep.subr.bf16.mxu0 0
  %292 = vmatpush1.bf16.msra.mxu0 0
  %293 = vmatprep.subr.bf16.mxu0 0
  %294 = vmatpush1.bf16.msra.mxu0 0
  %295 = vmatprep.subr.bf16.mxu0 0
  %296 = vmatpush1.bf16.msra.mxu0 0
  %297 = vmatprep.subr.bf16.mxu0 0
  %298 = vmatpush1.bf16.msra.mxu0 0
  %299 = vmatprep.subr.bf16.mxu0 0
  %300 = vmatpush1.bf16.msra.mxu0 0
  %301 = vmatprep.mubr.bf16.mxu0 0
  %302 = vmatmul.mubr.bf16.gmra.mrb[0].mxu0 %v99
  %v303 = vpop.f32.mrb[0].mxu0
  %v304 = vadd.f32 %v64, %v303
  %v305 = vpop.f32.mrb[0].mxu0
  %v306 = vadd.f32 %v68, %v305
  %v307 = vpop.f32.mrb[0].mxu0
  %v308 = vadd.f32 %v64, %v307
  %v309 = vpop.f32.mrb[0].mxu0
  %v310 = vadd.f32 %v68, %v309
  %311 = vmatprep.mubr.bf16.mxu0 0
  %312 = vmatmul.mubr.bf16.gmra.mrb[0].mxu0 %v100
  %v313 = vpop.f32.mrb[0].mxu0
  %v314 = vadd.f32 %v64, %v313
  %v315 = vpop.f32.mrb[0].mxu0
  %v316 = vadd.f32 %v68, %v315
  %v317 = vpop.f32.mrb[0].mxu0
  %v318 = vadd.f32 %v64, %v317
  %v319 = vpop.f32.mrb[0].mxu0
  %v320 = vadd.f32 %v68, %v319
  %321 = vmatprep.mubr.bf16.mxu0 0
  %322 = vmatmul.mubr.bf16.gmra.mrb[0].mxu0 %v101
  %v323 = vpop.f32.mrb[0].mxu0
  %v324 = vadd.f32 %v64, %v323
  %v325 = vpop.f32.mrb[0].mxu0
  %v326 = vadd.f32 %v68, %v325
  %v327 = vpop.f32.mrb[0].mxu0
  %v328 = vadd.f32 %v64, %v327
  %v329 = vpop.f32.mrb[0].mxu0
  %v330 = vadd.f32 %v68, %v329
  %331 = vmatprep.mubr.bf16.mxu0 0
  %332 = vmatmul.mubr.bf16.gmra.mrb[0].mxu0 %v102
  %v333 = vpop.f32.mrb[0].mxu0
  %v334 = vadd.f32 %v64, %v333
  %v335 = vpop.f32.mrb[0].mxu0
  %v336 = vadd.f32 %v68, %v335
  %v337 = vpop.f32.mrb[0].mxu0
  %v338 = vadd.f32 %v64, %v337
  %v339 = vpop.f32.mrb[0].mxu0
  %v340 = vadd.f32 %v68, %v339
  %341 = vmatprep.mubr.bf16.mxu0 0
  %342 = vmatmul.mubr.bf16.gmra.mrb[0].mxu0 %v103
  %v343 = vpop.f32.mrb[0].mxu0
  %v344 = vadd.f32 %v64, %v343
  %v345 = vpop.f32.mrb[0].mxu0
  %v346 = vadd.f32 %v68, %v345
  %v347 = vpop.f32.mrb[0].mxu0
  %v348 = vpop.f32.mrb[0].mxu0
  %349 = vdwg.mxu0
  %350 = vmatprep.subr.bf16.mxu0 %v208
  %351 = vmatpush1.bf16.msra.mxu0 %v207
  %352 = vmatprep.subr.bf16.mxu0 %v212
  %353 = vmatpush1.bf16.msra.mxu0 %v211
  %354 = vmatprep.subr.bf16.mxu0 %v216
  %355 = vmatpush1.bf16.msra.mxu0 %v215
  %356 = vmatprep.subr.bf16.mxu0 %v220
  %357 = vmatpush1.bf16.msra.mxu0 %v219
  %358 = vmatprep.subr.bf16.mxu0 %v224
  %359 = vmatpush1.bf16.msra.mxu0 %v223
  %360 = vmatprep.subr.bf16.mxu0 %v228
  %361 = vmatpush1.bf16.msra.mxu0 %v227
  %362 = vmatprep.subr.bf16.mxu0 %v232
  %363 = vmatpush1.bf16.msra.mxu0 %v231
  %364 = vmatprep.subr.bf16.mxu0 %v236
  %365 = vmatpush1.bf16.msra.mxu0 %v235
  %366 = vmatprep.subr.bf16.mxu0 0
  %367 = vmatpush1.bf16.msra.mxu0 0
  %368 = vmatprep.subr.bf16.mxu0 0
  %369 = vmatpush1.bf16.msra.mxu0 0
  %370 = vmatprep.subr.bf16.mxu0 0
  %371 = vmatpush1.bf16.msra.mxu0 0
  %372 = vmatprep.subr.bf16.mxu0 0
  %373 = vmatpush1.bf16.msra.mxu0 0
  %374 = vmatprep.subr.bf16.mxu0 0
  %375 = vmatpush1.bf16.msra.mxu0 0
  %376 = vmatprep.subr.bf16.mxu0 0
  %377 = vmatpush1.bf16.msra.mxu0 0
  %378 = vmatprep.subr.bf16.mxu0 0
  %379 = vmatpush1.bf16.msra.mxu0 0
  %380 = vmatprep.subr.bf16.mxu0 0
  %381 = vmatpush1.bf16.msra.mxu0 0
  %382 = vmatprep.mubr.bf16.mxu0 0
  %383 = vmatmul.mubr.bf16.gmra.mrb[0].mxu0 %v99
  %v384 = vpop.f32.mrb[0].mxu0
  %v385 = vadd.f32 %v72, %v384
  %v386 = vpop.f32.mrb[0].mxu0
  %v387 = vadd.f32 %v76, %v386
  %v388 = vpop.f32.mrb[0].mxu0
  %v389 = vadd.f32 %v72, %v388
  %v390 = vpop.f32.mrb[0].mxu0
  %v391 = vadd.f32 %v76, %v390
  %392 = vmatprep.mubr.bf16.mxu0 0
  %393 = vmatmul.mubr.bf16.gmra.mrb[0].mxu0 %v100
  %v394 = vpop.f32.mrb[0].mxu0
  %v395 = vadd.f32 %v72, %v394
  %v396 = vpop.f32.mrb[0].mxu0
  %v397 = vadd.f32 %v76, %v396
  %v398 = vpop.f32.mrb[0].mxu0
  %v399 = vadd.f32 %v72, %v398
  %v400 = vpop.f32.mrb[0].mxu0
  %v401 = vadd.f32 %v76, %v400
  %402 = vmatprep.mubr.bf16.mxu0 0
  %403 = vmatmul.mubr.bf16.gmra.mrb[0].mxu0 %v101
  %v404 = vpop.f32.mrb[0].mxu0
  %v405 = vadd.f32 %v72, %v404
  %v406 = vpop.f32.mrb[0].mxu0
  %v407 = vadd.f32 %v76, %v406
  %v408 = vpop.f32.mrb[0].mxu0
  %v409 = vadd.f32 %v72, %v408
  %v410 = vpop.f32.mrb[0].mxu0
  %v411 = vadd.f32 %v76, %v410
  %412 = vmatprep.mubr.bf16.mxu0 0
  %413 = vmatmul.mubr.bf16.gmra.mrb[0].mxu0 %v102
  %v414 = vpop.f32.mrb[0].mxu0
  %v415 = vadd.f32 %v72, %v414
  %v416 = vpop.f32.mrb[0].mxu0
  %v417 = vadd.f32 %v76, %v416
  %v418 = vpop.f32.mrb[0].mxu0
  %v419 = vadd.f32 %v72, %v418
  %v420 = vpop.f32.mrb[0].mxu0
  %v421 = vadd.f32 %v76, %v420
  %422 = vmatprep.mubr.bf16.mxu0 0
  %423 = vmatmul.mubr.bf16.gmra.mrb[0].mxu0 %v103
  %v424 = vpop.f32.mrb[0].mxu0
  %v425 = vadd.f32 %v72, %v424
  %v426 = vpop.f32.mrb[0].mxu0
  %v427 = vadd.f32 %v76, %v426
  %v428 = vpop.f32.mrb[0].mxu0
  %v429 = vpop.f32.mrb[0].mxu0
  %430 = vdwg.mxu0
  %431 = vst [vmem:[#allocation2] sm:$0xff] %v304
  %432 = vst [vmem:[#allocation2 + $0x8] sm:$0xff] %v306
  %433 = vst [vmem:[#allocation2 + $0x10] sm:$0xff] %v385
  %434 = vst [vmem:[#allocation2 + $0x18] sm:$0xff] %v387
  %435 = vst [vmem:[#allocation2 + $0x20] sm:$0xff] %v308
  %436 = vst [vmem:[#allocation2 + $0x28] sm:$0xff] %v310
  %437 = vst [vmem:[#allocation2 + $0x30] sm:$0xff] %v389
  %438 = vst [vmem:[#allocation2 + $0x38] sm:$0xff] %v391
  %439 = vst [vmem:[#allocation2 + $0x40] sm:$0xff] %v314
  %440 = vst [vmem:[#allocation2 + $0x48] sm:$0xff] %v316
  %441 = vst [vmem:[#allocation2 + $0x50] sm:$0xff] %v395
  %442 = vst [vmem:[#allocation2 + $0x58] sm:$0xff] %v397
  %443 = vst [vmem:[#allocation2 + $0x60] sm:$0xff] %v318
  %444 = vst [vmem:[#allocation2 + $0x68] sm:$0xff] %v320
  %445 = vst [vmem:[#allocation2 + $0x70] sm:$0xff] %v399
  %446 = vst [vmem:[#allocation2 + $0x78] sm:$0xff] %v401
  %447 = vst [vmem:[#allocation2 + $0x80] sm:$0xff] %v324
  %448 = vst [vmem:[#allocation2 + $0x88] sm:$0xff] %v326
  %449 = vst [vmem:[#allocation2 + $0x90] sm:$0xff] %v405
  %450 = vst [vmem:[#allocation2 + $0x98] sm:$0xff] %v407
  %451 = vst [vmem:[#allocation2 + $0xa0] sm:$0xff] %v328
  %452 = vst [vmem:[#allocation2 + $0xa8] sm:$0xff] %v330
  %453 = vst [vmem:[#allocation2 + $0xb0] sm:$0xff] %v409
  %454 = vst [vmem:[#allocation2 + $0xb8] sm:$0xff] %v411
  %455 = vst [vmem:[#allocation2 + $0xc0] sm:$0xff] %v334
  %456 = vst [vmem:[#allocation2 + $0xc8] sm:$0xff] %v336
  %457 = vst [vmem:[#allocation2 + $0xd0] sm:$0xff] %v415
  %458 = vst [vmem:[#allocation2 + $0xd8] sm:$0xff] %v417
  %459 = vst [vmem:[#allocation2 + $0xe0] sm:$0xff] %v338
  %460 = vst [vmem:[#allocation2 + $0xe8] sm:$0xff] %v340
  %461 = vst [vmem:[#allocation2 + $0xf0] sm:$0xff] %v419
  %462 = vst [vmem:[#allocation2 + $0xf8] sm:$0xff] %v421
  %463 = vst [vmem:[#allocation2 + $0x100] sm:$0xff] %v344
  %464 = vst [vmem:[#allocation2 + $0x108] sm:$0xff] %v346
  %465 = vst [vmem:[#allocation2 + $0x110] sm:$0xff] %v425
  %466 = vst [vmem:[#allocation2 + $0x118] sm:$0xff] %v427
  %v467 = vld [vmem:[#allocation2] sm:$0xff]
  %v468 = vld [vmem:[#allocation2 + $0x8] sm:$0xff]
  %v469 = vld [vmem:[#allocation2 + $0x10] sm:$0xff]
  %v470 = vld [vmem:[#allocation2 + $0x18] sm:$0xff]
  %v471 = vld [vmem:[%s2] sm:$0xff]
  %v472 = vld [vmem:[%s2 + $0x8] sm:$0xff]
  %v473 = vld [vmem:[%s2 + $0x10] sm:$0xff]
  %v474 = vld [vmem:[%s2 + $0x18] sm:$0xff]
  %v475 = vld [vmem:[%s2 + $0x20] sm:$0xff]
  %v476 = vld [vmem:[%s2 + $0x28] sm:$0xff]
  %v477 = vld [vmem:[%s2 + $0x30] sm:$0xff]
  %v478 = vld [vmem:[%s2 + $0x38] sm:$0xff]
  %v479 = vld [vmem:[%s2 + $0x40] sm:$0xff]
  %v480 = vld [vmem:[%s2 + $0x48] sm:$0xff]
  %v481 = vld [vmem:[%s2 + $0x50] sm:$0xff]
  %v482 = vld [vmem:[%s2 + $0x58] sm:$0xff]
  %v483 = vld [vmem:[%s2 + $0x60] sm:$0xff]
  %v484 = vld [vmem:[%s2 + $0x68] sm:$0xff]
  %v485 = vld [vmem:[%s2 + $0x70] sm:$0xff]
  %v486 = vld [vmem:[%s2 + $0x78] sm:$0xff]
  %v487 = vld [vmem:[%s2 + $0x80] sm:$0xff]
  %v488 = vld [vmem:[%s2 + $0x88] sm:$0xff]
  %v489 = vld [vmem:[%s2 + $0x90] sm:$0xff]
  %v490 = vld [vmem:[%s2 + $0x98] sm:$0xff]
  %v491 = vld [vmem:[%s2 + $0xa0] sm:$0xff]
  %v492 = vld [vmem:[%s2 + $0xa8] sm:$0xff]
  %v493 = vld [vmem:[%s2 + $0xb0] sm:$0xff]
  %v494 = vld [vmem:[%s2 + $0xb8] sm:$0xff]
  %v495 = vld [vmem:[%s2 + $0xc0] sm:$0xff]
  %v496 = vld [vmem:[%s2 + $0xc8] sm:$0xff]
  %v497 = vld [vmem:[%s2 + $0xd0] sm:$0xff]
  %v498 = vld [vmem:[%s2 + $0xd8] sm:$0xff]
  %v499 = vld [vmem:[%s2 + $0xe0] sm:$0xff]
  %v500 = vld [vmem:[%s2 + $0xe8] sm:$0xff]
  %v501 = vld [vmem:[%s2 + $0xf0] sm:$0xff]
  %v502 = vld [vmem:[%s2 + $0xf8] sm:$0xff]
  %v535 = vunpack.c.l.b16 %v471
  %v536 = vunpack.c.h.b16 %v471
  %v537 = vunpack.c.l.b16 %v472
  %v538 = vunpack.c.h.b16 %v472
  %v539 = vunpack.c.l.b16 %v473
  %v540 = vunpack.c.h.b16 %v473
  %v541 = vunpack.c.l.b16 %v474
  %v542 = vunpack.c.h.b16 %v474
  %v543 = vunpack.c.l.b16 %v475
  %v544 = vunpack.c.h.b16 %v475
  %v545 = vunpack.c.l.b16 %v476
  %v546 = vunpack.c.h.b16 %v476
  %v547 = vunpack.c.l.b16 %v477
  %v548 = vunpack.c.h.b16 %v477
  %v549 = vunpack.c.l.b16 %v478
  %v550 = vunpack.c.h.b16 %v478
  %v551 = vunpack.c.l.b16 %v479
  %v552 = vunpack.c.h.b16 %v479
  %v553 = vunpack.c.l.b16 %v480
  %v554 = vunpack.c.h.b16 %v480
  %v555 = vunpack.c.l.b16 %v481
  %v556 = vunpack.c.h.b16 %v481
  %v557 = vunpack.c.l.b16 %v482
  %v558 = vunpack.c.h.b16 %v482
  %v559 = vunpack.c.l.b16 %v483
  %v560 = vunpack.c.h.b16 %v483
  %v561 = vunpack.c.l.b16 %v484
  %v562 = vunpack.c.h.b16 %v484
  %v563 = vunpack.c.l.b16 %v485
  %v564 = vunpack.c.h.b16 %v485
  %v565 = vunpack.c.l.b16 %v486
  %v566 = vunpack.c.h.b16 %v486
  %v567 = vunpack.c.l.b16 %v487
  %v568 = vunpack.c.h.b16 %v487
  %v569 = vunpack.c.l.b16 %v488
  %v570 = vunpack.c.h.b16 %v488
  %v571 = vunpack.c.l.b16 %v489
  %v572 = vunpack.c.h.b16 %v489
  %v573 = vunpack.c.l.b16 %v490
  %v574 = vunpack.c.h.b16 %v490
  %v575 = vunpack.c.l.b16 %v491
  %v576 = vunpack.c.h.b16 %v491
  %v577 = vunpack.c.l.b16 %v492
  %v578 = vunpack.c.h.b16 %v492
  %v579 = vunpack.c.l.b16 %v493
  %v580 = vunpack.c.h.b16 %v493
  %v581 = vunpack.c.l.b16 %v494
  %v582 = vunpack.c.h.b16 %v494
  %v583 = vunpack.c.l.b16 %v495
  %v584 = vunpack.c.h.b16 %v495
  %v585 = vunpack.c.l.b16 %v496
  %v586 = vunpack.c.h.b16 %v496
  %v587 = vunpack.c.l.b16 %v497
  %v588 = vunpack.c.h.b16 %v497
  %v589 = vunpack.c.l.b16 %v498
  %v590 = vunpack.c.h.b16 %v498
  %v591 = vunpack.c.l.b16 %v499
  %v592 = vunpack.c.h.b16 %v499
  %v593 = vunpack.c.l.b16 %v500
  %v594 = vunpack.c.h.b16 %v500
  %v595 = vunpack.c.l.b16 %v501
  %v596 = vunpack.c.h.b16 %v501
  %v597 = vunpack.c.l.b16 %v502
  %v598 = vunpack.c.h.b16 %v502
  %v599 = vpack.c.b16 %v539, %v535
  %v600 = vpack.c.b16 %v540, %v536
  %v601 = vpack.c.b16 %v541, %v537
  %v602 = vpack.c.b16 %v542, %v538
  %v603 = vpack.c.b16 %v547, %v543
  %v604 = vpack.c.b16 %v548, %v544
  %v605 = vpack.c.b16 %v549, %v545
  %v606 = vpack.c.b16 %v550, %v546
  %v607 = vpack.c.b16 %v555, %v551
  %v608 = vpack.c.b16 %v556, %v552
  %v609 = vpack.c.b16 %v557, %v553
  %v610 = vpack.c.b16 %v558, %v554
  %v611 = vpack.c.b16 %v563, %v559
  %v612 = vpack.c.b16 %v564, %v560
  %v613 = vpack.c.b16 %v565, %v561
  %v614 = vpack.c.b16 %v566, %v562
  %v615 = vpack.c.b16 %v571, %v567
  %v616 = vpack.c.b16 %v572, %v568
  %v617 = vpack.c.b16 %v573, %v569
  %v618 = vpack.c.b16 %v574, %v570
  %v619 = vpack.c.b16 %v579, %v575
  %v620 = vpack.c.b16 %v580, %v576
  %v621 = vpack.c.b16 %v581, %v577
  %v622 = vpack.c.b16 %v582, %v578
  %v623 = vpack.c.b16 %v587, %v583
  %v624 = vpack.c.b16 %v588, %v584
  %v625 = vpack.c.b16 %v589, %v585
  %v626 = vpack.c.b16 %v590, %v586
  %v627 = vpack.c.b16 %v595, %v591
  %v628 = vpack.c.b16 %v596, %v592
  %v629 = vpack.c.b16 %v597, %v593
  %v630 = vpack.c.b16 %v598, %v594
  %663 = vmatprep.subr.bf16.mxu0 %v600
  %664 = vmatpush1.bf16.msra.mxu0 %v599
  %665 = vmatprep.subr.bf16.mxu0 %v604
  %666 = vmatpush1.bf16.msra.mxu0 %v603
  %667 = vmatprep.subr.bf16.mxu0 %v608
  %668 = vmatpush1.bf16.msra.mxu0 %v607
  %669 = vmatprep.subr.bf16.mxu0 %v612
  %670 = vmatpush1.bf16.msra.mxu0 %v611
  %671 = vmatprep.subr.bf16.mxu0 %v616
  %672 = vmatpush1.bf16.msra.mxu0 %v615
  %673 = vmatprep.subr.bf16.mxu0 %v620
  %674 = vmatpush1.bf16.msra.mxu0 %v619
  %675 = vmatprep.subr.bf16.mxu0 %v624
  %676 = vmatpush1.bf16.msra.mxu0 %v623
  %677 = vmatprep.subr.bf16.mxu0 %v628
  %678 = vmatpush1.bf16.msra.mxu0 %v627
  %679 = vmatprep.subr.bf16.mxu0 0
  %680 = vmatpush1.bf16.msra.mxu0 0
  %681 = vmatprep.subr.bf16.mxu0 0
  %682 = vmatpush1.bf16.msra.mxu0 0
  %683 = vmatprep.subr.bf16.mxu0 0
  %684 = vmatpush1.bf16.msra.mxu0 0
  %685 = vmatprep.subr.bf16.mxu0 0
  %686 = vmatpush1.bf16.msra.mxu0 0
  %687 = vmatprep.subr.bf16.mxu0 0
  %688 = vmatpush1.bf16.msra.mxu0 0
  %689 = vmatprep.subr.bf16.mxu0 0
  %690 = vmatpush1.bf16.msra.mxu0 0
  %691 = vmatprep.subr.bf16.mxu0 0
  %692 = vmatpush1.bf16.msra.mxu0 0
  %693 = vmatprep.subr.bf16.mxu0 0
  %694 = vmatpush1.bf16.msra.mxu0 0
  %695 = vmatprep.mubr.bf16.mxu0 0
  %696 = vmatmul.mubr.bf16.gmra.mrb[0].mxu0 0
  %v697 = vpop.f32.mrb[0].mxu0
  %v698 = vadd.f32 0.0, %v697
  %v699 = vpop.f32.mrb[0].mxu0
  %v700 = vadd.f32 0.0, %v699
  %v701 = vpop.f32.mrb[0].mxu0
  %v702 = vpop.f32.mrb[0].mxu0
  %703 = vdwg.mxu0
  %704 = vmatprep.subr.bf16.mxu0 %v602
  %705 = vmatpush1.bf16.msra.mxu0 %v601
  %706 = vmatprep.subr.bf16.mxu0 %v606
  %707 = vmatpush1.bf16.msra.mxu0 %v605
  %708 = vmatprep.subr.bf16.mxu0 %v610
  %709 = vmatpush1.bf16.msra.mxu0 %v609
  %710 = vmatprep.subr.bf16.mxu0 %v614
  %711 = vmatpush1.bf16.msra.mxu0 %v613
  %712 = vmatprep.subr.bf16.mxu0 %v618
  %713 = vmatpush1.bf16.msra.mxu0 %v617
  %714 = vmatprep.subr.bf16.mxu0 %v622
  %715 = vmatpush1.bf16.msra.mxu0 %v621
  %716 = vmatprep.subr.bf16.mxu0 %v626
  %717 = vmatpush1.bf16.msra.mxu0 %v625
  %718 = vmatprep.subr.bf16.mxu0 %v630
  %719 = vmatpush1.bf16.msra.mxu0 %v629
  %720 = vmatprep.subr.bf16.mxu0 0
  %721 = vmatpush1.bf16.msra.mxu0 0
  %722 = vmatprep.subr.bf16.mxu0 0
  %723 = vmatpush1.bf16.msra.mxu0 0
  %724 = vmatprep.subr.bf16.mxu0 0
  %725 = vmatpush1.bf16.msra.mxu0 0
  %726 = vmatprep.subr.bf16.mxu0 0
  %727 = vmatpush1.bf16.msra.mxu0 0
  %728 = vmatprep.subr.bf16.mxu0 0
  %729 = vmatpush1.bf16.msra.mxu0 0
  %730 = vmatprep.subr.bf16.mxu0 0
  %731 = vmatpush1.bf16.msra.mxu0 0
  %732 = vmatprep.subr.bf16.mxu0 0
  %733 = vmatpush1.bf16.msra.mxu0 0
  %734 = vmatprep.subr.bf16.mxu0 0
  %735 = vmatpush1.bf16.msra.mxu0 0
  %736 = vmatprep.mubr.bf16.mxu0 0
  %737 = vmatmul.mubr.bf16.gmra.mrb[0].mxu0 0
  %v738 = vpop.f32.mrb[0].mxu0
  %v739 = vadd.f32 0.0, %v738
  %v740 = vpop.f32.mrb[0].mxu0
  %v741 = vadd.f32 0.0, %v740
  %v742 = vpop.f32.mrb[0].mxu0
  %v743 = vpop.f32.mrb[0].mxu0
  %744 = vdwg.mxu0
  %v745 = vadd.f32 %v467, %v698
  %v746 = vadd.f32 %v468, %v700
  %v747 = vadd.f32 %v469, %v739
  %v748 = vadd.f32 %v470, %v741
  %v749 = vxor.u32 %v745, 2147483648
  %v750 = vxor.u32 %v746, 2147483648
  %v751 = vxor.u32 %v747, 2147483648
  %v752 = vmul.f32 %v749, 1.442695
  %v753 = vpow.pop %v752
  %v754 = vmul.f32 %v750, 1.442695
  %v755 = vpow.pop %v754
  %v756 = vmul.f32 %v751, 1.442695
  %v757 = vpow.pop %v756
  %v758 = vadd.f32 %v753, 1.0
  %v759 = vadd.f32 %v755, 1.0
  %v760 = vadd.f32 %v757, 1.0
  %v761 = vrcp.pop %v758
  %v762 = vmul.f32 1.0, %v761
  %v763 = vrcp.pop %v759
  %v764 = vmul.f32 1.0, %v763
  %v765 = vrcp.pop %v760
  %v766 = vmul.f32 1.0, %v765
  %v767 = vtanh.pop %v748
  %v768 = vmul.f32 %v764, 0.0
  %v769 = vmul.f32 %v762, %v767
  %v770 = vadd.f32 %v768, %v769
  %v771 = vtanh.pop %v770
  %v772 = vmul.f32 %v766, %v771
  %v773 = vpack.c.bf16 %v772, %v772
  %774 = vst [vmem:[%s4] sm:$0xf] %v773
  %v775 = vld [vmem:[#allocation2 + $0x20] sm:$0xff]
  %v776 = vld [vmem:[#allocation2 + $0x28] sm:$0xff]
  %v777 = vld [vmem:[#allocation2 + $0x30] sm:$0xff]
  %v778 = vld [vmem:[#allocation2 + $0x38] sm:$0xff]
  %v779 = vld [vmem:[%s2] sm:$0xff]
  %v780 = vld [vmem:[%s2 + $0x8] sm:$0xff]
  %v781 = vld [vmem:[%s2 + $0x10] sm:$0xff]
  %v782 = vld [vmem:[%s2 + $0x18] sm:$0xff]
  %v783 = vld [vmem:[%s2 + $0x20] sm:$0xff]
  %v784 = vld [vmem:[%s2 + $0x28] sm:$0xff]
  %v785 = vld [vmem:[%s2 + $0x30] sm:$0xff]
  %v786 = vld [vmem:[%s2 + $0x38] sm:$0xff]
  %v787 = vld [vmem:[%s2 + $0x40] sm:$0xff]
  %v788 = vld [vmem:[%s2 + $0x48] sm:$0xff]
  %v789 = vld [vmem:[%s2 + $0x50] sm:$0xff]
  %v790 = vld [vmem:[%s2 + $0x58] sm:$0xff]
  %v791 = vld [vmem:[%s2 + $0x60] sm:$0xff]
  %v792 = vld [vmem:[%s2 + $0x68] sm:$0xff]
  %v793 = vld [vmem:[%s2 + $0x70] sm:$0xff]
  %v794 = vld [vmem:[%s2 + $0x78] sm:$0xff]
  %v795 = vld [vmem:[%s2 + $0x80] sm:$0xff]
  %v796 = vld [vmem:[%s2 + $0x88] sm:$0xff]
  %v797 = vld [vmem:[%s2 + $0x90] sm:$0xff]
  %v798 = vld [vmem:[%s2 + $0x98] sm:$0xff]
  %v799 = vld [vmem:[%s2 + $0xa0] sm:$0xff]
  %v800 = vld [vmem:[%s2 + $0xa8] sm:$0xff]
  %v801 = vld [vmem:[%s2 + $0xb0] sm:$0xff]
  %v802 = vld [vmem:[%s2 + $0xb8] sm:$0xff]
  %v803 = vld [vmem:[%s2 + $0xc0] sm:$0xff]
  %v804 = vld [vmem:[%s2 + $0xc8] sm:$0xff]
  %v805 = vld [vmem:[%s2 + $0xd0] sm:$0xff]
  %v806 = vld [vmem:[%s2 + $0xd8] sm:$0xff]
  %v807 = vld [vmem:[%s2 + $0xe0] sm:$0xff]
  %v808 = vld [vmem:[%s2 + $0xe8] sm:$0xff]
  %v809 = vld [vmem:[%s2 + $0xf0] sm:$0xff]
  %v810 = vld [vmem:[%s2 + $0xf8] sm:$0xff]
  %v843 = vunpack.c.l.b16 %v779
  %v844 = vunpack.c.h.b16 %v779
  %v845 = vunpack.c.l.b16 %v780
  %v846 = vunpack.c.h.b16 %v780
  %v847 = vunpack.c.l.b16 %v781
  %v848 = vunpack.c.h.b16 %v781
  %v849 = vunpack.c.l.b16 %v782
  %v850 = vunpack.c.h.b16 %v782
  %v851 = vunpack.c.l.b16 %v783
  %v852 = vunpack.c.h.b16 %v783
  %v853 = vunpack.c.l.b16 %v784
  %v854 = vunpack.c.h.b16 %v784
  %v855 = vunpack.c.l.b16 %v785
  %v856 = vunpack.c.h.b16 %v785
  %v857 = vunpack.c.l.b16 %v786
  %v858 = vunpack.c.h.b16 %v786
  %v859 = vunpack.c.l.b16 %v787
  %v860 = vunpack.c.h.b16 %v787
  %v861 = vunpack.c.l.b16 %v788
  %v862 = vunpack.c.h.b16 %v788
  %v863 = vunpack.c.l.b16 %v789
  %v864 = vunpack.c.h.b16 %v789
  %v865 = vunpack.c.l.b16 %v790
  %v866 = vunpack.c.h.b16 %v790
  %v867 = vunpack.c.l.b16 %v791
  %v868 = vunpack.c.h.b16 %v791
  %v869 = vunpack.c.l.b16 %v792
  %v870 = vunpack.c.h.b16 %v792
  %v871 = vunpack.c.l.b16 %v793
  %v872 = vunpack.c.h.b16 %v793
  %v873 = vunpack.c.l.b16 %v794
  %v874 = vunpack.c.h.b16 %v794
  %v875 = vunpack.c.l.b16 %v795
  %v876 = vunpack.c.h.b16 %v795
  %v877 = vunpack.c.l.b16 %v796
  %v878 = vunpack.c.h.b16 %v796
  %v879 = vunpack.c.l.b16 %v797
  %v880 = vunpack.c.h.b16 %v797
  %v881 = vunpack.c.l.b16 %v798
  %v882 = vunpack.c.h.b16 %v798
  %v883 = vunpack.c.l.b16 %v799
  %v884 = vunpack.c.h.b16 %v799
  %v885 = vunpack.c.l.b16 %v800
  %v886 = vunpack.c.h.b16 %v800
  %v887 = vunpack.c.l.b16 %v801
  %v888 = vunpack.c.h.b16 %v801
  %v889 = vunpack.c.l.b16 %v802
  %v890 = vunpack.c.h.b16 %v802
  %v891 = vunpack.c.l.b16 %v803
  %v892 = vunpack.c.h.b16 %v803
  %v893 = vunpack.c.l.b16 %v804
  %v894 = vunpack.c.h.b16 %v804
  %v895 = vunpack.c.l.b16 %v805
  %v896 = vunpack.c.h.b16 %v805
  %v897 = vunpack.c.l.b16 %v806
  %v898 = vunpack.c.h.b16 %v806
  %v899 = vunpack.c.l.b16 %v807
  %v900 = vunpack.c.h.b16 %v807
  %v901 = vunpack.c.l.b16 %v808
  %v902 = vunpack.c.h.b16 %v808
  %v903 = vunpack.c.l.b16 %v809
  %v904 = vunpack.c.h.b16 %v809
  %v905 = vunpack.c.l.b16 %v810
  %v906 = vunpack.c.h.b16 %v810
  %v907 = vpack.c.b16 %v847, %v843
  %v908 = vpack.c.b16 %v848, %v844
  %v909 = vpack.c.b16 %v849, %v845
  %v910 = vpack.c.b16 %v850, %v846
  %v911 = vpack.c.b16 %v855, %v851
  %v912 = vpack.c.b16 %v856, %v852
  %v913 = vpack.c.b16 %v857, %v853
  %v914 = vpack.c.b16 %v858, %v854
  %v915 = vpack.c.b16 %v863, %v859
  %v916 = vpack.c.b16 %v864, %v860
  %v917 = vpack.c.b16 %v865, %v861
  %v918 = vpack.c.b16 %v866, %v862
  %v919 = vpack.c.b16 %v871, %v867
  %v920 = vpack.c.b16 %v872, %v868
  %v921 = vpack.c.b16 %v873, %v869
  %v922 = vpack.c.b16 %v874, %v870
  %v923 = vpack.c.b16 %v879, %v875
  %v924 = vpack.c.b16 %v880, %v876
  %v925 = vpack.c.b16 %v881, %v877
  %v926 = vpack.c.b16 %v882, %v878
  %v927 = vpack.c.b16 %v887, %v883
  %v928 = vpack.c.b16 %v888, %v884
  %v929 = vpack.c.b16 %v889, %v885
  %v930 = vpack.c.b16 %v890, %v886
  %v931 = vpack.c.b16 %v895, %v891
  %v932 = vpack.c.b16 %v896, %v892
  %v933 = vpack.c.b16 %v897, %v893
  %v934 = vpack.c.b16 %v898, %v894
  %v935 = vpack.c.b16 %v903, %v899
  %v936 = vpack.c.b16 %v904, %v900
  %v937 = vpack.c.b16 %v905, %v901
  %v938 = vpack.c.b16 %v906, %v902
  %971 = vmatprep.subr.bf16.mxu0 %v908
  %972 = vmatpush1.bf16.msra.mxu0 %v907
  %973 = vmatprep.subr.bf16.mxu0 %v912
  %974 = vmatpush1.bf16.msra.mxu0 %v911
  %975 = vmatprep.subr.bf16.mxu0 %v916
  %976 = vmatpush1.bf16.msra.mxu0 %v915
  %977 = vmatprep.subr.bf16.mxu0 %v920
  %978 = vmatpush1.bf16.msra.mxu0 %v919
  %979 = vmatprep.subr.bf16.mxu0 %v924
  %980 = vmatpush1.bf16.msra.mxu0 %v923
  %981 = vmatprep.subr.bf16.mxu0 %v928
  %982 = vmatpush1.bf16.msra.mxu0 %v927
  %983 = vmatprep.subr.bf16.mxu0 %v932
  %984 = vmatpush1.bf16.msra.mxu0 %v931
  %985 = vmatprep.subr.bf16.mxu0 %v936
  %986 = vmatpush1.bf16.msra.mxu0 %v935
  %987 = vmatprep.subr.bf16.mxu0 0
  %988 = vmatpush1.bf16.msra.mxu0 0
  %989 = vmatprep.subr.bf16.mxu0 0
  %990 = vmatpush1.bf16.msra.mxu0 0
  %991 = vmatprep.subr.bf16.mxu0 0
  %992 = vmatpush1.bf16.msra.mxu0 0
  %993 = vmatprep.subr.bf16.mxu0 0
  %994 = vmatpush1.bf16.msra.mxu0 0
  %995 = vmatprep.subr.bf16.mxu0 0
  %996 = vmatpush1.bf16.msra.mxu0 0
  %997 = vmatprep.subr.bf16.mxu0 0
  %998 = vmatpush1.bf16.msra.mxu0 0
  %999 = vmatprep.subr.bf16.mxu0 0
  %1000 = vmatpush1.bf16.msra.mxu0 0
  %1001 = vmatprep.subr.bf16.mxu0 0
  %1002 = vmatpush1.bf16.msra.mxu0 0
  %1003 = vmatprep.mubr.bf16.mxu0 0
  %1004 = vmatmul.mubr.bf16.gmra.mrb[0].mxu0 %v773
  %v1005 = vpop.f32.mrb[0].mxu0
  %v1006 = vadd.f32 0.0, %v1005
  %v1007 = vpop.f32.mrb[0].mxu0
  %v1008 = vadd.f32 0.0, %v1007
  %v1009 = vpop.f32.mrb[0].mxu0
  %v1010 = vpop.f32.mrb[0].mxu0
  %1011 = vdwg.mxu0
  %1012 = vmatprep.subr.bf16.mxu0 %v910
  %1013 = vmatpush1.bf16.msra.mxu0 %v909
  %1014 = vmatprep.subr.bf16.mxu0 %v914
  %1015 = vmatpush1.bf16.msra.mxu0 %v913
  %1016 = vmatprep.subr.bf16.mxu0 %v918
  %1017 = vmatpush1.bf16.msra.mxu0 %v917
  %1018 = vmatprep.subr.bf16.mxu0 %v922
  %1019 = vmatpush1.bf16.msra.mxu0 %v921
  %1020 = vmatprep.subr.bf16.mxu0 %v926
  %1021 = vmatpush1.bf16.msra.mxu0 %v925
  %1022 = vmatprep.subr.bf16.mxu0 %v930
  %1023 = vmatpush1.bf16.msra.mxu0 %v929
  %1024 = vmatprep.subr.bf16.mxu0 %v934
  %1025 = vmatpush1.bf16.msra.mxu0 %v933
  %1026 = vmatprep.subr.bf16.mxu0 %v938
  %1027 = vmatpush1.bf16.msra.mxu0 %v937
  %1028 = vmatprep.subr.bf16.mxu0 0
  %1029 = vmatpush1.bf16.msra.mxu0 0
  %1030 = vmatprep.subr.bf16.mxu0 0
  %1031 = vmatpush1.bf16.msra.mxu0 0
  %1032 = vmatprep.subr.bf16.mxu0 0
  %1033 = vmatpush1.bf16.msra.mxu0 0
  %1034 = vmatprep.subr.bf16.mxu0 0
  %1035 = vmatpush1.bf16.msra.mxu0 0
  %1036 = vmatprep.subr.bf16.mxu0 0
  %1037 = vmatpush1.bf16.msra.mxu0 0
  %1038 = vmatprep.subr.bf16.mxu0 0
  %1039 = vmatpush1.bf16.msra.mxu0 0
  %1040 = vmatprep.subr.bf16.mxu0 0
  %1041 = vmatpush1.bf16.msra.mxu0 0
  %1042 = vmatprep.subr.bf16.mxu0 0
  %1043 = vmatpush1.bf16.msra.mxu0 0
  %1044 = vmatprep.mubr.bf16.mxu0 0
  %1045 = vmatmul.mubr.bf16.gmra.mrb[0].mxu0 %v773
  %v1046 = vpop.f32.mrb[0].mxu0
  %v1047 = vadd.f32 0.0, %v1046
  %v1048 = vpop.f32.mrb[0].mxu0
  %v1049 = vadd.f32 0.0, %v1048
  %v1050 = vpop.f32.mrb[0].mxu0
  %v1051 = vpop.f32.mrb[0].mxu0
  %1052 = vdwg.mxu0
  %v1053 = vadd.f32 %v775, %v1006
  %v1054 = vadd.f32 %v776, %v1008
  %v1055 = vadd.f32 %v777, %v1047
  %v1056 = vadd.f32 %v778, %v1049
  %v1057 = vxor.u32 %v1053, 2147483648
  %v1058 = vxor.u32 %v1054, 2147483648
  %v1059 = vxor.u32 %v1055, 2147483648
  %v1060 = vmul.f32 %v1057, 1.442695
  %v1061 = vpow.pop %v1060
  %v1062 = vmul.f32 %v1058, 1.442695
  %v1063 = vpow.pop %v1062
  %v1064 = vmul.f32 %v1059, 1.442695
  %v1065 = vpow.pop %v1064
  %v1066 = vadd.f32 %v1061, 1.0
  %v1067 = vadd.f32 %v1063, 1.0
  %v1068 = vadd.f32 %v1065, 1.0
  %v1069 = vrcp.pop %v1066
  %v1070 = vmul.f32 1.0, %v1069
  %v1071 = vrcp.pop %v1067
  %v1072 = vmul.f32 1.0, %v1071
  %v1073 = vrcp.pop %v1068
  %v1074 = vmul.f32 1.0, %v1073
  %v1075 = vtanh.pop %v1056
  %v1076 = vmul.f32 %v1072, %v770
  %v1077 = vmul.f32 %v1070, %v1075
  %v1078 = vadd.f32 %v1076, %v1077
  %v1079 = vtanh.pop %v1078
  %v1080 = vmul.f32 %v1074, %v1079
  %v1081 = vpack.c.bf16 %v1080, %v1080
  %1082 = vst [vmem:[%s4 + $0x4] sm:$0xf] %v1081
  %v1083 = vld [vmem:[#allocation2 + $0x40] sm:$0xff]
  %v1084 = vld [vmem:[#allocation2 + $0x48] sm:$0xff]
  %v1085 = vld [vmem:[#allocation2 + $0x50] sm:$0xff]
  %v1086 = vld [vmem:[#allocation2 + $0x58] sm:$0xff]
  %v1087 = vld [vmem:[%s2] sm:$0xff]
  %v1088 = vld [vmem:[%s2 + $0x8] sm:$0xff]
  %v1089 = vld [vmem:[%s2 + $0x10] sm:$0xff]
  %v1090 = vld [vmem:[%s2 + $0x18] sm:$0xff]
  %v1091 = vld [vmem:[%s2 + $0x20] sm:$0xff]
  %v1092 = vld [vmem:[%s2 + $0x28] sm:$0xff]
  %v1093 = vld [vmem:[%s2 + $0x30] sm:$0xff]
  %v1094 = vld [vmem:[%s2 + $0x38] sm:$0xff]
  %v1095 = vld [vmem:[%s2 + $0x40] sm:$0xff]
  %v1096 = vld [vmem:[%s2 + $0x48] sm:$0xff]
  %v1097 = vld [vmem:[%s2 + $0x50] sm:$0xff]
  %v1098 = vld [vmem:[%s2 + $0x58] sm:$0xff]
  %v1099 = vld [vmem:[%s2 + $0x60] sm:$0xff]
  %v1100 = vld [vmem:[%s2 + $0x68] sm:$0xff]
  %v1101 = vld [vmem:[%s2 + $0x70] sm:$0xff]
  %v1102 = vld [vmem:[%s2 + $0x78] sm:$0xff]
  %v1103 = vld [vmem:[%s2 + $0x80] sm:$0xff]
  %v1104 = vld [vmem:[%s2 + $0x88] sm:$0xff]
  %v1105 = vld [vmem:[%s2 + $0x90] sm:$0xff]
  %v1106 = vld [vmem:[%s2 + $0x98] sm:$0xff]
  %v1107 = vld [vmem:[%s2 + $0xa0] sm:$0xff]
  %v1108 = vld [vmem:[%s2 + $0xa8] sm:$0xff]
  %v1109 = vld [vmem:[%s2 + $0xb0] sm:$0xff]
  %v1110 = vld [vmem:[%s2 + $0xb8] sm:$0xff]
  %v1111 = vld [vmem:[%s2 + $0xc0] sm:$0xff]
  %v1112 = vld [vmem:[%s2 + $0xc8] sm:$0xff]
  %v1113 = vld [vmem:[%s2 + $0xd0] sm:$0xff]
  %v1114 = vld [vmem:[%s2 + $0xd8] sm:$0xff]
  %v1115 = vld [vmem:[%s2 + $0xe0] sm:$0xff]
  %v1116 = vld [vmem:[%s2 + $0xe8] sm:$0xff]
  %v1117 = vld [vmem:[%s2 + $0xf0] sm:$0xff]
  %v1118 = vld [vmem:[%s2 + $0xf8] sm:$0xff]
  %v1151 = vunpack.c.l.b16 %v1087
  %v1152 = vunpack.c.h.b16 %v1087
  %v1153 = vunpack.c.l.b16 %v1088
  %v1154 = vunpack.c.h.b16 %v1088
  %v1155 = vunpack.c.l.b16 %v1089
  %v1156 = vunpack.c.h.b16 %v1089
  %v1157 = vunpack.c.l.b16 %v1090
  %v1158 = vunpack.c.h.b16 %v1090
  %v1159 = vunpack.c.l.b16 %v1091
  %v1160 = vunpack.c.h.b16 %v1091
  %v1161 = vunpack.c.l.b16 %v1092
  %v1162 = vunpack.c.h.b16 %v1092
  %v1163 = vunpack.c.l.b16 %v1093
  %v1164 = vunpack.c.h.b16 %v1093
  %v1165 = vunpack.c.l.b16 %v1094
  %v1166 = vunpack.c.h.b16 %v1094
  %v1167 = vunpack.c.l.b16 %v1095
  %v1168 = vunpack.c.h.b16 %v1095
  %v1169 = vunpack.c.l.b16 %v1096
  %v1170 = vunpack.c.h.b16 %v1096
  %v1171 = vunpack.c.l.b16 %v1097
  %v1172 = vunpack.c.h.b16 %v1097
  %v1173 = vunpack.c.l.b16 %v1098
  %v1174 = vunpack.c.h.b16 %v1098
  %v1175 = vunpack.c.l.b16 %v1099
  %v1176 = vunpack.c.h.b16 %v1099
  %v1177 = vunpack.c.l.b16 %v1100
  %v1178 = vunpack.c.h.b16 %v1100
  %v1179 = vunpack.c.l.b16 %v1101
  %v1180 = vunpack.c.h.b16 %v1101
  %v1181 = vunpack.c.l.b16 %v1102
  %v1182 = vunpack.c.h.b16 %v1102
  %v1183 = vunpack.c.l.b16 %v1103
  %v1184 = vunpack.c.h.b16 %v1103
  %v1185 = vunpack.c.l.b16 %v1104
  %v1186 = vunpack.c.h.b16 %v1104
  %v1187 = vunpack.c.l.b16 %v1105
  %v1188 = vunpack.c.h.b16 %v1105
  %v1189 = vunpack.c.l.b16 %v1106
  %v1190 = vunpack.c.h.b16 %v1106
  %v1191 = vunpack.c.l.b16 %v1107
  %v1192 = vunpack.c.h.b16 %v1107
  %v1193 = vunpack.c.l.b16 %v1108
  %v1194 = vunpack.c.h.b16 %v1108
  %v1195 = vunpack.c.l.b16 %v1109
  %v1196 = vunpack.c.h.b16 %v1109
  %v1197 = vunpack.c.l.b16 %v1110
  %v1198 = vunpack.c.h.b16 %v1110
  %v1199 = vunpack.c.l.b16 %v1111
  %v1200 = vunpack.c.h.b16 %v1111
  %v1201 = vunpack.c.l.b16 %v1112
  %v1202 = vunpack.c.h.b16 %v1112
  %v1203 = vunpack.c.l.b16 %v1113
  %v1204 = vunpack.c.h.b16 %v1113
  %v1205 = vunpack.c.l.b16 %v1114
  %v1206 = vunpack.c.h.b16 %v1114
  %v1207 = vunpack.c.l.b16 %v1115
  %v1208 = vunpack.c.h.b16 %v1115
  %v1209 = vunpack.c.l.b16 %v1116
  %v1210 = vunpack.c.h.b16 %v1116
  %v1211 = vunpack.c.l.b16 %v1117
  %v1212 = vunpack.c.h.b16 %v1117
  %v1213 = vunpack.c.l.b16 %v1118
  %v1214 = vunpack.c.h.b16 %v1118
  %v1215 = vpack.c.b16 %v1155, %v1151
  %v1216 = vpack.c.b16 %v1156, %v1152
  %v1217 = vpack.c.b16 %v1157, %v1153
  %v1218 = vpack.c.b16 %v1158, %v1154
  %v1219 = vpack.c.b16 %v1163, %v1159
  %v1220 = vpack.c.b16 %v1164, %v1160
  %v1221 = vpack.c.b16 %v1165, %v1161
  %v1222 = vpack.c.b16 %v1166, %v1162
  %v1223 = vpack.c.b16 %v1171, %v1167
  %v1224 = vpack.c.b16 %v1172, %v1168
  %v1225 = vpack.c.b16 %v1173, %v1169
  %v1226 = vpack.c.b16 %v1174, %v1170
  %v1227 = vpack.c.b16 %v1179, %v1175
  %v1228 = vpack.c.b16 %v1180, %v1176
  %v1229 = vpack.c.b16 %v1181, %v1177
  %v1230 = vpack.c.b16 %v1182, %v1178
  %v1231 = vpack.c.b16 %v1187, %v1183
  %v1232 = vpack.c.b16 %v1188, %v1184
  %v1233 = vpack.c.b16 %v1189, %v1185
  %v1234 = vpack.c.b16 %v1190, %v1186
  %v1235 = vpack.c.b16 %v1195, %v1191
  %v1236 = vpack.c.b16 %v1196, %v1192
  %v1237 = vpack.c.b16 %v1197, %v1193
  %v1238 = vpack.c.b16 %v1198, %v1194
  %v1239 = vpack.c.b16 %v1203, %v1199
  %v1240 = vpack.c.b16 %v1204, %v1200
  %v1241 = vpack.c.b16 %v1205, %v1201
  %v1242 = vpack.c.b16 %v1206, %v1202
  %v1243 = vpack.c.b16 %v1211, %v1207
  %v1244 = vpack.c.b16 %v1212, %v1208
  %v1245 = vpack.c.b16 %v1213, %v1209
  %v1246 = vpack.c.b16 %v1214, %v1210
  %1279 = vmatprep.subr.bf16.mxu0 %v1216
  %1280 = vmatpush1.bf16.msra.mxu0 %v1215
  %1281 = vmatprep.subr.bf16.mxu0 %v1220
  %1282 = vmatpush1.bf16.msra.mxu0 %v1219
  %1283 = vmatprep.subr.bf16.mxu0 %v1224
  %1284 = vmatpush1.bf16.msra.mxu0 %v1223
  %1285 = vmatprep.subr.bf16.mxu0 %v1228
  %1286 = vmatpush1.bf16.msra.mxu0 %v1227
  %1287 = vmatprep.subr.bf16.mxu0 %v1232
  %1288 = vmatpush1.bf16.msra.mxu0 %v1231
  %1289 = vmatprep.subr.bf16.mxu0 %v1236
  %1290 = vmatpush1.bf16.msra.mxu0 %v1235
  %1291 = vmatprep.subr.bf16.mxu0 %v1240
  %1292 = vmatpush1.bf16.msra.mxu0 %v1239
  %1293 = vmatprep.subr.bf16.mxu0 %v1244
  %1294 = vmatpush1.bf16.msra.mxu0 %v1243
  %1295 = vmatprep.subr.bf16.mxu0 0
  %1296 = vmatpush1.bf16.msra.mxu0 0
  %1297 = vmatprep.subr.bf16.mxu0 0
  %1298 = vmatpush1.bf16.msra.mxu0 0
  %1299 = vmatprep.subr.bf16.mxu0 0
  %1300 = vmatpush1.bf16.msra.mxu0 0
  %1301 = vmatprep.subr.bf16.mxu0 0
  %1302 = vmatpush1.bf16.msra.mxu0 0
  %1303 = vmatprep.subr.bf16.mxu0 0
  %1304 = vmatpush1.bf16.msra.mxu0 0
  %1305 = vmatprep.subr.bf16.mxu0 0
  %1306 = vmatpush1.bf16.msra.mxu0 0
  %1307 = vmatprep.subr.bf16.mxu0 0
  %1308 = vmatpush1.bf16.msra.mxu0 0
  %1309 = vmatprep.subr.bf16.mxu0 0
  %1310 = vmatpush1.bf16.msra.mxu0 0
  %1311 = vmatprep.mubr.bf16.mxu0 0
  %1312 = vmatmul.mubr.bf16.gmra.mrb[0].mxu0 %v1081
  %v1313 = vpop.f32.mrb[0].mxu0
  %v1314 = vadd.f32 0.0, %v1313
  %v1315 = vpop.f32.mrb[0].mxu0
  %v1316 = vadd.f32 0.0, %v1315
  %v1317 = vpop.f32.mrb[0].mxu0
  %v1318 = vpop.f32.mrb[0].mxu0
  %1319 = vdwg.mxu0
  %1320 = vmatprep.subr.bf16.mxu0 %v1218
  %1321 = vmatpush1.bf16.msra.mxu0 %v1217
  %1322 = vmatprep.subr.bf16.mxu0 %v1222
  %1323 = vmatpush1.bf16.msra.mxu0 %v1221
  %1324 = vmatprep.subr.bf16.mxu0 %v1226
  %1325 = vmatpush1.bf16.msra.mxu0 %v1225
  %1326 = vmatprep.subr.bf16.mxu0 %v1230
  %1327 = vmatpush1.bf16.msra.mxu0 %v1229
  %1328 = vmatprep.subr.bf16.mxu0 %v1234
  %1329 = vmatpush1.bf16.msra.mxu0 %v1233
  %1330 = vmatprep.subr.bf16.mxu0 %v1238
  %1331 = vmatpush1.bf16.msra.mxu0 %v1237
  %1332 = vmatprep.subr.bf16.mxu0 %v1242
  %1333 = vmatpush1.bf16.msra.mxu0 %v1241
  %1334 = vmatprep.subr.bf16.mxu0 %v1246
  %1335 = vmatpush1.bf16.msra.mxu0 %v1245
  %1336 = vmatprep.subr.bf16.mxu0 0
  %1337 = vmatpush1.bf16.msra.mxu0 0
  %1338 = vmatprep.subr.bf16.mxu0 0
  %1339 = vmatpush1.bf16.msra.mxu0 0
  %1340 = vmatprep.subr.bf16.mxu0 0
  %1341 = vmatpush1.bf16.msra.mxu0 0
  %1342 = vmatprep.subr.bf16.mxu0 0
  %1343 = vmatpush1.bf16.msra.mxu0 0
  %1344 = vmatprep.subr.bf16.mxu0 0
  %1345 = vmatpush1.bf16.msra.mxu0 0
  %1346 = vmatprep.subr.bf16.mxu0 0
  %1347 = vmatpush1.bf16.msra.mxu0 0
  %1348 = vmatprep.subr.bf16.mxu0 0
  %1349 = vmatpush1.bf16.msra.mxu0 0
  %1350 = vmatprep.subr.bf16.mxu0 0
  %1351 = vmatpush1.bf16.msra.mxu0 0
  %1352 = vmatprep.mubr.bf16.mxu0 0
  %1353 = vmatmul.mubr.bf16.gmra.mrb[0].mxu0 %v1081
  %v1354 = vpop.f32.mrb[0].mxu0
  %v1355 = vadd.f32 0.0, %v1354
  %v1356 = vpop.f32.mrb[0].mxu0
  %v1357 = vadd.f32 0.0, %v1356
  %v1358 = vpop.f32.mrb[0].mxu0
  %v1359 = vpop.f32.mrb[0].mxu0
  %1360 = vdwg.mxu0
  %v1361 = vadd.f32 %v1083, %v1314
  %v1362 = vadd.f32 %v1084, %v1316
  %v1363 = vadd.f32 %v1085, %v1355
  %v1364 = vadd.f32 %v1086, %v1357
  %v1365 = vxor.u32 %v1361, 2147483648
  %v1366 = vxor.u32 %v1362, 2147483648
  %v1367 = vxor.u32 %v1363, 2147483648
  %v1368 = vmul.f32 %v1365, 1.442695
  %v1369 = vpow.pop %v1368
  %v1370 = vmul.f32 %v1366, 1.442695
  %v1371 = vpow.pop %v1370
  %v1372 = vmul.f32 %v1367, 1.442695
  %v1373 = vpow.pop %v1372
  %v1374 = vadd.f32 %v1369, 1.0
  %v1375 = vadd.f32 %v1371, 1.0
  %v1376 = vadd.f32 %v1373, 1.0
  %v1377 = vrcp.pop %v1374
  %v1378 = vmul.f32 1.0, %v1377
  %v1379 = vrcp.pop %v1375
  %v1380 = vmul.f32 1.0, %v1379
  %v1381 = vrcp.pop %v1376
  %v1382 = vmul.f32 1.0, %v1381
  %v1383 = vtanh.pop %v1364
  %v1384 = vmul.f32 %v1380, %v1078
  %v1385 = vmul.f32 %v1378, %v1383
  %v1386 = vadd.f32 %v1384, %v1385
  %v1387 = vtanh.pop %v1386
  %v1388 = vmul.f32 %v1382, %v1387
  %v1389 = vpack.c.bf16 %v1388, %v1388
  %1390 = vst [vmem:[%s4 + $0x8] sm:$0xf] %v1389
  %v1391 = vld [vmem:[#allocation2 + $0x60] sm:$0xff]
  %v1392 = vld [vmem:[#allocation2 + $0x68] sm:$0xff]
  %v1393 = vld [vmem:[#allocation2 + $0x70] sm:$0xff]
  %v1394 = vld [vmem:[#allocation2 + $0x78] sm:$0xff]
  %v1395 = vld [vmem:[%s2] sm:$0xff]
  %v1396 = vld [vmem:[%s2 + $0x8] sm:$0xff]
  %v1397 = vld [vmem:[%s2 + $0x10] sm:$0xff]
  %v1398 = vld [vmem:[%s2 + $0x18] sm:$0xff]
  %v1399 = vld [vmem:[%s2 + $0x20] sm:$0xff]
  %v1400 = vld [vmem:[%s2 + $0x28] sm:$0xff]
  %v1401 = vld [vmem:[%s2 + $0x30] sm:$0xff]
  %v1402 = vld [vmem:[%s2 + $0x38] sm:$0xff]
  %v1403 = vld [vmem:[%s2 + $0x40] sm:$0xff]
  %v1404 = vld [vmem:[%s2 + $0x48] sm:$0xff]
  %v1405 = vld [vmem:[%s2 + $0x50] sm:$0xff]
  %v1406 = vld [vmem:[%s2 + $0x58] sm:$0xff]
  %v1407 = vld [vmem:[%s2 + $0x60] sm:$0xff]
  %v1408 = vld [vmem:[%s2 + $0x68] sm:$0xff]
  %v1409 = vld [vmem:[%s2 + $0x70] sm:$0xff]
  %v1410 = vld [vmem:[%s2 + $0x78] sm:$0xff]
  %v1411 = vld [vmem:[%s2 + $0x80] sm:$0xff]
  %v1412 = vld [vmem:[%s2 + $0x88] sm:$0xff]
  %v1413 = vld [vmem:[%s2 + $0x90] sm:$0xff]
  %v1414 = vld [vmem:[%s2 + $0x98] sm:$0xff]
  %v1415 = vld [vmem:[%s2 + $0xa0] sm:$0xff]
  %v1416 = vld [vmem:[%s2 + $0xa8] sm:$0xff]
  %v1417 = vld [vmem:[%s2 + $0xb0] sm:$0xff]
  %v1418 = vld [vmem:[%s2 + $0xb8] sm:$0xff]
  %v1419 = vld [vmem:[%s2 + $0xc0] sm:$0xff]
  %v1420 = vld [vmem:[%s2 + $0xc8] sm:$0xff]
  %v1421 = vld [vmem:[%s2 + $0xd0] sm:$0xff]
  %v1422 = vld [vmem:[%s2 + $0xd8] sm:$0xff]
  %v1423 = vld [vmem:[%s2 + $0xe0] sm:$0xff]
  %v1424 = vld [vmem:[%s2 + $0xe8] sm:$0xff]
  %v1425 = vld [vmem:[%s2 + $0xf0] sm:$0xff]
  %v1426 = vld [vmem:[%s2 + $0xf8] sm:$0xff]
  %v1459 = vunpack.c.l.b16 %v1395
  %v1460 = vunpack.c.h.b16 %v1395
  %v1461 = vunpack.c.l.b16 %v1396
  %v1462 = vunpack.c.h.b16 %v1396
  %v1463 = vunpack.c.l.b16 %v1397
  %v1464 = vunpack.c.h.b16 %v1397
  %v1465 = vunpack.c.l.b16 %v1398
  %v1466 = vunpack.c.h.b16 %v1398
  %v1467 = vunpack.c.l.b16 %v1399
  %v1468 = vunpack.c.h.b16 %v1399
  %v1469 = vunpack.c.l.b16 %v1400
  %v1470 = vunpack.c.h.b16 %v1400
  %v1471 = vunpack.c.l.b16 %v1401
  %v1472 = vunpack.c.h.b16 %v1401
  %v1473 = vunpack.c.l.b16 %v1402
  %v1474 = vunpack.c.h.b16 %v1402
  %v1475 = vunpack.c.l.b16 %v1403
  %v1476 = vunpack.c.h.b16 %v1403
  %v1477 = vunpack.c.l.b16 %v1404
  %v1478 = vunpack.c.h.b16 %v1404
  %v1479 = vunpack.c.l.b16 %v1405
  %v1480 = vunpack.c.h.b16 %v1405
  %v1481 = vunpack.c.l.b16 %v1406
  %v1482 = vunpack.c.h.b16 %v1406
  %v1483 = vunpack.c.l.b16 %v1407
  %v1484 = vunpack.c.h.b16 %v1407
  %v1485 = vunpack.c.l.b16 %v1408
  %v1486 = vunpack.c.h.b16 %v1408
  %v1487 = vunpack.c.l.b16 %v1409
  %v1488 = vunpack.c.h.b16 %v1409
  %v1489 = vunpack.c.l.b16 %v1410
  %v1490 = vunpack.c.h.b16 %v1410
  %v1491 = vunpack.c.l.b16 %v1411
  %v1492 = vunpack.c.h.b16 %v1411
  %v1493 = vunpack.c.l.b16 %v1412
  %v1494 = vunpack.c.h.b16 %v1412
  %v1495 = vunpack.c.l.b16 %v1413
  %v1496 = vunpack.c.h.b16 %v1413
  %v1497 = vunpack.c.l.b16 %v1414
  %v1498 = vunpack.c.h.b16 %v1414
  %v1499 = vunpack.c.l.b16 %v1415
  %v1500 = vunpack.c.h.b16 %v1415
  %v1501 = vunpack.c.l.b16 %v1416
  %v1502 = vunpack.c.h.b16 %v1416
  %v1503 = vunpack.c.l.b16 %v1417
  %v1504 = vunpack.c.h.b16 %v1417
  %v1505 = vunpack.c.l.b16 %v1418
  %v1506 = vunpack.c.h.b16 %v1418
  %v1507 = vunpack.c.l.b16 %v1419
  %v1508 = vunpack.c.h.b16 %v1419
  %v1509 = vunpack.c.l.b16 %v1420
  %v1510 = vunpack.c.h.b16 %v1420
  %v1511 = vunpack.c.l.b16 %v1421
  %v1512 = vunpack.c.h.b16 %v1421
  %v1513 = vunpack.c.l.b16 %v1422
  %v1514 = vunpack.c.h.b16 %v1422
  %v1515 = vunpack.c.l.b16 %v1423
  %v1516 = vunpack.c.h.b16 %v1423
  %v1517 = vunpack.c.l.b16 %v1424
  %v1518 = vunpack.c.h.b16 %v1424
  %v1519 = vunpack.c.l.b16 %v1425
  %v1520 = vunpack.c.h.b16 %v1425
  %v1521 = vunpack.c.l.b16 %v1426
  %v1522 = vunpack.c.h.b16 %v1426
  %v1523 = vpack.c.b16 %v1463, %v1459
  %v1524 = vpack.c.b16 %v1464, %v1460
  %v1525 = vpack.c.b16 %v1465, %v1461
  %v1526 = vpack.c.b16 %v1466, %v1462
  %v1527 = vpack.c.b16 %v1471, %v1467
  %v1528 = vpack.c.b16 %v1472, %v1468
  %v1529 = vpack.c.b16 %v1473, %v1469
  %v1530 = vpack.c.b16 %v1474, %v1470
  %v1531 = vpack.c.b16 %v1479, %v1475
  %v1532 = vpack.c.b16 %v1480, %v1476
  %v1533 = vpack.c.b16 %v1481, %v1477
  %v1534 = vpack.c.b16 %v1482, %v1478
  %v1535 = vpack.c.b16 %v1487, %v1483
  %v1536 = vpack.c.b16 %v1488, %v1484
  %v1537 = vpack.c.b16 %v1489, %v1485
  %v1538 = vpack.c.b16 %v1490, %v1486
  %v1539 = vpack.c.b16 %v1495, %v1491
  %v1540 = vpack.c.b16 %v1496, %v1492
  %v1541 = vpack.c.b16 %v1497, %v1493
  %v1542 = vpack.c.b16 %v1498, %v1494
  %v1543 = vpack.c.b16 %v1503, %v1499
  %v1544 = vpack.c.b16 %v1504, %v1500
  %v1545 = vpack.c.b16 %v1505, %v1501
  %v1546 = vpack.c.b16 %v1506, %v1502
  %v1547 = vpack.c.b16 %v1511, %v1507
  %v1548 = vpack.c.b16 %v1512, %v1508
  %v1549 = vpack.c.b16 %v1513, %v1509
  %v1550 = vpack.c.b16 %v1514, %v1510
  %v1551 = vpack.c.b16 %v1519, %v1515
  %v1552 = vpack.c.b16 %v1520, %v1516
  %v1553 = vpack.c.b16 %v1521, %v1517
  %v1554 = vpack.c.b16 %v1522, %v1518
  %1587 = vmatprep.subr.bf16.mxu0 %v1524
  %1588 = vmatpush1.bf16.msra.mxu0 %v1523
  %1589 = vmatprep.subr.bf16.mxu0 %v1528
  %1590 = vmatpush1.bf16.msra.mxu0 %v1527
  %1591 = vmatprep.subr.bf16.mxu0 %v1532
  %1592 = vmatpush1.bf16.msra.mxu0 %v1531
  %1593 = vmatprep.subr.bf16.mxu0 %v1536
  %1594 = vmatpush1.bf16.msra.mxu0 %v1535
  %1595 = vmatprep.subr.bf16.mxu0 %v1540
  %1596 = vmatpush1.bf16.msra.mxu0 %v1539
  %1597 = vmatprep.subr.bf16.mxu0 %v1544
  %1598 = vmatpush1.bf16.msra.mxu0 %v1543
  %1599 = vmatprep.subr.bf16.mxu0 %v1548
  %1600 = vmatpush1.bf16.msra.mxu0 %v1547
  %1601 = vmatprep.subr.bf16.mxu0 %v1552
  %1602 = vmatpush1.bf16.msra.mxu0 %v1551
  %1603 = vmatprep.subr.bf16.mxu0 0
  %1604 = vmatpush1.bf16.msra.mxu0 0
  %1605 = vmatprep.subr.bf16.mxu0 0
  %1606 = vmatpush1.bf16.msra.mxu0 0
  %1607 = vmatprep.subr.bf16.mxu0 0
  %1608 = vmatpush1.bf16.msra.mxu0 0
  %1609 = vmatprep.subr.bf16.mxu0 0
  %1610 = vmatpush1.bf16.msra.mxu0 0
  %1611 = vmatprep.subr.bf16.mxu0 0
  %1612 = vmatpush1.bf16.msra.mxu0 0
  %1613 = vmatprep.subr.bf16.mxu0 0
  %1614 = vmatpush1.bf16.msra.mxu0 0
  %1615 = vmatprep.subr.bf16.mxu0 0
  %1616 = vmatpush1.bf16.msra.mxu0 0
  %1617 = vmatprep.subr.bf16.mxu0 0
  %1618 = vmatpush1.bf16.msra.mxu0 0
  %1619 = vmatprep.mubr.bf16.mxu0 0
  %1620 = vmatmul.mubr.bf16.gmra.mrb[0].mxu0 %v1389
  %v1621 = vpop.f32.mrb[0].mxu0
  %v1622 = vadd.f32 0.0, %v1621
  %v1623 = vpop.f32.mrb[0].mxu0
  %v1624 = vadd.f32 0.0, %v1623
  %v1625 = vpop.f32.mrb[0].mxu0
  %v1626 = vpop.f32.mrb[0].mxu0
  %1627 = vdwg.mxu0
  %1628 = vmatprep.subr.bf16.mxu0 %v1526
  %1629 = vmatpush1.bf16.msra.mxu0 %v1525
  %1630 = vmatprep.subr.bf16.mxu0 %v1530
  %1631 = vmatpush1.bf16.msra.mxu0 %v1529
  %1632 = vmatprep.subr.bf16.mxu0 %v1534
  %1633 = vmatpush1.bf16.msra.mxu0 %v1533
  %1634 = vmatprep.subr.bf16.mxu0 %v1538
  %1635 = vmatpush1.bf16.msra.mxu0 %v1537
  %1636 = vmatprep.subr.bf16.mxu0 %v1542
  %1637 = vmatpush1.bf16.msra.mxu0 %v1541
  %1638 = vmatprep.subr.bf16.mxu0 %v1546
  %1639 = vmatpush1.bf16.msra.mxu0 %v1545
  %1640 = vmatprep.subr.bf16.mxu0 %v1550
  %1641 = vmatpush1.bf16.msra.mxu0 %v1549
  %1642 = vmatprep.subr.bf16.mxu0 %v1554
  %1643 = vmatpush1.bf16.msra.mxu0 %v1553
  %1644 = vmatprep.subr.bf16.mxu0 0
  %1645 = vmatpush1.bf16.msra.mxu0 0
  %1646 = vmatprep.subr.bf16.mxu0 0
  %1647 = vmatpush1.bf16.msra.mxu0 0
  %1648 = vmatprep.subr.bf16.mxu0 0
  %1649 = vmatpush1.bf16.msra.mxu0 0
  %1650 = vmatprep.subr.bf16.mxu0 0
  %1651 = vmatpush1.bf16.msra.mxu0 0
  %1652 = vmatprep.subr.bf16.mxu0 0
  %1653 = vmatpush1.bf16.msra.mxu0 0
  %1654 = vmatprep.subr.bf16.mxu0 0
  %1655 = vmatpush1.bf16.msra.mxu0 0
  %1656 = vmatprep.subr.bf16.mxu0 0
  %1657 = vmatpush1.bf16.msra.mxu0 0
  %1658 = vmatprep.subr.bf16.mxu0 0
  %1659 = vmatpush1.bf16.msra.mxu0 0
  %1660 = vmatprep.mubr.bf16.mxu0 0
  %1661 = vmatmul.mubr.bf16.gmra.mrb[0].mxu0 %v1389
  %v1662 = vpop.f32.mrb[0].mxu0
  %v1663 = vadd.f32 0.0, %v1662
  %v1664 = vpop.f32.mrb[0].mxu0
  %v1665 = vadd.f32 0.0, %v1664
  %v1666 = vpop.f32.mrb[0].mxu0
  %v1667 = vpop.f32.mrb[0].mxu0
  %1668 = vdwg.mxu0
  %v1669 = vadd.f32 %v1391, %v1622
  %v1670 = vadd.f32 %v1392, %v1624
  %v1671 = vadd.f32 %v1393, %v1663
  %v1672 = vadd.f32 %v1394, %v1665
  %v1673 = vxor.u32 %v1669, 2147483648
  %v1674 = vxor.u32 %v1670, 2147483648
  %v1675 = vxor.u32 %v1671, 2147483648
  %v1676 = vmul.f32 %v1673, 1.442695
  %v1677 = vpow.pop %v1676
  %v1678 = vmul.f32 %v1674, 1.442695
  %v1679 = vpow.pop %v1678
  %v1680 = vmul.f32 %v1675, 1.442695
  %v1681 = vpow.pop %v1680
  %v1682 = vadd.f32 %v1677, 1.0
  %v1683 = vadd.f32 %v1679, 1.0
  %v1684 = vadd.f32 %v1681, 1.0
  %v1685 = vrcp.pop %v1682
  %v1686 = vmul.f32 1.0, %v1685
  %v1687 = vrcp.pop %v1683
  %v1688 = vmul.f32 1.0, %v1687
  %v1689 = vrcp.pop %v1684
  %v1690 = vmul.f32 1.0, %v1689
  %v1691 = vtanh.pop %v1672
  %v1692 = vmul.f32 %v1688, %v1386
  %v1693 = vmul.f32 %v1686, %v1691
  %v1694 = vadd.f32 %v1692, %v1693
  %v1695 = vtanh.pop %v1694
  %v1696 = vmul.f32 %v1690, %v1695
  %v1697 = vpack.c.bf16 %v1696, %v1696
  %1698 = vst [vmem:[%s4 + $0xc] sm:$0xf] %v1697
  %v1699 = vld [vmem:[#allocation2 + $0x80] sm:$0xff]
  %v1700 = vld [vmem:[#allocation2 + $0x88] sm:$0xff]
  %v1701 = vld [vmem:[#allocation2 + $0x90] sm:$0xff]
  %v1702 = vld [vmem:[#allocation2 + $0x98] sm:$0xff]
  %v1703 = vld [vmem:[%s2] sm:$0xff]
  %v1704 = vld [vmem:[%s2 + $0x8] sm:$0xff]
  %v1705 = vld [vmem:[%s2 + $0x10] sm:$0xff]
  %v1706 = vld [vmem:[%s2 + $0x18] sm:$0xff]
  %v1707 = vld [vmem:[%s2 + $0x20] sm:$0xff]
  %v1708 = vld [vmem:[%s2 + $0x28] sm:$0xff]
  %v1709 = vld [vmem:[%s2 + $0x30] sm:$0xff]
  %v1710 = vld [vmem:[%s2 + $0x38] sm:$0xff]
  %v1711 = vld [vmem:[%s2 + $0x40] sm:$0xff]
  %v1712 = vld [vmem:[%s2 + $0x48] sm:$0xff]
  %v1713 = vld [vmem:[%s2 + $0x50] sm:$0xff]
  %v1714 = vld [vmem:[%s2 + $0x58] sm:$0xff]
  %v1715 = vld [vmem:[%s2 + $0x60] sm:$0xff]
  %v1716 = vld [vmem:[%s2 + $0x68] sm:$0xff]
  %v1717 = vld [vmem:[%s2 + $0x70] sm:$0xff]
  %v1718 = vld [vmem:[%s2 + $0x78] sm:$0xff]
  %v1719 = vld [vmem:[%s2 + $0x80] sm:$0xff]
  %v1720 = vld [vmem:[%s2 + $0x88] sm:$0xff]
  %v1721 = vld [vmem:[%s2 + $0x90] sm:$0xff]
  %v1722 = vld [vmem:[%s2 + $0x98] sm:$0xff]
  %v1723 = vld [vmem:[%s2 + $0xa0] sm:$0xff]
  %v1724 = vld [vmem:[%s2 + $0xa8] sm:$0xff]
  %v1725 = vld [vmem:[%s2 + $0xb0] sm:$0xff]
  %v1726 = vld [vmem:[%s2 + $0xb8] sm:$0xff]
  %v1727 = vld [vmem:[%s2 + $0xc0] sm:$0xff]
  %v1728 = vld [vmem:[%s2 + $0xc8] sm:$0xff]
  %v1729 = vld [vmem:[%s2 + $0xd0] sm:$0xff]
  %v1730 = vld [vmem:[%s2 + $0xd8] sm:$0xff]
  %v1731 = vld [vmem:[%s2 + $0xe0] sm:$0xff]
  %v1732 = vld [vmem:[%s2 + $0xe8] sm:$0xff]
  %v1733 = vld [vmem:[%s2 + $0xf0] sm:$0xff]
  %v1734 = vld [vmem:[%s2 + $0xf8] sm:$0xff]
  %v1767 = vunpack.c.l.b16 %v1703
  %v1768 = vunpack.c.h.b16 %v1703
  %v1769 = vunpack.c.l.b16 %v1704
  %v1770 = vunpack.c.h.b16 %v1704
  %v1771 = vunpack.c.l.b16 %v1705
  %v1772 = vunpack.c.h.b16 %v1705
  %v1773 = vunpack.c.l.b16 %v1706
  %v1774 = vunpack.c.h.b16 %v1706
  %v1775 = vunpack.c.l.b16 %v1707
  %v1776 = vunpack.c.h.b16 %v1707
  %v1777 = vunpack.c.l.b16 %v1708
  %v1778 = vunpack.c.h.b16 %v1708
  %v1779 = vunpack.c.l.b16 %v1709
  %v1780 = vunpack.c.h.b16 %v1709
  %v1781 = vunpack.c.l.b16 %v1710
  %v1782 = vunpack.c.h.b16 %v1710
  %v1783 = vunpack.c.l.b16 %v1711
  %v1784 = vunpack.c.h.b16 %v1711
  %v1785 = vunpack.c.l.b16 %v1712
  %v1786 = vunpack.c.h.b16 %v1712
  %v1787 = vunpack.c.l.b16 %v1713
  %v1788 = vunpack.c.h.b16 %v1713
  %v1789 = vunpack.c.l.b16 %v1714
  %v1790 = vunpack.c.h.b16 %v1714
  %v1791 = vunpack.c.l.b16 %v1715
  %v1792 = vunpack.c.h.b16 %v1715
  %v1793 = vunpack.c.l.b16 %v1716
  %v1794 = vunpack.c.h.b16 %v1716
  %v1795 = vunpack.c.l.b16 %v1717
  %v1796 = vunpack.c.h.b16 %v1717
  %v1797 = vunpack.c.l.b16 %v1718
  %v1798 = vunpack.c.h.b16 %v1718
  %v1799 = vunpack.c.l.b16 %v1719
  %v1800 = vunpack.c.h.b16 %v1719
  %v1801 = vunpack.c.l.b16 %v1720
  %v1802 = vunpack.c.h.b16 %v1720
  %v1803 = vunpack.c.l.b16 %v1721
  %v1804 = vunpack.c.h.b16 %v1721
  %v1805 = vunpack.c.l.b16 %v1722
  %v1806 = vunpack.c.h.b16 %v1722
  %v1807 = vunpack.c.l.b16 %v1723
  %v1808 = vunpack.c.h.b16 %v1723
  %v1809 = vunpack.c.l.b16 %v1724
  %v1810 = vunpack.c.h.b16 %v1724
  %v1811 = vunpack.c.l.b16 %v1725
  %v1812 = vunpack.c.h.b16 %v1725
  %v1813 = vunpack.c.l.b16 %v1726
  %v1814 = vunpack.c.h.b16 %v1726
  %v1815 = vunpack.c.l.b16 %v1727
  %v1816 = vunpack.c.h.b16 %v1727
  %v1817 = vunpack.c.l.b16 %v1728
  %v1818 = vunpack.c.h.b16 %v1728
  %v1819 = vunpack.c.l.b16 %v1729
  %v1820 = vunpack.c.h.b16 %v1729
  %v1821 = vunpack.c.l.b16 %v1730
  %v1822 = vunpack.c.h.b16 %v1730
  %v1823 = vunpack.c.l.b16 %v1731
  %v1824 = vunpack.c.h.b16 %v1731
  %v1825 = vunpack.c.l.b16 %v1732
  %v1826 = vunpack.c.h.b16 %v1732
  %v1827 = vunpack.c.l.b16 %v1733
  %v1828 = vunpack.c.h.b16 %v1733
  %v1829 = vunpack.c.l.b16 %v1734
  %v1830 = vunpack.c.h.b16 %v1734
  %v1831 = vpack.c.b16 %v1771, %v1767
  %v1832 = vpack.c.b16 %v1772, %v1768
  %v1833 = vpack.c.b16 %v1773, %v1769
  %v1834 = vpack.c.b16 %v1774, %v1770
  %v1835 = vpack.c.b16 %v1779, %v1775
  %v1836 = vpack.c.b16 %v1780, %v1776
  %v1837 = vpack.c.b16 %v1781, %v1777
  %v1838 = vpack.c.b16 %v1782, %v1778
  %v1839 = vpack.c.b16 %v1787, %v1783
  %v1840 = vpack.c.b16 %v1788, %v1784
  %v1841 = vpack.c.b16 %v1789, %v1785
  %v1842 = vpack.c.b16 %v1790, %v1786
  %v1843 = vpack.c.b16 %v1795, %v1791
  %v1844 = vpack.c.b16 %v1796, %v1792
  %v1845 = vpack.c.b16 %v1797, %v1793
  %v1846 = vpack.c.b16 %v1798, %v1794
  %v1847 = vpack.c.b16 %v1803, %v1799
  %v1848 = vpack.c.b16 %v1804, %v1800
  %v1849 = vpack.c.b16 %v1805, %v1801
  %v1850 = vpack.c.b16 %v1806, %v1802
  %v1851 = vpack.c.b16 %v1811, %v1807
  %v1852 = vpack.c.b16 %v1812, %v1808
  %v1853 = vpack.c.b16 %v1813, %v1809
  %v1854 = vpack.c.b16 %v1814, %v1810
  %v1855 = vpack.c.b16 %v1819, %v1815
  %v1856 = vpack.c.b16 %v1820, %v1816
  %v1857 = vpack.c.b16 %v1821, %v1817
  %v1858 = vpack.c.b16 %v1822, %v1818
  %v1859 = vpack.c.b16 %v1827, %v1823
  %v1860 = vpack.c.b16 %v1828, %v1824
  %v1861 = vpack.c.b16 %v1829, %v1825
  %v1862 = vpack.c.b16 %v1830, %v1826
  %1895 = vmatprep.subr.bf16.mxu0 %v1832
  %1896 = vmatpush1.bf16.msra.mxu0 %v1831
  %1897 = vmatprep.subr.bf16.mxu0 %v1836
  %1898 = vmatpush1.bf16.msra.mxu0 %v1835
  %1899 = vmatprep.subr.bf16.mxu0 %v1840
  %1900 = vmatpush1.bf16.msra.mxu0 %v1839
  %1901 = vmatprep.subr.bf16.mxu0 %v1844
  %1902 = vmatpush1.bf16.msra.mxu0 %v1843
  %1903 = vmatprep.subr.bf16.mxu0 %v1848
  %1904 = vmatpush1.bf16.msra.mxu0 %v1847
  %1905 = vmatprep.subr.bf16.mxu0 %v1852
  %1906 = vmatpush1.bf16.msra.mxu0 %v1851
  %1907 = vmatprep.subr.bf16.mxu0 %v1856
  %1908 = vmatpush1.bf16.msra.mxu0 %v1855
  %1909 = vmatprep.subr.bf16.mxu0 %v1860
  %1910 = vmatpush1.bf16.msra.mxu0 %v1859
  %1911 = vmatprep.subr.bf16.mxu0 0
  %1912 = vmatpush1.bf16.msra.mxu0 0
  %1913 = vmatprep.subr.bf16.mxu0 0
  %1914 = vmatpush1.bf16.msra.mxu0 0
  %1915 = vmatprep.subr.bf16.mxu0 0
  %1916 = vmatpush1.bf16.msra.mxu0 0
  %1917 = vmatprep.subr.bf16.mxu0 0
  %1918 = vmatpush1.bf16.msra.mxu0 0
  %1919 = vmatprep.subr.bf16.mxu0 0
  %1920 = vmatpush1.bf16.msra.mxu0 0
  %1921 = vmatprep.subr.bf16.mxu0 0
  %1922 = vmatpush1.bf16.msra.mxu0 0
  %1923 = vmatprep.subr.bf16.mxu0 0
  %1924 = vmatpush1.bf16.msra.mxu0 0
  %1925 = vmatprep.subr.bf16.mxu0 0
  %1926 = vmatpush1.bf16.msra.mxu0 0
  %1927 = vmatprep.mubr.bf16.mxu0 0
  %1928 = vmatmul.mubr.bf16.gmra.mrb[0].mxu0 %v1697
  %v1929 = vpop.f32.mrb[0].mxu0
  %v1930 = vadd.f32 0.0, %v1929
  %v1931 = vpop.f32.mrb[0].mxu0
  %v1932 = vadd.f32 0.0, %v1931
  %v1933 = vpop.f32.mrb[0].mxu0
  %v1934 = vpop.f32.mrb[0].mxu0
  %1935 = vdwg.mxu0
  %1936 = vmatprep.subr.bf16.mxu0 %v1834
  %1937 = vmatpush1.bf16.msra.mxu0 %v1833
  %1938 = vmatprep.subr.bf16.mxu0 %v1838
  %1939 = vmatpush1.bf16.msra.mxu0 %v1837
  %1940 = vmatprep.subr.bf16.mxu0 %v1842
  %1941 = vmatpush1.bf16.msra.mxu0 %v1841
  %1942 = vmatprep.subr.bf16.mxu0 %v1846
  %1943 = vmatpush1.bf16.msra.mxu0 %v1845
  %1944 = vmatprep.subr.bf16.mxu0 %v1850
  %1945 = vmatpush1.bf16.msra.mxu0 %v1849
  %1946 = vmatprep.subr.bf16.mxu0 %v1854
  %1947 = vmatpush1.bf16.msra.mxu0 %v1853
  %1948 = vmatprep.subr.bf16.mxu0 %v1858
  %1949 = vmatpush1.bf16.msra.mxu0 %v1857
  %1950 = vmatprep.subr.bf16.mxu0 %v1862
  %1951 = vmatpush1.bf16.msra.mxu0 %v1861
  %1952 = vmatprep.subr.bf16.mxu0 0
  %1953 = vmatpush1.bf16.msra.mxu0 0
  %1954 = vmatprep.subr.bf16.mxu0 0
  %1955 = vmatpush1.bf16.msra.mxu0 0
  %1956 = vmatprep.subr.bf16.mxu0 0
  %1957 = vmatpush1.bf16.msra.mxu0 0
  %1958 = vmatprep.subr.bf16.mxu0 0
  %1959 = vmatpush1.bf16.msra.mxu0 0
  %1960 = vmatprep.subr.bf16.mxu0 0
  %1961 = vmatpush1.bf16.msra.mxu0 0
  %1962 = vmatprep.subr.bf16.mxu0 0
  %1963 = vmatpush1.bf16.msra.mxu0 0
  %1964 = vmatprep.subr.bf16.mxu0 0
  %1965 = vmatpush1.bf16.msra.mxu0 0
  %1966 = vmatprep.subr.bf16.mxu0 0
  %1967 = vmatpush1.bf16.msra.mxu0 0
  %1968 = vmatprep.mubr.bf16.mxu0 0
  %1969 = vmatmul.mubr.bf16.gmra.mrb[0].mxu0 %v1697
  %v1970 = vpop.f32.mrb[0].mxu0
  %v1971 = vadd.f32 0.0, %v1970
  %v1972 = vpop.f32.mrb[0].mxu0
  %v1973 = vadd.f32 0.0, %v1972
  %v1974 = vpop.f32.mrb[0].mxu0
  %v1975 = vpop.f32.mrb[0].mxu0
  %1976 = vdwg.mxu0
  %v1977 = vadd.f32 %v1699, %v1930
  %v1978 = vadd.f32 %v1700, %v1932
  %v1979 = vadd.f32 %v1701, %v1971
  %v1980 = vadd.f32 %v1702, %v1973
  %v1981 = vxor.u32 %v1977, 2147483648
  %v1982 = vxor.u32 %v1978, 2147483648
  %v1983 = vxor.u32 %v1979, 2147483648
  %v1984 = vmul.f32 %v1981, 1.442695
  %v1985 = vpow.pop %v1984
  %v1986 = vmul.f32 %v1982, 1.442695
  %v1987 = vpow.pop %v1986
  %v1988 = vmul.f32 %v1983, 1.442695
  %v1989 = vpow.pop %v1988
  %v1990 = vadd.f32 %v1985, 1.0
  %v1991 = vadd.f32 %v1987, 1.0
  %v1992 = vadd.f32 %v1989, 1.0
  %v1993 = vrcp.pop %v1990
  %v1994 = vmul.f32 1.0, %v1993
  %v1995 = vrcp.pop %v1991
  %v1996 = vmul.f32 1.0, %v1995
  %v1997 = vrcp.pop %v1992
  %v1998 = vmul.f32 1.0, %v1997
  %v1999 = vtanh.pop %v1980
  %v2000 = vmul.f32 %v1996, %v1694
  %v2001 = vmul.f32 %v1994, %v1999
  %v2002 = vadd.f32 %v2000, %v2001
  %v2003 = vtanh.pop %v2002
  %v2004 = vmul.f32 %v1998, %v2003
  %v2005 = vpack.c.bf16 %v2004, %v2004
  %2006 = vst [vmem:[%s4 + $0x10] sm:$0xf] %v2005
  %v2007 = vld [vmem:[#allocation2 + $0xa0] sm:$0xff]
  %v2008 = vld [vmem:[#allocation2 + $0xa8] sm:$0xff]
  %v2009 = vld [vmem:[#allocation2 + $0xb0] sm:$0xff]
  %v2010 = vld [vmem:[#allocation2 + $0xb8] sm:$0xff]
  %v2011 = vld [vmem:[%s2] sm:$0xff]
  %v2012 = vld [vmem:[%s2 + $0x8] sm:$0xff]
  %v2013 = vld [vmem:[%s2 + $0x10] sm:$0xff]
  %v2014 = vld [vmem:[%s2 + $0x18] sm:$0xff]
  %v2015 = vld [vmem:[%s2 + $0x20] sm:$0xff]
  %v2016 = vld [vmem:[%s2 + $0x28] sm:$0xff]
  %v2017 = vld [vmem:[%s2 + $0x30] sm:$0xff]
  %v2018 = vld [vmem:[%s2 + $0x38] sm:$0xff]
  %v2019 = vld [vmem:[%s2 + $0x40] sm:$0xff]
  %v2020 = vld [vmem:[%s2 + $0x48] sm:$0xff]
  %v2021 = vld [vmem:[%s2 + $0x50] sm:$0xff]
  %v2022 = vld [vmem:[%s2 + $0x58] sm:$0xff]
  %v2023 = vld [vmem:[%s2 + $0x60] sm:$0xff]
  %v2024 = vld [vmem:[%s2 + $0x68] sm:$0xff]
  %v2025 = vld [vmem:[%s2 + $0x70] sm:$0xff]
  %v2026 = vld [vmem:[%s2 + $0x78] sm:$0xff]
  %v2027 = vld [vmem:[%s2 + $0x80] sm:$0xff]
  %v2028 = vld [vmem:[%s2 + $0x88] sm:$0xff]
  %v2029 = vld [vmem:[%s2 + $0x90] sm:$0xff]
  %v2030 = vld [vmem:[%s2 + $0x98] sm:$0xff]
  %v2031 = vld [vmem:[%s2 + $0xa0] sm:$0xff]
  %v2032 = vld [vmem:[%s2 + $0xa8] sm:$0xff]
  %v2033 = vld [vmem:[%s2 + $0xb0] sm:$0xff]
  %v2034 = vld [vmem:[%s2 + $0xb8] sm:$0xff]
  %v2035 = vld [vmem:[%s2 + $0xc0] sm:$0xff]
  %v2036 = vld [vmem:[%s2 + $0xc8] sm:$0xff]
  %v2037 = vld [vmem:[%s2 + $0xd0] sm:$0xff]
  %v2038 = vld [vmem:[%s2 + $0xd8] sm:$0xff]
  %v2039 = vld [vmem:[%s2 + $0xe0] sm:$0xff]
  %v2040 = vld [vmem:[%s2 + $0xe8] sm:$0xff]
  %v2041 = vld [vmem:[%s2 + $0xf0] sm:$0xff]
  %v2042 = vld [vmem:[%s2 + $0xf8] sm:$0xff]
  %v2075 = vunpack.c.l.b16 %v2011
  %v2076 = vunpack.c.h.b16 %v2011
  %v2077 = vunpack.c.l.b16 %v2012
  %v2078 = vunpack.c.h.b16 %v2012
  %v2079 = vunpack.c.l.b16 %v2013
  %v2080 = vunpack.c.h.b16 %v2013
  %v2081 = vunpack.c.l.b16 %v2014
  %v2082 = vunpack.c.h.b16 %v2014
  %v2083 = vunpack.c.l.b16 %v2015
  %v2084 = vunpack.c.h.b16 %v2015
  %v2085 = vunpack.c.l.b16 %v2016
  %v2086 = vunpack.c.h.b16 %v2016
  %v2087 = vunpack.c.l.b16 %v2017
  %v2088 = vunpack.c.h.b16 %v2017
  %v2089 = vunpack.c.l.b16 %v2018
  %v2090 = vunpack.c.h.b16 %v2018
  %v2091 = vunpack.c.l.b16 %v2019
  %v2092 = vunpack.c.h.b16 %v2019
  %v2093 = vunpack.c.l.b16 %v2020
  %v2094 = vunpack.c.h.b16 %v2020
  %v2095 = vunpack.c.l.b16 %v2021
  %v2096 = vunpack.c.h.b16 %v2021
  %v2097 = vunpack.c.l.b16 %v2022
  %v2098 = vunpack.c.h.b16 %v2022
  %v2099 = vunpack.c.l.b16 %v2023
  %v2100 = vunpack.c.h.b16 %v2023
  %v2101 = vunpack.c.l.b16 %v2024
  %v2102 = vunpack.c.h.b16 %v2024
  %v2103 = vunpack.c.l.b16 %v2025
  %v2104 = vunpack.c.h.b16 %v2025
  %v2105 = vunpack.c.l.b16 %v2026
  %v2106 = vunpack.c.h.b16 %v2026
  %v2107 = vunpack.c.l.b16 %v2027
  %v2108 = vunpack.c.h.b16 %v2027
  %v2109 = vunpack.c.l.b16 %v2028
  %v2110 = vunpack.c.h.b16 %v2028
  %v2111 = vunpack.c.l.b16 %v2029
  %v2112 = vunpack.c.h.b16 %v2029
  %v2113 = vunpack.c.l.b16 %v2030
  %v2114 = vunpack.c.h.b16 %v2030
  %v2115 = vunpack.c.l.b16 %v2031
  %v2116 = vunpack.c.h.b16 %v2031
  %v2117 = vunpack.c.l.b16 %v2032
  %v2118 = vunpack.c.h.b16 %v2032
  %v2119 = vunpack.c.l.b16 %v2033
  %v2120 = vunpack.c.h.b16 %v2033
  %v2121 = vunpack.c.l.b16 %v2034
  %v2122 = vunpack.c.h.b16 %v2034
  %v2123 = vunpack.c.l.b16 %v2035
  %v2124 = vunpack.c.h.b16 %v2035
  %v2125 = vunpack.c.l.b16 %v2036
  %v2126 = vunpack.c.h.b16 %v2036
  %v2127 = vunpack.c.l.b16 %v2037
  %v2128 = vunpack.c.h.b16 %v2037
  %v2129 = vunpack.c.l.b16 %v2038
  %v2130 = vunpack.c.h.b16 %v2038
  %v2131 = vunpack.c.l.b16 %v2039
  %v2132 = vunpack.c.h.b16 %v2039
  %v2133 = vunpack.c.l.b16 %v2040
  %v2134 = vunpack.c.h.b16 %v2040
  %v2135 = vunpack.c.l.b16 %v2041
  %v2136 = vunpack.c.h.b16 %v2041
  %v2137 = vunpack.c.l.b16 %v2042
  %v2138 = vunpack.c.h.b16 %v2042
  %v2139 = vpack.c.b16 %v2079, %v2075
  %v2140 = vpack.c.b16 %v2080, %v2076
  %v2141 = vpack.c.b16 %v2081, %v2077
  %v2142 = vpack.c.b16 %v2082, %v2078
  %v2143 = vpack.c.b16 %v2087, %v2083
  %v2144 = vpack.c.b16 %v2088, %v2084
  %v2145 = vpack.c.b16 %v2089, %v2085
  %v2146 = vpack.c.b16 %v2090, %v2086
  %v2147 = vpack.c.b16 %v2095, %v2091
  %v2148 = vpack.c.b16 %v2096, %v2092
  %v2149 = vpack.c.b16 %v2097, %v2093
  %v2150 = vpack.c.b16 %v2098, %v2094
  %v2151 = vpack.c.b16 %v2103, %v2099
  %v2152 = vpack.c.b16 %v2104, %v2100
  %v2153 = vpack.c.b16 %v2105, %v2101
  %v2154 = vpack.c.b16 %v2106, %v2102
  %v2155 = vpack.c.b16 %v2111, %v2107
  %v2156 = vpack.c.b16 %v2112, %v2108
  %v2157 = vpack.c.b16 %v2113, %v2109
  %v2158 = vpack.c.b16 %v2114, %v2110
  %v2159 = vpack.c.b16 %v2119, %v2115
  %v2160 = vpack.c.b16 %v2120, %v2116
  %v2161 = vpack.c.b16 %v2121, %v2117
  %v2162 = vpack.c.b16 %v2122, %v2118
  %v2163 = vpack.c.b16 %v2127, %v2123
  %v2164 = vpack.c.b16 %v2128, %v2124
  %v2165 = vpack.c.b16 %v2129, %v2125
  %v2166 = vpack.c.b16 %v2130, %v2126
  %v2167 = vpack.c.b16 %v2135, %v2131
  %v2168 = vpack.c.b16 %v2136, %v2132
  %v2169 = vpack.c.b16 %v2137, %v2133
  %v2170 = vpack.c.b16 %v2138, %v2134
  %2203 = vmatprep.subr.bf16.mxu0 %v2140
  %2204 = vmatpush1.bf16.msra.mxu0 %v2139
  %2205 = vmatprep.subr.bf16.mxu0 %v2144
  %2206 = vmatpush1.bf16.msra.mxu0 %v2143
  %2207 = vmatprep.subr.bf16.mxu0 %v2148
  %2208 = vmatpush1.bf16.msra.mxu0 %v2147
  %2209 = vmatprep.subr.bf16.mxu0 %v2152
  %2210 = vmatpush1.bf16.msra.mxu0 %v2151
  %2211 = vmatprep.subr.bf16.mxu0 %v2156
  %2212 = vmatpush1.bf16.msra.mxu0 %v2155
  %2213 = vmatprep.subr.bf16.mxu0 %v2160
  %2214 = vmatpush1.bf16.msra.mxu0 %v2159
  %2215 = vmatprep.subr.bf16.mxu0 %v2164
  %2216 = vmatpush1.bf16.msra.mxu0 %v2163
  %2217 = vmatprep.subr.bf16.mxu0 %v2168
  %2218 = vmatpush1.bf16.msra.mxu0 %v2167
  %2219 = vmatprep.subr.bf16.mxu0 0
  %2220 = vmatpush1.bf16.msra.mxu0 0
  %2221 = vmatprep.subr.bf16.mxu0 0
  %2222 = vmatpush1.bf16.msra.mxu0 0
  %2223 = vmatprep.subr.bf16.mxu0 0
  %2224 = vmatpush1.bf16.msra.mxu0 0
  %2225 = vmatprep.subr.bf16.mxu0 0
  %2226 = vmatpush1.bf16.msra.mxu0 0
  %2227 = vmatprep.subr.bf16.mxu0 0
  %2228 = vmatpush1.bf16.msra.mxu0 0
  %2229 = vmatprep.subr.bf16.mxu0 0
  %2230 = vmatpush1.bf16.msra.mxu0 0
  %2231 = vmatprep.subr.bf16.mxu0 0
  %2232 = vmatpush1.bf16.msra.mxu0 0
  %2233 = vmatprep.subr.bf16.mxu0 0
  %2234 = vmatpush1.bf16.msra.mxu0 0
  %2235 = vmatprep.mubr.bf16.mxu0 0
  %2236 = vmatmul.mubr.bf16.gmra.mrb[0].mxu0 %v2005
  %v2237 = vpop.f32.mrb[0].mxu0
  %v2238 = vadd.f32 0.0, %v2237
  %v2239 = vpop.f32.mrb[0].mxu0
  %v2240 = vadd.f32 0.0, %v2239
  %v2241 = vpop.f32.mrb[0].mxu0
  %v2242 = vpop.f32.mrb[0].mxu0
  %2243 = vdwg.mxu0
  %2244 = vmatprep.subr.bf16.mxu0 %v2142
  %2245 = vmatpush1.bf16.msra.mxu0 %v2141
  %2246 = vmatprep.subr.bf16.mxu0 %v2146
  %2247 = vmatpush1.bf16.msra.mxu0 %v2145
  %2248 = vmatprep.subr.bf16.mxu0 %v2150
  %2249 = vmatpush1.bf16.msra.mxu0 %v2149
  %2250 = vmatprep.subr.bf16.mxu0 %v2154
  %2251 = vmatpush1.bf16.msra.mxu0 %v2153
  %2252 = vmatprep.subr.bf16.mxu0 %v2158
  %2253 = vmatpush1.bf16.msra.mxu0 %v2157
  %2254 = vmatprep.subr.bf16.mxu0 %v2162
  %2255 = vmatpush1.bf16.msra.mxu0 %v2161
  %2256 = vmatprep.subr.bf16.mxu0 %v2166
  %2257 = vmatpush1.bf16.msra.mxu0 %v2165
  %2258 = vmatprep.subr.bf16.mxu0 %v2170
  %2259 = vmatpush1.bf16.msra.mxu0 %v2169
  %2260 = vmatprep.subr.bf16.mxu0 0
  %2261 = vmatpush1.bf16.msra.mxu0 0
  %2262 = vmatprep.subr.bf16.mxu0 0
  %2263 = vmatpush1.bf16.msra.mxu0 0
  %2264 = vmatprep.subr.bf16.mxu0 0
  %2265 = vmatpush1.bf16.msra.mxu0 0
  %2266 = vmatprep.subr.bf16.mxu0 0
  %2267 = vmatpush1.bf16.msra.mxu0 0
  %2268 = vmatprep.subr.bf16.mxu0 0
  %2269 = vmatpush1.bf16.msra.mxu0 0
  %2270 = vmatprep.subr.bf16.mxu0 0
  %2271 = vmatpush1.bf16.msra.mxu0 0
  %2272 = vmatprep.subr.bf16.mxu0 0
  %2273 = vmatpush1.bf16.msra.mxu0 0
  %2274 = vmatprep.subr.bf16.mxu0 0
  %2275 = vmatpush1.bf16.msra.mxu0 0
  %2276 = vmatprep.mubr.bf16.mxu0 0
  %2277 = vmatmul.mubr.bf16.gmra.mrb[0].mxu0 %v2005
  %v2278 = vpop.f32.mrb[0].mxu0
  %v2279 = vadd.f32 0.0, %v2278
  %v2280 = vpop.f32.mrb[0].mxu0
  %v2281 = vadd.f32 0.0, %v2280
  %v2282 = vpop.f32.mrb[0].mxu0
  %v2283 = vpop.f32.mrb[0].mxu0
  %2284 = vdwg.mxu0
  %v2285 = vadd.f32 %v2007, %v2238
  %v2286 = vadd.f32 %v2008, %v2240
  %v2287 = vadd.f32 %v2009, %v2279
  %v2288 = vadd.f32 %v2010, %v2281
  %v2289 = vxor.u32 %v2285, 2147483648
  %v2290 = vxor.u32 %v2286, 2147483648
  %v2291 = vxor.u32 %v2287, 2147483648
  %v2292 = vmul.f32 %v2289, 1.442695
  %v2293 = vpow.pop %v2292
  %v2294 = vmul.f32 %v2290, 1.442695
  %v2295 = vpow.pop %v2294
  %v2296 = vmul.f32 %v2291, 1.442695
  %v2297 = vpow.pop %v2296
  %v2298 = vadd.f32 %v2293, 1.0
  %v2299 = vadd.f32 %v2295, 1.0
  %v2300 = vadd.f32 %v2297, 1.0
  %v2301 = vrcp.pop %v2298
  %v2302 = vmul.f32 1.0, %v2301
  %v2303 = vrcp.pop %v2299
  %v2304 = vmul.f32 1.0, %v2303
  %v2305 = vrcp.pop %v2300
  %v2306 = vmul.f32 1.0, %v2305
  %v2307 = vtanh.pop %v2288
  %v2308 = vmul.f32 %v2304, %v2002
  %v2309 = vmul.f32 %v2302, %v2307
  %v2310 = vadd.f32 %v2308, %v2309
  %v2311 = vtanh.pop %v2310
  %v2312 = vmul.f32 %v2306, %v2311
  %v2313 = vpack.c.bf16 %v2312, %v2312
  %2314 = vst [vmem:[%s4 + $0x14] sm:$0xf] %v2313
  %v2315 = vld [vmem:[#allocation2 + $0xc0] sm:$0xff]
  %v2316 = vld [vmem:[#allocation2 + $0xc8] sm:$0xff]
  %v2317 = vld [vmem:[#allocation2 + $0xd0] sm:$0xff]
  %v2318 = vld [vmem:[#allocation2 + $0xd8] sm:$0xff]
  %v2319 = vld [vmem:[%s2] sm:$0xff]
  %v2320 = vld [vmem:[%s2 + $0x8] sm:$0xff]
  %v2321 = vld [vmem:[%s2 + $0x10] sm:$0xff]
  %v2322 = vld [vmem:[%s2 + $0x18] sm:$0xff]
  %v2323 = vld [vmem:[%s2 + $0x20] sm:$0xff]
  %v2324 = vld [vmem:[%s2 + $0x28] sm:$0xff]
  %v2325 = vld [vmem:[%s2 + $0x30] sm:$0xff]
  %v2326 = vld [vmem:[%s2 + $0x38] sm:$0xff]
  %v2327 = vld [vmem:[%s2 + $0x40] sm:$0xff]
  %v2328 = vld [vmem:[%s2 + $0x48] sm:$0xff]
  %v2329 = vld [vmem:[%s2 + $0x50] sm:$0xff]
  %v2330 = vld [vmem:[%s2 + $0x58] sm:$0xff]
  %v2331 = vld [vmem:[%s2 + $0x60] sm:$0xff]
  %v2332 = vld [vmem:[%s2 + $0x68] sm:$0xff]
  %v2333 = vld [vmem:[%s2 + $0x70] sm:$0xff]
  %v2334 = vld [vmem:[%s2 + $0x78] sm:$0xff]
  %v2335 = vld [vmem:[%s2 + $0x80] sm:$0xff]
  %v2336 = vld [vmem:[%s2 + $0x88] sm:$0xff]
  %v2337 = vld [vmem:[%s2 + $0x90] sm:$0xff]
  %v2338 = vld [vmem:[%s2 + $0x98] sm:$0xff]
  %v2339 = vld [vmem:[%s2 + $0xa0] sm:$0xff]
  %v2340 = vld [vmem:[%s2 + $0xa8] sm:$0xff]
  %v2341 = vld [vmem:[%s2 + $0xb0] sm:$0xff]
  %v2342 = vld [vmem:[%s2 + $0xb8] sm:$0xff]
  %v2343 = vld [vmem:[%s2 + $0xc0] sm:$0xff]
  %v2344 = vld [vmem:[%s2 + $0xc8] sm:$0xff]
  %v2345 = vld [vmem:[%s2 + $0xd0] sm:$0xff]
  %v2346 = vld [vmem:[%s2 + $0xd8] sm:$0xff]
  %v2347 = vld [vmem:[%s2 + $0xe0] sm:$0xff]
  %v2348 = vld [vmem:[%s2 + $0xe8] sm:$0xff]
  %v2349 = vld [vmem:[%s2 + $0xf0] sm:$0xff]
  %v2350 = vld [vmem:[%s2 + $0xf8] sm:$0xff]
  %v2383 = vunpack.c.l.b16 %v2319
  %v2384 = vunpack.c.h.b16 %v2319
  %v2385 = vunpack.c.l.b16 %v2320
  %v2386 = vunpack.c.h.b16 %v2320
  %v2387 = vunpack.c.l.b16 %v2321
  %v2388 = vunpack.c.h.b16 %v2321
  %v2389 = vunpack.c.l.b16 %v2322
  %v2390 = vunpack.c.h.b16 %v2322
  %v2391 = vunpack.c.l.b16 %v2323
  %v2392 = vunpack.c.h.b16 %v2323
  %v2393 = vunpack.c.l.b16 %v2324
  %v2394 = vunpack.c.h.b16 %v2324
  %v2395 = vunpack.c.l.b16 %v2325
  %v2396 = vunpack.c.h.b16 %v2325
  %v2397 = vunpack.c.l.b16 %v2326
  %v2398 = vunpack.c.h.b16 %v2326
  %v2399 = vunpack.c.l.b16 %v2327
  %v2400 = vunpack.c.h.b16 %v2327
  %v2401 = vunpack.c.l.b16 %v2328
  %v2402 = vunpack.c.h.b16 %v2328
  %v2403 = vunpack.c.l.b16 %v2329
  %v2404 = vunpack.c.h.b16 %v2329
  %v2405 = vunpack.c.l.b16 %v2330
  %v2406 = vunpack.c.h.b16 %v2330
  %v2407 = vunpack.c.l.b16 %v2331
  %v2408 = vunpack.c.h.b16 %v2331
  %v2409 = vunpack.c.l.b16 %v2332
  %v2410 = vunpack.c.h.b16 %v2332
  %v2411 = vunpack.c.l.b16 %v2333
  %v2412 = vunpack.c.h.b16 %v2333
  %v2413 = vunpack.c.l.b16 %v2334
  %v2414 = vunpack.c.h.b16 %v2334
  %v2415 = vunpack.c.l.b16 %v2335
  %v2416 = vunpack.c.h.b16 %v2335
  %v2417 = vunpack.c.l.b16 %v2336
  %v2418 = vunpack.c.h.b16 %v2336
  %v2419 = vunpack.c.l.b16 %v2337
  %v2420 = vunpack.c.h.b16 %v2337
  %v2421 = vunpack.c.l.b16 %v2338
  %v2422 = vunpack.c.h.b16 %v2338
  %v2423 = vunpack.c.l.b16 %v2339
  %v2424 = vunpack.c.h.b16 %v2339
  %v2425 = vunpack.c.l.b16 %v2340
  %v2426 = vunpack.c.h.b16 %v2340
  %v2427 = vunpack.c.l.b16 %v2341
  %v2428 = vunpack.c.h.b16 %v2341
  %v2429 = vunpack.c.l.b16 %v2342
  %v2430 = vunpack.c.h.b16 %v2342
  %v2431 = vunpack.c.l.b16 %v2343
  %v2432 = vunpack.c.h.b16 %v2343
  %v2433 = vunpack.c.l.b16 %v2344
  %v2434 = vunpack.c.h.b16 %v2344
  %v2435 = vunpack.c.l.b16 %v2345
  %v2436 = vunpack.c.h.b16 %v2345
  %v2437 = vunpack.c.l.b16 %v2346
  %v2438 = vunpack.c.h.b16 %v2346
  %v2439 = vunpack.c.l.b16 %v2347
  %v2440 = vunpack.c.h.b16 %v2347
  %v2441 = vunpack.c.l.b16 %v2348
  %v2442 = vunpack.c.h.b16 %v2348
  %v2443 = vunpack.c.l.b16 %v2349
  %v2444 = vunpack.c.h.b16 %v2349
  %v2445 = vunpack.c.l.b16 %v2350
  %v2446 = vunpack.c.h.b16 %v2350
  %v2447 = vpack.c.b16 %v2387, %v2383
  %v2448 = vpack.c.b16 %v2388, %v2384
  %v2449 = vpack.c.b16 %v2389, %v2385
  %v2450 = vpack.c.b16 %v2390, %v2386
  %v2451 = vpack.c.b16 %v2395, %v2391
  %v2452 = vpack.c.b16 %v2396, %v2392
  %v2453 = vpack.c.b16 %v2397, %v2393
  %v2454 = vpack.c.b16 %v2398, %v2394
  %v2455 = vpack.c.b16 %v2403, %v2399
  %v2456 = vpack.c.b16 %v2404, %v2400
  %v2457 = vpack.c.b16 %v2405, %v2401
  %v2458 = vpack.c.b16 %v2406, %v2402
  %v2459 = vpack.c.b16 %v2411, %v2407
  %v2460 = vpack.c.b16 %v2412, %v2408
  %v2461 = vpack.c.b16 %v2413, %v2409
  %v2462 = vpack.c.b16 %v2414, %v2410
  %v2463 = vpack.c.b16 %v2419, %v2415
  %v2464 = vpack.c.b16 %v2420, %v2416
  %v2465 = vpack.c.b16 %v2421, %v2417
  %v2466 = vpack.c.b16 %v2422, %v2418
  %v2467 = vpack.c.b16 %v2427, %v2423
  %v2468 = vpack.c.b16 %v2428, %v2424
  %v2469 = vpack.c.b16 %v2429, %v2425
  %v2470 = vpack.c.b16 %v2430, %v2426
  %v2471 = vpack.c.b16 %v2435, %v2431
  %v2472 = vpack.c.b16 %v2436, %v2432
  %v2473 = vpack.c.b16 %v2437, %v2433
  %v2474 = vpack.c.b16 %v2438, %v2434
  %v2475 = vpack.c.b16 %v2443, %v2439
  %v2476 = vpack.c.b16 %v2444, %v2440
  %v2477 = vpack.c.b16 %v2445, %v2441
  %v2478 = vpack.c.b16 %v2446, %v2442
  %2511 = vmatprep.subr.bf16.mxu0 %v2448
  %2512 = vmatpush1.bf16.msra.mxu0 %v2447
  %2513 = vmatprep.subr.bf16.mxu0 %v2452
  %2514 = vmatpush1.bf16.msra.mxu0 %v2451
  %2515 = vmatprep.subr.bf16.mxu0 %v2456
  %2516 = vmatpush1.bf16.msra.mxu0 %v2455
  %2517 = vmatprep.subr.bf16.mxu0 %v2460
  %2518 = vmatpush1.bf16.msra.mxu0 %v2459
  %2519 = vmatprep.subr.bf16.mxu0 %v2464
  %2520 = vmatpush1.bf16.msra.mxu0 %v2463
  %2521 = vmatprep.subr.bf16.mxu0 %v2468
  %2522 = vmatpush1.bf16.msra.mxu0 %v2467
  %2523 = vmatprep.subr.bf16.mxu0 %v2472
  %2524 = vmatpush1.bf16.msra.mxu0 %v2471
  %2525 = vmatprep.subr.bf16.mxu0 %v2476
  %2526 = vmatpush1.bf16.msra.mxu0 %v2475
  %2527 = vmatprep.subr.bf16.mxu0 0
  %2528 = vmatpush1.bf16.msra.mxu0 0
  %2529 = vmatprep.subr.bf16.mxu0 0
  %2530 = vmatpush1.bf16.msra.mxu0 0
  %2531 = vmatprep.subr.bf16.mxu0 0
  %2532 = vmatpush1.bf16.msra.mxu0 0
  %2533 = vmatprep.subr.bf16.mxu0 0
  %2534 = vmatpush1.bf16.msra.mxu0 0
  %2535 = vmatprep.subr.bf16.mxu0 0
  %2536 = vmatpush1.bf16.msra.mxu0 0
  %2537 = vmatprep.subr.bf16.mxu0 0
  %2538 = vmatpush1.bf16.msra.mxu0 0
  %2539 = vmatprep.subr.bf16.mxu0 0
  %2540 = vmatpush1.bf16.msra.mxu0 0
  %2541 = vmatprep.subr.bf16.mxu0 0
  %2542 = vmatpush1.bf16.msra.mxu0 0
  %2543 = vmatprep.mubr.bf16.mxu0 0
  %2544 = vmatmul.mubr.bf16.gmra.mrb[0].mxu0 %v2313
  %v2545 = vpop.f32.mrb[0].mxu0
  %v2546 = vadd.f32 0.0, %v2545
  %v2547 = vpop.f32.mrb[0].mxu0
  %v2548 = vadd.f32 0.0, %v2547
  %v2549 = vpop.f32.mrb[0].mxu0
  %v2550 = vpop.f32.mrb[0].mxu0
  %2551 = vdwg.mxu0
  %2552 = vmatprep.subr.bf16.mxu0 %v2450
  %2553 = vmatpush1.bf16.msra.mxu0 %v2449
  %2554 = vmatprep.subr.bf16.mxu0 %v2454
  %2555 = vmatpush1.bf16.msra.mxu0 %v2453
  %2556 = vmatprep.subr.bf16.mxu0 %v2458
  %2557 = vmatpush1.bf16.msra.mxu0 %v2457
  %2558 = vmatprep.subr.bf16.mxu0 %v2462
  %2559 = vmatpush1.bf16.msra.mxu0 %v2461
  %2560 = vmatprep.subr.bf16.mxu0 %v2466
  %2561 = vmatpush1.bf16.msra.mxu0 %v2465
  %2562 = vmatprep.subr.bf16.mxu0 %v2470
  %2563 = vmatpush1.bf16.msra.mxu0 %v2469
  %2564 = vmatprep.subr.bf16.mxu0 %v2474
  %2565 = vmatpush1.bf16.msra.mxu0 %v2473
  %2566 = vmatprep.subr.bf16.mxu0 %v2478
  %2567 = vmatpush1.bf16.msra.mxu0 %v2477
  %2568 = vmatprep.subr.bf16.mxu0 0
  %2569 = vmatpush1.bf16.msra.mxu0 0
  %2570 = vmatprep.subr.bf16.mxu0 0
  %2571 = vmatpush1.bf16.msra.mxu0 0
  %2572 = vmatprep.subr.bf16.mxu0 0
  %2573 = vmatpush1.bf16.msra.mxu0 0
  %2574 = vmatprep.subr.bf16.mxu0 0
  %2575 = vmatpush1.bf16.msra.mxu0 0
  %2576 = vmatprep.subr.bf16.mxu0 0
  %2577 = vmatpush1.bf16.msra.mxu0 0
  %2578 = vmatprep.subr.bf16.mxu0 0
  %2579 = vmatpush1.bf16.msra.mxu0 0
  %2580 = vmatprep.subr.bf16.mxu0 0
  %2581 = vmatpush1.bf16.msra.mxu0 0
  %2582 = vmatprep.subr.bf16.mxu0 0
  %2583 = vmatpush1.bf16.msra.mxu0 0
  %2584 = vmatprep.mubr.bf16.mxu0 0
  %2585 = vmatmul.mubr.bf16.gmra.mrb[0].mxu0 %v2313
  %v2586 = vpop.f32.mrb[0].mxu0
  %v2587 = vadd.f32 0.0, %v2586
  %v2588 = vpop.f32.mrb[0].mxu0
  %v2589 = vadd.f32 0.0, %v2588
  %v2590 = vpop.f32.mrb[0].mxu0
  %v2591 = vpop.f32.mrb[0].mxu0
  %2592 = vdwg.mxu0
  %v2593 = vadd.f32 %v2315, %v2546
  %v2594 = vadd.f32 %v2316, %v2548
  %v2595 = vadd.f32 %v2317, %v2587
  %v2596 = vadd.f32 %v2318, %v2589
  %v2597 = vxor.u32 %v2593, 2147483648
  %v2598 = vxor.u32 %v2594, 2147483648
  %v2599 = vxor.u32 %v2595, 2147483648
  %v2600 = vmul.f32 %v2597, 1.442695
  %v2601 = vpow.pop %v2600
  %v2602 = vmul.f32 %v2598, 1.442695
  %v2603 = vpow.pop %v2602
  %v2604 = vmul.f32 %v2599, 1.442695
  %v2605 = vpow.pop %v2604
  %v2606 = vadd.f32 %v2601, 1.0
  %v2607 = vadd.f32 %v2603, 1.0
  %v2608 = vadd.f32 %v2605, 1.0
  %v2609 = vrcp.pop %v2606
  %v2610 = vmul.f32 1.0, %v2609
  %v2611 = vrcp.pop %v2607
  %v2612 = vmul.f32 1.0, %v2611
  %v2613 = vrcp.pop %v2608
  %v2614 = vmul.f32 1.0, %v2613
  %v2615 = vtanh.pop %v2596
  %v2616 = vmul.f32 %v2612, %v2310
  %v2617 = vmul.f32 %v2610, %v2615
  %v2618 = vadd.f32 %v2616, %v2617
  %v2619 = vtanh.pop %v2618
  %v2620 = vmul.f32 %v2614, %v2619
  %v2621 = vpack.c.bf16 %v2620, %v2620
  %2622 = vst [vmem:[%s4 + $0x18] sm:$0xf] %v2621
  %v2623 = vld [vmem:[#allocation2 + $0xe0] sm:$0xff]
  %v2624 = vld [vmem:[#allocation2 + $0xe8] sm:$0xff]
  %v2625 = vld [vmem:[#allocation2 + $0xf0] sm:$0xff]
  %v2626 = vld [vmem:[#allocation2 + $0xf8] sm:$0xff]
  %v2627 = vld [vmem:[%s2] sm:$0xff]
  %v2628 = vld [vmem:[%s2 + $0x8] sm:$0xff]
  %v2629 = vld [vmem:[%s2 + $0x10] sm:$0xff]
  %v2630 = vld [vmem:[%s2 + $0x18] sm:$0xff]
  %v2631 = vld [vmem:[%s2 + $0x20] sm:$0xff]
  %v2632 = vld [vmem:[%s2 + $0x28] sm:$0xff]
  %v2633 = vld [vmem:[%s2 + $0x30] sm:$0xff]
  %v2634 = vld [vmem:[%s2 + $0x38] sm:$0xff]
  %v2635 = vld [vmem:[%s2 + $0x40] sm:$0xff]
  %v2636 = vld [vmem:[%s2 + $0x48] sm:$0xff]
  %v2637 = vld [vmem:[%s2 + $0x50] sm:$0xff]
  %v2638 = vld [vmem:[%s2 + $0x58] sm:$0xff]
  %v2639 = vld [vmem:[%s2 + $0x60] sm:$0xff]
  %v2640 = vld [vmem:[%s2 + $0x68] sm:$0xff]
  %v2641 = vld [vmem:[%s2 + $0x70] sm:$0xff]
  %v2642 = vld [vmem:[%s2 + $0x78] sm:$0xff]
  %v2643 = vld [vmem:[%s2 + $0x80] sm:$0xff]
  %v2644 = vld [vmem:[%s2 + $0x88] sm:$0xff]
  %v2645 = vld [vmem:[%s2 + $0x90] sm:$0xff]
  %v2646 = vld [vmem:[%s2 + $0x98] sm:$0xff]
  %v2647 = vld [vmem:[%s2 + $0xa0] sm:$0xff]
  %v2648 = vld [vmem:[%s2 + $0xa8] sm:$0xff]
  %v2649 = vld [vmem:[%s2 + $0xb0] sm:$0xff]
  %v2650 = vld [vmem:[%s2 + $0xb8] sm:$0xff]
  %v2651 = vld [vmem:[%s2 + $0xc0] sm:$0xff]
  %v2652 = vld [vmem:[%s2 + $0xc8] sm:$0xff]
  %v2653 = vld [vmem:[%s2 + $0xd0] sm:$0xff]
  %v2654 = vld [vmem:[%s2 + $0xd8] sm:$0xff]
  %v2655 = vld [vmem:[%s2 + $0xe0] sm:$0xff]
  %v2656 = vld [vmem:[%s2 + $0xe8] sm:$0xff]
  %v2657 = vld [vmem:[%s2 + $0xf0] sm:$0xff]
  %v2658 = vld [vmem:[%s2 + $0xf8] sm:$0xff]
  %v2691 = vunpack.c.l.b16 %v2627
  %v2692 = vunpack.c.h.b16 %v2627
  %v2693 = vunpack.c.l.b16 %v2628
  %v2694 = vunpack.c.h.b16 %v2628
  %v2695 = vunpack.c.l.b16 %v2629
  %v2696 = vunpack.c.h.b16 %v2629
  %v2697 = vunpack.c.l.b16 %v2630
  %v2698 = vunpack.c.h.b16 %v2630
  %v2699 = vunpack.c.l.b16 %v2631
  %v2700 = vunpack.c.h.b16 %v2631
  %v2701 = vunpack.c.l.b16 %v2632
  %v2702 = vunpack.c.h.b16 %v2632
  %v2703 = vunpack.c.l.b16 %v2633
  %v2704 = vunpack.c.h.b16 %v2633
  %v2705 = vunpack.c.l.b16 %v2634
  %v2706 = vunpack.c.h.b16 %v2634
  %v2707 = vunpack.c.l.b16 %v2635
  %v2708 = vunpack.c.h.b16 %v2635
  %v2709 = vunpack.c.l.b16 %v2636
  %v2710 = vunpack.c.h.b16 %v2636
  %v2711 = vunpack.c.l.b16 %v2637
  %v2712 = vunpack.c.h.b16 %v2637
  %v2713 = vunpack.c.l.b16 %v2638
  %v2714 = vunpack.c.h.b16 %v2638
  %v2715 = vunpack.c.l.b16 %v2639
  %v2716 = vunpack.c.h.b16 %v2639
  %v2717 = vunpack.c.l.b16 %v2640
  %v2718 = vunpack.c.h.b16 %v2640
  %v2719 = vunpack.c.l.b16 %v2641
  %v2720 = vunpack.c.h.b16 %v2641
  %v2721 = vunpack.c.l.b16 %v2642
  %v2722 = vunpack.c.h.b16 %v2642
  %v2723 = vunpack.c.l.b16 %v2643
  %v2724 = vunpack.c.h.b16 %v2643
  %v2725 = vunpack.c.l.b16 %v2644
  %v2726 = vunpack.c.h.b16 %v2644
  %v2727 = vunpack.c.l.b16 %v2645
  %v2728 = vunpack.c.h.b16 %v2645
  %v2729 = vunpack.c.l.b16 %v2646
  %v2730 = vunpack.c.h.b16 %v2646
  %v2731 = vunpack.c.l.b16 %v2647
  %v2732 = vunpack.c.h.b16 %v2647
  %v2733 = vunpack.c.l.b16 %v2648
  %v2734 = vunpack.c.h.b16 %v2648
  %v2735 = vunpack.c.l.b16 %v2649
  %v2736 = vunpack.c.h.b16 %v2649
  %v2737 = vunpack.c.l.b16 %v2650
  %v2738 = vunpack.c.h.b16 %v2650
  %v2739 = vunpack.c.l.b16 %v2651
  %v2740 = vunpack.c.h.b16 %v2651
  %v2741 = vunpack.c.l.b16 %v2652
  %v2742 = vunpack.c.h.b16 %v2652
  %v2743 = vunpack.c.l.b16 %v2653
  %v2744 = vunpack.c.h.b16 %v2653
  %v2745 = vunpack.c.l.b16 %v2654
  %v2746 = vunpack.c.h.b16 %v2654
  %v2747 = vunpack.c.l.b16 %v2655
  %v2748 = vunpack.c.h.b16 %v2655
  %v2749 = vunpack.c.l.b16 %v2656
  %v2750 = vunpack.c.h.b16 %v2656
  %v2751 = vunpack.c.l.b16 %v2657
  %v2752 = vunpack.c.h.b16 %v2657
  %v2753 = vunpack.c.l.b16 %v2658
  %v2754 = vunpack.c.h.b16 %v2658
  %v2755 = vpack.c.b16 %v2695, %v2691
  %v2756 = vpack.c.b16 %v2696, %v2692
  %v2757 = vpack.c.b16 %v2697, %v2693
  %v2758 = vpack.c.b16 %v2698, %v2694
  %v2759 = vpack.c.b16 %v2703, %v2699
  %v2760 = vpack.c.b16 %v2704, %v2700
  %v2761 = vpack.c.b16 %v2705, %v2701
  %v2762 = vpack.c.b16 %v2706, %v2702
  %v2763 = vpack.c.b16 %v2711, %v2707
  %v2764 = vpack.c.b16 %v2712, %v2708
  %v2765 = vpack.c.b16 %v2713, %v2709
  %v2766 = vpack.c.b16 %v2714, %v2710
  %v2767 = vpack.c.b16 %v2719, %v2715
  %v2768 = vpack.c.b16 %v2720, %v2716
  %v2769 = vpack.c.b16 %v2721, %v2717
  %v2770 = vpack.c.b16 %v2722, %v2718
  %v2771 = vpack.c.b16 %v2727, %v2723
  %v2772 = vpack.c.b16 %v2728, %v2724
  %v2773 = vpack.c.b16 %v2729, %v2725
  %v2774 = vpack.c.b16 %v2730, %v2726
  %v2775 = vpack.c.b16 %v2735, %v2731
  %v2776 = vpack.c.b16 %v2736, %v2732
  %v2777 = vpack.c.b16 %v2737, %v2733
  %v2778 = vpack.c.b16 %v2738, %v2734
  %v2779 = vpack.c.b16 %v2743, %v2739
  %v2780 = vpack.c.b16 %v2744, %v2740
  %v2781 = vpack.c.b16 %v2745, %v2741
  %v2782 = vpack.c.b16 %v2746, %v2742
  %v2783 = vpack.c.b16 %v2751, %v2747
  %v2784 = vpack.c.b16 %v2752, %v2748
  %v2785 = vpack.c.b16 %v2753, %v2749
  %v2786 = vpack.c.b16 %v2754, %v2750
  %2819 = vmatprep.subr.bf16.mxu0 %v2756
  %2820 = vmatpush1.bf16.msra.mxu0 %v2755
  %2821 = vmatprep.subr.bf16.mxu0 %v2760
  %2822 = vmatpush1.bf16.msra.mxu0 %v2759
  %2823 = vmatprep.subr.bf16.mxu0 %v2764
  %2824 = vmatpush1.bf16.msra.mxu0 %v2763
  %2825 = vmatprep.subr.bf16.mxu0 %v2768
  %2826 = vmatpush1.bf16.msra.mxu0 %v2767
  %2827 = vmatprep.subr.bf16.mxu0 %v2772
  %2828 = vmatpush1.bf16.msra.mxu0 %v2771
  %2829 = vmatprep.subr.bf16.mxu0 %v2776
  %2830 = vmatpush1.bf16.msra.mxu0 %v2775
  %2831 = vmatprep.subr.bf16.mxu0 %v2780
  %2832 = vmatpush1.bf16.msra.mxu0 %v2779
  %2833 = vmatprep.subr.bf16.mxu0 %v2784
  %2834 = vmatpush1.bf16.msra.mxu0 %v2783
  %2835 = vmatprep.subr.bf16.mxu0 0
  %2836 = vmatpush1.bf16.msra.mxu0 0
  %2837 = vmatprep.subr.bf16.mxu0 0
  %2838 = vmatpush1.bf16.msra.mxu0 0
  %2839 = vmatprep.subr.bf16.mxu0 0
  %2840 = vmatpush1.bf16.msra.mxu0 0
  %2841 = vmatprep.subr.bf16.mxu0 0
  %2842 = vmatpush1.bf16.msra.mxu0 0
  %2843 = vmatprep.subr.bf16.mxu0 0
  %2844 = vmatpush1.bf16.msra.mxu0 0
  %2845 = vmatprep.subr.bf16.mxu0 0
  %2846 = vmatpush1.bf16.msra.mxu0 0
  %2847 = vmatprep.subr.bf16.mxu0 0
  %2848 = vmatpush1.bf16.msra.mxu0 0
  %2849 = vmatprep.subr.bf16.mxu0 0
  %2850 = vmatpush1.bf16.msra.mxu0 0
  %2851 = vmatprep.mubr.bf16.mxu0 0
  %2852 = vmatmul.mubr.bf16.gmra.mrb[0].mxu0 %v2621
  %v2853 = vpop.f32.mrb[0].mxu0
  %v2854 = vadd.f32 0.0, %v2853
  %v2855 = vpop.f32.mrb[0].mxu0
  %v2856 = vadd.f32 0.0, %v2855
  %v2857 = vpop.f32.mrb[0].mxu0
  %v2858 = vpop.f32.mrb[0].mxu0
  %2859 = vdwg.mxu0
  %2860 = vmatprep.subr.bf16.mxu0 %v2758
  %2861 = vmatpush1.bf16.msra.mxu0 %v2757
  %2862 = vmatprep.subr.bf16.mxu0 %v2762
  %2863 = vmatpush1.bf16.msra.mxu0 %v2761
  %2864 = vmatprep.subr.bf16.mxu0 %v2766
  %2865 = vmatpush1.bf16.msra.mxu0 %v2765
  %2866 = vmatprep.subr.bf16.mxu0 %v2770
  %2867 = vmatpush1.bf16.msra.mxu0 %v2769
  %2868 = vmatprep.subr.bf16.mxu0 %v2774
  %2869 = vmatpush1.bf16.msra.mxu0 %v2773
  %2870 = vmatprep.subr.bf16.mxu0 %v2778
  %2871 = vmatpush1.bf16.msra.mxu0 %v2777
  %2872 = vmatprep.subr.bf16.mxu0 %v2782
  %2873 = vmatpush1.bf16.msra.mxu0 %v2781
  %2874 = vmatprep.subr.bf16.mxu0 %v2786
  %2875 = vmatpush1.bf16.msra.mxu0 %v2785
  %2876 = vmatprep.subr.bf16.mxu0 0
  %2877 = vmatpush1.bf16.msra.mxu0 0
  %2878 = vmatprep.subr.bf16.mxu0 0
  %2879 = vmatpush1.bf16.msra.mxu0 0
  %2880 = vmatprep.subr.bf16.mxu0 0
  %2881 = vmatpush1.bf16.msra.mxu0 0
  %2882 = vmatprep.subr.bf16.mxu0 0
  %2883 = vmatpush1.bf16.msra.mxu0 0
  %2884 = vmatprep.subr.bf16.mxu0 0
  %2885 = vmatpush1.bf16.msra.mxu0 0
  %2886 = vmatprep.subr.bf16.mxu0 0
  %2887 = vmatpush1.bf16.msra.mxu0 0
  %2888 = vmatprep.subr.bf16.mxu0 0
  %2889 = vmatpush1.bf16.msra.mxu0 0
  %2890 = vmatprep.subr.bf16.mxu0 0
  %2891 = vmatpush1.bf16.msra.mxu0 0
  %2892 = vmatprep.mubr.bf16.mxu0 0
  %2893 = vmatmul.mubr.bf16.gmra.mrb[0].mxu0 %v2621
  %v2894 = vpop.f32.mrb[0].mxu0
  %v2895 = vadd.f32 0.0, %v2894
  %v2896 = vpop.f32.mrb[0].mxu0
  %v2897 = vadd.f32 0.0, %v2896
  %v2898 = vpop.f32.mrb[0].mxu0
  %v2899 = vpop.f32.mrb[0].mxu0
  %2900 = vdwg.mxu0
  %v2901 = vadd.f32 %v2623, %v2854
  %v2902 = vadd.f32 %v2624, %v2856
  %v2903 = vadd.f32 %v2625, %v2895
  %v2904 = vadd.f32 %v2626, %v2897
  %v2905 = vxor.u32 %v2901, 2147483648
  %v2906 = vxor.u32 %v2902, 2147483648
  %v2907 = vxor.u32 %v2903, 2147483648
  %v2908 = vmul.f32 %v2905, 1.442695
  %v2909 = vpow.pop %v2908
  %v2910 = vmul.f32 %v2906, 1.442695
  %v2911 = vpow.pop %v2910
  %v2912 = vmul.f32 %v2907, 1.442695
  %v2913 = vpow.pop %v2912
  %v2914 = vadd.f32 %v2909, 1.0
  %v2915 = vadd.f32 %v2911, 1.0
  %v2916 = vadd.f32 %v2913, 1.0
  %v2917 = vrcp.pop %v2914
  %v2918 = vmul.f32 1.0, %v2917
  %v2919 = vrcp.pop %v2915
  %v2920 = vmul.f32 1.0, %v2919
  %v2921 = vrcp.pop %v2916
  %v2922 = vmul.f32 1.0, %v2921
  %v2923 = vtanh.pop %v2904
  %v2924 = vmul.f32 %v2920, %v2618
  %v2925 = vmul.f32 %v2918, %v2923
  %v2926 = vadd.f32 %v2924, %v2925
  %v2927 = vtanh.pop %v2926
  %v2928 = vmul.f32 %v2922, %v2927
  %v2929 = vpack.c.bf16 %v2928, %v2928
  %2930 = vst [vmem:[%s4 + $0x1c] sm:$0xf] %v2929
  %v2931 = vld [vmem:[#allocation2 + $0x100] sm:$0xff]
  %v2932 = vld [vmem:[#allocation2 + $0x108] sm:$0xff]
  %v2933 = vld [vmem:[#allocation2 + $0x110] sm:$0xff]
  %v2934 = vld [vmem:[#allocation2 + $0x118] sm:$0xff]
  %v2935 = vld [vmem:[%s2] sm:$0xff]
  %v2936 = vld [vmem:[%s2 + $0x8] sm:$0xff]
  %v2937 = vld [vmem:[%s2 + $0x10] sm:$0xff]
  %v2938 = vld [vmem:[%s2 + $0x18] sm:$0xff]
  %v2939 = vld [vmem:[%s2 + $0x20] sm:$0xff]
  %v2940 = vld [vmem:[%s2 + $0x28] sm:$0xff]
  %v2941 = vld [vmem:[%s2 + $0x30] sm:$0xff]
  %v2942 = vld [vmem:[%s2 + $0x38] sm:$0xff]
  %v2943 = vld [vmem:[%s2 + $0x40] sm:$0xff]
  %v2944 = vld [vmem:[%s2 + $0x48] sm:$0xff]
  %v2945 = vld [vmem:[%s2 + $0x50] sm:$0xff]
  %v2946 = vld [vmem:[%s2 + $0x58] sm:$0xff]
  %v2947 = vld [vmem:[%s2 + $0x60] sm:$0xff]
  %v2948 = vld [vmem:[%s2 + $0x68] sm:$0xff]
  %v2949 = vld [vmem:[%s2 + $0x70] sm:$0xff]
  %v2950 = vld [vmem:[%s2 + $0x78] sm:$0xff]
  %v2951 = vld [vmem:[%s2 + $0x80] sm:$0xff]
  %v2952 = vld [vmem:[%s2 + $0x88] sm:$0xff]
  %v2953 = vld [vmem:[%s2 + $0x90] sm:$0xff]
  %v2954 = vld [vmem:[%s2 + $0x98] sm:$0xff]
  %v2955 = vld [vmem:[%s2 + $0xa0] sm:$0xff]
  %v2956 = vld [vmem:[%s2 + $0xa8] sm:$0xff]
  %v2957 = vld [vmem:[%s2 + $0xb0] sm:$0xff]
  %v2958 = vld [vmem:[%s2 + $0xb8] sm:$0xff]
  %v2959 = vld [vmem:[%s2 + $0xc0] sm:$0xff]
  %v2960 = vld [vmem:[%s2 + $0xc8] sm:$0xff]
  %v2961 = vld [vmem:[%s2 + $0xd0] sm:$0xff]
  %v2962 = vld [vmem:[%s2 + $0xd8] sm:$0xff]
  %v2963 = vld [vmem:[%s2 + $0xe0] sm:$0xff]
  %v2964 = vld [vmem:[%s2 + $0xe8] sm:$0xff]
  %v2965 = vld [vmem:[%s2 + $0xf0] sm:$0xff]
  %v2966 = vld [vmem:[%s2 + $0xf8] sm:$0xff]
  %v2999 = vunpack.c.l.b16 %v2935
  %v3000 = vunpack.c.h.b16 %v2935
  %v3001 = vunpack.c.l.b16 %v2936
  %v3002 = vunpack.c.h.b16 %v2936
  %v3003 = vunpack.c.l.b16 %v2937
  %v3004 = vunpack.c.h.b16 %v2937
  %v3005 = vunpack.c.l.b16 %v2938
  %v3006 = vunpack.c.h.b16 %v2938
  %v3007 = vunpack.c.l.b16 %v2939
  %v3008 = vunpack.c.h.b16 %v2939
  %v3009 = vunpack.c.l.b16 %v2940
  %v3010 = vunpack.c.h.b16 %v2940
  %v3011 = vunpack.c.l.b16 %v2941
  %v3012 = vunpack.c.h.b16 %v2941
  %v3013 = vunpack.c.l.b16 %v2942
  %v3014 = vunpack.c.h.b16 %v2942
  %v3015 = vunpack.c.l.b16 %v2943
  %v3016 = vunpack.c.h.b16 %v2943
  %v3017 = vunpack.c.l.b16 %v2944
  %v3018 = vunpack.c.h.b16 %v2944
  %v3019 = vunpack.c.l.b16 %v2945
  %v3020 = vunpack.c.h.b16 %v2945
  %v3021 = vunpack.c.l.b16 %v2946
  %v3022 = vunpack.c.h.b16 %v2946
  %v3023 = vunpack.c.l.b16 %v2947
  %v3024 = vunpack.c.h.b16 %v2947
  %v3025 = vunpack.c.l.b16 %v2948
  %v3026 = vunpack.c.h.b16 %v2948
  %v3027 = vunpack.c.l.b16 %v2949
  %v3028 = vunpack.c.h.b16 %v2949
  %v3029 = vunpack.c.l.b16 %v2950
  %v3030 = vunpack.c.h.b16 %v2950
  %v3031 = vunpack.c.l.b16 %v2951
  %v3032 = vunpack.c.h.b16 %v2951
  %v3033 = vunpack.c.l.b16 %v2952
  %v3034 = vunpack.c.h.b16 %v2952
  %v3035 = vunpack.c.l.b16 %v2953
  %v3036 = vunpack.c.h.b16 %v2953
  %v3037 = vunpack.c.l.b16 %v2954
  %v3038 = vunpack.c.h.b16 %v2954
  %v3039 = vunpack.c.l.b16 %v2955
  %v3040 = vunpack.c.h.b16 %v2955
  %v3041 = vunpack.c.l.b16 %v2956
  %v3042 = vunpack.c.h.b16 %v2956
  %v3043 = vunpack.c.l.b16 %v2957
  %v3044 = vunpack.c.h.b16 %v2957
  %v3045 = vunpack.c.l.b16 %v2958
  %v3046 = vunpack.c.h.b16 %v2958
  %v3047 = vunpack.c.l.b16 %v2959
  %v3048 = vunpack.c.h.b16 %v2959
  %v3049 = vunpack.c.l.b16 %v2960
  %v3050 = vunpack.c.h.b16 %v2960
  %v3051 = vunpack.c.l.b16 %v2961
  %v3052 = vunpack.c.h.b16 %v2961
  %v3053 = vunpack.c.l.b16 %v2962
  %v3054 = vunpack.c.h.b16 %v2962
  %v3055 = vunpack.c.l.b16 %v2963
  %v3056 = vunpack.c.h.b16 %v2963
  %v3057 = vunpack.c.l.b16 %v2964
  %v3058 = vunpack.c.h.b16 %v2964
  %v3059 = vunpack.c.l.b16 %v2965
  %v3060 = vunpack.c.h.b16 %v2965
  %v3061 = vunpack.c.l.b16 %v2966
  %v3062 = vunpack.c.h.b16 %v2966
  %v3063 = vpack.c.b16 %v3003, %v2999
  %v3064 = vpack.c.b16 %v3004, %v3000
  %v3065 = vpack.c.b16 %v3005, %v3001
  %v3066 = vpack.c.b16 %v3006, %v3002
  %v3067 = vpack.c.b16 %v3011, %v3007
  %v3068 = vpack.c.b16 %v3012, %v3008
  %v3069 = vpack.c.b16 %v3013, %v3009
  %v3070 = vpack.c.b16 %v3014, %v3010
  %v3071 = vpack.c.b16 %v3019, %v3015
  %v3072 = vpack.c.b16 %v3020, %v3016
  %v3073 = vpack.c.b16 %v3021, %v3017
  %v3074 = vpack.c.b16 %v3022, %v3018
  %v3075 = vpack.c.b16 %v3027, %v3023
  %v3076 = vpack.c.b16 %v3028, %v3024
  %v3077 = vpack.c.b16 %v3029, %v3025
  %v3078 = vpack.c.b16 %v3030, %v3026
  %v3079 = vpack.c.b16 %v3035, %v3031
  %v3080 = vpack.c.b16 %v3036, %v3032
  %v3081 = vpack.c.b16 %v3037, %v3033
  %v3082 = vpack.c.b16 %v3038, %v3034
  %v3083 = vpack.c.b16 %v3043, %v3039
  %v3084 = vpack.c.b16 %v3044, %v3040
  %v3085 = vpack.c.b16 %v3045, %v3041
  %v3086 = vpack.c.b16 %v3046, %v3042
  %v3087 = vpack.c.b16 %v3051, %v3047
  %v3088 = vpack.c.b16 %v3052, %v3048
  %v3089 = vpack.c.b16 %v3053, %v3049
  %v3090 = vpack.c.b16 %v3054, %v3050
  %v3091 = vpack.c.b16 %v3059, %v3055
  %v3092 = vpack.c.b16 %v3060, %v3056
  %v3093 = vpack.c.b16 %v3061, %v3057
  %v3094 = vpack.c.b16 %v3062, %v3058
  %3127 = vmatprep.subr.bf16.mxu0 %v3064
  %3128 = vmatpush1.bf16.msra.mxu0 %v3063
  %3129 = vmatprep.subr.bf16.mxu0 %v3068
  %3130 = vmatpush1.bf16.msra.mxu0 %v3067
  %3131 = vmatprep.subr.bf16.mxu0 %v3072
  %3132 = vmatpush1.bf16.msra.mxu0 %v3071
  %3133 = vmatprep.subr.bf16.mxu0 %v3076
  %3134 = vmatpush1.bf16.msra.mxu0 %v3075
  %3135 = vmatprep.subr.bf16.mxu0 %v3080
  %3136 = vmatpush1.bf16.msra.mxu0 %v3079
  %3137 = vmatprep.subr.bf16.mxu0 %v3084
  %3138 = vmatpush1.bf16.msra.mxu0 %v3083
  %3139 = vmatprep.subr.bf16.mxu0 %v3088
  %3140 = vmatpush1.bf16.msra.mxu0 %v3087
  %3141 = vmatprep.subr.bf16.mxu0 %v3092
  %3142 = vmatpush1.bf16.msra.mxu0 %v3091
  %3143 = vmatprep.subr.bf16.mxu0 0
  %3144 = vmatpush1.bf16.msra.mxu0 0
  %3145 = vmatprep.subr.bf16.mxu0 0
  %3146 = vmatpush1.bf16.msra.mxu0 0
  %3147 = vmatprep.subr.bf16.mxu0 0
  %3148 = vmatpush1.bf16.msra.mxu0 0
  %3149 = vmatprep.subr.bf16.mxu0 0
  %3150 = vmatpush1.bf16.msra.mxu0 0
  %3151 = vmatprep.subr.bf16.mxu0 0
  %3152 = vmatpush1.bf16.msra.mxu0 0
  %3153 = vmatprep.subr.bf16.mxu0 0
  %3154 = vmatpush1.bf16.msra.mxu0 0
  %3155 = vmatprep.subr.bf16.mxu0 0
  %3156 = vmatpush1.bf16.msra.mxu0 0
  %3157 = vmatprep.subr.bf16.mxu0 0
  %3158 = vmatpush1.bf16.msra.mxu0 0
  %3159 = vmatprep.mubr.bf16.mxu0 0
  %3160 = vmatmul.mubr.bf16.gmra.mrb[0].mxu0 %v2929
  %v3161 = vpop.f32.mrb[0].mxu0
  %v3162 = vadd.f32 0.0, %v3161
  %v3163 = vpop.f32.mrb[0].mxu0
  %v3164 = vadd.f32 0.0, %v3163
  %v3165 = vpop.f32.mrb[0].mxu0
  %v3166 = vpop.f32.mrb[0].mxu0
  %3167 = vdwg.mxu0
  %3168 = vmatprep.subr.bf16.mxu0 %v3066
  %3169 = vmatpush1.bf16.msra.mxu0 %v3065
  %3170 = vmatprep.subr.bf16.mxu0 %v3070
  %3171 = vmatpush1.bf16.msra.mxu0 %v3069
  %3172 = vmatprep.subr.bf16.mxu0 %v3074
  %3173 = vmatpush1.bf16.msra.mxu0 %v3073
  %3174 = vmatprep.subr.bf16.mxu0 %v3078
  %3175 = vmatpush1.bf16.msra.mxu0 %v3077
  %3176 = vmatprep.subr.bf16.mxu0 %v3082
  %3177 = vmatpush1.bf16.msra.mxu0 %v3081
  %3178 = vmatprep.subr.bf16.mxu0 %v3086
  %3179 = vmatpush1.bf16.msra.mxu0 %v3085
  %3180 = vmatprep.subr.bf16.mxu0 %v3090
  %3181 = vmatpush1.bf16.msra.mxu0 %v3089
  %3182 = vmatprep.subr.bf16.mxu0 %v3094
  %3183 = vmatpush1.bf16.msra.mxu0 %v3093
  %3184 = vmatprep.subr.bf16.mxu0 0
  %3185 = vmatpush1.bf16.msra.mxu0 0
  %3186 = vmatprep.subr.bf16.mxu0 0
  %3187 = vmatpush1.bf16.msra.mxu0 0
  %3188 = vmatprep.subr.bf16.mxu0 0
  %3189 = vmatpush1.bf16.msra.mxu0 0
  %3190 = vmatprep.subr.bf16.mxu0 0
  %3191 = vmatpush1.bf16.msra.mxu0 0
  %3192 = vmatprep.subr.bf16.mxu0 0
  %3193 = vmatpush1.bf16.msra.mxu0 0
  %3194 = vmatprep.subr.bf16.mxu0 0
  %3195 = vmatpush1.bf16.msra.mxu0 0
  %3196 = vmatprep.subr.bf16.mxu0 0
  %3197 = vmatpush1.bf16.msra.mxu0 0
  %3198 = vmatprep.subr.bf16.mxu0 0
  %3199 = vmatpush1.bf16.msra.mxu0 0
  %3200 = vmatprep.mubr.bf16.mxu0 0
  %3201 = vmatmul.mubr.bf16.gmra.mrb[0].mxu0 %v2929
  %v3202 = vpop.f32.mrb[0].mxu0
  %v3203 = vadd.f32 0.0, %v3202
  %v3204 = vpop.f32.mrb[0].mxu0
  %v3205 = vadd.f32 0.0, %v3204
  %v3206 = vpop.f32.mrb[0].mxu0
  %v3207 = vpop.f32.mrb[0].mxu0
  %3208 = vdwg.mxu0
  %v3209 = vadd.f32 %v2931, %v3162
  %v3210 = vadd.f32 %v2932, %v3164
  %v3211 = vadd.f32 %v2933, %v3203
  %v3212 = vadd.f32 %v2934, %v3205
  %v3213 = vxor.u32 %v3209, 2147483648
  %v3214 = vxor.u32 %v3210, 2147483648
  %v3215 = vxor.u32 %v3211, 2147483648
  %v3216 = vmul.f32 %v3213, 1.442695
  %v3217 = vpow.pop %v3216
  %v3218 = vmul.f32 %v3214, 1.442695
  %v3219 = vpow.pop %v3218
  %v3220 = vmul.f32 %v3215, 1.442695
  %v3221 = vpow.pop %v3220
  %v3222 = vadd.f32 %v3217, 1.0
  %v3223 = vadd.f32 %v3219, 1.0
  %v3224 = vadd.f32 %v3221, 1.0
  %v3225 = vrcp.pop %v3222
  %v3226 = vmul.f32 1.0, %v3225
  %v3227 = vrcp.pop %v3223
  %v3228 = vmul.f32 1.0, %v3227
  %v3229 = vrcp.pop %v3224
  %v3230 = vmul.f32 1.0, %v3229
  %v3231 = vtanh.pop %v3212
  %v3232 = vmul.f32 %v3228, %v2926
  %v3233 = vmul.f32 %v3226, %v3231
  %v3234 = vadd.f32 %v3232, %v3233
  %v3235 = vtanh.pop %v3234
  %v3236 = vmul.f32 %v3230, %v3235
  %v3237 = vpack.c.bf16 %v3236, %v3236
  %3238 = vst [vmem:[%s4 + $0x20] sm:$0xf] %v3237
  %v3239 = vld [vmem:[%s4] sm:$0xf]
  %v3240 = vld [vmem:[%s4 + $0x4] sm:$0xf]
  %v3241 = vld [vmem:[%s4 + $0x8] sm:$0xf]
  %v3242 = vld [vmem:[%s4 + $0xc] sm:$0xf]
  %v3243 = vld [vmem:[%s4 + $0x10] sm:$0xf]
  %v3244 = vld [vmem:[%s4 + $0x14] sm:$0xf]
  %v3245 = vld [vmem:[%s4 + $0x18] sm:$0xf]
  %v3246 = vld [vmem:[%s4 + $0x1c] sm:$0xf]
  %v3247 = vld [vmem:[%s4 + $0x20] sm:$0xf]
  %s3248 = scalar_lea.vmem %s1, 256
  %v3249 = vld [vmem:[%s3248] sm:$0xff]
  %v3250 = vld [vmem:[%s3248 + $0x8] sm:$0xff]
  %v3251 = vld [vmem:[%s3248 + $0x10] sm:$0xff]
  %v3252 = vld [vmem:[%s3248 + $0x18] sm:$0xff]
  %v3253 = vld [vmem:[%s3248 + $0x20] sm:$0xff]
  %v3254 = vld [vmem:[%s3248 + $0x28] sm:$0xff]
  %v3255 = vld [vmem:[%s3248 + $0x30] sm:$0xff]
  %v3256 = vld [vmem:[%s3248 + $0x38] sm:$0xff]
  %v3257 = vld [vmem:[%s3248 + $0x40] sm:$0xff]
  %v3258 = vld [vmem:[%s3248 + $0x48] sm:$0xff]
  %v3259 = vld [vmem:[%s3248 + $0x50] sm:$0xff]
  %v3260 = vld [vmem:[%s3248 + $0x58] sm:$0xff]
  %v3261 = vld [vmem:[%s3248 + $0x60] sm:$0xff]
  %v3262 = vld [vmem:[%s3248 + $0x68] sm:$0xff]
  %v3263 = vld [vmem:[%s3248 + $0x70] sm:$0xff]
  %v3264 = vld [vmem:[%s3248 + $0x78] sm:$0xff]
  %v3265 = vld [vmem:[%s3248 + $0x80] sm:$0xff]
  %v3266 = vld [vmem:[%s3248 + $0x88] sm:$0xff]
  %v3267 = vld [vmem:[%s3248 + $0x90] sm:$0xff]
  %v3268 = vld [vmem:[%s3248 + $0x98] sm:$0xff]
  %v3269 = vld [vmem:[%s3248 + $0xa0] sm:$0xff]
  %v3270 = vld [vmem:[%s3248 + $0xa8] sm:$0xff]
  %v3271 = vld [vmem:[%s3248 + $0xb0] sm:$0xff]
  %v3272 = vld [vmem:[%s3248 + $0xb8] sm:$0xff]
  %v3273 = vld [vmem:[%s3248 + $0xc0] sm:$0xff]
  %v3274 = vld [vmem:[%s3248 + $0xc8] sm:$0xff]
  %v3275 = vld [vmem:[%s3248 + $0xd0] sm:$0xff]
  %v3276 = vld [vmem:[%s3248 + $0xd8] sm:$0xff]
  %v3277 = vld [vmem:[%s3248 + $0xe0] sm:$0xff]
  %v3278 = vld [vmem:[%s3248 + $0xe8] sm:$0xff]
  %v3279 = vld [vmem:[%s3248 + $0xf0] sm:$0xff]
  %v3280 = vld [vmem:[%s3248 + $0xf8] sm:$0xff]
  %s3281 = scalar_lea.vmem %s3, 4
  %v3282 = vld [vmem:[%s3281] sm:$0xf]
  %v3284 = vlaneseq
  %v3285 = vshrl.u32 %v3284, 7
  %v3286 = vsub.s32 0, %v3285
  %v3287 = vrot.slane %v3282, %v3286
  %v3288 = vlaneseq
  %v3289 = vshrl.u32 %v3288, 7
  %v3290 = vsub.s32 1, %v3289
  %v3291 = vrot.slane %v3282, %v3290
  %v3292 = vlaneseq
  %v3293 = vshrl.u32 %v3292, 7
  %v3294 = vsub.s32 2, %v3293
  %v3295 = vrot.slane %v3282, %v3294
  %v3296 = vlaneseq
  %v3297 = vshrl.u32 %v3296, 7
  %v3298 = vsub.s32 3, %v3297
  %v3299 = vrot.slane %v3282, %v3298
  %v3313 = vunpack.c.l.b16 %v3239
  %v3314 = vunpack.c.l.b16 %v3240
  %v3315 = vunpack.c.l.b16 %v3241
  %v3316 = vunpack.c.l.b16 %v3242
  %v3317 = vunpack.c.l.b16 %v3243
  %v3318 = vunpack.c.l.b16 %v3244
  %v3319 = vunpack.c.l.b16 %v3245
  %v3320 = vunpack.c.l.b16 %v3246
  %v3321 = vunpack.c.l.b16 %v3247
  %v3322 = vpack.c.b16 %v3314, %v3313
  %v3323 = vpack.c.b16 %v3316, %v3315
  %v3324 = vpack.c.b16 %v3318, %v3317
  %v3325 = vpack.c.b16 %v3320, %v3319
  %v3326 = vpack.c.b16 %v3321, %v3321
  %v3364 = vunpack.c.l.b16 %v3249
  %v3365 = vunpack.c.h.b16 %v3249
  %v3366 = vunpack.c.l.b16 %v3250
  %v3367 = vunpack.c.h.b16 %v3250
  %v3368 = vunpack.c.l.b16 %v3251
  %v3369 = vunpack.c.h.b16 %v3251
  %v3370 = vunpack.c.l.b16 %v3252
  %v3371 = vunpack.c.h.b16 %v3252
  %v3372 = vunpack.c.l.b16 %v3253
  %v3373 = vunpack.c.h.b16 %v3253
  %v3374 = vunpack.c.l.b16 %v3254
  %v3375 = vunpack.c.h.b16 %v3254
  %v3376 = vunpack.c.l.b16 %v3255
  %v3377 = vunpack.c.h.b16 %v3255
  %v3378 = vunpack.c.l.b16 %v3256
  %v3379 = vunpack.c.h.b16 %v3256
  %v3380 = vunpack.c.l.b16 %v3257
  %v3381 = vunpack.c.h.b16 %v3257
  %v3382 = vunpack.c.l.b16 %v3258
  %v3383 = vunpack.c.h.b16 %v3258
  %v3384 = vunpack.c.l.b16 %v3259
  %v3385 = vunpack.c.h.b16 %v3259
  %v3386 = vunpack.c.l.b16 %v3260
  %v3387 = vunpack.c.h.b16 %v3260
  %v3388 = vunpack.c.l.b16 %v3261
  %v3389 = vunpack.c.h.b16 %v3261
  %v3390 = vunpack.c.l.b16 %v3262
  %v3391 = vunpack.c.h.b16 %v3262
  %v3392 = vunpack.c.l.b16 %v3263
  %v3393 = vunpack.c.h.b16 %v3263
  %v3394 = vunpack.c.l.b16 %v3264
  %v3395 = vunpack.c.h.b16 %v3264
  %v3396 = vunpack.c.l.b16 %v3265
  %v3397 = vunpack.c.h.b16 %v3265
  %v3398 = vunpack.c.l.b16 %v3266
  %v3399 = vunpack.c.h.b16 %v3266
  %v3400 = vunpack.c.l.b16 %v3267
  %v3401 = vunpack.c.h.b16 %v3267
  %v3402 = vunpack.c.l.b16 %v3268
  %v3403 = vunpack.c.h.b16 %v3268
  %v3404 = vunpack.c.l.b16 %v3269
  %v3405 = vunpack.c.h.b16 %v3269
  %v3406 = vunpack.c.l.b16 %v3270
  %v3407 = vunpack.c.h.b16 %v3270
  %v3408 = vunpack.c.l.b16 %v3271
  %v3409 = vunpack.c.h.b16 %v3271
  %v3410 = vunpack.c.l.b16 %v3272
  %v3411 = vunpack.c.h.b16 %v3272
  %v3412 = vunpack.c.l.b16 %v3273
  %v3413 = vunpack.c.h.b16 %v3273
  %v3414 = vunpack.c.l.b16 %v3274
  %v3415 = vunpack.c.h.b16 %v3274
  %v3416 = vunpack.c.l.b16 %v3275
  %v3417 = vunpack.c.h.b16 %v3275
  %v3418 = vunpack.c.l.b16 %v3276
  %v3419 = vunpack.c.h.b16 %v3276
  %v3420 = vunpack.c.l.b16 %v3277
  %v3421 = vunpack.c.h.b16 %v3277
  %v3422 = vunpack.c.l.b16 %v3278
  %v3423 = vunpack.c.h.b16 %v3278
  %v3424 = vunpack.c.l.b16 %v3279
  %v3425 = vunpack.c.h.b16 %v3279
  %v3426 = vunpack.c.l.b16 %v3280
  %v3427 = vunpack.c.h.b16 %v3280
  %v3428 = vpack.c.b16 %v3368, %v3364
  %v3429 = vpack.c.b16 %v3369, %v3365
  %v3430 = vpack.c.b16 %v3370, %v3366
  %v3431 = vpack.c.b16 %v3371, %v3367
  %v3432 = vpack.c.b16 %v3376, %v3372
  %v3433 = vpack.c.b16 %v3377, %v3373
  %v3434 = vpack.c.b16 %v3378, %v3374
  %v3435 = vpack.c.b16 %v3379, %v3375
  %v3436 = vpack.c.b16 %v3384, %v3380
  %v3437 = vpack.c.b16 %v3385, %v3381
  %v3438 = vpack.c.b16 %v3386, %v3382
  %v3439 = vpack.c.b16 %v3387, %v3383
  %v3440 = vpack.c.b16 %v3392, %v3388
  %v3441 = vpack.c.b16 %v3393, %v3389
  %v3442 = vpack.c.b16 %v3394, %v3390
  %v3443 = vpack.c.b16 %v3395, %v3391
  %v3444 = vpack.c.b16 %v3400, %v3396
  %v3445 = vpack.c.b16 %v3401, %v3397
  %v3446 = vpack.c.b16 %v3402, %v3398
  %v3447 = vpack.c.b16 %v3403, %v3399
  %v3448 = vpack.c.b16 %v3408, %v3404
  %v3449 = vpack.c.b16 %v3409, %v3405
  %v3450 = vpack.c.b16 %v3410, %v3406
  %v3451 = vpack.c.b16 %v3411, %v3407
  %v3452 = vpack.c.b16 %v3416, %v3412
  %v3453 = vpack.c.b16 %v3417, %v3413
  %v3454 = vpack.c.b16 %v3418, %v3414
  %v3455 = vpack.c.b16 %v3419, %v3415
  %v3456 = vpack.c.b16 %v3424, %v3420
  %v3457 = vpack.c.b16 %v3425, %v3421
  %v3458 = vpack.c.b16 %v3426, %v3422
  %v3459 = vpack.c.b16 %v3427, %v3423
  %3492 = vmatprep.subr.bf16.mxu0 %v3429
  %3493 = vmatpush1.bf16.msra.mxu0 %v3428
  %3494 = vmatprep.subr.bf16.mxu0 %v3433
  %3495 = vmatpush1.bf16.msra.mxu0 %v3432
  %3496 = vmatprep.subr.bf16.mxu0 %v3437
  %3497 = vmatpush1.bf16.msra.mxu0 %v3436
  %3498 = vmatprep.subr.bf16.mxu0 %v3441
  %3499 = vmatpush1.bf16.msra.mxu0 %v3440
  %3500 = vmatprep.subr.bf16.mxu0 %v3445
  %3501 = vmatpush1.bf16.msra.mxu0 %v3444
  %3502 = vmatprep.subr.bf16.mxu0 %v3449
  %3503 = vmatpush1.bf16.msra.mxu0 %v3448
  %3504 = vmatprep.subr.bf16.mxu0 %v3453
  %3505 = vmatpush1.bf16.msra.mxu0 %v3452
  %3506 = vmatprep.subr.bf16.mxu0 %v3457
  %3507 = vmatpush1.bf16.msra.mxu0 %v3456
  %3508 = vmatprep.subr.bf16.mxu0 0
  %3509 = vmatpush1.bf16.msra.mxu0 0
  %3510 = vmatprep.subr.bf16.mxu0 0
  %3511 = vmatpush1.bf16.msra.mxu0 0
  %3512 = vmatprep.subr.bf16.mxu0 0
  %3513 = vmatpush1.bf16.msra.mxu0 0
  %3514 = vmatprep.subr.bf16.mxu0 0
  %3515 = vmatpush1.bf16.msra.mxu0 0
  %3516 = vmatprep.subr.bf16.mxu0 0
  %3517 = vmatpush1.bf16.msra.mxu0 0
  %3518 = vmatprep.subr.bf16.mxu0 0
  %3519 = vmatpush1.bf16.msra.mxu0 0
  %3520 = vmatprep.subr.bf16.mxu0 0
  %3521 = vmatpush1.bf16.msra.mxu0 0
  %3522 = vmatprep.subr.bf16.mxu0 0
  %3523 = vmatpush1.bf16.msra.mxu0 0
  %3524 = vmatprep.mubr.bf16.mxu0 0
  %3525 = vmatmul.mubr.bf16.gmra.mrb[0].mxu0 %v3322
  %v3526 = vpop.f32.mrb[0].mxu0
  %v3527 = vadd.f32 %v3287, %v3526
  %v3528 = vpop.f32.mrb[0].mxu0
  %v3529 = vadd.f32 %v3291, %v3528
  %v3530 = vpop.f32.mrb[0].mxu0
  %v3531 = vadd.f32 %v3287, %v3530
  %v3532 = vpop.f32.mrb[0].mxu0
  %v3533 = vadd.f32 %v3291, %v3532
  %3534 = vmatprep.mubr.bf16.mxu0 0
  %3535 = vmatmul.mubr.bf16.gmra.mrb[0].mxu0 %v3323
  %v3536 = vpop.f32.mrb[0].mxu0
  %v3537 = vadd.f32 %v3287, %v3536
  %v3538 = vpop.f32.mrb[0].mxu0
  %v3539 = vadd.f32 %v3291, %v3538
  %v3540 = vpop.f32.mrb[0].mxu0
  %v3541 = vadd.f32 %v3287, %v3540
  %v3542 = vpop.f32.mrb[0].mxu0
  %v3543 = vadd.f32 %v3291, %v3542
  %3544 = vmatprep.mubr.bf16.mxu0 0
  %3545 = vmatmul.mubr.bf16.gmra.mrb[0].mxu0 %v3324
  %v3546 = vpop.f32.mrb[0].mxu0
  %v3547 = vadd.f32 %v3287, %v3546
  %v3548 = vpop.f32.mrb[0].mxu0
  %v3549 = vadd.f32 %v3291, %v3548
  %v3550 = vpop.f32.mrb[0].mxu0
  %v3551 = vadd.f32 %v3287, %v3550
  %v3552 = vpop.f32.mrb[0].mxu0
  %v3553 = vadd.f32 %v3291, %v3552
  %3554 = vmatprep.mubr.bf16.mxu0 0
  %3555 = vmatmul.mubr.bf16.gmra.mrb[0].mxu0 %v3325
  %v3556 = vpop.f32.mrb[0].mxu0
  %v3557 = vadd.f32 %v3287, %v3556
  %v3558 = vpop.f32.mrb[0].mxu0
  %v3559 = vadd.f32 %v3291, %v3558
  %v3560 = vpop.f32.mrb[0].mxu0
  %v3561 = vadd.f32 %v3287, %v3560
  %v3562 = vpop.f32.mrb[0].mxu0
  %v3563 = vadd.f32 %v3291, %v3562
  %3564 = vmatprep.mubr.bf16.mxu0 0
  %3565 = vmatmul.mubr.bf16.gmra.mrb[0].mxu0 %v3326
  %v3566 = vpop.f32.mrb[0].mxu0
  %v3567 = vadd.f32 %v3287, %v3566
  %v3568 = vpop.f32.mrb[0].mxu0
  %v3569 = vadd.f32 %v3291, %v3568
  %v3570 = vpop.f32.mrb[0].mxu0
  %v3571 = vpop.f32.mrb[0].mxu0
  %3572 = vdwg.mxu0
  %3573 = vmatprep.subr.bf16.mxu0 %v3431
  %3574 = vmatpush1.bf16.msra.mxu0 %v3430
  %3575 = vmatprep.subr.bf16.mxu0 %v3435
  %3576 = vmatpush1.bf16.msra.mxu0 %v3434
  %3577 = vmatprep.subr.bf16.mxu0 %v3439
  %3578 = vmatpush1.bf16.msra.mxu0 %v3438
  %3579 = vmatprep.subr.bf16.mxu0 %v3443
  %3580 = vmatpush1.bf16.msra.mxu0 %v3442
  %3581 = vmatprep.subr.bf16.mxu0 %v3447
  %3582 = vmatpush1.bf16.msra.mxu0 %v3446
  %3583 = vmatprep.subr.bf16.mxu0 %v3451
  %3584 = vmatpush1.bf16.msra.mxu0 %v3450
  %3585 = vmatprep.subr.bf16.mxu0 %v3455
  %3586 = vmatpush1.bf16.msra.mxu0 %v3454
  %3587 = vmatprep.subr.bf16.mxu0 %v3459
  %3588 = vmatpush1.bf16.msra.mxu0 %v3458
  %3589 = vmatprep.subr.bf16.mxu0 0
  %3590 = vmatpush1.bf16.msra.mxu0 0
  %3591 = vmatprep.subr.bf16.mxu0 0
  %3592 = vmatpush1.bf16.msra.mxu0 0
  %3593 = vmatprep.subr.bf16.mxu0 0
  %3594 = vmatpush1.bf16.msra.mxu0 0
  %3595 = vmatprep.subr.bf16.mxu0 0
  %3596 = vmatpush1.bf16.msra.mxu0 0
  %3597 = vmatprep.subr.bf16.mxu0 0
  %3598 = vmatpush1.bf16.msra.mxu0 0
  %3599 = vmatprep.subr.bf16.mxu0 0
  %3600 = vmatpush1.bf16.msra.mxu0 0
  %3601 = vmatprep.subr.bf16.mxu0 0
  %3602 = vmatpush1.bf16.msra.mxu0 0
  %3603 = vmatprep.subr.bf16.mxu0 0
  %3604 = vmatpush1.bf16.msra.mxu0 0
  %3605 = vmatprep.mubr.bf16.mxu0 0
  %3606 = vmatmul.mubr.bf16.gmra.mrb[0].mxu0 %v3322
  %v3607 = vpop.f32.mrb[0].mxu0
  %v3608 = vadd.f32 %v3295, %v3607
  %v3609 = vpop.f32.mrb[0].mxu0
  %v3610 = vadd.f32 %v3299, %v3609
  %v3611 = vpop.f32.mrb[0].mxu0
  %v3612 = vadd.f32 %v3295, %v3611
  %v3613 = vpop.f32.mrb[0].mxu0
  %v3614 = vadd.f32 %v3299, %v3613
  %3615 = vmatprep.mubr.bf16.mxu0 0
  %3616 = vmatmul.mubr.bf16.gmra.mrb[0].mxu0 %v3323
  %v3617 = vpop.f32.mrb[0].mxu0
  %v3618 = vadd.f32 %v3295, %v3617
  %v3619 = vpop.f32.mrb[0].mxu0
  %v3620 = vadd.f32 %v3299, %v3619
  %v3621 = vpop.f32.mrb[0].mxu0
  %v3622 = vadd.f32 %v3295, %v3621
  %v3623 = vpop.f32.mrb[0].mxu0
  %v3624 = vadd.f32 %v3299, %v3623
  %3625 = vmatprep.mubr.bf16.mxu0 0
  %3626 = vmatmul.mubr.bf16.gmra.mrb[0].mxu0 %v3324
  %v3627 = vpop.f32.mrb[0].mxu0
  %v3628 = vadd.f32 %v3295, %v3627
  %v3629 = vpop.f32.mrb[0].mxu0
  %v3630 = vadd.f32 %v3299, %v3629
  %v3631 = vpop.f32.mrb[0].mxu0
  %v3632 = vadd.f32 %v3295, %v3631
  %v3633 = vpop.f32.mrb[0].mxu0
  %v3634 = vadd.f32 %v3299, %v3633
  %3635 = vmatprep.mubr.bf16.mxu0 0
  %3636 = vmatmul.mubr.bf16.gmra.mrb[0].mxu0 %v3325
  %v3637 = vpop.f32.mrb[0].mxu0
  %v3638 = vadd.f32 %v3295, %v3637
  %v3639 = vpop.f32.mrb[0].mxu0
  %v3640 = vadd.f32 %v3299, %v3639
  %v3641 = vpop.f32.mrb[0].mxu0
  %v3642 = vadd.f32 %v3295, %v3641
  %v3643 = vpop.f32.mrb[0].mxu0
  %v3644 = vadd.f32 %v3299, %v3643
  %3645 = vmatprep.mubr.bf16.mxu0 0
  %3646 = vmatmul.mubr.bf16.gmra.mrb[0].mxu0 %v3326
  %v3647 = vpop.f32.mrb[0].mxu0
  %v3648 = vadd.f32 %v3295, %v3647
  %v3649 = vpop.f32.mrb[0].mxu0
  %v3650 = vadd.f32 %v3299, %v3649
  %v3651 = vpop.f32.mrb[0].mxu0
  %v3652 = vpop.f32.mrb[0].mxu0
  %3653 = vdwg.mxu0
  %3654 = vst [vmem:[#allocation2] sm:$0xff] %v3527
  %3655 = vst [vmem:[#allocation2 + $0x8] sm:$0xff] %v3529
  %3656 = vst [vmem:[#allocation2 + $0x10] sm:$0xff] %v3608
  %3657 = vst [vmem:[#allocation2 + $0x18] sm:$0xff] %v3610
  %3658 = vst [vmem:[#allocation2 + $0x20] sm:$0xff] %v3531
  %3659 = vst [vmem:[#allocation2 + $0x28] sm:$0xff] %v3533
  %3660 = vst [vmem:[#allocation2 + $0x30] sm:$0xff] %v3612
  %3661 = vst [vmem:[#allocation2 + $0x38] sm:$0xff] %v3614
  %3662 = vst [vmem:[#allocation2 + $0x40] sm:$0xff] %v3537
  %3663 = vst [vmem:[#allocation2 + $0x48] sm:$0xff] %v3539
  %3664 = vst [vmem:[#allocation2 + $0x50] sm:$0xff] %v3618
  %3665 = vst [vmem:[#allocation2 + $0x58] sm:$0xff] %v3620
  %3666 = vst [vmem:[#allocation2 + $0x60] sm:$0xff] %v3541
  %3667 = vst [vmem:[#allocation2 + $0x68] sm:$0xff] %v3543
  %3668 = vst [vmem:[#allocation2 + $0x70] sm:$0xff] %v3622
  %3669 = vst [vmem:[#allocation2 + $0x78] sm:$0xff] %v3624
  %3670 = vst [vmem:[#allocation2 + $0x80] sm:$0xff] %v3547
  %3671 = vst [vmem:[#allocation2 + $0x88] sm:$0xff] %v3549
  %3672 = vst [vmem:[#allocation2 + $0x90] sm:$0xff] %v3628
  %3673 = vst [vmem:[#allocation2 + $0x98] sm:$0xff] %v3630
  %3674 = vst [vmem:[#allocation2 + $0xa0] sm:$0xff] %v3551
  %3675 = vst [vmem:[#allocation2 + $0xa8] sm:$0xff] %v3553
  %3676 = vst [vmem:[#allocation2 + $0xb0] sm:$0xff] %v3632
  %3677 = vst [vmem:[#allocation2 + $0xb8] sm:$0xff] %v3634
  %3678 = vst [vmem:[#allocation2 + $0xc0] sm:$0xff] %v3557
  %3679 = vst [vmem:[#allocation2 + $0xc8] sm:$0xff] %v3559
  %3680 = vst [vmem:[#allocation2 + $0xd0] sm:$0xff] %v3638
  %3681 = vst [vmem:[#allocation2 + $0xd8] sm:$0xff] %v3640
  %3682 = vst [vmem:[#allocation2 + $0xe0] sm:$0xff] %v3561
  %3683 = vst [vmem:[#allocation2 + $0xe8] sm:$0xff] %v3563
  %3684 = vst [vmem:[#allocation2 + $0xf0] sm:$0xff] %v3642
  %3685 = vst [vmem:[#allocation2 + $0xf8] sm:$0xff] %v3644
  %3686 = vst [vmem:[#allocation2 + $0x100] sm:$0xff] %v3567
  %3687 = vst [vmem:[#allocation2 + $0x108] sm:$0xff] %v3569
  %3688 = vst [vmem:[#allocation2 + $0x110] sm:$0xff] %v3648
  %3689 = vst [vmem:[#allocation2 + $0x118] sm:$0xff] %v3650
  %v3690 = vld [vmem:[#allocation2] sm:$0xff]
  %v3691 = vld [vmem:[#allocation2 + $0x8] sm:$0xff]
  %v3692 = vld [vmem:[#allocation2 + $0x10] sm:$0xff]
  %v3693 = vld [vmem:[#allocation2 + $0x18] sm:$0xff]
  %s3694 = scalar_lea.vmem %s2, 256
  %v3695 = vld [vmem:[%s3694] sm:$0xff]
  %v3696 = vld [vmem:[%s3694 + $0x8] sm:$0xff]
  %v3697 = vld [vmem:[%s3694 + $0x10] sm:$0xff]
  %v3698 = vld [vmem:[%s3694 + $0x18] sm:$0xff]
  %v3699 = vld [vmem:[%s3694 + $0x20] sm:$0xff]
  %v3700 = vld [vmem:[%s3694 + $0x28] sm:$0xff]
  %v3701 = vld [vmem:[%s3694 + $0x30] sm:$0xff]
  %v3702 = vld [vmem:[%s3694 + $0x38] sm:$0xff]
  %v3703 = vld [vmem:[%s3694 + $0x40] sm:$0xff]
  %v3704 = vld [vmem:[%s3694 + $0x48] sm:$0xff]
  %v3705 = vld [vmem:[%s3694 + $0x50] sm:$0xff]
  %v3706 = vld [vmem:[%s3694 + $0x58] sm:$0xff]
  %v3707 = vld [vmem:[%s3694 + $0x60] sm:$0xff]
  %v3708 = vld [vmem:[%s3694 + $0x68] sm:$0xff]
  %v3709 = vld [vmem:[%s3694 + $0x70] sm:$0xff]
  %v3710 = vld [vmem:[%s3694 + $0x78] sm:$0xff]
  %v3711 = vld [vmem:[%s3694 + $0x80] sm:$0xff]
  %v3712 = vld [vmem:[%s3694 + $0x88] sm:$0xff]
  %v3713 = vld [vmem:[%s3694 + $0x90] sm:$0xff]
  %v3714 = vld [vmem:[%s3694 + $0x98] sm:$0xff]
  %v3715 = vld [vmem:[%s3694 + $0xa0] sm:$0xff]
  %v3716 = vld [vmem:[%s3694 + $0xa8] sm:$0xff]
  %v3717 = vld [vmem:[%s3694 + $0xb0] sm:$0xff]
  %v3718 = vld [vmem:[%s3694 + $0xb8] sm:$0xff]
  %v3719 = vld [vmem:[%s3694 + $0xc0] sm:$0xff]
  %v3720 = vld [vmem:[%s3694 + $0xc8] sm:$0xff]
  %v3721 = vld [vmem:[%s3694 + $0xd0] sm:$0xff]
  %v3722 = vld [vmem:[%s3694 + $0xd8] sm:$0xff]
  %v3723 = vld [vmem:[%s3694 + $0xe0] sm:$0xff]
  %v3724 = vld [vmem:[%s3694 + $0xe8] sm:$0xff]
  %v3725 = vld [vmem:[%s3694 + $0xf0] sm:$0xff]
  %v3726 = vld [vmem:[%s3694 + $0xf8] sm:$0xff]
  %v3759 = vunpack.c.l.b16 %v3695
  %v3760 = vunpack.c.h.b16 %v3695
  %v3761 = vunpack.c.l.b16 %v3696
  %v3762 = vunpack.c.h.b16 %v3696
  %v3763 = vunpack.c.l.b16 %v3697
  %v3764 = vunpack.c.h.b16 %v3697
  %v3765 = vunpack.c.l.b16 %v3698
  %v3766 = vunpack.c.h.b16 %v3698
  %v3767 = vunpack.c.l.b16 %v3699
  %v3768 = vunpack.c.h.b16 %v3699
  %v3769 = vunpack.c.l.b16 %v3700
  %v3770 = vunpack.c.h.b16 %v3700
  %v3771 = vunpack.c.l.b16 %v3701
  %v3772 = vunpack.c.h.b16 %v3701
  %v3773 = vunpack.c.l.b16 %v3702
  %v3774 = vunpack.c.h.b16 %v3702
  %v3775 = vunpack.c.l.b16 %v3703
  %v3776 = vunpack.c.h.b16 %v3703
  %v3777 = vunpack.c.l.b16 %v3704
  %v3778 = vunpack.c.h.b16 %v3704
  %v3779 = vunpack.c.l.b16 %v3705
  %v3780 = vunpack.c.h.b16 %v3705
  %v3781 = vunpack.c.l.b16 %v3706
  %v3782 = vunpack.c.h.b16 %v3706
  %v3783 = vunpack.c.l.b16 %v3707
  %v3784 = vunpack.c.h.b16 %v3707
  %v3785 = vunpack.c.l.b16 %v3708
  %v3786 = vunpack.c.h.b16 %v3708
  %v3787 = vunpack.c.l.b16 %v3709
  %v3788 = vunpack.c.h.b16 %v3709
  %v3789 = vunpack.c.l.b16 %v3710
  %v3790 = vunpack.c.h.b16 %v3710
  %v3791 = vunpack.c.l.b16 %v3711
  %v3792 = vunpack.c.h.b16 %v3711
  %v3793 = vunpack.c.l.b16 %v3712
  %v3794 = vunpack.c.h.b16 %v3712
  %v3795 = vunpack.c.l.b16 %v3713
  %v3796 = vunpack.c.h.b16 %v3713
  %v3797 = vunpack.c.l.b16 %v3714
  %v3798 = vunpack.c.h.b16 %v3714
  %v3799 = vunpack.c.l.b16 %v3715
  %v3800 = vunpack.c.h.b16 %v3715
  %v3801 = vunpack.c.l.b16 %v3716
  %v3802 = vunpack.c.h.b16 %v3716
  %v3803 = vunpack.c.l.b16 %v3717
  %v3804 = vunpack.c.h.b16 %v3717
  %v3805 = vunpack.c.l.b16 %v3718
  %v3806 = vunpack.c.h.b16 %v3718
  %v3807 = vunpack.c.l.b16 %v3719
  %v3808 = vunpack.c.h.b16 %v3719
  %v3809 = vunpack.c.l.b16 %v3720
  %v3810 = vunpack.c.h.b16 %v3720
  %v3811 = vunpack.c.l.b16 %v3721
  %v3812 = vunpack.c.h.b16 %v3721
  %v3813 = vunpack.c.l.b16 %v3722
  %v3814 = vunpack.c.h.b16 %v3722
  %v3815 = vunpack.c.l.b16 %v3723
  %v3816 = vunpack.c.h.b16 %v3723
  %v3817 = vunpack.c.l.b16 %v3724
  %v3818 = vunpack.c.h.b16 %v3724
  %v3819 = vunpack.c.l.b16 %v3725
  %v3820 = vunpack.c.h.b16 %v3725
  %v3821 = vunpack.c.l.b16 %v3726
  %v3822 = vunpack.c.h.b16 %v3726
  %v3823 = vpack.c.b16 %v3763, %v3759
  %v3824 = vpack.c.b16 %v3764, %v3760
  %v3825 = vpack.c.b16 %v3765, %v3761
  %v3826 = vpack.c.b16 %v3766, %v3762
  %v3827 = vpack.c.b16 %v3771, %v3767
  %v3828 = vpack.c.b16 %v3772, %v3768
  %v3829 = vpack.c.b16 %v3773, %v3769
  %v3830 = vpack.c.b16 %v3774, %v3770
  %v3831 = vpack.c.b16 %v3779, %v3775
  %v3832 = vpack.c.b16 %v3780, %v3776
  %v3833 = vpack.c.b16 %v3781, %v3777
  %v3834 = vpack.c.b16 %v3782, %v3778
  %v3835 = vpack.c.b16 %v3787, %v3783
  %v3836 = vpack.c.b16 %v3788, %v3784
  %v3837 = vpack.c.b16 %v3789, %v3785
  %v3838 = vpack.c.b16 %v3790, %v3786
  %v3839 = vpack.c.b16 %v3795, %v3791
  %v3840 = vpack.c.b16 %v3796, %v3792
  %v3841 = vpack.c.b16 %v3797, %v3793
  %v3842 = vpack.c.b16 %v3798, %v3794
  %v3843 = vpack.c.b16 %v3803, %v3799
  %v3844 = vpack.c.b16 %v3804, %v3800
  %v3845 = vpack.c.b16 %v3805, %v3801
  %v3846 = vpack.c.b16 %v3806, %v3802
  %v3847 = vpack.c.b16 %v3811, %v3807
  %v3848 = vpack.c.b16 %v3812, %v3808
  %v3849 = vpack.c.b16 %v3813, %v3809
  %v3850 = vpack.c.b16 %v3814, %v3810
  %v3851 = vpack.c.b16 %v3819, %v3815
  %v3852 = vpack.c.b16 %v3820, %v3816
  %v3853 = vpack.c.b16 %v3821, %v3817
  %v3854 = vpack.c.b16 %v3822, %v3818
  %3887 = vmatprep.subr.bf16.mxu0 %v3824
  %3888 = vmatpush1.bf16.msra.mxu0 %v3823
  %3889 = vmatprep.subr.bf16.mxu0 %v3828
  %3890 = vmatpush1.bf16.msra.mxu0 %v3827
  %3891 = vmatprep.subr.bf16.mxu0 %v3832
  %3892 = vmatpush1.bf16.msra.mxu0 %v3831
  %3893 = vmatprep.subr.bf16.mxu0 %v3836
  %3894 = vmatpush1.bf16.msra.mxu0 %v3835
  %3895 = vmatprep.subr.bf16.mxu0 %v3840
  %3896 = vmatpush1.bf16.msra.mxu0 %v3839
  %3897 = vmatprep.subr.bf16.mxu0 %v3844
  %3898 = vmatpush1.bf16.msra.mxu0 %v3843
  %3899 = vmatprep.subr.bf16.mxu0 %v3848
  %3900 = vmatpush1.bf16.msra.mxu0 %v3847
  %3901 = vmatprep.subr.bf16.mxu0 %v3852
  %3902 = vmatpush1.bf16.msra.mxu0 %v3851
  %3903 = vmatprep.subr.bf16.mxu0 0
  %3904 = vmatpush1.bf16.msra.mxu0 0
  %3905 = vmatprep.subr.bf16.mxu0 0
  %3906 = vmatpush1.bf16.msra.mxu0 0
  %3907 = vmatprep.subr.bf16.mxu0 0
  %3908 = vmatpush1.bf16.msra.mxu0 0
  %3909 = vmatprep.subr.bf16.mxu0 0
  %3910 = vmatpush1.bf16.msra.mxu0 0
  %3911 = vmatprep.subr.bf16.mxu0 0
  %3912 = vmatpush1.bf16.msra.mxu0 0
  %3913 = vmatprep.subr.bf16.mxu0 0
  %3914 = vmatpush1.bf16.msra.mxu0 0
  %3915 = vmatprep.subr.bf16.mxu0 0
  %3916 = vmatpush1.bf16.msra.mxu0 0
  %3917 = vmatprep.subr.bf16.mxu0 0
  %3918 = vmatpush1.bf16.msra.mxu0 0
  %3919 = vmatprep.mubr.bf16.mxu0 0
  %3920 = vmatmul.mubr.bf16.gmra.mrb[0].mxu0 0
  %v3921 = vpop.f32.mrb[0].mxu0
  %v3922 = vadd.f32 0.0, %v3921
  %v3923 = vpop.f32.mrb[0].mxu0
  %v3924 = vadd.f32 0.0, %v3923
  %v3925 = vpop.f32.mrb[0].mxu0
  %v3926 = vpop.f32.mrb[0].mxu0
  %3927 = vdwg.mxu0
  %3928 = vmatprep.subr.bf16.mxu0 %v3826
  %3929 = vmatpush1.bf16.msra.mxu0 %v3825
  %3930 = vmatprep.subr.bf16.mxu0 %v3830
  %3931 = vmatpush1.bf16.msra.mxu0 %v3829
  %3932 = vmatprep.subr.bf16.mxu0 %v3834
  %3933 = vmatpush1.bf16.msra.mxu0 %v3833
  %3934 = vmatprep.subr.bf16.mxu0 %v3838
  %3935 = vmatpush1.bf16.msra.mxu0 %v3837
  %3936 = vmatprep.subr.bf16.mxu0 %v3842
  %3937 = vmatpush1.bf16.msra.mxu0 %v3841
  %3938 = vmatprep.subr.bf16.mxu0 %v3846
  %3939 = vmatpush1.bf16.msra.mxu0 %v3845
  %3940 = vmatprep.subr.bf16.mxu0 %v3850
  %3941 = vmatpush1.bf16.msra.mxu0 %v3849
  %3942 = vmatprep.subr.bf16.mxu0 %v3854
  %3943 = vmatpush1.bf16.msra.mxu0 %v3853
  %3944 = vmatprep.subr.bf16.mxu0 0
  %3945 = vmatpush1.bf16.msra.mxu0 0
  %3946 = vmatprep.subr.bf16.mxu0 0
  %3947 = vmatpush1.bf16.msra.mxu0 0
  %3948 = vmatprep.subr.bf16.mxu0 0
  %3949 = vmatpush1.bf16.msra.mxu0 0
  %3950 = vmatprep.subr.bf16.mxu0 0
  %3951 = vmatpush1.bf16.msra.mxu0 0
  %3952 = vmatprep.subr.bf16.mxu0 0
  %3953 = vmatpush1.bf16.msra.mxu0 0
  %3954 = vmatprep.subr.bf16.mxu0 0
  %3955 = vmatpush1.bf16.msra.mxu0 0
  %3956 = vmatprep.subr.bf16.mxu0 0
  %3957 = vmatpush1.bf16.msra.mxu0 0
  %3958 = vmatprep.subr.bf16.mxu0 0
  %3959 = vmatpush1.bf16.msra.mxu0 0
  %3960 = vmatprep.mubr.bf16.mxu0 0
  %3961 = vmatmul.mubr.bf16.gmra.mrb[0].mxu0 0
  %v3962 = vpop.f32.mrb[0].mxu0
  %v3963 = vadd.f32 0.0, %v3962
  %v3964 = vpop.f32.mrb[0].mxu0
  %v3965 = vadd.f32 0.0, %v3964
  %v3966 = vpop.f32.mrb[0].mxu0
  %v3967 = vpop.f32.mrb[0].mxu0
  %3968 = vdwg.mxu0
  %v3969 = vadd.f32 %v3690, %v3922
  %v3970 = vadd.f32 %v3691, %v3924
  %v3971 = vadd.f32 %v3692, %v3963
  %v3972 = vadd.f32 %v3693, %v3965
  %v3973 = vxor.u32 %v3969, 2147483648
  %v3974 = vxor.u32 %v3970, 2147483648
  %v3975 = vxor.u32 %v3971, 2147483648
  %v3976 = vmul.f32 %v3973, 1.442695
  %v3977 = vpow.pop %v3976
  %v3978 = vmul.f32 %v3974, 1.442695
  %v3979 = vpow.pop %v3978
  %v3980 = vmul.f32 %v3975, 1.442695
  %v3981 = vpow.pop %v3980
  %v3982 = vadd.f32 %v3977, 1.0
  %v3983 = vadd.f32 %v3979, 1.0
  %v3984 = vadd.f32 %v3981, 1.0
  %v3985 = vrcp.pop %v3982
  %v3986 = vmul.f32 1.0, %v3985
  %v3987 = vrcp.pop %v3983
  %v3988 = vmul.f32 1.0, %v3987
  %v3989 = vrcp.pop %v3984
  %v3990 = vmul.f32 1.0, %v3989
  %v3991 = vtanh.pop %v3972
  %v3992 = vmul.f32 %v3988, 0.0
  %v3993 = vmul.f32 %v3986, %v3991
  %v3994 = vadd.f32 %v3992, %v3993
  %v3995 = vtanh.pop %v3994
  %v3996 = vmul.f32 %v3990, %v3995
  %v3997 = vpack.c.bf16 %v3996, %v3996
  %3998 = vst [vmem:[%s4] sm:$0xf] %v3997
  %v3999 = vld [vmem:[#allocation2 + $0x20] sm:$0xff]
  %v4000 = vld [vmem:[#allocation2 + $0x28] sm:$0xff]
  %v4001 = vld [vmem:[#allocation2 + $0x30] sm:$0xff]
  %v4002 = vld [vmem:[#allocation2 + $0x38] sm:$0xff]
  %v4003 = vld [vmem:[%s3694] sm:$0xff]
  %v4004 = vld [vmem:[%s3694 + $0x8] sm:$0xff]
  %v4005 = vld [vmem:[%s3694 + $0x10] sm:$0xff]
  %v4006 = vld [vmem:[%s3694 + $0x18] sm:$0xff]
  %v4007 = vld [vmem:[%s3694 + $0x20] sm:$0xff]
  %v4008 = vld [vmem:[%s3694 + $0x28] sm:$0xff]
  %v4009 = vld [vmem:[%s3694 + $0x30] sm:$0xff]
  %v4010 = vld [vmem:[%s3694 + $0x38] sm:$0xff]
  %v4011 = vld [vmem:[%s3694 + $0x40] sm:$0xff]
  %v4012 = vld [vmem:[%s3694 + $0x48] sm:$0xff]
  %v4013 = vld [vmem:[%s3694 + $0x50] sm:$0xff]
  %v4014 = vld [vmem:[%s3694 + $0x58] sm:$0xff]
  %v4015 = vld [vmem:[%s3694 + $0x60] sm:$0xff]
  %v4016 = vld [vmem:[%s3694 + $0x68] sm:$0xff]
  %v4017 = vld [vmem:[%s3694 + $0x70] sm:$0xff]
  %v4018 = vld [vmem:[%s3694 + $0x78] sm:$0xff]
  %v4019 = vld [vmem:[%s3694 + $0x80] sm:$0xff]
  %v4020 = vld [vmem:[%s3694 + $0x88] sm:$0xff]
  %v4021 = vld [vmem:[%s3694 + $0x90] sm:$0xff]
  %v4022 = vld [vmem:[%s3694 + $0x98] sm:$0xff]
  %v4023 = vld [vmem:[%s3694 + $0xa0] sm:$0xff]
  %v4024 = vld [vmem:[%s3694 + $0xa8] sm:$0xff]
  %v4025 = vld [vmem:[%s3694 + $0xb0] sm:$0xff]
  %v4026 = vld [vmem:[%s3694 + $0xb8] sm:$0xff]
  %v4027 = vld [vmem:[%s3694 + $0xc0] sm:$0xff]
  %v4028 = vld [vmem:[%s3694 + $0xc8] sm:$0xff]
  %v4029 = vld [vmem:[%s3694 + $0xd0] sm:$0xff]
  %v4030 = vld [vmem:[%s3694 + $0xd8] sm:$0xff]
  %v4031 = vld [vmem:[%s3694 + $0xe0] sm:$0xff]
  %v4032 = vld [vmem:[%s3694 + $0xe8] sm:$0xff]
  %v4033 = vld [vmem:[%s3694 + $0xf0] sm:$0xff]
  %v4034 = vld [vmem:[%s3694 + $0xf8] sm:$0xff]
  %v4067 = vunpack.c.l.b16 %v4003
  %v4068 = vunpack.c.h.b16 %v4003
  %v4069 = vunpack.c.l.b16 %v4004
  %v4070 = vunpack.c.h.b16 %v4004
  %v4071 = vunpack.c.l.b16 %v4005
  %v4072 = vunpack.c.h.b16 %v4005
  %v4073 = vunpack.c.l.b16 %v4006
  %v4074 = vunpack.c.h.b16 %v4006
  %v4075 = vunpack.c.l.b16 %v4007
  %v4076 = vunpack.c.h.b16 %v4007
  %v4077 = vunpack.c.l.b16 %v4008
  %v4078 = vunpack.c.h.b16 %v4008
  %v4079 = vunpack.c.l.b16 %v4009
  %v4080 = vunpack.c.h.b16 %v4009
  %v4081 = vunpack.c.l.b16 %v4010
  %v4082 = vunpack.c.h.b16 %v4010
  %v4083 = vunpack.c.l.b16 %v4011
  %v4084 = vunpack.c.h.b16 %v4011
  %v4085 = vunpack.c.l.b16 %v4012
  %v4086 = vunpack.c.h.b16 %v4012
  %v4087 = vunpack.c.l.b16 %v4013
  %v4088 = vunpack.c.h.b16 %v4013
  %v4089 = vunpack.c.l.b16 %v4014
  %v4090 = vunpack.c.h.b16 %v4014
  %v4091 = vunpack.c.l.b16 %v4015
  %v4092 = vunpack.c.h.b16 %v4015
  %v4093 = vunpack.c.l.b16 %v4016
  %v4094 = vunpack.c.h.b16 %v4016
  %v4095 = vunpack.c.l.b16 %v4017
  %v4096 = vunpack.c.h.b16 %v4017
  %v4097 = vunpack.c.l.b16 %v4018
  %v4098 = vunpack.c.h.b16 %v4018
  %v4099 = vunpack.c.l.b16 %v4019
  %v4100 = vunpack.c.h.b16 %v4019
  %v4101 = vunpack.c.l.b16 %v4020
  %v4102 = vunpack.c.h.b16 %v4020
  %v4103 = vunpack.c.l.b16 %v4021
  %v4104 = vunpack.c.h.b16 %v4021
  %v4105 = vunpack.c.l.b16 %v4022
  %v4106 = vunpack.c.h.b16 %v4022
  %v4107 = vunpack.c.l.b16 %v4023
  %v4108 = vunpack.c.h.b16 %v4023
  %v4109 = vunpack.c.l.b16 %v4024
  %v4110 = vunpack.c.h.b16 %v4024
  %v4111 = vunpack.c.l.b16 %v4025
  %v4112 = vunpack.c.h.b16 %v4025
  %v4113 = vunpack.c.l.b16 %v4026
  %v4114 = vunpack.c.h.b16 %v4026
  %v4115 = vunpack.c.l.b16 %v4027
  %v4116 = vunpack.c.h.b16 %v4027
  %v4117 = vunpack.c.l.b16 %v4028
  %v4118 = vunpack.c.h.b16 %v4028
  %v4119 = vunpack.c.l.b16 %v4029
  %v4120 = vunpack.c.h.b16 %v4029
  %v4121 = vunpack.c.l.b16 %v4030
  %v4122 = vunpack.c.h.b16 %v4030
  %v4123 = vunpack.c.l.b16 %v4031
  %v4124 = vunpack.c.h.b16 %v4031
  %v4125 = vunpack.c.l.b16 %v4032
  %v4126 = vunpack.c.h.b16 %v4032
  %v4127 = vunpack.c.l.b16 %v4033
  %v4128 = vunpack.c.h.b16 %v4033
  %v4129 = vunpack.c.l.b16 %v4034
  %v4130 = vunpack.c.h.b16 %v4034
  %v4131 = vpack.c.b16 %v4071, %v4067
  %v4132 = vpack.c.b16 %v4072, %v4068
  %v4133 = vpack.c.b16 %v4073, %v4069
  %v4134 = vpack.c.b16 %v4074, %v4070
  %v4135 = vpack.c.b16 %v4079, %v4075
  %v4136 = vpack.c.b16 %v4080, %v4076
  %v4137 = vpack.c.b16 %v4081, %v4077
  %v4138 = vpack.c.b16 %v4082, %v4078
  %v4139 = vpack.c.b16 %v4087, %v4083
  %v4140 = vpack.c.b16 %v4088, %v4084
  %v4141 = vpack.c.b16 %v4089, %v4085
  %v4142 = vpack.c.b16 %v4090, %v4086
  %v4143 = vpack.c.b16 %v4095, %v4091
  %v4144 = vpack.c.b16 %v4096, %v4092
  %v4145 = vpack.c.b16 %v4097, %v4093
  %v4146 = vpack.c.b16 %v4098, %v4094
  %v4147 = vpack.c.b16 %v4103, %v4099
  %v4148 = vpack.c.b16 %v4104, %v4100
  %v4149 = vpack.c.b16 %v4105, %v4101
  %v4150 = vpack.c.b16 %v4106, %v4102
  %v4151 = vpack.c.b16 %v4111, %v4107
  %v4152 = vpack.c.b16 %v4112, %v4108
  %v4153 = vpack.c.b16 %v4113, %v4109
  %v4154 = vpack.c.b16 %v4114, %v4110
  %v4155 = vpack.c.b16 %v4119, %v4115
  %v4156 = vpack.c.b16 %v4120, %v4116
  %v4157 = vpack.c.b16 %v4121, %v4117
  %v4158 = vpack.c.b16 %v4122, %v4118
  %v4159 = vpack.c.b16 %v4127, %v4123
  %v4160 = vpack.c.b16 %v4128, %v4124
  %v4161 = vpack.c.b16 %v4129, %v4125
  %v4162 = vpack.c.b16 %v4130, %v4126
  %4195 = vmatprep.subr.bf16.mxu0 %v4132
  %4196 = vmatpush1.bf16.msra.mxu0 %v4131
  %4197 = vmatprep.subr.bf16.mxu0 %v4136
  %4198 = vmatpush1.bf16.msra.mxu0 %v4135
  %4199 = vmatprep.subr.bf16.mxu0 %v4140
  %4200 = vmatpush1.bf16.msra.mxu0 %v4139
  %4201 = vmatprep.subr.bf16.mxu0 %v4144
  %4202 = vmatpush1.bf16.msra.mxu0 %v4143
  %4203 = vmatprep.subr.bf16.mxu0 %v4148
  %4204 = vmatpush1.bf16.msra.mxu0 %v4147
  %4205 = vmatprep.subr.bf16.mxu0 %v4152
  %4206 = vmatpush1.bf16.msra.mxu0 %v4151
  %4207 = vmatprep.subr.bf16.mxu0 %v4156
  %4208 = vmatpush1.bf16.msra.mxu0 %v4155
  %4209 = vmatprep.subr.bf16.mxu0 %v4160
  %4210 = vmatpush1.bf16.msra.mxu0 %v4159
  %4211 = vmatprep.subr.bf16.mxu0 0
  %4212 = vmatpush1.bf16.msra.mxu0 0
  %4213 = vmatprep.subr.bf16.mxu0 0
  %4214 = vmatpush1.bf16.msra.mxu0 0
  %4215 = vmatprep.subr.bf16.mxu0 0
  %4216 = vmatpush1.bf16.msra.mxu0 0
  %4217 = vmatprep.subr.bf16.mxu0 0
  %4218 = vmatpush1.bf16.msra.mxu0 0
  %4219 = vmatprep.subr.bf16.mxu0 0
  %4220 = vmatpush1.bf16.msra.mxu0 0
  %4221 = vmatprep.subr.bf16.mxu0 0
  %4222 = vmatpush1.bf16.msra.mxu0 0
  %4223 = vmatprep.subr.bf16.mxu0 0
  %4224 = vmatpush1.bf16.msra.mxu0 0
  %4225 = vmatprep.subr.bf16.mxu0 0
  %4226 = vmatpush1.bf16.msra.mxu0 0
  %4227 = vmatprep.mubr.bf16.mxu0 0
  %4228 = vmatmul.mubr.bf16.gmra.mrb[0].mxu0 %v3997
  %v4229 = vpop.f32.mrb[0].mxu0
  %v4230 = vadd.f32 0.0, %v4229
  %v4231 = vpop.f32.mrb[0].mxu0
  %v4232 = vadd.f32 0.0, %v4231
  %v4233 = vpop.f32.mrb[0].mxu0
  %v4234 = vpop.f32.mrb[0].mxu0
  %4235 = vdwg.mxu0
  %4236 = vmatprep.subr.bf16.mxu0 %v4134
  %4237 = vmatpush1.bf16.msra.mxu0 %v4133
  %4238 = vmatprep.subr.bf16.mxu0 %v4138
  %4239 = vmatpush1.bf16.msra.mxu0 %v4137
  %4240 = vmatprep.subr.bf16.mxu0 %v4142
  %4241 = vmatpush1.bf16.msra.mxu0 %v4141
  %4242 = vmatprep.subr.bf16.mxu0 %v4146
  %4243 = vmatpush1.bf16.msra.mxu0 %v4145
  %4244 = vmatprep.subr.bf16.mxu0 %v4150
  %4245 = vmatpush1.bf16.msra.mxu0 %v4149
  %4246 = vmatprep.subr.bf16.mxu0 %v4154
  %4247 = vmatpush1.bf16.msra.mxu0 %v4153
  %4248 = vmatprep.subr.bf16.mxu0 %v4158
  %4249 = vmatpush1.bf16.msra.mxu0 %v4157
  %4250 = vmatprep.subr.bf16.mxu0 %v4162
  %4251 = vmatpush1.bf16.msra.mxu0 %v4161
  %4252 = vmatprep.subr.bf16.mxu0 0
  %4253 = vmatpush1.bf16.msra.mxu0 0
  %4254 = vmatprep.subr.bf16.mxu0 0
  %4255 = vmatpush1.bf16.msra.mxu0 0
  %4256 = vmatprep.subr.bf16.mxu0 0
  %4257 = vmatpush1.bf16.msra.mxu0 0
  %4258 = vmatprep.subr.bf16.mxu0 0
  %4259 = vmatpush1.bf16.msra.mxu0 0
  %4260 = vmatprep.subr.bf16.mxu0 0
  %4261 = vmatpush1.bf16.msra.mxu0 0
  %4262 = vmatprep.subr.bf16.mxu0 0
  %4263 = vmatpush1.bf16.msra.mxu0 0
  %4264 = vmatprep.subr.bf16.mxu0 0
  %4265 = vmatpush1.bf16.msra.mxu0 0
  %4266 = vmatprep.subr.bf16.mxu0 0
  %4267 = vmatpush1.bf16.msra.mxu0 0
  %4268 = vmatprep.mubr.bf16.mxu0 0
  %4269 = vmatmul.mubr.bf16.gmra.mrb[0].mxu0 %v3997
  %v4270 = vpop.f32.mrb[0].mxu0
  %v4271 = vadd.f32 0.0, %v4270
  %v4272 = vpop.f32.mrb[0].mxu0
  %v4273 = vadd.f32 0.0, %v4272
  %v4274 = vpop.f32.mrb[0].mxu0
  %v4275 = vpop.f32.mrb[0].mxu0
  %4276 = vdwg.mxu0
  %v4277 = vadd.f32 %v3999, %v4230
  %v4278 = vadd.f32 %v4000, %v4232
  %v4279 = vadd.f32 %v4001, %v4271
  %v4280 = vadd.f32 %v4002, %v4273
  %v4281 = vxor.u32 %v4277, 2147483648
  %v4282 = vxor.u32 %v4278, 2147483648
  %v4283 = vxor.u32 %v4279, 2147483648
  %v4284 = vmul.f32 %v4281, 1.442695
  %v4285 = vpow.pop %v4284
  %v4286 = vmul.f32 %v4282, 1.442695
  %v4287 = vpow.pop %v4286
  %v4288 = vmul.f32 %v4283, 1.442695
  %v4289 = vpow.pop %v4288
  %v4290 = vadd.f32 %v4285, 1.0
  %v4291 = vadd.f32 %v4287, 1.0
  %v4292 = vadd.f32 %v4289, 1.0
  %v4293 = vrcp.pop %v4290
  %v4294 = vmul.f32 1.0, %v4293
  %v4295 = vrcp.pop %v4291
  %v4296 = vmul.f32 1.0, %v4295
  %v4297 = vrcp.pop %v4292
  %v4298 = vmul.f32 1.0, %v4297
  %v4299 = vtanh.pop %v4280
  %v4300 = vmul.f32 %v4296, %v3994
  %v4301 = vmul.f32 %v4294, %v4299
  %v4302 = vadd.f32 %v4300, %v4301
  %v4303 = vtanh.pop %v4302
  %v4304 = vmul.f32 %v4298, %v4303
  %v4305 = vpack.c.bf16 %v4304, %v4304
  %4306 = vst [vmem:[%s4 + $0x4] sm:$0xf] %v4305
  %v4307 = vld [vmem:[#allocation2 + $0x40] sm:$0xff]
  %v4308 = vld [vmem:[#allocation2 + $0x48] sm:$0xff]
  %v4309 = vld [vmem:[#allocation2 + $0x50] sm:$0xff]
  %v4310 = vld [vmem:[#allocation2 + $0x58] sm:$0xff]
  %v4311 = vld [vmem:[%s3694] sm:$0xff]
  %v4312 = vld [vmem:[%s3694 + $0x8] sm:$0xff]
  %v4313 = vld [vmem:[%s3694 + $0x10] sm:$0xff]
  %v4314 = vld [vmem:[%s3694 + $0x18] sm:$0xff]
  %v4315 = vld [vmem:[%s3694 + $0x20] sm:$0xff]
  %v4316 = vld [vmem:[%s3694 + $0x28] sm:$0xff]
  %v4317 = vld [vmem:[%s3694 + $0x30] sm:$0xff]
  %v4318 = vld [vmem:[%s3694 + $0x38] sm:$0xff]
  %v4319 = vld [vmem:[%s3694 + $0x40] sm:$0xff]
  %v4320 = vld [vmem:[%s3694 + $0x48] sm:$0xff]
  %v4321 = vld [vmem:[%s3694 + $0x50] sm:$0xff]
  %v4322 = vld [vmem:[%s3694 + $0x58] sm:$0xff]
  %v4323 = vld [vmem:[%s3694 + $0x60] sm:$0xff]
  %v4324 = vld [vmem:[%s3694 + $0x68] sm:$0xff]
  %v4325 = vld [vmem:[%s3694 + $0x70] sm:$0xff]
  %v4326 = vld [vmem:[%s3694 + $0x78] sm:$0xff]
  %v4327 = vld [vmem:[%s3694 + $0x80] sm:$0xff]
  %v4328 = vld [vmem:[%s3694 + $0x88] sm:$0xff]
  %v4329 = vld [vmem:[%s3694 + $0x90] sm:$0xff]
  %v4330 = vld [vmem:[%s3694 + $0x98] sm:$0xff]
  %v4331 = vld [vmem:[%s3694 + $0xa0] sm:$0xff]
  %v4332 = vld [vmem:[%s3694 + $0xa8] sm:$0xff]
  %v4333 = vld [vmem:[%s3694 + $0xb0] sm:$0xff]
  %v4334 = vld [vmem:[%s3694 + $0xb8] sm:$0xff]
  %v4335 = vld [vmem:[%s3694 + $0xc0] sm:$0xff]
  %v4336 = vld [vmem:[%s3694 + $0xc8] sm:$0xff]
  %v4337 = vld [vmem:[%s3694 + $0xd0] sm:$0xff]
  %v4338 = vld [vmem:[%s3694 + $0xd8] sm:$0xff]
  %v4339 = vld [vmem:[%s3694 + $0xe0] sm:$0xff]
  %v4340 = vld [vmem:[%s3694 + $0xe8] sm:$0xff]
  %v4341 = vld [vmem:[%s3694 + $0xf0] sm:$0xff]
  %v4342 = vld [vmem:[%s3694 + $0xf8] sm:$0xff]
  %v4375 = vunpack.c.l.b16 %v4311
  %v4376 = vunpack.c.h.b16 %v4311
  %v4377 = vunpack.c.l.b16 %v4312
  %v4378 = vunpack.c.h.b16 %v4312
  %v4379 = vunpack.c.l.b16 %v4313
  %v4380 = vunpack.c.h.b16 %v4313
  %v4381 = vunpack.c.l.b16 %v4314
  %v4382 = vunpack.c.h.b16 %v4314
  %v4383 = vunpack.c.l.b16 %v4315
  %v4384 = vunpack.c.h.b16 %v4315
  %v4385 = vunpack.c.l.b16 %v4316
  %v4386 = vunpack.c.h.b16 %v4316
  %v4387 = vunpack.c.l.b16 %v4317
  %v4388 = vunpack.c.h.b16 %v4317
  %v4389 = vunpack.c.l.b16 %v4318
  %v4390 = vunpack.c.h.b16 %v4318
  %v4391 = vunpack.c.l.b16 %v4319
  %v4392 = vunpack.c.h.b16 %v4319
  %v4393 = vunpack.c.l.b16 %v4320
  %v4394 = vunpack.c.h.b16 %v4320
  %v4395 = vunpack.c.l.b16 %v4321
  %v4396 = vunpack.c.h.b16 %v4321
  %v4397 = vunpack.c.l.b16 %v4322
  %v4398 = vunpack.c.h.b16 %v4322
  %v4399 = vunpack.c.l.b16 %v4323
  %v4400 = vunpack.c.h.b16 %v4323
  %v4401 = vunpack.c.l.b16 %v4324
  %v4402 = vunpack.c.h.b16 %v4324
  %v4403 = vunpack.c.l.b16 %v4325
  %v4404 = vunpack.c.h.b16 %v4325
  %v4405 = vunpack.c.l.b16 %v4326
  %v4406 = vunpack.c.h.b16 %v4326
  %v4407 = vunpack.c.l.b16 %v4327
  %v4408 = vunpack.c.h.b16 %v4327
  %v4409 = vunpack.c.l.b16 %v4328
  %v4410 = vunpack.c.h.b16 %v4328
  %v4411 = vunpack.c.l.b16 %v4329
  %v4412 = vunpack.c.h.b16 %v4329
  %v4413 = vunpack.c.l.b16 %v4330
  %v4414 = vunpack.c.h.b16 %v4330
  %v4415 = vunpack.c.l.b16 %v4331
  %v4416 = vunpack.c.h.b16 %v4331
  %v4417 = vunpack.c.l.b16 %v4332
  %v4418 = vunpack.c.h.b16 %v4332
  %v4419 = vunpack.c.l.b16 %v4333
  %v4420 = vunpack.c.h.b16 %v4333
  %v4421 = vunpack.c.l.b16 %v4334
  %v4422 = vunpack.c.h.b16 %v4334
  %v4423 = vunpack.c.l.b16 %v4335
  %v4424 = vunpack.c.h.b16 %v4335
  %v4425 = vunpack.c.l.b16 %v4336
  %v4426 = vunpack.c.h.b16 %v4336
  %v4427 = vunpack.c.l.b16 %v4337
  %v4428 = vunpack.c.h.b16 %v4337
  %v4429 = vunpack.c.l.b16 %v4338
  %v4430 = vunpack.c.h.b16 %v4338
  %v4431 = vunpack.c.l.b16 %v4339
  %v4432 = vunpack.c.h.b16 %v4339
  %v4433 = vunpack.c.l.b16 %v4340
  %v4434 = vunpack.c.h.b16 %v4340
  %v4435 = vunpack.c.l.b16 %v4341
  %v4436 = vunpack.c.h.b16 %v4341
  %v4437 = vunpack.c.l.b16 %v4342
  %v4438 = vunpack.c.h.b16 %v4342
  %v4439 = vpack.c.b16 %v4379, %v4375
  %v4440 = vpack.c.b16 %v4380, %v4376
  %v4441 = vpack.c.b16 %v4381, %v4377
  %v4442 = vpack.c.b16 %v4382, %v4378
  %v4443 = vpack.c.b16 %v4387, %v4383
  %v4444 = vpack.c.b16 %v4388, %v4384
  %v4445 = vpack.c.b16 %v4389, %v4385
  %v4446 = vpack.c.b16 %v4390, %v4386
  %v4447 = vpack.c.b16 %v4395, %v4391
  %v4448 = vpack.c.b16 %v4396, %v4392
  %v4449 = vpack.c.b16 %v4397, %v4393
  %v4450 = vpack.c.b16 %v4398, %v4394
  %v4451 = vpack.c.b16 %v4403, %v4399
  %v4452 = vpack.c.b16 %v4404, %v4400
  %v4453 = vpack.c.b16 %v4405, %v4401
  %v4454 = vpack.c.b16 %v4406, %v4402
  %v4455 = vpack.c.b16 %v4411, %v4407
  %v4456 = vpack.c.b16 %v4412, %v4408
  %v4457 = vpack.c.b16 %v4413, %v4409
  %v4458 = vpack.c.b16 %v4414, %v4410
  %v4459 = vpack.c.b16 %v4419, %v4415
  %v4460 = vpack.c.b16 %v4420, %v4416
  %v4461 = vpack.c.b16 %v4421, %v4417
  %v4462 = vpack.c.b16 %v4422, %v4418
  %v4463 = vpack.c.b16 %v4427, %v4423
  %v4464 = vpack.c.b16 %v4428, %v4424
  %v4465 = vpack.c.b16 %v4429, %v4425
  %v4466 = vpack.c.b16 %v4430, %v4426
  %v4467 = vpack.c.b16 %v4435, %v4431
  %v4468 = vpack.c.b16 %v4436, %v4432
  %v4469 = vpack.c.b16 %v4437, %v4433
  %v4470 = vpack.c.b16 %v4438, %v4434
  %4503 = vmatprep.subr.bf16.mxu0 %v4440
  %4504 = vmatpush1.bf16.msra.mxu0 %v4439
  %4505 = vmatprep.subr.bf16.mxu0 %v4444
  %4506 = vmatpush1.bf16.msra.mxu0 %v4443
  %4507 = vmatprep.subr.bf16.mxu0 %v4448
  %4508 = vmatpush1.bf16.msra.mxu0 %v4447
  %4509 = vmatprep.subr.bf16.mxu0 %v4452
  %4510 = vmatpush1.bf16.msra.mxu0 %v4451
  %4511 = vmatprep.subr.bf16.mxu0 %v4456
  %4512 = vmatpush1.bf16.msra.mxu0 %v4455
  %4513 = vmatprep.subr.bf16.mxu0 %v4460
  %4514 = vmatpush1.bf16.msra.mxu0 %v4459
  %4515 = vmatprep.subr.bf16.mxu0 %v4464
  %4516 = vmatpush1.bf16.msra.mxu0 %v4463
  %4517 = vmatprep.subr.bf16.mxu0 %v4468
  %4518 = vmatpush1.bf16.msra.mxu0 %v4467
  %4519 = vmatprep.subr.bf16.mxu0 0
  %4520 = vmatpush1.bf16.msra.mxu0 0
  %4521 = vmatprep.subr.bf16.mxu0 0
  %4522 = vmatpush1.bf16.msra.mxu0 0
  %4523 = vmatprep.subr.bf16.mxu0 0
  %4524 = vmatpush1.bf16.msra.mxu0 0
  %4525 = vmatprep.subr.bf16.mxu0 0
  %4526 = vmatpush1.bf16.msra.mxu0 0
  %4527 = vmatprep.subr.bf16.mxu0 0
  %4528 = vmatpush1.bf16.msra.mxu0 0
  %4529 = vmatprep.subr.bf16.mxu0 0
  %4530 = vmatpush1.bf16.msra.mxu0 0
  %4531 = vmatprep.subr.bf16.mxu0 0
  %4532 = vmatpush1.bf16.msra.mxu0 0
  %4533 = vmatprep.subr.bf16.mxu0 0
  %4534 = vmatpush1.bf16.msra.mxu0 0
  %4535 = vmatprep.mubr.bf16.mxu0 0
  %4536 = vmatmul.mubr.bf16.gmra.mrb[0].mxu0 %v4305
  %v4537 = vpop.f32.mrb[0].mxu0
  %v4538 = vadd.f32 0.0, %v4537
  %v4539 = vpop.f32.mrb[0].mxu0
  %v4540 = vadd.f32 0.0, %v4539
  %v4541 = vpop.f32.mrb[0].mxu0
  %v4542 = vpop.f32.mrb[0].mxu0
  %4543 = vdwg.mxu0
  %4544 = vmatprep.subr.bf16.mxu0 %v4442
  %4545 = vmatpush1.bf16.msra.mxu0 %v4441
  %4546 = vmatprep.subr.bf16.mxu0 %v4446
  %4547 = vmatpush1.bf16.msra.mxu0 %v4445
  %4548 = vmatprep.subr.bf16.mxu0 %v4450
  %4549 = vmatpush1.bf16.msra.mxu0 %v4449
  %4550 = vmatprep.subr.bf16.mxu0 %v4454
  %4551 = vmatpush1.bf16.msra.mxu0 %v4453
  %4552 = vmatprep.subr.bf16.mxu0 %v4458
  %4553 = vmatpush1.bf16.msra.mxu0 %v4457
  %4554 = vmatprep.subr.bf16.mxu0 %v4462
  %4555 = vmatpush1.bf16.msra.mxu0 %v4461
  %4556 = vmatprep.subr.bf16.mxu0 %v4466
  %4557 = vmatpush1.bf16.msra.mxu0 %v4465
  %4558 = vmatprep.subr.bf16.mxu0 %v4470
  %4559 = vmatpush1.bf16.msra.mxu0 %v4469
  %4560 = vmatprep.subr.bf16.mxu0 0
  %4561 = vmatpush1.bf16.msra.mxu0 0
  %4562 = vmatprep.subr.bf16.mxu0 0
  %4563 = vmatpush1.bf16.msra.mxu0 0
  %4564 = vmatprep.subr.bf16.mxu0 0
  %4565 = vmatpush1.bf16.msra.mxu0 0
  %4566 = vmatprep.subr.bf16.mxu0 0
  %4567 = vmatpush1.bf16.msra.mxu0 0
  %4568 = vmatprep.subr.bf16.mxu0 0
  %4569 = vmatpush1.bf16.msra.mxu0 0
  %4570 = vmatprep.subr.bf16.mxu0 0
  %4571 = vmatpush1.bf16.msra.mxu0 0
  %4572 = vmatprep.subr.bf16.mxu0 0
  %4573 = vmatpush1.bf16.msra.mxu0 0
  %4574 = vmatprep.subr.bf16.mxu0 0
  %4575 = vmatpush1.bf16.msra.mxu0 0
  %4576 = vmatprep.mubr.bf16.mxu0 0
  %4577 = vmatmul.mubr.bf16.gmra.mrb[0].mxu0 %v4305
  %v4578 = vpop.f32.mrb[0].mxu0
  %v4579 = vadd.f32 0.0, %v4578
  %v4580 = vpop.f32.mrb[0].mxu0
  %v4581 = vadd.f32 0.0, %v4580
  %v4582 = vpop.f32.mrb[0].mxu0
  %v4583 = vpop.f32.mrb[0].mxu0
  %4584 = vdwg.mxu0
  %v4585 = vadd.f32 %v4307, %v4538
  %v4586 = vadd.f32 %v4308, %v4540
  %v4587 = vadd.f32 %v4309, %v4579
  %v4588 = vadd.f32 %v4310, %v4581
  %v4589 = vxor.u32 %v4585, 2147483648
  %v4590 = vxor.u32 %v4586, 2147483648
  %v4591 = vxor.u32 %v4587, 2147483648
  %v4592 = vmul.f32 %v4589, 1.442695
  %v4593 = vpow.pop %v4592
  %v4594 = vmul.f32 %v4590, 1.442695
  %v4595 = vpow.pop %v4594
  %v4596 = vmul.f32 %v4591, 1.442695
  %v4597 = vpow.pop %v4596
  %v4598 = vadd.f32 %v4593, 1.0
  %v4599 = vadd.f32 %v4595, 1.0
  %v4600 = vadd.f32 %v4597, 1.0
  %v4601 = vrcp.pop %v4598
  %v4602 = vmul.f32 1.0, %v4601
  %v4603 = vrcp.pop %v4599
  %v4604 = vmul.f32 1.0, %v4603
  %v4605 = vrcp.pop %v4600
  %v4606 = vmul.f32 1.0, %v4605
  %v4607 = vtanh.pop %v4588
  %v4608 = vmul.f32 %v4604, %v4302
  %v4609 = vmul.f32 %v4602, %v4607
  %v4610 = vadd.f32 %v4608, %v4609
  %v4611 = vtanh.pop %v4610
  %v4612 = vmul.f32 %v4606, %v4611
  %v4613 = vpack.c.bf16 %v4612, %v4612
  %4614 = vst [vmem:[%s4 + $0x8] sm:$0xf] %v4613
  %v4615 = vld [vmem:[#allocation2 + $0x60] sm:$0xff]
  %v4616 = vld [vmem:[#allocation2 + $0x68] sm:$0xff]
  %v4617 = vld [vmem:[#allocation2 + $0x70] sm:$0xff]
  %v4618 = vld [vmem:[#allocation2 + $0x78] sm:$0xff]
  %v4619 = vld [vmem:[%s3694] sm:$0xff]
  %v4620 = vld [vmem:[%s3694 + $0x8] sm:$0xff]
  %v4621 = vld [vmem:[%s3694 + $0x10] sm:$0xff]
  %v4622 = vld [vmem:[%s3694 + $0x18] sm:$0xff]
  %v4623 = vld [vmem:[%s3694 + $0x20] sm:$0xff]
  %v4624 = vld [vmem:[%s3694 + $0x28] sm:$0xff]
  %v4625 = vld [vmem:[%s3694 + $0x30] sm:$0xff]
  %v4626 = vld [vmem:[%s3694 + $0x38] sm:$0xff]
  %v4627 = vld [vmem:[%s3694 + $0x40] sm:$0xff]
  %v4628 = vld [vmem:[%s3694 + $0x48] sm:$0xff]
  %v4629 = vld [vmem:[%s3694 + $0x50] sm:$0xff]
  %v4630 = vld [vmem:[%s3694 + $0x58] sm:$0xff]
  %v4631 = vld [vmem:[%s3694 + $0x60] sm:$0xff]
  %v4632 = vld [vmem:[%s3694 + $0x68] sm:$0xff]
  %v4633 = vld [vmem:[%s3694 + $0x70] sm:$0xff]
  %v4634 = vld [vmem:[%s3694 + $0x78] sm:$0xff]
  %v4635 = vld [vmem:[%s3694 + $0x80] sm:$0xff]
  %v4636 = vld [vmem:[%s3694 + $0x88] sm:$0xff]
  %v4637 = vld [vmem:[%s3694 + $0x90] sm:$0xff]
  %v4638 = vld [vmem:[%s3694 + $0x98] sm:$0xff]
  %v4639 = vld [vmem:[%s3694 + $0xa0] sm:$0xff]
  %v4640 = vld [vmem:[%s3694 + $0xa8] sm:$0xff]
  %v4641 = vld [vmem:[%s3694 + $0xb0] sm:$0xff]
  %v4642 = vld [vmem:[%s3694 + $0xb8] sm:$0xff]
  %v4643 = vld [vmem:[%s3694 + $0xc0] sm:$0xff]
  %v4644 = vld [vmem:[%s3694 + $0xc8] sm:$0xff]
  %v4645 = vld [vmem:[%s3694 + $0xd0] sm:$0xff]
  %v4646 = vld [vmem:[%s3694 + $0xd8] sm:$0xff]
  %v4647 = vld [vmem:[%s3694 + $0xe0] sm:$0xff]
  %v4648 = vld [vmem:[%s3694 + $0xe8] sm:$0xff]
  %v4649 = vld [vmem:[%s3694 + $0xf0] sm:$0xff]
  %v4650 = vld [vmem:[%s3694 + $0xf8] sm:$0xff]
  %v4683 = vunpack.c.l.b16 %v4619
  %v4684 = vunpack.c.h.b16 %v4619
  %v4685 = vunpack.c.l.b16 %v4620
  %v4686 = vunpack.c.h.b16 %v4620
  %v4687 = vunpack.c.l.b16 %v4621
  %v4688 = vunpack.c.h.b16 %v4621
  %v4689 = vunpack.c.l.b16 %v4622
  %v4690 = vunpack.c.h.b16 %v4622
  %v4691 = vunpack.c.l.b16 %v4623
  %v4692 = vunpack.c.h.b16 %v4623
  %v4693 = vunpack.c.l.b16 %v4624
  %v4694 = vunpack.c.h.b16 %v4624
  %v4695 = vunpack.c.l.b16 %v4625
  %v4696 = vunpack.c.h.b16 %v4625
  %v4697 = vunpack.c.l.b16 %v4626
  %v4698 = vunpack.c.h.b16 %v4626
  %v4699 = vunpack.c.l.b16 %v4627
  %v4700 = vunpack.c.h.b16 %v4627
  %v4701 = vunpack.c.l.b16 %v4628
  %v4702 = vunpack.c.h.b16 %v4628
  %v4703 = vunpack.c.l.b16 %v4629
  %v4704 = vunpack.c.h.b16 %v4629
  %v4705 = vunpack.c.l.b16 %v4630
  %v4706 = vunpack.c.h.b16 %v4630
  %v4707 = vunpack.c.l.b16 %v4631
  %v4708 = vunpack.c.h.b16 %v4631
  %v4709 = vunpack.c.l.b16 %v4632
  %v4710 = vunpack.c.h.b16 %v4632
  %v4711 = vunpack.c.l.b16 %v4633
  %v4712 = vunpack.c.h.b16 %v4633
  %v4713 = vunpack.c.l.b16 %v4634
  %v4714 = vunpack.c.h.b16 %v4634
  %v4715 = vunpack.c.l.b16 %v4635
  %v4716 = vunpack.c.h.b16 %v4635
  %v4717 = vunpack.c.l.b16 %v4636
  %v4718 = vunpack.c.h.b16 %v4636
  %v4719 = vunpack.c.l.b16 %v4637
  %v4720 = vunpack.c.h.b16 %v4637
  %v4721 = vunpack.c.l.b16 %v4638
  %v4722 = vunpack.c.h.b16 %v4638
  %v4723 = vunpack.c.l.b16 %v4639
  %v4724 = vunpack.c.h.b16 %v4639
  %v4725 = vunpack.c.l.b16 %v4640
  %v4726 = vunpack.c.h.b16 %v4640
  %v4727 = vunpack.c.l.b16 %v4641
  %v4728 = vunpack.c.h.b16 %v4641
  %v4729 = vunpack.c.l.b16 %v4642
  %v4730 = vunpack.c.h.b16 %v4642
  %v4731 = vunpack.c.l.b16 %v4643
  %v4732 = vunpack.c.h.b16 %v4643
  %v4733 = vunpack.c.l.b16 %v4644
  %v4734 = vunpack.c.h.b16 %v4644
  %v4735 = vunpack.c.l.b16 %v4645
  %v4736 = vunpack.c.h.b16 %v4645
  %v4737 = vunpack.c.l.b16 %v4646
  %v4738 = vunpack.c.h.b16 %v4646
  %v4739 = vunpack.c.l.b16 %v4647
  %v4740 = vunpack.c.h.b16 %v4647
  %v4741 = vunpack.c.l.b16 %v4648
  %v4742 = vunpack.c.h.b16 %v4648
  %v4743 = vunpack.c.l.b16 %v4649
  %v4744 = vunpack.c.h.b16 %v4649
  %v4745 = vunpack.c.l.b16 %v4650
  %v4746 = vunpack.c.h.b16 %v4650
  %v4747 = vpack.c.b16 %v4687, %v4683
  %v4748 = vpack.c.b16 %v4688, %v4684
  %v4749 = vpack.c.b16 %v4689, %v4685
  %v4750 = vpack.c.b16 %v4690, %v4686
  %v4751 = vpack.c.b16 %v4695, %v4691
  %v4752 = vpack.c.b16 %v4696, %v4692
  %v4753 = vpack.c.b16 %v4697, %v4693
  %v4754 = vpack.c.b16 %v4698, %v4694
  %v4755 = vpack.c.b16 %v4703, %v4699
  %v4756 = vpack.c.b16 %v4704, %v4700
  %v4757 = vpack.c.b16 %v4705, %v4701
  %v4758 = vpack.c.b16 %v4706, %v4702
  %v4759 = vpack.c.b16 %v4711, %v4707
  %v4760 = vpack.c.b16 %v4712, %v4708
  %v4761 = vpack.c.b16 %v4713, %v4709
  %v4762 = vpack.c.b16 %v4714, %v4710
  %v4763 = vpack.c.b16 %v4719, %v4715
  %v4764 = vpack.c.b16 %v4720, %v4716
  %v4765 = vpack.c.b16 %v4721, %v4717
  %v4766 = vpack.c.b16 %v4722, %v4718
  %v4767 = vpack.c.b16 %v4727, %v4723
  %v4768 = vpack.c.b16 %v4728, %v4724
  %v4769 = vpack.c.b16 %v4729, %v4725
  %v4770 = vpack.c.b16 %v4730, %v4726
  %v4771 = vpack.c.b16 %v4735, %v4731
  %v4772 = vpack.c.b16 %v4736, %v4732
  %v4773 = vpack.c.b16 %v4737, %v4733
  %v4774 = vpack.c.b16 %v4738, %v4734
  %v4775 = vpack.c.b16 %v4743, %v4739
  %v4776 = vpack.c.b16 %v4744, %v4740
  %v4777 = vpack.c.b16 %v4745, %v4741
  %v4778 = vpack.c.b16 %v4746, %v4742
  %4811 = vmatprep.subr.bf16.mxu0 %v4748
  %4812 = vmatpush1.bf16.msra.mxu0 %v4747
  %4813 = vmatprep.subr.bf16.mxu0 %v4752
  %4814 = vmatpush1.bf16.msra.mxu0 %v4751
  %4815 = vmatprep.subr.bf16.mxu0 %v4756
  %4816 = vmatpush1.bf16.msra.mxu0 %v4755
  %4817 = vmatprep.subr.bf16.mxu0 %v4760
  %4818 = vmatpush1.bf16.msra.mxu0 %v4759
  %4819 = vmatprep.subr.bf16.mxu0 %v4764
  %4820 = vmatpush1.bf16.msra.mxu0 %v4763
  %4821 = vmatprep.subr.bf16.mxu0 %v4768
  %4822 = vmatpush1.bf16.msra.mxu0 %v4767
  %4823 = vmatprep.subr.bf16.mxu0 %v4772
  %4824 = vmatpush1.bf16.msra.mxu0 %v4771
  %4825 = vmatprep.subr.bf16.mxu0 %v4776
  %4826 = vmatpush1.bf16.msra.mxu0 %v4775
  %4827 = vmatprep.subr.bf16.mxu0 0
  %4828 = vmatpush1.bf16.msra.mxu0 0
  %4829 = vmatprep.subr.bf16.mxu0 0
  %4830 = vmatpush1.bf16.msra.mxu0 0
  %4831 = vmatprep.subr.bf16.mxu0 0
  %4832 = vmatpush1.bf16.msra.mxu0 0
  %4833 = vmatprep.subr.bf16.mxu0 0
  %4834 = vmatpush1.bf16.msra.mxu0 0
  %4835 = vmatprep.subr.bf16.mxu0 0
  %4836 = vmatpush1.bf16.msra.mxu0 0
  %4837 = vmatprep.subr.bf16.mxu0 0
  %4838 = vmatpush1.bf16.msra.mxu0 0
  %4839 = vmatprep.subr.bf16.mxu0 0
  %4840 = vmatpush1.bf16.msra.mxu0 0
  %4841 = vmatprep.subr.bf16.mxu0 0
  %4842 = vmatpush1.bf16.msra.mxu0 0
  %4843 = vmatprep.mubr.bf16.mxu0 0
  %4844 = vmatmul.mubr.bf16.gmra.mrb[0].mxu0 %v4613
  %v4845 = vpop.f32.mrb[0].mxu0
  %v4846 = vadd.f32 0.0, %v4845
  %v4847 = vpop.f32.mrb[0].mxu0
  %v4848 = vadd.f32 0.0, %v4847
  %v4849 = vpop.f32.mrb[0].mxu0
  %v4850 = vpop.f32.mrb[0].mxu0
  %4851 = vdwg.mxu0
  %4852 = vmatprep.subr.bf16.mxu0 %v4750
  %4853 = vmatpush1.bf16.msra.mxu0 %v4749
  %4854 = vmatprep.subr.bf16.mxu0 %v4754
  %4855 = vmatpush1.bf16.msra.mxu0 %v4753
  %4856 = vmatprep.subr.bf16.mxu0 %v4758
  %4857 = vmatpush1.bf16.msra.mxu0 %v4757
  %4858 = vmatprep.subr.bf16.mxu0 %v4762
  %4859 = vmatpush1.bf16.msra.mxu0 %v4761
  %4860 = vmatprep.subr.bf16.mxu0 %v4766
  %4861 = vmatpush1.bf16.msra.mxu0 %v4765
  %4862 = vmatprep.subr.bf16.mxu0 %v4770
  %4863 = vmatpush1.bf16.msra.mxu0 %v4769
  %4864 = vmatprep.subr.bf16.mxu0 %v4774
  %4865 = vmatpush1.bf16.msra.mxu0 %v4773
  %4866 = vmatprep.subr.bf16.mxu0 %v4778
  %4867 = vmatpush1.bf16.msra.mxu0 %v4777
  %4868 = vmatprep.subr.bf16.mxu0 0
  %4869 = vmatpush1.bf16.msra.mxu0 0
  %4870 = vmatprep.subr.bf16.mxu0 0
  %4871 = vmatpush1.bf16.msra.mxu0 0
  %4872 = vmatprep.subr.bf16.mxu0 0
  %4873 = vmatpush1.bf16.msra.mxu0 0
  %4874 = vmatprep.subr.bf16.mxu0 0
  %4875 = vmatpush1.bf16.msra.mxu0 0
  %4876 = vmatprep.subr.bf16.mxu0 0
  %4877 = vmatpush1.bf16.msra.mxu0 0
  %4878 = vmatprep.subr.bf16.mxu0 0
  %4879 = vmatpush1.bf16.msra.mxu0 0
  %4880 = vmatprep.subr.bf16.mxu0 0
  %4881 = vmatpush1.bf16.msra.mxu0 0
  %4882 = vmatprep.subr.bf16.mxu0 0
  %4883 = vmatpush1.bf16.msra.mxu0 0
  %4884 = vmatprep.mubr.bf16.mxu0 0
  %4885 = vmatmul.mubr.bf16.gmra.mrb[0].mxu0 %v4613
  %v4886 = vpop.f32.mrb[0].mxu0
  %v4887 = vadd.f32 0.0, %v4886
  %v4888 = vpop.f32.mrb[0].mxu0
  %v4889 = vadd.f32 0.0, %v4888
  %v4890 = vpop.f32.mrb[0].mxu0
  %v4891 = vpop.f32.mrb[0].mxu0
  %4892 = vdwg.mxu0
  %v4893 = vadd.f32 %v4615, %v4846
  %v4894 = vadd.f32 %v4616, %v4848
  %v4895 = vadd.f32 %v4617, %v4887
  %v4896 = vadd.f32 %v4618, %v4889
  %v4897 = vxor.u32 %v4893, 2147483648
  %v4898 = vxor.u32 %v4894, 2147483648
  %v4899 = vxor.u32 %v4895, 2147483648
  %v4900 = vmul.f32 %v4897, 1.442695
  %v4901 = vpow.pop %v4900
  %v4902 = vmul.f32 %v4898, 1.442695
  %v4903 = vpow.pop %v4902
  %v4904 = vmul.f32 %v4899, 1.442695
  %v4905 = vpow.pop %v4904
  %v4906 = vadd.f32 %v4901, 1.0
  %v4907 = vadd.f32 %v4903, 1.0
  %v4908 = vadd.f32 %v4905, 1.0
  %v4909 = vrcp.pop %v4906
  %v4910 = vmul.f32 1.0, %v4909
  %v4911 = vrcp.pop %v4907
  %v4912 = vmul.f32 1.0, %v4911
  %v4913 = vrcp.pop %v4908
  %v4914 = vmul.f32 1.0, %v4913
  %v4915 = vtanh.pop %v4896
  %v4916 = vmul.f32 %v4912, %v4610
  %v4917 = vmul.f32 %v4910, %v4915
  %v4918 = vadd.f32 %v4916, %v4917
  %v4919 = vtanh.pop %v4918
  %v4920 = vmul.f32 %v4914, %v4919
  %v4921 = vpack.c.bf16 %v4920, %v4920
  %4922 = vst [vmem:[%s4 + $0xc] sm:$0xf] %v4921
  %v4923 = vld [vmem:[#allocation2 + $0x80] sm:$0xff]
  %v4924 = vld [vmem:[#allocation2 + $0x88] sm:$0xff]
  %v4925 = vld [vmem:[#allocation2 + $0x90] sm:$0xff]
  %v4926 = vld [vmem:[#allocation2 + $0x98] sm:$0xff]
  %v4927 = vld [vmem:[%s3694] sm:$0xff]
  %v4928 = vld [vmem:[%s3694 + $0x8] sm:$0xff]
  %v4929 = vld [vmem:[%s3694 + $0x10] sm:$0xff]
  %v4930 = vld [vmem:[%s3694 + $0x18] sm:$0xff]
  %v4931 = vld [vmem:[%s3694 + $0x20] sm:$0xff]
  %v4932 = vld [vmem:[%s3694 + $0x28] sm:$0xff]
  %v4933 = vld [vmem:[%s3694 + $0x30] sm:$0xff]
  %v4934 = vld [vmem:[%s3694 + $0x38] sm:$0xff]
  %v4935 = vld [vmem:[%s3694 + $0x40] sm:$0xff]
  %v4936 = vld [vmem:[%s3694 + $0x48] sm:$0xff]
  %v4937 = vld [vmem:[%s3694 + $0x50] sm:$0xff]
  %v4938 = vld [vmem:[%s3694 + $0x58] sm:$0xff]
  %v4939 = vld [vmem:[%s3694 + $0x60] sm:$0xff]
  %v4940 = vld [vmem:[%s3694 + $0x68] sm:$0xff]
  %v4941 = vld [vmem:[%s3694 + $0x70] sm:$0xff]
  %v4942 = vld [vmem:[%s3694 + $0x78] sm:$0xff]
  %v4943 = vld [vmem:[%s3694 + $0x80] sm:$0xff]
  %v4944 = vld [vmem:[%s3694 + $0x88] sm:$0xff]
  %v4945 = vld [vmem:[%s3694 + $0x90] sm:$0xff]
  %v4946 = vld [vmem:[%s3694 + $0x98] sm:$0xff]
  %v4947 = vld [vmem:[%s3694 + $0xa0] sm:$0xff]
  %v4948 = vld [vmem:[%s3694 + $0xa8] sm:$0xff]
  %v4949 = vld [vmem:[%s3694 + $0xb0] sm:$0xff]
  %v4950 = vld [vmem:[%s3694 + $0xb8] sm:$0xff]
  %v4951 = vld [vmem:[%s3694 + $0xc0] sm:$0xff]
  %v4952 = vld [vmem:[%s3694 + $0xc8] sm:$0xff]
  %v4953 = vld [vmem:[%s3694 + $0xd0] sm:$0xff]
  %v4954 = vld [vmem:[%s3694 + $0xd8] sm:$0xff]
  %v4955 = vld [vmem:[%s3694 + $0xe0] sm:$0xff]
  %v4956 = vld [vmem:[%s3694 + $0xe8] sm:$0xff]
  %v4957 = vld [vmem:[%s3694 + $0xf0] sm:$0xff]
  %v4958 = vld [vmem:[%s3694 + $0xf8] sm:$0xff]
  %v4991 = vunpack.c.l.b16 %v4927
  %v4992 = vunpack.c.h.b16 %v4927
  %v4993 = vunpack.c.l.b16 %v4928
  %v4994 = vunpack.c.h.b16 %v4928
  %v4995 = vunpack.c.l.b16 %v4929
  %v4996 = vunpack.c.h.b16 %v4929
  %v4997 = vunpack.c.l.b16 %v4930
  %v4998 = vunpack.c.h.b16 %v4930
  %v4999 = vunpack.c.l.b16 %v4931
  %v5000 = vunpack.c.h.b16 %v4931
  %v5001 = vunpack.c.l.b16 %v4932
  %v5002 = vunpack.c.h.b16 %v4932
  %v5003 = vunpack.c.l.b16 %v4933
  %v5004 = vunpack.c.h.b16 %v4933
  %v5005 = vunpack.c.l.b16 %v4934
  %v5006 = vunpack.c.h.b16 %v4934
  %v5007 = vunpack.c.l.b16 %v4935
  %v5008 = vunpack.c.h.b16 %v4935
  %v5009 = vunpack.c.l.b16 %v4936
  %v5010 = vunpack.c.h.b16 %v4936
  %v5011 = vunpack.c.l.b16 %v4937
  %v5012 = vunpack.c.h.b16 %v4937
  %v5013 = vunpack.c.l.b16 %v4938
  %v5014 = vunpack.c.h.b16 %v4938
  %v5015 = vunpack.c.l.b16 %v4939
  %v5016 = vunpack.c.h.b16 %v4939
  %v5017 = vunpack.c.l.b16 %v4940
  %v5018 = vunpack.c.h.b16 %v4940
  %v5019 = vunpack.c.l.b16 %v4941
  %v5020 = vunpack.c.h.b16 %v4941
  %v5021 = vunpack.c.l.b16 %v4942
  %v5022 = vunpack.c.h.b16 %v4942
  %v5023 = vunpack.c.l.b16 %v4943
  %v5024 = vunpack.c.h.b16 %v4943
  %v5025 = vunpack.c.l.b16 %v4944
  %v5026 = vunpack.c.h.b16 %v4944
  %v5027 = vunpack.c.l.b16 %v4945
  %v5028 = vunpack.c.h.b16 %v4945
  %v5029 = vunpack.c.l.b16 %v4946
  %v5030 = vunpack.c.h.b16 %v4946
  %v5031 = vunpack.c.l.b16 %v4947
  %v5032 = vunpack.c.h.b16 %v4947
  %v5033 = vunpack.c.l.b16 %v4948
  %v5034 = vunpack.c.h.b16 %v4948
  %v5035 = vunpack.c.l.b16 %v4949
  %v5036 = vunpack.c.h.b16 %v4949
  %v5037 = vunpack.c.l.b16 %v4950
  %v5038 = vunpack.c.h.b16 %v4950
  %v5039 = vunpack.c.l.b16 %v4951
  %v5040 = vunpack.c.h.b16 %v4951
  %v5041 = vunpack.c.l.b16 %v4952
  %v5042 = vunpack.c.h.b16 %v4952
  %v5043 = vunpack.c.l.b16 %v4953
  %v5044 = vunpack.c.h.b16 %v4953
  %v5045 = vunpack.c.l.b16 %v4954
  %v5046 = vunpack.c.h.b16 %v4954
  %v5047 = vunpack.c.l.b16 %v4955
  %v5048 = vunpack.c.h.b16 %v4955
  %v5049 = vunpack.c.l.b16 %v4956
  %v5050 = vunpack.c.h.b16 %v4956
  %v5051 = vunpack.c.l.b16 %v4957
  %v5052 = vunpack.c.h.b16 %v4957
  %v5053 = vunpack.c.l.b16 %v4958
  %v5054 = vunpack.c.h.b16 %v4958
  %v5055 = vpack.c.b16 %v4995, %v4991
  %v5056 = vpack.c.b16 %v4996, %v4992
  %v5057 = vpack.c.b16 %v4997, %v4993
  %v5058 = vpack.c.b16 %v4998, %v4994
  %v5059 = vpack.c.b16 %v5003, %v4999
  %v5060 = vpack.c.b16 %v5004, %v5000
  %v5061 = vpack.c.b16 %v5005, %v5001
  %v5062 = vpack.c.b16 %v5006, %v5002
  %v5063 = vpack.c.b16 %v5011, %v5007
  %v5064 = vpack.c.b16 %v5012, %v5008
  %v5065 = vpack.c.b16 %v5013, %v5009
  %v5066 = vpack.c.b16 %v5014, %v5010
  %v5067 = vpack.c.b16 %v5019, %v5015
  %v5068 = vpack.c.b16 %v5020, %v5016
  %v5069 = vpack.c.b16 %v5021, %v5017
  %v5070 = vpack.c.b16 %v5022, %v5018
  %v5071 = vpack.c.b16 %v5027, %v5023
  %v5072 = vpack.c.b16 %v5028, %v5024
  %v5073 = vpack.c.b16 %v5029, %v5025
  %v5074 = vpack.c.b16 %v5030, %v5026
  %v5075 = vpack.c.b16 %v5035, %v5031
  %v5076 = vpack.c.b16 %v5036, %v5032
  %v5077 = vpack.c.b16 %v5037, %v5033
  %v5078 = vpack.c.b16 %v5038, %v5034
  %v5079 = vpack.c.b16 %v5043, %v5039
  %v5080 = vpack.c.b16 %v5044, %v5040
  %v5081 = vpack.c.b16 %v5045, %v5041
  %v5082 = vpack.c.b16 %v5046, %v5042
  %v5083 = vpack.c.b16 %v5051, %v5047
  %v5084 = vpack.c.b16 %v5052, %v5048
  %v5085 = vpack.c.b16 %v5053, %v5049
  %v5086 = vpack.c.b16 %v5054, %v5050
  %5119 = vmatprep.subr.bf16.mxu0 %v5056
  %5120 = vmatpush1.bf16.msra.mxu0 %v5055
  %5121 = vmatprep.subr.bf16.mxu0 %v5060
  %5122 = vmatpush1.bf16.msra.mxu0 %v5059
  %5123 = vmatprep.subr.bf16.mxu0 %v5064
  %5124 = vmatpush1.bf16.msra.mxu0 %v5063
  %5125 = vmatprep.subr.bf16.mxu0 %v5068
  %5126 = vmatpush1.bf16.msra.mxu0 %v5067
  %5127 = vmatprep.subr.bf16.mxu0 %v5072
  %5128 = vmatpush1.bf16.msra.mxu0 %v5071
  %5129 = vmatprep.subr.bf16.mxu0 %v5076
  %5130 = vmatpush1.bf16.msra.mxu0 %v5075
  %5131 = vmatprep.subr.bf16.mxu0 %v5080
  %5132 = vmatpush1.bf16.msra.mxu0 %v5079
  %5133 = vmatprep.subr.bf16.mxu0 %v5084
  %5134 = vmatpush1.bf16.msra.mxu0 %v5083
  %5135 = vmatprep.subr.bf16.mxu0 0
  %5136 = vmatpush1.bf16.msra.mxu0 0
  %5137 = vmatprep.subr.bf16.mxu0 0
  %5138 = vmatpush1.bf16.msra.mxu0 0
  %5139 = vmatprep.subr.bf16.mxu0 0
  %5140 = vmatpush1.bf16.msra.mxu0 0
  %5141 = vmatprep.subr.bf16.mxu0 0
  %5142 = vmatpush1.bf16.msra.mxu0 0
  %5143 = vmatprep.subr.bf16.mxu0 0
  %5144 = vmatpush1.bf16.msra.mxu0 0
  %5145 = vmatprep.subr.bf16.mxu0 0
  %5146 = vmatpush1.bf16.msra.mxu0 0
  %5147 = vmatprep.subr.bf16.mxu0 0
  %5148 = vmatpush1.bf16.msra.mxu0 0
  %5149 = vmatprep.subr.bf16.mxu0 0
  %5150 = vmatpush1.bf16.msra.mxu0 0
  %5151 = vmatprep.mubr.bf16.mxu0 0
  %5152 = vmatmul.mubr.bf16.gmra.mrb[0].mxu0 %v4921
  %v5153 = vpop.f32.mrb[0].mxu0
  %v5154 = vadd.f32 0.0, %v5153
  %v5155 = vpop.f32.mrb[0].mxu0
  %v5156 = vadd.f32 0.0, %v5155
  %v5157 = vpop.f32.mrb[0].mxu0
  %v5158 = vpop.f32.mrb[0].mxu0
  %5159 = vdwg.mxu0
  %5160 = vmatprep.subr.bf16.mxu0 %v5058
  %5161 = vmatpush1.bf16.msra.mxu0 %v5057
  %5162 = vmatprep.subr.bf16.mxu0 %v5062
  %5163 = vmatpush1.bf16.msra.mxu0 %v5061
  %5164 = vmatprep.subr.bf16.mxu0 %v5066
  %5165 = vmatpush1.bf16.msra.mxu0 %v5065
  %5166 = vmatprep.subr.bf16.mxu0 %v5070
  %5167 = vmatpush1.bf16.msra.mxu0 %v5069
  %5168 = vmatprep.subr.bf16.mxu0 %v5074
  %5169 = vmatpush1.bf16.msra.mxu0 %v5073
  %5170 = vmatprep.subr.bf16.mxu0 %v5078
  %5171 = vmatpush1.bf16.msra.mxu0 %v5077
  %5172 = vmatprep.subr.bf16.mxu0 %v5082
  %5173 = vmatpush1.bf16.msra.mxu0 %v5081
  %5174 = vmatprep.subr.bf16.mxu0 %v5086
  %5175 = vmatpush1.bf16.msra.mxu0 %v5085
  %5176 = vmatprep.subr.bf16.mxu0 0
  %5177 = vmatpush1.bf16.msra.mxu0 0
  %5178 = vmatprep.subr.bf16.mxu0 0
  %5179 = vmatpush1.bf16.msra.mxu0 0
  %5180 = vmatprep.subr.bf16.mxu0 0
  %5181 = vmatpush1.bf16.msra.mxu0 0
  %5182 = vmatprep.subr.bf16.mxu0 0
  %5183 = vmatpush1.bf16.msra.mxu0 0
  %5184 = vmatprep.subr.bf16.mxu0 0
  %5185 = vmatpush1.bf16.msra.mxu0 0
  %5186 = vmatprep.subr.bf16.mxu0 0
  %5187 = vmatpush1.bf16.msra.mxu0 0
  %5188 = vmatprep.subr.bf16.mxu0 0
  %5189 = vmatpush1.bf16.msra.mxu0 0
  %5190 = vmatprep.subr.bf16.mxu0 0
  %5191 = vmatpush1.bf16.msra.mxu0 0
  %5192 = vmatprep.mubr.bf16.mxu0 0
  %5193 = vmatmul.mubr.bf16.gmra.mrb[0].mxu0 %v4921
  %v5194 = vpop.f32.mrb[0].mxu0
  %v5195 = vadd.f32 0.0, %v5194
  %v5196 = vpop.f32.mrb[0].mxu0
  %v5197 = vadd.f32 0.0, %v5196
  %v5198 = vpop.f32.mrb[0].mxu0
  %v5199 = vpop.f32.mrb[0].mxu0
  %5200 = vdwg.mxu0
  %v5201 = vadd.f32 %v4923, %v5154
  %v5202 = vadd.f32 %v4924, %v5156
  %v5203 = vadd.f32 %v4925, %v5195
  %v5204 = vadd.f32 %v4926, %v5197
  %v5205 = vxor.u32 %v5201, 2147483648
  %v5206 = vxor.u32 %v5202, 2147483648
  %v5207 = vxor.u32 %v5203, 2147483648
  %v5208 = vmul.f32 %v5205, 1.442695
  %v5209 = vpow.pop %v5208
  %v5210 = vmul.f32 %v5206, 1.442695
  %v5211 = vpow.pop %v5210
  %v5212 = vmul.f32 %v5207, 1.442695
  %v5213 = vpow.pop %v5212
  %v5214 = vadd.f32 %v5209, 1.0
  %v5215 = vadd.f32 %v5211, 1.0
  %v5216 = vadd.f32 %v5213, 1.0
  %v5217 = vrcp.pop %v5214
  %v5218 = vmul.f32 1.0, %v5217
  %v5219 = vrcp.pop %v5215
  %v5220 = vmul.f32 1.0, %v5219
  %v5221 = vrcp.pop %v5216
  %v5222 = vmul.f32 1.0, %v5221
  %v5223 = vtanh.pop %v5204
  %v5224 = vmul.f32 %v5220, %v4918
  %v5225 = vmul.f32 %v5218, %v5223
  %v5226 = vadd.f32 %v5224, %v5225
  %v5227 = vtanh.pop %v5226
  %v5228 = vmul.f32 %v5222, %v5227
  %v5229 = vpack.c.bf16 %v5228, %v5228
  %5230 = vst [vmem:[%s4 + $0x10] sm:$0xf] %v5229
  %v5231 = vld [vmem:[#allocation2 + $0xa0] sm:$0xff]
  %v5232 = vld [vmem:[#allocation2 + $0xa8] sm:$0xff]
  %v5233 = vld [vmem:[#allocation2 + $0xb0] sm:$0xff]
  %v5234 = vld [vmem:[#allocation2 + $0xb8] sm:$0xff]
  %v5235 = vld [vmem:[%s3694] sm:$0xff]
  %v5236 = vld [vmem:[%s3694 + $0x8] sm:$0xff]
  %v5237 = vld [vmem:[%s3694 + $0x10] sm:$0xff]
  %v5238 = vld [vmem:[%s3694 + $0x18] sm:$0xff]
  %v5239 = vld [vmem:[%s3694 + $0x20] sm:$0xff]
  %v5240 = vld [vmem:[%s3694 + $0x28] sm:$0xff]
  %v5241 = vld [vmem:[%s3694 + $0x30] sm:$0xff]
  %v5242 = vld [vmem:[%s3694 + $0x38] sm:$0xff]
  %v5243 = vld [vmem:[%s3694 + $0x40] sm:$0xff]
  %v5244 = vld [vmem:[%s3694 + $0x48] sm:$0xff]
  %v5245 = vld [vmem:[%s3694 + $0x50] sm:$0xff]
  %v5246 = vld [vmem:[%s3694 + $0x58] sm:$0xff]
  %v5247 = vld [vmem:[%s3694 + $0x60] sm:$0xff]
  %v5248 = vld [vmem:[%s3694 + $0x68] sm:$0xff]
  %v5249 = vld [vmem:[%s3694 + $0x70] sm:$0xff]
  %v5250 = vld [vmem:[%s3694 + $0x78] sm:$0xff]
  %v5251 = vld [vmem:[%s3694 + $0x80] sm:$0xff]
  %v5252 = vld [vmem:[%s3694 + $0x88] sm:$0xff]
  %v5253 = vld [vmem:[%s3694 + $0x90] sm:$0xff]
  %v5254 = vld [vmem:[%s3694 + $0x98] sm:$0xff]
  %v5255 = vld [vmem:[%s3694 + $0xa0] sm:$0xff]
  %v5256 = vld [vmem:[%s3694 + $0xa8] sm:$0xff]
  %v5257 = vld [vmem:[%s3694 + $0xb0] sm:$0xff]
  %v5258 = vld [vmem:[%s3694 + $0xb8] sm:$0xff]
  %v5259 = vld [vmem:[%s3694 + $0xc0] sm:$0xff]
  %v5260 = vld [vmem:[%s3694 + $0xc8] sm:$0xff]
  %v5261 = vld [vmem:[%s3694 + $0xd0] sm:$0xff]
  %v5262 = vld [vmem:[%s3694 + $0xd8] sm:$0xff]
  %v5263 = vld [vmem:[%s3694 + $0xe0] sm:$0xff]
  %v5264 = vld [vmem:[%s3694 + $0xe8] sm:$0xff]
  %v5265 = vld [vmem:[%s3694 + $0xf0] sm:$0xff]
  %v5266 = vld [vmem:[%s3694 + $0xf8] sm:$0xff]
  %v5299 = vunpack.c.l.b16 %v5235
  %v5300 = vunpack.c.h.b16 %v5235
  %v5301 = vunpack.c.l.b16 %v5236
  %v5302 = vunpack.c.h.b16 %v5236
  %v5303 = vunpack.c.l.b16 %v5237
  %v5304 = vunpack.c.h.b16 %v5237
  %v5305 = vunpack.c.l.b16 %v5238
  %v5306 = vunpack.c.h.b16 %v5238
  %v5307 = vunpack.c.l.b16 %v5239
  %v5308 = vunpack.c.h.b16 %v5239
  %v5309 = vunpack.c.l.b16 %v5240
  %v5310 = vunpack.c.h.b16 %v5240
  %v5311 = vunpack.c.l.b16 %v5241
  %v5312 = vunpack.c.h.b16 %v5241
  %v5313 = vunpack.c.l.b16 %v5242
  %v5314 = vunpack.c.h.b16 %v5242
  %v5315 = vunpack.c.l.b16 %v5243
  %v5316 = vunpack.c.h.b16 %v5243
  %v5317 = vunpack.c.l.b16 %v5244
  %v5318 = vunpack.c.h.b16 %v5244
  %v5319 = vunpack.c.l.b16 %v5245
  %v5320 = vunpack.c.h.b16 %v5245
  %v5321 = vunpack.c.l.b16 %v5246
  %v5322 = vunpack.c.h.b16 %v5246
  %v5323 = vunpack.c.l.b16 %v5247
  %v5324 = vunpack.c.h.b16 %v5247
  %v5325 = vunpack.c.l.b16 %v5248
  %v5326 = vunpack.c.h.b16 %v5248
  %v5327 = vunpack.c.l.b16 %v5249
  %v5328 = vunpack.c.h.b16 %v5249
  %v5329 = vunpack.c.l.b16 %v5250
  %v5330 = vunpack.c.h.b16 %v5250
  %v5331 = vunpack.c.l.b16 %v5251
  %v5332 = vunpack.c.h.b16 %v5251
  %v5333 = vunpack.c.l.b16 %v5252
  %v5334 = vunpack.c.h.b16 %v5252
  %v5335 = vunpack.c.l.b16 %v5253
  %v5336 = vunpack.c.h.b16 %v5253
  %v5337 = vunpack.c.l.b16 %v5254
  %v5338 = vunpack.c.h.b16 %v5254
  %v5339 = vunpack.c.l.b16 %v5255
  %v5340 = vunpack.c.h.b16 %v5255
  %v5341 = vunpack.c.l.b16 %v5256
  %v5342 = vunpack.c.h.b16 %v5256
  %v5343 = vunpack.c.l.b16 %v5257
  %v5344 = vunpack.c.h.b16 %v5257
  %v5345 = vunpack.c.l.b16 %v5258
  %v5346 = vunpack.c.h.b16 %v5258
  %v5347 = vunpack.c.l.b16 %v5259
  %v5348 = vunpack.c.h.b16 %v5259
  %v5349 = vunpack.c.l.b16 %v5260
  %v5350 = vunpack.c.h.b16 %v5260
  %v5351 = vunpack.c.l.b16 %v5261
  %v5352 = vunpack.c.h.b16 %v5261
  %v5353 = vunpack.c.l.b16 %v5262
  %v5354 = vunpack.c.h.b16 %v5262
  %v5355 = vunpack.c.l.b16 %v5263
  %v5356 = vunpack.c.h.b16 %v5263
  %v5357 = vunpack.c.l.b16 %v5264
  %v5358 = vunpack.c.h.b16 %v5264
  %v5359 = vunpack.c.l.b16 %v5265
  %v5360 = vunpack.c.h.b16 %v5265
  %v5361 = vunpack.c.l.b16 %v5266
  %v5362 = vunpack.c.h.b16 %v5266
  %v5363 = vpack.c.b16 %v5303, %v5299
  %v5364 = vpack.c.b16 %v5304, %v5300
  %v5365 = vpack.c.b16 %v5305, %v5301
  %v5366 = vpack.c.b16 %v5306, %v5302
  %v5367 = vpack.c.b16 %v5311, %v5307
  %v5368 = vpack.c.b16 %v5312, %v5308
  %v5369 = vpack.c.b16 %v5313, %v5309
  %v5370 = vpack.c.b16 %v5314, %v5310
  %v5371 = vpack.c.b16 %v5319, %v5315
  %v5372 = vpack.c.b16 %v5320, %v5316
  %v5373 = vpack.c.b16 %v5321, %v5317
  %v5374 = vpack.c.b16 %v5322, %v5318
  %v5375 = vpack.c.b16 %v5327, %v5323
  %v5376 = vpack.c.b16 %v5328, %v5324
  %v5377 = vpack.c.b16 %v5329, %v5325
  %v5378 = vpack.c.b16 %v5330, %v5326
  %v5379 = vpack.c.b16 %v5335, %v5331
  %v5380 = vpack.c.b16 %v5336, %v5332
  %v5381 = vpack.c.b16 %v5337, %v5333
  %v5382 = vpack.c.b16 %v5338, %v5334
  %v5383 = vpack.c.b16 %v5343, %v5339
  %v5384 = vpack.c.b16 %v5344, %v5340
  %v5385 = vpack.c.b16 %v5345, %v5341
  %v5386 = vpack.c.b16 %v5346, %v5342
  %v5387 = vpack.c.b16 %v5351, %v5347
  %v5388 = vpack.c.b16 %v5352, %v5348
  %v5389 = vpack.c.b16 %v5353, %v5349
  %v5390 = vpack.c.b16 %v5354, %v5350
  %v5391 = vpack.c.b16 %v5359, %v5355
  %v5392 = vpack.c.b16 %v5360, %v5356
  %v5393 = vpack.c.b16 %v5361, %v5357
  %v5394 = vpack.c.b16 %v5362, %v5358
  %5427 = vmatprep.subr.bf16.mxu0 %v5364
  %5428 = vmatpush1.bf16.msra.mxu0 %v5363
  %5429 = vmatprep.subr.bf16.mxu0 %v5368
  %5430 = vmatpush1.bf16.msra.mxu0 %v5367
  %5431 = vmatprep.subr.bf16.mxu0 %v5372
  %5432 = vmatpush1.bf16.msra.mxu0 %v5371
  %5433 = vmatprep.subr.bf16.mxu0 %v5376
  %5434 = vmatpush1.bf16.msra.mxu0 %v5375
  %5435 = vmatprep.subr.bf16.mxu0 %v5380
  %5436 = vmatpush1.bf16.msra.mxu0 %v5379
  %5437 = vmatprep.subr.bf16.mxu0 %v5384
  %5438 = vmatpush1.bf16.msra.mxu0 %v5383
  %5439 = vmatprep.subr.bf16.mxu0 %v5388
  %5440 = vmatpush1.bf16.msra.mxu0 %v5387
  %5441 = vmatprep.subr.bf16.mxu0 %v5392
  %5442 = vmatpush1.bf16.msra.mxu0 %v5391
  %5443 = vmatprep.subr.bf16.mxu0 0
  %5444 = vmatpush1.bf16.msra.mxu0 0
  %5445 = vmatprep.subr.bf16.mxu0 0
  %5446 = vmatpush1.bf16.msra.mxu0 0
  %5447 = vmatprep.subr.bf16.mxu0 0
  %5448 = vmatpush1.bf16.msra.mxu0 0
  %5449 = vmatprep.subr.bf16.mxu0 0
  %5450 = vmatpush1.bf16.msra.mxu0 0
  %5451 = vmatprep.subr.bf16.mxu0 0
  %5452 = vmatpush1.bf16.msra.mxu0 0
  %5453 = vmatprep.subr.bf16.mxu0 0
  %5454 = vmatpush1.bf16.msra.mxu0 0
  %5455 = vmatprep.subr.bf16.mxu0 0
  %5456 = vmatpush1.bf16.msra.mxu0 0
  %5457 = vmatprep.subr.bf16.mxu0 0
  %5458 = vmatpush1.bf16.msra.mxu0 0
  %5459 = vmatprep.mubr.bf16.mxu0 0
  %5460 = vmatmul.mubr.bf16.gmra.mrb[0].mxu0 %v5229
  %v5461 = vpop.f32.mrb[0].mxu0
  %v5462 = vadd.f32 0.0, %v5461
  %v5463 = vpop.f32.mrb[0].mxu0
  %v5464 = vadd.f32 0.0, %v5463
  %v5465 = vpop.f32.mrb[0].mxu0
  %v5466 = vpop.f32.mrb[0].mxu0
  %5467 = vdwg.mxu0
  %5468 = vmatprep.subr.bf16.mxu0 %v5366
  %5469 = vmatpush1.bf16.msra.mxu0 %v5365
  %5470 = vmatprep.subr.bf16.mxu0 %v5370
  %5471 = vmatpush1.bf16.msra.mxu0 %v5369
  %5472 = vmatprep.subr.bf16.mxu0 %v5374
  %5473 = vmatpush1.bf16.msra.mxu0 %v5373
  %5474 = vmatprep.subr.bf16.mxu0 %v5378
  %5475 = vmatpush1.bf16.msra.mxu0 %v5377
  %5476 = vmatprep.subr.bf16.mxu0 %v5382
  %5477 = vmatpush1.bf16.msra.mxu0 %v5381
  %5478 = vmatprep.subr.bf16.mxu0 %v5386
  %5479 = vmatpush1.bf16.msra.mxu0 %v5385
  %5480 = vmatprep.subr.bf16.mxu0 %v5390
  %5481 = vmatpush1.bf16.msra.mxu0 %v5389
  %5482 = vmatprep.subr.bf16.mxu0 %v5394
  %5483 = vmatpush1.bf16.msra.mxu0 %v5393
  %5484 = vmatprep.subr.bf16.mxu0 0
  %5485 = vmatpush1.bf16.msra.mxu0 0
  %5486 = vmatprep.subr.bf16.mxu0 0
  %5487 = vmatpush1.bf16.msra.mxu0 0
  %5488 = vmatprep.subr.bf16.mxu0 0
  %5489 = vmatpush1.bf16.msra.mxu0 0
  %5490 = vmatprep.subr.bf16.mxu0 0
  %5491 = vmatpush1.bf16.msra.mxu0 0
  %5492 = vmatprep.subr.bf16.mxu0 0
  %5493 = vmatpush1.bf16.msra.mxu0 0
  %5494 = vmatprep.subr.bf16.mxu0 0
  %5495 = vmatpush1.bf16.msra.mxu0 0
  %5496 = vmatprep.subr.bf16.mxu0 0
  %5497 = vmatpush1.bf16.msra.mxu0 0
  %5498 = vmatprep.subr.bf16.mxu0 0
  %5499 = vmatpush1.bf16.msra.mxu0 0
  %5500 = vmatprep.mubr.bf16.mxu0 0
  %5501 = vmatmul.mubr.bf16.gmra.mrb[0].mxu0 %v5229
  %v5502 = vpop.f32.mrb[0].mxu0
  %v5503 = vadd.f32 0.0, %v5502
  %v5504 = vpop.f32.mrb[0].mxu0
  %v5505 = vadd.f32 0.0, %v5504
  %v5506 = vpop.f32.mrb[0].mxu0
  %v5507 = vpop.f32.mrb[0].mxu0
  %5508 = vdwg.mxu0
  %v5509 = vadd.f32 %v5231, %v5462
  %v5510 = vadd.f32 %v5232, %v5464
  %v5511 = vadd.f32 %v5233, %v5503
  %v5512 = vadd.f32 %v5234, %v5505
  %v5513 = vxor.u32 %v5509, 2147483648
  %v5514 = vxor.u32 %v5510, 2147483648
  %v5515 = vxor.u32 %v5511, 2147483648
  %v5516 = vmul.f32 %v5513, 1.442695
  %v5517 = vpow.pop %v5516
  %v5518 = vmul.f32 %v5514, 1.442695
  %v5519 = vpow.pop %v5518
  %v5520 = vmul.f32 %v5515, 1.442695
  %v5521 = vpow.pop %v5520
  %v5522 = vadd.f32 %v5517, 1.0
  %v5523 = vadd.f32 %v5519, 1.0
  %v5524 = vadd.f32 %v5521, 1.0
  %v5525 = vrcp.pop %v5522
  %v5526 = vmul.f32 1.0, %v5525
  %v5527 = vrcp.pop %v5523
  %v5528 = vmul.f32 1.0, %v5527
  %v5529 = vrcp.pop %v5524
  %v5530 = vmul.f32 1.0, %v5529
  %v5531 = vtanh.pop %v5512
  %v5532 = vmul.f32 %v5528, %v5226
  %v5533 = vmul.f32 %v5526, %v5531
  %v5534 = vadd.f32 %v5532, %v5533
  %v5535 = vtanh.pop %v5534
  %v5536 = vmul.f32 %v5530, %v5535
  %v5537 = vpack.c.bf16 %v5536, %v5536
  %5538 = vst [vmem:[%s4 + $0x14] sm:$0xf] %v5537
  %v5539 = vld [vmem:[#allocation2 + $0xc0] sm:$0xff]
  %v5540 = vld [vmem:[#allocation2 + $0xc8] sm:$0xff]
  %v5541 = vld [vmem:[#allocation2 + $0xd0] sm:$0xff]
  %v5542 = vld [vmem:[#allocation2 + $0xd8] sm:$0xff]
  %v5543 = vld [vmem:[%s3694] sm:$0xff]
  %v5544 = vld [vmem:[%s3694 + $0x8] sm:$0xff]
  %v5545 = vld [vmem:[%s3694 + $0x10] sm:$0xff]
  %v5546 = vld [vmem:[%s3694 + $0x18] sm:$0xff]
  %v5547 = vld [vmem:[%s3694 + $0x20] sm:$0xff]
  %v5548 = vld [vmem:[%s3694 + $0x28] sm:$0xff]
  %v5549 = vld [vmem:[%s3694 + $0x30] sm:$0xff]
  %v5550 = vld [vmem:[%s3694 + $0x38] sm:$0xff]
  %v5551 = vld [vmem:[%s3694 + $0x40] sm:$0xff]
  %v5552 = vld [vmem:[%s3694 + $0x48] sm:$0xff]
  %v5553 = vld [vmem:[%s3694 + $0x50] sm:$0xff]
  %v5554 = vld [vmem:[%s3694 + $0x58] sm:$0xff]
  %v5555 = vld [vmem:[%s3694 + $0x60] sm:$0xff]
  %v5556 = vld [vmem:[%s3694 + $0x68] sm:$0xff]
  %v5557 = vld [vmem:[%s3694 + $0x70] sm:$0xff]
  %v5558 = vld [vmem:[%s3694 + $0x78] sm:$0xff]
  %v5559 = vld [vmem:[%s3694 + $0x80] sm:$0xff]
  %v5560 = vld [vmem:[%s3694 + $0x88] sm:$0xff]
  %v5561 = vld [vmem:[%s3694 + $0x90] sm:$0xff]
  %v5562 = vld [vmem:[%s3694 + $0x98] sm:$0xff]
  %v5563 = vld [vmem:[%s3694 + $0xa0] sm:$0xff]
  %v5564 = vld [vmem:[%s3694 + $0xa8] sm:$0xff]
  %v5565 = vld [vmem:[%s3694 + $0xb0] sm:$0xff]
  %v5566 = vld [vmem:[%s3694 + $0xb8] sm:$0xff]
  %v5567 = vld [vmem:[%s3694 + $0xc0] sm:$0xff]
  %v5568 = vld [vmem:[%s3694 + $0xc8] sm:$0xff]
  %v5569 = vld [vmem:[%s3694 + $0xd0] sm:$0xff]
  %v5570 = vld [vmem:[%s3694 + $0xd8] sm:$0xff]
  %v5571 = vld [vmem:[%s3694 + $0xe0] sm:$0xff]
  %v5572 = vld [vmem:[%s3694 + $0xe8] sm:$0xff]
  %v5573 = vld [vmem:[%s3694 + $0xf0] sm:$0xff]
  %v5574 = vld [vmem:[%s3694 + $0xf8] sm:$0xff]
  %v5607 = vunpack.c.l.b16 %v5543
  %v5608 = vunpack.c.h.b16 %v5543
  %v5609 = vunpack.c.l.b16 %v5544
  %v5610 = vunpack.c.h.b16 %v5544
  %v5611 = vunpack.c.l.b16 %v5545
  %v5612 = vunpack.c.h.b16 %v5545
  %v5613 = vunpack.c.l.b16 %v5546
  %v5614 = vunpack.c.h.b16 %v5546
  %v5615 = vunpack.c.l.b16 %v5547
  %v5616 = vunpack.c.h.b16 %v5547
  %v5617 = vunpack.c.l.b16 %v5548
  %v5618 = vunpack.c.h.b16 %v5548
  %v5619 = vunpack.c.l.b16 %v5549
  %v5620 = vunpack.c.h.b16 %v5549
  %v5621 = vunpack.c.l.b16 %v5550
  %v5622 = vunpack.c.h.b16 %v5550
  %v5623 = vunpack.c.l.b16 %v5551
  %v5624 = vunpack.c.h.b16 %v5551
  %v5625 = vunpack.c.l.b16 %v5552
  %v5626 = vunpack.c.h.b16 %v5552
  %v5627 = vunpack.c.l.b16 %v5553
  %v5628 = vunpack.c.h.b16 %v5553
  %v5629 = vunpack.c.l.b16 %v5554
  %v5630 = vunpack.c.h.b16 %v5554
  %v5631 = vunpack.c.l.b16 %v5555
  %v5632 = vunpack.c.h.b16 %v5555
  %v5633 = vunpack.c.l.b16 %v5556
  %v5634 = vunpack.c.h.b16 %v5556
  %v5635 = vunpack.c.l.b16 %v5557
  %v5636 = vunpack.c.h.b16 %v5557
  %v5637 = vunpack.c.l.b16 %v5558
  %v5638 = vunpack.c.h.b16 %v5558
  %v5639 = vunpack.c.l.b16 %v5559
  %v5640 = vunpack.c.h.b16 %v5559
  %v5641 = vunpack.c.l.b16 %v5560
  %v5642 = vunpack.c.h.b16 %v5560
  %v5643 = vunpack.c.l.b16 %v5561
  %v5644 = vunpack.c.h.b16 %v5561
  %v5645 = vunpack.c.l.b16 %v5562
  %v5646 = vunpack.c.h.b16 %v5562
  %v5647 = vunpack.c.l.b16 %v5563
  %v5648 = vunpack.c.h.b16 %v5563
  %v5649 = vunpack.c.l.b16 %v5564
  %v5650 = vunpack.c.h.b16 %v5564
  %v5651 = vunpack.c.l.b16 %v5565
  %v5652 = vunpack.c.h.b16 %v5565
  %v5653 = vunpack.c.l.b16 %v5566
  %v5654 = vunpack.c.h.b16 %v5566
  %v5655 = vunpack.c.l.b16 %v5567
  %v5656 = vunpack.c.h.b16 %v5567
  %v5657 = vunpack.c.l.b16 %v5568
  %v5658 = vunpack.c.h.b16 %v5568
  %v5659 = vunpack.c.l.b16 %v5569
  %v5660 = vunpack.c.h.b16 %v5569
  %v5661 = vunpack.c.l.b16 %v5570
  %v5662 = vunpack.c.h.b16 %v5570
  %v5663 = vunpack.c.l.b16 %v5571
  %v5664 = vunpack.c.h.b16 %v5571
  %v5665 = vunpack.c.l.b16 %v5572
  %v5666 = vunpack.c.h.b16 %v5572
  %v5667 = vunpack.c.l.b16 %v5573
  %v5668 = vunpack.c.h.b16 %v5573
  %v5669 = vunpack.c.l.b16 %v5574
  %v5670 = vunpack.c.h.b16 %v5574
  %v5671 = vpack.c.b16 %v5611, %v5607
  %v5672 = vpack.c.b16 %v5612, %v5608
  %v5673 = vpack.c.b16 %v5613, %v5609
  %v5674 = vpack.c.b16 %v5614, %v5610
  %v5675 = vpack.c.b16 %v5619, %v5615
  %v5676 = vpack.c.b16 %v5620, %v5616
  %v5677 = vpack.c.b16 %v5621, %v5617
  %v5678 = vpack.c.b16 %v5622, %v5618
  %v5679 = vpack.c.b16 %v5627, %v5623
  %v5680 = vpack.c.b16 %v5628, %v5624
  %v5681 = vpack.c.b16 %v5629, %v5625
  %v5682 = vpack.c.b16 %v5630, %v5626
  %v5683 = vpack.c.b16 %v5635, %v5631
  %v5684 = vpack.c.b16 %v5636, %v5632
  %v5685 = vpack.c.b16 %v5637, %v5633
  %v5686 = vpack.c.b16 %v5638, %v5634
  %v5687 = vpack.c.b16 %v5643, %v5639
  %v5688 = vpack.c.b16 %v5644, %v5640
  %v5689 = vpack.c.b16 %v5645, %v5641
  %v5690 = vpack.c.b16 %v5646, %v5642
  %v5691 = vpack.c.b16 %v5651, %v5647
  %v5692 = vpack.c.b16 %v5652, %v5648
  %v5693 = vpack.c.b16 %v5653, %v5649
  %v5694 = vpack.c.b16 %v5654, %v5650
  %v5695 = vpack.c.b16 %v5659, %v5655
  %v5696 = vpack.c.b16 %v5660, %v5656
  %v5697 = vpack.c.b16 %v5661, %v5657
  %v5698 = vpack.c.b16 %v5662, %v5658
  %v5699 = vpack.c.b16 %v5667, %v5663
  %v5700 = vpack.c.b16 %v5668, %v5664
  %v5701 = vpack.c.b16 %v5669, %v5665
  %v5702 = vpack.c.b16 %v5670, %v5666
  %5735 = vmatprep.subr.bf16.mxu0 %v5672
  %5736 = vmatpush1.bf16.msra.mxu0 %v5671
  %5737 = vmatprep.subr.bf16.mxu0 %v5676
  %5738 = vmatpush1.bf16.msra.mxu0 %v5675
  %5739 = vmatprep.subr.bf16.mxu0 %v5680
  %5740 = vmatpush1.bf16.msra.mxu0 %v5679
  %5741 = vmatprep.subr.bf16.mxu0 %v5684
  %5742 = vmatpush1.bf16.msra.mxu0 %v5683
  %5743 = vmatprep.subr.bf16.mxu0 %v5688
  %5744 = vmatpush1.bf16.msra.mxu0 %v5687
  %5745 = vmatprep.subr.bf16.mxu0 %v5692
  %5746 = vmatpush1.bf16.msra.mxu0 %v5691
  %5747 = vmatprep.subr.bf16.mxu0 %v5696
  %5748 = vmatpush1.bf16.msra.mxu0 %v5695
  %5749 = vmatprep.subr.bf16.mxu0 %v5700
  %5750 = vmatpush1.bf16.msra.mxu0 %v5699
  %5751 = vmatprep.subr.bf16.mxu0 0
  %5752 = vmatpush1.bf16.msra.mxu0 0
  %5753 = vmatprep.subr.bf16.mxu0 0
  %5754 = vmatpush1.bf16.msra.mxu0 0
  %5755 = vmatprep.subr.bf16.mxu0 0
  %5756 = vmatpush1.bf16.msra.mxu0 0
  %5757 = vmatprep.subr.bf16.mxu0 0
  %5758 = vmatpush1.bf16.msra.mxu0 0
  %5759 = vmatprep.subr.bf16.mxu0 0
  %5760 = vmatpush1.bf16.msra.mxu0 0
  %5761 = vmatprep.subr.bf16.mxu0 0
  %5762 = vmatpush1.bf16.msra.mxu0 0
  %5763 = vmatprep.subr.bf16.mxu0 0
  %5764 = vmatpush1.bf16.msra.mxu0 0
  %5765 = vmatprep.subr.bf16.mxu0 0
  %5766 = vmatpush1.bf16.msra.mxu0 0
  %5767 = vmatprep.mubr.bf16.mxu0 0
  %5768 = vmatmul.mubr.bf16.gmra.mrb[0].mxu0 %v5537
  %v5769 = vpop.f32.mrb[0].mxu0
  %v5770 = vadd.f32 0.0, %v5769
  %v5771 = vpop.f32.mrb[0].mxu0
  %v5772 = vadd.f32 0.0, %v5771
  %v5773 = vpop.f32.mrb[0].mxu0
  %v5774 = vpop.f32.mrb[0].mxu0
  %5775 = vdwg.mxu0
  %5776 = vmatprep.subr.bf16.mxu0 %v5674
  %5777 = vmatpush1.bf16.msra.mxu0 %v5673
  %5778 = vmatprep.subr.bf16.mxu0 %v5678
  %5779 = vmatpush1.bf16.msra.mxu0 %v5677
  %5780 = vmatprep.subr.bf16.mxu0 %v5682
  %5781 = vmatpush1.bf16.msra.mxu0 %v5681
  %5782 = vmatprep.subr.bf16.mxu0 %v5686
  %5783 = vmatpush1.bf16.msra.mxu0 %v5685
  %5784 = vmatprep.subr.bf16.mxu0 %v5690
  %5785 = vmatpush1.bf16.msra.mxu0 %v5689
  %5786 = vmatprep.subr.bf16.mxu0 %v5694
  %5787 = vmatpush1.bf16.msra.mxu0 %v5693
  %5788 = vmatprep.subr.bf16.mxu0 %v5698
  %5789 = vmatpush1.bf16.msra.mxu0 %v5697
  %5790 = vmatprep.subr.bf16.mxu0 %v5702
  %5791 = vmatpush1.bf16.msra.mxu0 %v5701
  %5792 = vmatprep.subr.bf16.mxu0 0
  %5793 = vmatpush1.bf16.msra.mxu0 0
  %5794 = vmatprep.subr.bf16.mxu0 0
  %5795 = vmatpush1.bf16.msra.mxu0 0
  %5796 = vmatprep.subr.bf16.mxu0 0
  %5797 = vmatpush1.bf16.msra.mxu0 0
  %5798 = vmatprep.subr.bf16.mxu0 0
  %5799 = vmatpush1.bf16.msra.mxu0 0
  %5800 = vmatprep.subr.bf16.mxu0 0
  %5801 = vmatpush1.bf16.msra.mxu0 0
  %5802 = vmatprep.subr.bf16.mxu0 0
  %5803 = vmatpush1.bf16.msra.mxu0 0
  %5804 = vmatprep.subr.bf16.mxu0 0
  %5805 = vmatpush1.bf16.msra.mxu0 0
  %5806 = vmatprep.subr.bf16.mxu0 0
  %5807 = vmatpush1.bf16.msra.mxu0 0
  %5808 = vmatprep.mubr.bf16.mxu0 0
  %5809 = vmatmul.mubr.bf16.gmra.mrb[0].mxu0 %v5537
  %v5810 = vpop.f32.mrb[0].mxu0
  %v5811 = vadd.f32 0.0, %v5810
  %v5812 = vpop.f32.mrb[0].mxu0
  %v5813 = vadd.f32 0.0, %v5812
  %v5814 = vpop.f32.mrb[0].mxu0
  %v5815 = vpop.f32.mrb[0].mxu0
  %5816 = vdwg.mxu0
  %v5817 = vadd.f32 %v5539, %v5770
  %v5818 = vadd.f32 %v5540, %v5772
  %v5819 = vadd.f32 %v5541, %v5811
  %v5820 = vadd.f32 %v5542, %v5813
  %v5821 = vxor.u32 %v5817, 2147483648
  %v5822 = vxor.u32 %v5818, 2147483648
  %v5823 = vxor.u32 %v5819, 2147483648
  %v5824 = vmul.f32 %v5821, 1.442695
  %v5825 = vpow.pop %v5824
  %v5826 = vmul.f32 %v5822, 1.442695
  %v5827 = vpow.pop %v5826
  %v5828 = vmul.f32 %v5823, 1.442695
  %v5829 = vpow.pop %v5828
  %v5830 = vadd.f32 %v5825, 1.0
  %v5831 = vadd.f32 %v5827, 1.0
  %v5832 = vadd.f32 %v5829, 1.0
  %v5833 = vrcp.pop %v5830
  %v5834 = vmul.f32 1.0, %v5833
  %v5835 = vrcp.pop %v5831
  %v5836 = vmul.f32 1.0, %v5835
  %v5837 = vrcp.pop %v5832
  %v5838 = vmul.f32 1.0, %v5837
  %v5839 = vtanh.pop %v5820
  %v5840 = vmul.f32 %v5836, %v5534
  %v5841 = vmul.f32 %v5834, %v5839
  %v5842 = vadd.f32 %v5840, %v5841
  %v5843 = vtanh.pop %v5842
  %v5844 = vmul.f32 %v5838, %v5843
  %v5845 = vpack.c.bf16 %v5844, %v5844
  %5846 = vst [vmem:[%s4 + $0x18] sm:$0xf] %v5845
  %v5847 = vld [vmem:[#allocation2 + $0xe0] sm:$0xff]
  %v5848 = vld [vmem:[#allocation2 + $0xe8] sm:$0xff]
  %v5849 = vld [vmem:[#allocation2 + $0xf0] sm:$0xff]
  %v5850 = vld [vmem:[#allocation2 + $0xf8] sm:$0xff]
  %v5851 = vld [vmem:[%s3694] sm:$0xff]
  %v5852 = vld [vmem:[%s3694 + $0x8] sm:$0xff]
  %v5853 = vld [vmem:[%s3694 + $0x10] sm:$0xff]
  %v5854 = vld [vmem:[%s3694 + $0x18] sm:$0xff]
  %v5855 = vld [vmem:[%s3694 + $0x20] sm:$0xff]
  %v5856 = vld [vmem:[%s3694 + $0x28] sm:$0xff]
  %v5857 = vld [vmem:[%s3694 + $0x30] sm:$0xff]
  %v5858 = vld [vmem:[%s3694 + $0x38] sm:$0xff]
  %v5859 = vld [vmem:[%s3694 + $0x40] sm:$0xff]
  %v5860 = vld [vmem:[%s3694 + $0x48] sm:$0xff]
  %v5861 = vld [vmem:[%s3694 + $0x50] sm:$0xff]
  %v5862 = vld [vmem:[%s3694 + $0x58] sm:$0xff]
  %v5863 = vld [vmem:[%s3694 + $0x60] sm:$0xff]
  %v5864 = vld [vmem:[%s3694 + $0x68] sm:$0xff]
  %v5865 = vld [vmem:[%s3694 + $0x70] sm:$0xff]
  %v5866 = vld [vmem:[%s3694 + $0x78] sm:$0xff]
  %v5867 = vld [vmem:[%s3694 + $0x80] sm:$0xff]
  %v5868 = vld [vmem:[%s3694 + $0x88] sm:$0xff]
  %v5869 = vld [vmem:[%s3694 + $0x90] sm:$0xff]
  %v5870 = vld [vmem:[%s3694 + $0x98] sm:$0xff]
  %v5871 = vld [vmem:[%s3694 + $0xa0] sm:$0xff]
  %v5872 = vld [vmem:[%s3694 + $0xa8] sm:$0xff]
  %v5873 = vld [vmem:[%s3694 + $0xb0] sm:$0xff]
  %v5874 = vld [vmem:[%s3694 + $0xb8] sm:$0xff]
  %v5875 = vld [vmem:[%s3694 + $0xc0] sm:$0xff]
  %v5876 = vld [vmem:[%s3694 + $0xc8] sm:$0xff]
  %v5877 = vld [vmem:[%s3694 + $0xd0] sm:$0xff]
  %v5878 = vld [vmem:[%s3694 + $0xd8] sm:$0xff]
  %v5879 = vld [vmem:[%s3694 + $0xe0] sm:$0xff]
  %v5880 = vld [vmem:[%s3694 + $0xe8] sm:$0xff]
  %v5881 = vld [vmem:[%s3694 + $0xf0] sm:$0xff]
  %v5882 = vld [vmem:[%s3694 + $0xf8] sm:$0xff]
  %v5915 = vunpack.c.l.b16 %v5851
  %v5916 = vunpack.c.h.b16 %v5851
  %v5917 = vunpack.c.l.b16 %v5852
  %v5918 = vunpack.c.h.b16 %v5852
  %v5919 = vunpack.c.l.b16 %v5853
  %v5920 = vunpack.c.h.b16 %v5853
  %v5921 = vunpack.c.l.b16 %v5854
  %v5922 = vunpack.c.h.b16 %v5854
  %v5923 = vunpack.c.l.b16 %v5855
  %v5924 = vunpack.c.h.b16 %v5855
  %v5925 = vunpack.c.l.b16 %v5856
  %v5926 = vunpack.c.h.b16 %v5856
  %v5927 = vunpack.c.l.b16 %v5857
  %v5928 = vunpack.c.h.b16 %v5857
  %v5929 = vunpack.c.l.b16 %v5858
  %v5930 = vunpack.c.h.b16 %v5858
  %v5931 = vunpack.c.l.b16 %v5859
  %v5932 = vunpack.c.h.b16 %v5859
  %v5933 = vunpack.c.l.b16 %v5860
  %v5934 = vunpack.c.h.b16 %v5860
  %v5935 = vunpack.c.l.b16 %v5861
  %v5936 = vunpack.c.h.b16 %v5861
  %v5937 = vunpack.c.l.b16 %v5862
  %v5938 = vunpack.c.h.b16 %v5862
  %v5939 = vunpack.c.l.b16 %v5863
  %v5940 = vunpack.c.h.b16 %v5863
  %v5941 = vunpack.c.l.b16 %v5864
  %v5942 = vunpack.c.h.b16 %v5864
  %v5943 = vunpack.c.l.b16 %v5865
  %v5944 = vunpack.c.h.b16 %v5865
  %v5945 = vunpack.c.l.b16 %v5866
  %v5946 = vunpack.c.h.b16 %v5866
  %v5947 = vunpack.c.l.b16 %v5867
  %v5948 = vunpack.c.h.b16 %v5867
  %v5949 = vunpack.c.l.b16 %v5868
  %v5950 = vunpack.c.h.b16 %v5868
  %v5951 = vunpack.c.l.b16 %v5869
  %v5952 = vunpack.c.h.b16 %v5869
  %v5953 = vunpack.c.l.b16 %v5870
  %v5954 = vunpack.c.h.b16 %v5870
  %v5955 = vunpack.c.l.b16 %v5871
  %v5956 = vunpack.c.h.b16 %v5871
  %v5957 = vunpack.c.l.b16 %v5872
  %v5958 = vunpack.c.h.b16 %v5872
  %v5959 = vunpack.c.l.b16 %v5873
  %v5960 = vunpack.c.h.b16 %v5873
  %v5961 = vunpack.c.l.b16 %v5874
  %v5962 = vunpack.c.h.b16 %v5874
  %v5963 = vunpack.c.l.b16 %v5875
  %v5964 = vunpack.c.h.b16 %v5875
  %v5965 = vunpack.c.l.b16 %v5876
  %v5966 = vunpack.c.h.b16 %v5876
  %v5967 = vunpack.c.l.b16 %v5877
  %v5968 = vunpack.c.h.b16 %v5877
  %v5969 = vunpack.c.l.b16 %v5878
  %v5970 = vunpack.c.h.b16 %v5878
  %v5971 = vunpack.c.l.b16 %v5879
  %v5972 = vunpack.c.h.b16 %v5879
  %v5973 = vunpack.c.l.b16 %v5880
  %v5974 = vunpack.c.h.b16 %v5880
  %v5975 = vunpack.c.l.b16 %v5881
  %v5976 = vunpack.c.h.b16 %v5881
  %v5977 = vunpack.c.l.b16 %v5882
  %v5978 = vunpack.c.h.b16 %v5882
  %v5979 = vpack.c.b16 %v5919, %v5915
  %v5980 = vpack.c.b16 %v5920, %v5916
  %v5981 = vpack.c.b16 %v5921, %v5917
  %v5982 = vpack.c.b16 %v5922, %v5918
  %v5983 = vpack.c.b16 %v5927, %v5923
  %v5984 = vpack.c.b16 %v5928, %v5924
  %v5985 = vpack.c.b16 %v5929, %v5925
  %v5986 = vpack.c.b16 %v5930, %v5926
  %v5987 = vpack.c.b16 %v5935, %v5931
  %v5988 = vpack.c.b16 %v5936, %v5932
  %v5989 = vpack.c.b16 %v5937, %v5933
  %v5990 = vpack.c.b16 %v5938, %v5934
  %v5991 = vpack.c.b16 %v5943, %v5939
  %v5992 = vpack.c.b16 %v5944, %v5940
  %v5993 = vpack.c.b16 %v5945, %v5941
  %v5994 = vpack.c.b16 %v5946, %v5942
  %v5995 = vpack.c.b16 %v5951, %v5947
  %v5996 = vpack.c.b16 %v5952, %v5948
  %v5997 = vpack.c.b16 %v5953, %v5949
  %v5998 = vpack.c.b16 %v5954, %v5950
  %v5999 = vpack.c.b16 %v5959, %v5955
  %v6000 = vpack.c.b16 %v5960, %v5956
  %v6001 = vpack.c.b16 %v5961, %v5957
  %v6002 = vpack.c.b16 %v5962, %v5958
  %v6003 = vpack.c.b16 %v5967, %v5963
  %v6004 = vpack.c.b16 %v5968, %v5964
  %v6005 = vpack.c.b16 %v5969, %v5965
  %v6006 = vpack.c.b16 %v5970, %v5966
  %v6007 = vpack.c.b16 %v5975, %v5971
  %v6008 = vpack.c.b16 %v5976, %v5972
  %v6009 = vpack.c.b16 %v5977, %v5973
  %v6010 = vpack.c.b16 %v5978, %v5974
  %6043 = vmatprep.subr.bf16.mxu0 %v5980
  %6044 = vmatpush1.bf16.msra.mxu0 %v5979
  %6045 = vmatprep.subr.bf16.mxu0 %v5984
  %6046 = vmatpush1.bf16.msra.mxu0 %v5983
  %6047 = vmatprep.subr.bf16.mxu0 %v5988
  %6048 = vmatpush1.bf16.msra.mxu0 %v5987
  %6049 = vmatprep.subr.bf16.mxu0 %v5992
  %6050 = vmatpush1.bf16.msra.mxu0 %v5991
  %6051 = vmatprep.subr.bf16.mxu0 %v5996
  %6052 = vmatpush1.bf16.msra.mxu0 %v5995
  %6053 = vmatprep.subr.bf16.mxu0 %v6000
  %6054 = vmatpush1.bf16.msra.mxu0 %v5999
  %6055 = vmatprep.subr.bf16.mxu0 %v6004
  %6056 = vmatpush1.bf16.msra.mxu0 %v6003
  %6057 = vmatprep.subr.bf16.mxu0 %v6008
  %6058 = vmatpush1.bf16.msra.mxu0 %v6007
  %6059 = vmatprep.subr.bf16.mxu0 0
  %6060 = vmatpush1.bf16.msra.mxu0 0
  %6061 = vmatprep.subr.bf16.mxu0 0
  %6062 = vmatpush1.bf16.msra.mxu0 0
  %6063 = vmatprep.subr.bf16.mxu0 0
  %6064 = vmatpush1.bf16.msra.mxu0 0
  %6065 = vmatprep.subr.bf16.mxu0 0
  %6066 = vmatpush1.bf16.msra.mxu0 0
  %6067 = vmatprep.subr.bf16.mxu0 0
  %6068 = vmatpush1.bf16.msra.mxu0 0
  %6069 = vmatprep.subr.bf16.mxu0 0
  %6070 = vmatpush1.bf16.msra.mxu0 0
  %6071 = vmatprep.subr.bf16.mxu0 0
  %6072 = vmatpush1.bf16.msra.mxu0 0
  %6073 = vmatprep.subr.bf16.mxu0 0
  %6074 = vmatpush1.bf16.msra.mxu0 0
  %6075 = vmatprep.mubr.bf16.mxu0 0
  %6076 = vmatmul.mubr.bf16.gmra.mrb[0].mxu0 %v5845
  %v6077 = vpop.f32.mrb[0].mxu0
  %v6078 = vadd.f32 0.0, %v6077
  %v6079 = vpop.f32.mrb[0].mxu0
  %v6080 = vadd.f32 0.0, %v6079
  %v6081 = vpop.f32.mrb[0].mxu0
  %v6082 = vpop.f32.mrb[0].mxu0
  %6083 = vdwg.mxu0
  %6084 = vmatprep.subr.bf16.mxu0 %v5982
  %6085 = vmatpush1.bf16.msra.mxu0 %v5981
  %6086 = vmatprep.subr.bf16.mxu0 %v5986
  %6087 = vmatpush1.bf16.msra.mxu0 %v5985
  %6088 = vmatprep.subr.bf16.mxu0 %v5990
  %6089 = vmatpush1.bf16.msra.mxu0 %v5989
  %6090 = vmatprep.subr.bf16.mxu0 %v5994
  %6091 = vmatpush1.bf16.msra.mxu0 %v5993
  %6092 = vmatprep.subr.bf16.mxu0 %v5998
  %6093 = vmatpush1.bf16.msra.mxu0 %v5997
  %6094 = vmatprep.subr.bf16.mxu0 %v6002
  %6095 = vmatpush1.bf16.msra.mxu0 %v6001
  %6096 = vmatprep.subr.bf16.mxu0 %v6006
  %6097 = vmatpush1.bf16.msra.mxu0 %v6005
  %6098 = vmatprep.subr.bf16.mxu0 %v6010
  %6099 = vmatpush1.bf16.msra.mxu0 %v6009
  %6100 = vmatprep.subr.bf16.mxu0 0
  %6101 = vmatpush1.bf16.msra.mxu0 0
  %6102 = vmatprep.subr.bf16.mxu0 0
  %6103 = vmatpush1.bf16.msra.mxu0 0
  %6104 = vmatprep.subr.bf16.mxu0 0
  %6105 = vmatpush1.bf16.msra.mxu0 0
  %6106 = vmatprep.subr.bf16.mxu0 0
  %6107 = vmatpush1.bf16.msra.mxu0 0
  %6108 = vmatprep.subr.bf16.mxu0 0
  %6109 = vmatpush1.bf16.msra.mxu0 0
  %6110 = vmatprep.subr.bf16.mxu0 0
  %6111 = vmatpush1.bf16.msra.mxu0 0
  %6112 = vmatprep.subr.bf16.mxu0 0
  %6113 = vmatpush1.bf16.msra.mxu0 0
  %6114 = vmatprep.subr.bf16.mxu0 0
  %6115 = vmatpush1.bf16.msra.mxu0 0
  %6116 = vmatprep.mubr.bf16.mxu0 0
  %6117 = vmatmul.mubr.bf16.gmra.mrb[0].mxu0 %v5845
  %v6118 = vpop.f32.mrb[0].mxu0
  %v6119 = vadd.f32 0.0, %v6118
  %v6120 = vpop.f32.mrb[0].mxu0
  %v6121 = vadd.f32 0.0, %v6120
  %v6122 = vpop.f32.mrb[0].mxu0
  %v6123 = vpop.f32.mrb[0].mxu0
  %6124 = vdwg.mxu0
  %v6125 = vadd.f32 %v5847, %v6078
  %v6126 = vadd.f32 %v5848, %v6080
  %v6127 = vadd.f32 %v5849, %v6119
  %v6128 = vadd.f32 %v5850, %v6121
  %v6129 = vxor.u32 %v6125, 2147483648
  %v6130 = vxor.u32 %v6126, 2147483648
  %v6131 = vxor.u32 %v6127, 2147483648
  %v6132 = vmul.f32 %v6129, 1.442695
  %v6133 = vpow.pop %v6132
  %v6134 = vmul.f32 %v6130, 1.442695
  %v6135 = vpow.pop %v6134
  %v6136 = vmul.f32 %v6131, 1.442695
  %v6137 = vpow.pop %v6136
  %v6138 = vadd.f32 %v6133, 1.0
  %v6139 = vadd.f32 %v6135, 1.0
  %v6140 = vadd.f32 %v6137, 1.0
  %v6141 = vrcp.pop %v6138
  %v6142 = vmul.f32 1.0, %v6141
  %v6143 = vrcp.pop %v6139
  %v6144 = vmul.f32 1.0, %v6143
  %v6145 = vrcp.pop %v6140
  %v6146 = vmul.f32 1.0, %v6145
  %v6147 = vtanh.pop %v6128
  %v6148 = vmul.f32 %v6144, %v5842
  %v6149 = vmul.f32 %v6142, %v6147
  %v6150 = vadd.f32 %v6148, %v6149
  %v6151 = vtanh.pop %v6150
  %v6152 = vmul.f32 %v6146, %v6151
  %v6153 = vpack.c.bf16 %v6152, %v6152
  %6154 = vst [vmem:[%s4 + $0x1c] sm:$0xf] %v6153
  %v6155 = vld [vmem:[#allocation2 + $0x100] sm:$0xff]
  %v6156 = vld [vmem:[#allocation2 + $0x108] sm:$0xff]
  %v6157 = vld [vmem:[#allocation2 + $0x110] sm:$0xff]
  %v6158 = vld [vmem:[#allocation2 + $0x118] sm:$0xff]
  %v6159 = vld [vmem:[%s3694] sm:$0xff]
  %v6160 = vld [vmem:[%s3694 + $0x8] sm:$0xff]
  %v6161 = vld [vmem:[%s3694 + $0x10] sm:$0xff]
  %v6162 = vld [vmem:[%s3694 + $0x18] sm:$0xff]
  %v6163 = vld [vmem:[%s3694 + $0x20] sm:$0xff]
  %v6164 = vld [vmem:[%s3694 + $0x28] sm:$0xff]
  %v6165 = vld [vmem:[%s3694 + $0x30] sm:$0xff]
  %v6166 = vld [vmem:[%s3694 + $0x38] sm:$0xff]
  %v6167 = vld [vmem:[%s3694 + $0x40] sm:$0xff]
  %v6168 = vld [vmem:[%s3694 + $0x48] sm:$0xff]
  %v6169 = vld [vmem:[%s3694 + $0x50] sm:$0xff]
  %v6170 = vld [vmem:[%s3694 + $0x58] sm:$0xff]
  %v6171 = vld [vmem:[%s3694 + $0x60] sm:$0xff]
  %v6172 = vld [vmem:[%s3694 + $0x68] sm:$0xff]
  %v6173 = vld [vmem:[%s3694 + $0x70] sm:$0xff]
  %v6174 = vld [vmem:[%s3694 + $0x78] sm:$0xff]
  %v6175 = vld [vmem:[%s3694 + $0x80] sm:$0xff]
  %v6176 = vld [vmem:[%s3694 + $0x88] sm:$0xff]
  %v6177 = vld [vmem:[%s3694 + $0x90] sm:$0xff]
  %v6178 = vld [vmem:[%s3694 + $0x98] sm:$0xff]
  %v6179 = vld [vmem:[%s3694 + $0xa0] sm:$0xff]
  %v6180 = vld [vmem:[%s3694 + $0xa8] sm:$0xff]
  %v6181 = vld [vmem:[%s3694 + $0xb0] sm:$0xff]
  %v6182 = vld [vmem:[%s3694 + $0xb8] sm:$0xff]
  %v6183 = vld [vmem:[%s3694 + $0xc0] sm:$0xff]
  %v6184 = vld [vmem:[%s3694 + $0xc8] sm:$0xff]
  %v6185 = vld [vmem:[%s3694 + $0xd0] sm:$0xff]
  %v6186 = vld [vmem:[%s3694 + $0xd8] sm:$0xff]
  %v6187 = vld [vmem:[%s3694 + $0xe0] sm:$0xff]
  %v6188 = vld [vmem:[%s3694 + $0xe8] sm:$0xff]
  %v6189 = vld [vmem:[%s3694 + $0xf0] sm:$0xff]
  %v6190 = vld [vmem:[%s3694 + $0xf8] sm:$0xff]
  %v6223 = vunpack.c.l.b16 %v6159
  %v6224 = vunpack.c.h.b16 %v6159
  %v6225 = vunpack.c.l.b16 %v6160
  %v6226 = vunpack.c.h.b16 %v6160
  %v6227 = vunpack.c.l.b16 %v6161
  %v6228 = vunpack.c.h.b16 %v6161
  %v6229 = vunpack.c.l.b16 %v6162
  %v6230 = vunpack.c.h.b16 %v6162
  %v6231 = vunpack.c.l.b16 %v6163
  %v6232 = vunpack.c.h.b16 %v6163
  %v6233 = vunpack.c.l.b16 %v6164
  %v6234 = vunpack.c.h.b16 %v6164
  %v6235 = vunpack.c.l.b16 %v6165
  %v6236 = vunpack.c.h.b16 %v6165
  %v6237 = vunpack.c.l.b16 %v6166
  %v6238 = vunpack.c.h.b16 %v6166
  %v6239 = vunpack.c.l.b16 %v6167
  %v6240 = vunpack.c.h.b16 %v6167
  %v6241 = vunpack.c.l.b16 %v6168
  %v6242 = vunpack.c.h.b16 %v6168
  %v6243 = vunpack.c.l.b16 %v6169
  %v6244 = vunpack.c.h.b16 %v6169
  %v6245 = vunpack.c.l.b16 %v6170
  %v6246 = vunpack.c.h.b16 %v6170
  %v6247 = vunpack.c.l.b16 %v6171
  %v6248 = vunpack.c.h.b16 %v6171
  %v6249 = vunpack.c.l.b16 %v6172
  %v6250 = vunpack.c.h.b16 %v6172
  %v6251 = vunpack.c.l.b16 %v6173
  %v6252 = vunpack.c.h.b16 %v6173
  %v6253 = vunpack.c.l.b16 %v6174
  %v6254 = vunpack.c.h.b16 %v6174
  %v6255 = vunpack.c.l.b16 %v6175
  %v6256 = vunpack.c.h.b16 %v6175
  %v6257 = vunpack.c.l.b16 %v6176
  %v6258 = vunpack.c.h.b16 %v6176
  %v6259 = vunpack.c.l.b16 %v6177
  %v6260 = vunpack.c.h.b16 %v6177
  %v6261 = vunpack.c.l.b16 %v6178
  %v6262 = vunpack.c.h.b16 %v6178
  %v6263 = vunpack.c.l.b16 %v6179
  %v6264 = vunpack.c.h.b16 %v6179
  %v6265 = vunpack.c.l.b16 %v6180
  %v6266 = vunpack.c.h.b16 %v6180
  %v6267 = vunpack.c.l.b16 %v6181
  %v6268 = vunpack.c.h.b16 %v6181
  %v6269 = vunpack.c.l.b16 %v6182
  %v6270 = vunpack.c.h.b16 %v6182
  %v6271 = vunpack.c.l.b16 %v6183
  %v6272 = vunpack.c.h.b16 %v6183
  %v6273 = vunpack.c.l.b16 %v6184
  %v6274 = vunpack.c.h.b16 %v6184
  %v6275 = vunpack.c.l.b16 %v6185
  %v6276 = vunpack.c.h.b16 %v6185
  %v6277 = vunpack.c.l.b16 %v6186
  %v6278 = vunpack.c.h.b16 %v6186
  %v6279 = vunpack.c.l.b16 %v6187
  %v6280 = vunpack.c.h.b16 %v6187
  %v6281 = vunpack.c.l.b16 %v6188
  %v6282 = vunpack.c.h.b16 %v6188
  %v6283 = vunpack.c.l.b16 %v6189
  %v6284 = vunpack.c.h.b16 %v6189
  %v6285 = vunpack.c.l.b16 %v6190
  %v6286 = vunpack.c.h.b16 %v6190
  %v6287 = vpack.c.b16 %v6227, %v6223
  %v6288 = vpack.c.b16 %v6228, %v6224
  %v6289 = vpack.c.b16 %v6229, %v6225
  %v6290 = vpack.c.b16 %v6230, %v6226
  %v6291 = vpack.c.b16 %v6235, %v6231
  %v6292 = vpack.c.b16 %v6236, %v6232
  %v6293 = vpack.c.b16 %v6237, %v6233
  %v6294 = vpack.c.b16 %v6238, %v6234
  %v6295 = vpack.c.b16 %v6243, %v6239
  %v6296 = vpack.c.b16 %v6244, %v6240
  %v6297 = vpack.c.b16 %v6245, %v6241
  %v6298 = vpack.c.b16 %v6246, %v6242
  %v6299 = vpack.c.b16 %v6251, %v6247
  %v6300 = vpack.c.b16 %v6252, %v6248
  %v6301 = vpack.c.b16 %v6253, %v6249
  %v6302 = vpack.c.b16 %v6254, %v6250
  %v6303 = vpack.c.b16 %v6259, %v6255
  %v6304 = vpack.c.b16 %v6260, %v6256
  %v6305 = vpack.c.b16 %v6261, %v6257
  %v6306 = vpack.c.b16 %v6262, %v6258
  %v6307 = vpack.c.b16 %v6267, %v6263
  %v6308 = vpack.c.b16 %v6268, %v6264
  %v6309 = vpack.c.b16 %v6269, %v6265
  %v6310 = vpack.c.b16 %v6270, %v6266
  %v6311 = vpack.c.b16 %v6275, %v6271
  %v6312 = vpack.c.b16 %v6276, %v6272
  %v6313 = vpack.c.b16 %v6277, %v6273
  %v6314 = vpack.c.b16 %v6278, %v6274
  %v6315 = vpack.c.b16 %v6283, %v6279
  %v6316 = vpack.c.b16 %v6284, %v6280
  %v6317 = vpack.c.b16 %v6285, %v6281
  %v6318 = vpack.c.b16 %v6286, %v6282
  %6351 = vmatprep.subr.bf16.mxu0 %v6288
  %6352 = vmatpush1.bf16.msra.mxu0 %v6287
  %6353 = vmatprep.subr.bf16.mxu0 %v6292
  %6354 = vmatpush1.bf16.msra.mxu0 %v6291
  %6355 = vmatprep.subr.bf16.mxu0 %v6296
  %6356 = vmatpush1.bf16.msra.mxu0 %v6295
  %6357 = vmatprep.subr.bf16.mxu0 %v6300
  %6358 = vmatpush1.bf16.msra.mxu0 %v6299
  %6359 = vmatprep.subr.bf16.mxu0 %v6304
  %6360 = vmatpush1.bf16.msra.mxu0 %v6303
  %6361 = vmatprep.subr.bf16.mxu0 %v6308
  %6362 = vmatpush1.bf16.msra.mxu0 %v6307
  %6363 = vmatprep.subr.bf16.mxu0 %v6312
  %6364 = vmatpush1.bf16.msra.mxu0 %v6311
  %6365 = vmatprep.subr.bf16.mxu0 %v6316
  %6366 = vmatpush1.bf16.msra.mxu0 %v6315
  %6367 = vmatprep.subr.bf16.mxu0 0
  %6368 = vmatpush1.bf16.msra.mxu0 0
  %6369 = vmatprep.subr.bf16.mxu0 0
  %6370 = vmatpush1.bf16.msra.mxu0 0
  %6371 = vmatprep.subr.bf16.mxu0 0
  %6372 = vmatpush1.bf16.msra.mxu0 0
  %6373 = vmatprep.subr.bf16.mxu0 0
  %6374 = vmatpush1.bf16.msra.mxu0 0
  %6375 = vmatprep.subr.bf16.mxu0 0
  %6376 = vmatpush1.bf16.msra.mxu0 0
  %6377 = vmatprep.subr.bf16.mxu0 0
  %6378 = vmatpush1.bf16.msra.mxu0 0
  %6379 = vmatprep.subr.bf16.mxu0 0
  %6380 = vmatpush1.bf16.msra.mxu0 0
  %6381 = vmatprep.subr.bf16.mxu0 0
  %6382 = vmatpush1.bf16.msra.mxu0 0
  %6383 = vmatprep.mubr.bf16.mxu0 0
  %6384 = vmatmul.mubr.bf16.gmra.mrb[0].mxu0 %v6153
  %v6385 = vpop.f32.mrb[0].mxu0
  %v6386 = vadd.f32 0.0, %v6385
  %v6387 = vpop.f32.mrb[0].mxu0
  %v6388 = vadd.f32 0.0, %v6387
  %v6389 = vpop.f32.mrb[0].mxu0
  %v6390 = vpop.f32.mrb[0].mxu0
  %6391 = vdwg.mxu0
  %6392 = vmatprep.subr.bf16.mxu0 %v6290
  %6393 = vmatpush1.bf16.msra.mxu0 %v6289
  %6394 = vmatprep.subr.bf16.mxu0 %v6294
  %6395 = vmatpush1.bf16.msra.mxu0 %v6293
  %6396 = vmatprep.subr.bf16.mxu0 %v6298
  %6397 = vmatpush1.bf16.msra.mxu0 %v6297
  %6398 = vmatprep.subr.bf16.mxu0 %v6302
  %6399 = vmatpush1.bf16.msra.mxu0 %v6301
  %6400 = vmatprep.subr.bf16.mxu0 %v6306
  %6401 = vmatpush1.bf16.msra.mxu0 %v6305
  %6402 = vmatprep.subr.bf16.mxu0 %v6310
  %6403 = vmatpush1.bf16.msra.mxu0 %v6309
  %6404 = vmatprep.subr.bf16.mxu0 %v6314
  %6405 = vmatpush1.bf16.msra.mxu0 %v6313
  %6406 = vmatprep.subr.bf16.mxu0 %v6318
  %6407 = vmatpush1.bf16.msra.mxu0 %v6317
  %6408 = vmatprep.subr.bf16.mxu0 0
  %6409 = vmatpush1.bf16.msra.mxu0 0
  %6410 = vmatprep.subr.bf16.mxu0 0
  %6411 = vmatpush1.bf16.msra.mxu0 0
  %6412 = vmatprep.subr.bf16.mxu0 0
  %6413 = vmatpush1.bf16.msra.mxu0 0
  %6414 = vmatprep.subr.bf16.mxu0 0
  %6415 = vmatpush1.bf16.msra.mxu0 0
  %6416 = vmatprep.subr.bf16.mxu0 0
  %6417 = vmatpush1.bf16.msra.mxu0 0
  %6418 = vmatprep.subr.bf16.mxu0 0
  %6419 = vmatpush1.bf16.msra.mxu0 0
  %6420 = vmatprep.subr.bf16.mxu0 0
  %6421 = vmatpush1.bf16.msra.mxu0 0
  %6422 = vmatprep.subr.bf16.mxu0 0
  %6423 = vmatpush1.bf16.msra.mxu0 0
  %6424 = vmatprep.mubr.bf16.mxu0 0
  %6425 = vmatmul.mubr.bf16.gmra.mrb[0].mxu0 %v6153
  %v6426 = vpop.f32.mrb[0].mxu0
  %v6427 = vadd.f32 0.0, %v6426
  %v6428 = vpop.f32.mrb[0].mxu0
  %v6429 = vadd.f32 0.0, %v6428
  %v6430 = vpop.f32.mrb[0].mxu0
  %v6431 = vpop.f32.mrb[0].mxu0
  %6432 = vdwg.mxu0
  %v6433 = vadd.f32 %v6155, %v6386
  %v6434 = vadd.f32 %v6156, %v6388
  %v6435 = vadd.f32 %v6157, %v6427
  %v6436 = vadd.f32 %v6158, %v6429
  %v6437 = vxor.u32 %v6433, 2147483648
  %v6438 = vxor.u32 %v6434, 2147483648
  %v6439 = vxor.u32 %v6435, 2147483648
  %v6440 = vmul.f32 %v6437, 1.442695
  %v6441 = vpow.pop %v6440
  %v6442 = vmul.f32 %v6438, 1.442695
  %v6443 = vpow.pop %v6442
  %v6444 = vmul.f32 %v6439, 1.442695
  %v6445 = vpow.pop %v6444
  %v6446 = vadd.f32 %v6441, 1.0
  %v6447 = vadd.f32 %v6443, 1.0
  %v6448 = vadd.f32 %v6445, 1.0
  %v6449 = vrcp.pop %v6446
  %v6450 = vmul.f32 1.0, %v6449
  %v6451 = vrcp.pop %v6447
  %v6452 = vmul.f32 1.0, %v6451
  %v6453 = vrcp.pop %v6448
  %v6454 = vmul.f32 1.0, %v6453
  %v6455 = vtanh.pop %v6436
  %v6456 = vmul.f32 %v6452, %v6150
  %v6457 = vmul.f32 %v6450, %v6455
  %v6458 = vadd.f32 %v6456, %v6457
  %v6459 = vtanh.pop %v6458
  %v6460 = vmul.f32 %v6454, %v6459
  %v6461 = vpack.c.bf16 %v6460, %v6460
  %6462 = vst [vmem:[%s4 + $0x20] sm:$0xf] %v6461
  // Predicated region
  $region18: #{cnn_to_rnn_forward.6} parent=0 // pred_check
    _
  $region19: #{cnn_to_rnn_forward.6} parent=0 // pred_check_branch
    %6464 = sbr.rel (0) target = $region21
  $region20: #{cnn_to_rnn_forward.6} parent=0 // pred_region
    _
  $region21: #{cnn_to_rnn_forward.6} parent=0 // pred_fallthru
    _
  // Predicated region
  $region22: #{cnn_to_rnn_forward.6} parent=0 // pred_check
    _
  $region23: #{cnn_to_rnn_forward.6} parent=0 // pred_check_branch
    %6466 = sbr.rel (0) target = $region25
  $region24: #{cnn_to_rnn_forward.6} parent=0 // pred_region
    _
  $region25: #{cnn_to_rnn_forward.6} parent=0 // pred_fallthru
    _

</llo_original>
